<compile_context>
chip_gen: v7x
topology: tpu7x:2x2x1
jax: 0.10.0
libtpu: 0.0.40
codegen_flags: <defaults>
</compile_context>

<pallas_src>
import functools
import math

import jax
import jax.numpy as jnp
import numpy as np
from jax import lax
from jax.experimental import pallas as pl
from jax.experimental.pallas import tpu as pltpu

NUM_HEADS = 4
HEAD_DIM = 16
C = 64                      # feature channels
GRID_HW = 8                 # backbone output spatial (8x8)
TOKENS = GRID_HW * GRID_HW  # 64 tokens
IN_H = IN_W = 64            # input spatial (backbone /8 -> 8x8, matches pos_encodings)
HW_OUT = IN_H * IN_W        # 4096 output pixels


# ------------------------- init-block conv1 kernel --------------------------

def _mm_bias_relu_kernel(x_ref, w_ref, b_ref, o_ref):
    """o = relu(x @ w + b); BatchNorm pre-folded into (w, b); bf16 in, f32 accumulate."""
    y = jnp.dot(x_ref[...], w_ref[...], preferred_element_type=jnp.float32)
    o_ref[...] = jnp.maximum(y + b_ref[...], 0.0)


def _pick_tile_m(m, cap=1024):
    if m <= cap:
        return m
    for t in (1024, 512, 256, 128, 64, 16, 8):
        if m % t == 0:
            return t
    return m


def mm_bias_relu(x, w, b):
    m, kd = x.shape
    n = w.shape[1]
    tm = _pick_tile_m(m)
    return pl.pallas_call(
        _mm_bias_relu_kernel,
        out_shape=jax.ShapeDtypeStruct((m, n), jnp.float32),
        grid=(m // tm,),
        in_specs=[
            pl.BlockSpec((tm, kd), lambda i: (i, 0)),
            pl.BlockSpec((kd, n), lambda i: (0, 0)),
            pl.BlockSpec((1, n), lambda i: (0, 0)),
        ],
        out_specs=pl.BlockSpec((tm, n), lambda i: (i, 0)),
        compiler_params=pltpu.CompilerParams(dimension_semantics=("parallel",)),
    )(x, w, b)


# ------------------- fused conv2 + attention + MLP + heads -------------------

def _fused_kernel(m2_ref, pos_ref, w2_ref, b2_ref,
                  wq_ref, bq_ref, wk_ref, bk_ref, wv_ref, bv_ref,
                  mask_ref,
                  wm1t_ref, bm1_ref, wm2t_ref, bm2_ref,
                  wh1_ref, bh1_ref, wh2_ref, bh2_ref,
                  mupt_ref, out_ref):
    f32, bf16 = jnp.float32, jnp.bfloat16

    # ---- init_block conv2 (im2col patches prepared on host): relu(m2 @ w2 + b2)
    tokens = jnp.dot(m2_ref[0], w2_ref[...], preferred_element_type=f32) + b2_ref[...]
    tokens = jnp.maximum(tokens, 0.0)                                  # (T, C) f32
    feat = (tokens + pos_ref[...]).astype(bf16)                        # (T, C)

    # ---- qkv projection (1/sqrt(head_dim) pre-folded into wq/bq on the host)
    q = jnp.dot(feat, wq_ref[...], preferred_element_type=f32) + bq_ref[...]
    k = jnp.dot(feat, wk_ref[...], preferred_element_type=f32) + bk_ref[...]
    v = jnp.dot(feat, wv_ref[...], preferred_element_type=f32) + bv_ref[...]

    # ---- packed 4-head attention: heads stacked along the sublane axis of Q.
    # mask[h*T + n, c] == 1 iff channel c belongs to head h (precomputed bf16 input).
    mask = mask_ref[...]                                               # (4T, C) bf16
    qb = q.astype(bf16)
    q_big = jnp.broadcast_to(qb[None], (NUM_HEADS, TOKENS, C)).reshape(
        NUM_HEADS * TOKENS, C) * mask                                  # (4T, C)
    # s[h*T+n, m] = <q_h[n], k_h[m]>  (non-head-h channels of q_big are zero)
    s = lax.dot_general(q_big, k.astype(bf16), (((1,), (1,)), ((), ())),
                        preferred_element_type=f32)                    # (4T, T)
    # row max == exact per-(head, query) max -> per-head softmax, no underflow risk
    s = s - jnp.max(s, axis=-1, keepdims=True)
    p = jnp.exp(s)
    den = jnp.sum(p, axis=-1, keepdims=True)                           # >= 1 (max term is exp(0))
    p = (p * pl.reciprocal(den, approx=True)).astype(bf16)
    val = jnp.dot(p, v.astype(bf16), preferred_element_type=f32)       # (4T, C)
    vm = val * mask                                                    # keep only own-head channels
    att = (vm[0:TOKENS] + vm[TOKENS:2 * TOKENS]
           + vm[2 * TOKENS:3 * TOKENS] + vm[3 * TOKENS:4 * TOKENS])    # (T, C)

    # ---- post-attention MLP, channel-major domain (BN folded into w/b on host).
    h1 = lax.dot_general(wm1t_ref[...], att.astype(bf16), (((1,), (1,)), ((), ())),
                         preferred_element_type=f32) + bm1_ref[...]
    h1 = jnp.maximum(h1, 0.0)                                          # (C, T)
    h2 = jnp.dot(wm2t_ref[...], h1.astype(bf16), preferred_element_type=f32) + bm2_ref[...]
    h2 = jnp.maximum(h2, 0.0)                                          # (C, T)

    # ---- reassociated heads + bilinear upsample:
    # interp(conv1x1(h2)) == conv1x1(interp(h2)), so apply the (2C, C) head conv on the
    # tiny 8x8 grid first, then a single (2C, T) x (T, HW_TILE) upsample matmul (M=128).
    g = jnp.dot(wh1_ref[...], h2.astype(bf16), preferred_element_type=f32)        # (2C, T)
    hh = jnp.dot(g.astype(bf16), mupt_ref[...], preferred_element_type=f32) + bh1_ref[...]
    hh = jnp.maximum(hh, 0.0)                                          # (2C, HW_TILE)
    out = jnp.dot(wh2_ref[...], hh.astype(bf16), preferred_element_type=f32) + bh2_ref[...]
    out_ref[0] = out                                                   # (2, HW_TILE): row0=seg, row1=corner


# ------------------------------- glue / params ------------------------------

def _bilinear_matrix(in_size, out_size):
    """1-D bilinear interpolation matrix matching F.interpolate(align_corners=False)."""
    scale = in_size / out_size
    idx = np.arange(out_size, dtype=np.float64)
    src = np.maximum((idx + 0.5) * scale - 0.5, 0.0)
    i0 = np.minimum(np.floor(src).astype(np.int64), in_size - 1)
    i1 = np.minimum(i0 + 1, in_size - 1)
    w1 = src - i0
    w0 = 1.0 - w1
    A = np.zeros((out_size, in_size), dtype=np.float64)
    A[np.arange(out_size), i0] += w0
    A[np.arange(out_size), i1] += w1
    return A


def init_params(key):
    keys = jax.random.split(key, 64)
    kit = iter(keys)

    def nrm(shape, scale=0.1):
        return scale * jax.random.normal(next(kit), shape, dtype=jnp.float32)

    def bn(c):
        g = 1.0 + 0.1 * jax.random.normal(next(kit), (c,), dtype=jnp.float32)
        b = 0.1 * jax.random.normal(next(kit), (c,), dtype=jnp.float32)
        m = 0.1 * jax.random.normal(next(kit), (c,), dtype=jnp.float32)
        v = 1.0 + jax.random.uniform(next(kit), (c,), dtype=jnp.float32)
        return (g, b, m, v)

    p = {}
    # init_block conv1: Conv2d(3, 64, k=1, s=4) -> stored (Cin_padded=8, 64), pad rows are zero
    w1 = nrm((3, C))
    p['w1'] = jnp.concatenate([w1, jnp.zeros((5, C), jnp.float32)], axis=0)
    p['b1'] = nrm((C,))
    p['bn1'] = bn(C)
    # init_block conv2: Conv2d(64, 64, k=3, s=2, p=1) -> im2col layout (ky, kx, cin) x cout
    p['w2'] = nrm((3, 3, C, C)).reshape(9 * C, C)
    p['b2'] = nrm((C,))
    p['bn2'] = bn(C)
    # positional encodings: torch (1, 64, 8, 8) NCHW -> token layout (1, TOKENS, C)
    pos_nchw = nrm((1, C, GRID_HW, GRID_HW), scale=0.5)
    p['pos'] = jnp.transpose(pos_nchw, (0, 2, 3, 1)).reshape(1, TOKENS, C)
    # qkv 1x1 conv
    p['wqkv'] = nrm((C, 3 * C))
    p['bqkv'] = nrm((3 * C,))
    # post-attention MLP (Conv1x1 block: two conv+BN+ReLU)
    p['mlp_w1'], p['mlp_b1'], p['mlp_bn1'] = nrm((C, C)), nrm((C,)), bn(C)
    p['mlp_w2'], p['mlp_b2'], p['mlp_bn2'] = nrm((C, C)), nrm((C,)), bn(C)
    # seg head (ConvMask)
    p['seg_w1'], p['seg_b1'], p['seg_bn1'] = nrm((C, C)), nrm((C,)), bn(C)
    p['seg_w2'], p['seg_b2'] = nrm((C, 1)), nrm((1,))
    # corner head (ConvMask)
    p['cor_w1'], p['cor_b1'], p['cor_bn1'] = nrm((C, C)), nrm((C,)), bn(C)
    p['cor_w2'], p['cor_b2'] = nrm((C, 1)), nrm((1,))
    # bilinear 8->64 upsample as a (4096, 64) matrix: kron of two 1-D interpolation matrices
    A = _bilinear_matrix(GRID_HW, IN_H)
    p['upsample_matrix'] = jnp.asarray(np.kron(A, A), dtype=jnp.float32)
    return p


def pack_params(p, eps=1e-5):
    """Host-side prep: fold BN into (w, b), fold 1/sqrt(d) into Wq, pre-transpose the
    channel-major weights, stack the two head convs, precompute the head mask, and
    cast every MXU operand to bf16 (accumulation stays f32 in-kernel)."""
    f32, bf16 = jnp.float32, jnp.bfloat16

    def fold(w, b, bnp):
        g, beta, mean, var = bnp
        s = g / jnp.sqrt(var + eps)
        return w * s[None, :], (b - mean) * s + beta

    pp = {}
    w1, b1 = fold(p['w1'], p['b1'], p['bn1'])
    pp['w1'], pp['b1'] = w1.astype(bf16), b1[None, :].astype(f32)
    w2, b2 = fold(p['w2'], p['b2'], p['bn2'])
    pp['w2'], pp['b2'] = w2.astype(bf16), b2[None, :].astype(f32)
    pp['pos'] = p['pos'].reshape(TOKENS, C).astype(f32)

    inv = 1.0 / math.sqrt(HEAD_DIM)
    wqkv, bqkv = p['wqkv'], p['bqkv']
    pp['wq'] = (wqkv[:, 0 * C:1 * C] * inv).astype(bf16)
    pp['bq'] = (bqkv[0 * C:1 * C] * inv)[None, :].astype(f32)
    pp['wk'] = wqkv[:, 1 * C:2 * C].astype(bf16)
    pp['bk'] = bqkv[1 * C:2 * C][None, :].astype(f32)
    pp['wv'] = wqkv[:, 2 * C:3 * C].astype(bf16)
    pp['bv'] = bqkv[2 * C:3 * C][None, :].astype(f32)

    # head membership mask: mask[h*TOKENS + n, c] = 1 iff channel c belongs to head h
    rows = np.arange(NUM_HEADS * TOKENS)[:, None] // TOKENS
    cols = np.arange(C)[None, :] // HEAD_DIM
    pp['mask'] = jnp.asarray((rows == cols).astype(np.float32), dtype=bf16)

    wm1, bm1 = fold(p['mlp_w1'], p['mlp_b1'], p['mlp_bn1'])
    wm2, bm2 = fold(p['mlp_w2'], p['mlp_b2'], p['mlp_bn2'])
    pp['wm1t'], pp['bm1'] = wm1.T.astype(bf16), bm1[:, None].astype(f32)
    pp['wm2t'], pp['bm2'] = wm2.T.astype(bf16), bm2[:, None].astype(f32)

    ws1, bs1 = fold(p['seg_w1'], p['seg_b1'], p['seg_bn1'])
    wc1, bc1 = fold(p['cor_w1'], p['cor_b1'], p['cor_bn1'])
    pp['wh1'] = jnp.concatenate([ws1.T, wc1.T], axis=0).astype(bf16)        # (2C, C)
    pp['bh1'] = jnp.concatenate([bs1, bc1], axis=0)[:, None].astype(f32)    # (2C, 1)
    z = jnp.zeros((C,), f32)
    wh2 = jnp.stack([jnp.concatenate([p['seg_w2'][:, 0], z]),
                     jnp.concatenate([z, p['cor_w2'][:, 0]])], axis=0)      # (2, 2C) block-diag
    pp['wh2'] = wh2.astype(bf16)
    pp['bh2'] = jnp.stack([p['seg_b2'], p['cor_b2']], axis=0).reshape(2, 1).astype(f32)

    # transposed upsample matrix (TOKENS, HW_OUT) in bf16.
    # TODO(synk): could exploit separability (two 8->64 1-D interpolation matmuls) instead
    # of the kron matrix if the MXU remains the binding unit after the reassociation.
    pp['mupt'] = p['upsample_matrix'].T.astype(bf16)
    return pp


def forward(pp, x_nchw):
    B = x_nchw.shape[0]
    bf16 = jnp.bfloat16
    x = jnp.transpose(x_nchw, (0, 2, 3, 1))                         # NHWC (B, 64, 64, 3)

    # TODO(synk): strided subsample / im2col patch extraction for the init-block convs is
    # plain XLA data rearrangement feeding the Pallas kernels (no clean BlockSpec form).
    # ---- init_block conv1: 1x1 stride-4 conv == subsample + pointwise matmul (bf16)
    xs = jnp.pad(x[:, ::4, ::4, :], ((0, 0), (0, 0), (0, 0), (0, 5))).astype(bf16)
    y1 = mm_bias_relu(xs.reshape(B * 16 * 16, 8), pp['w1'], pp['b1']).reshape(B, 16, 16, C)

    # ---- init_block conv2: im2col patches (bf16), matmul happens inside the fused kernel
    yp = jnp.pad(y1, ((0, 0), (1, 1), (1, 1), (0, 0)))              # (B, 18, 18, 64)
    taps = [yp[:, ky:ky + 16:2, kx:kx + 16:2, :] for ky in range(3) for kx in range(3)]
    m2 = jnp.stack(taps, axis=3).reshape(B, TOKENS, 9 * C).astype(bf16)

    # NT=1 for B>=2 (batch feeds megacore); keep NT=2 only at B==1 so a dual-TC part
    # still gets 2-way parallelism (the duplicated attention/MLP work is tiny).
    nt = 2 if B == 1 else 1
    hw_tile = HW_OUT // nt

    def _c(shape):
        return pl.BlockSpec(shape, lambda b, t: (0,) * len(shape))

    # advisory cost estimate (per-image MXU work dominated by the (2C,T)x(T,HW) matmul)
    f_pre = (2 * TOKENS * (9 * C) * C                         # conv2
             + 3 * 2 * TOKENS * C * C                         # q, k, v
             + 2 * (NUM_HEADS * TOKENS) * C * TOKENS          # scores
             + 2 * (NUM_HEADS * TOKENS) * TOKENS * C          # attn @ V
             + 2 * 2 * TOKENS * C * C                         # MLP
             + 2 * (2 * C) * C * TOKENS)                      # g = wh1 @ h2
    f_tile = 2 * (2 * C) * TOKENS * hw_tile + 2 * 2 * (2 * C) * hw_tile
    cost = pl.CostEstimate(
        flops=B * nt * (f_pre + f_tile),
        transcendentals=B * nt * NUM_HEADS * TOKENS * TOKENS,
        bytes_accessed=B * nt * (TOKENS * 9 * C * 2 + TOKENS * hw_tile * 2
                                 + 2 * hw_tile * 4) + 262144)

    out = pl.pallas_call(
        _fused_kernel,
        out_shape=jax.ShapeDtypeStruct((B, 2, HW_OUT), jnp.float32),
        grid=(B, nt),
        in_specs=[
            pl.BlockSpec((1, TOKENS, 9 * C), lambda b, t: (b, 0, 0)),   # im2col patches
            _c((TOKENS, C)),                                            # pos
            _c((9 * C, C)), _c((1, C)),                                 # conv2 w, b
            _c((C, C)), _c((1, C)),                                     # wq (scaled), bq
            _c((C, C)), _c((1, C)),                                     # wk, bk
            _c((C, C)), _c((1, C)),                                     # wv, bv
            _c((NUM_HEADS * TOKENS, C)),                                # head mask
            _c((C, C)), _c((C, 1)),                                     # wm1^T, bm1
            _c((C, C)), _c((C, 1)),                                     # wm2^T, bm2
            _c((2 * C, C)), _c((2 * C, 1)),                             # stacked head conv1
            _c((2, 2 * C)), _c((2, 1)),                                 # block-diag head conv2
            pl.BlockSpec((TOKENS, hw_tile), lambda b, t: (0, t)),       # upsample^T tile
        ],
        out_specs=pl.BlockSpec((1, 2, hw_tile), lambda b, t: (b, 0, t)),
        compiler_params=pltpu.CompilerParams(
            dimension_semantics=("parallel", "parallel")),
        cost_estimate=cost,
    )(m2, pp['pos'], pp['w2'], pp['b2'],
      pp['wq'], pp['bq'], pp['wk'], pp['bk'], pp['wv'], pp['bv'],
      pp['mask'], pp['wm1t'], pp['bm1'], pp['wm2t'], pp['bm2'],
      pp['wh1'], pp['bh1'], pp['wh2'], pp['bh2'], pp['mupt'])

    seg = out[:, 0].reshape(B, 1, IN_H, IN_W)                       # already NCHW raster order
    cor = out[:, 1].reshape(B, 1, IN_H, IN_W)
    return seg, cor


# ------------------------- pure-JAX f32 reference ---------------------------

def reference_forward(p, x_nchw, eps=1e-5):
    B = x_nchw.shape[0]

    def bn(y, bnp):
        g, beta, mean, var = bnp
        return (y - mean) / jnp.sqrt(var + eps) * g + beta

    x = jnp.transpose(x_nchw, (0, 2, 3, 1))
    xs = jnp.pad(x[:, ::4, ::4, :], ((0, 0), (0, 0), (0, 0), (0, 5)))
    y1 = jnp.maximum(bn(xs @ p['w1'] + p['b1'], p['bn1']), 0.0)
    yp = jnp.pad(y1, ((0, 0), (1, 1), (1, 1), (0, 0)))
    taps = [yp[:, ky:ky + 16:2, kx:kx + 16:2, :] for ky in range(3) for kx in range(3)]
    patches = jnp.stack(taps, axis=3).reshape(B, TOKENS, 9 * C)
    tok = jnp.maximum(bn(patches @ p['w2'] + p['b2'], p['bn2']), 0.0)
    feat = tok + p['pos']
    qkv = feat @ p['wqkv'] + p['bqkv']
    q, k, v = qkv[..., :C], qkv[..., C:2 * C], qkv[..., 2 * C:]
    outs = []
    for h in range(NUM_HEADS):
        sl = slice(h * HEAD_DIM, (h + 1) * HEAD_DIM)
        s = jnp.einsum('bnd,bmd->bnm', q[..., sl], k[..., sl]) / math.sqrt(HEAD_DIM)
        pm = jax.nn.softmax(s, axis=-1)
        outs.append(jnp.einsum('bnm,bmd->bnd', pm, v[..., sl]))
    att = jnp.concatenate(outs, axis=-1)
    h1 = jnp.maximum(bn(att @ p['mlp_w1'] + p['mlp_b1'], p['mlp_bn1']), 0.0)
    h2 = jnp.maximum(bn(h1 @ p['mlp_w2'] + p['mlp_b2'], p['mlp_bn2']), 0.0)
    up = jnp.einsum('xt,btc->bxc', p['upsample_matrix'], h2)
    hs = jnp.maximum(bn(up @ p['seg_w1'] + p['seg_b1'], p['seg_bn1']), 0.0)
    seg = (hs @ p['seg_w2'] + p['seg_b2']).reshape(B, IN_H, IN_W, 1).transpose(0, 3, 1, 2)
    hc = jnp.maximum(bn(up @ p['cor_w1'] + p['cor_b1'], p['cor_bn1']), 0.0)
    cor = (hc @ p['cor_w2'] + p['cor_b2']).reshape(B, IN_H, IN_W, 1).transpose(0, 3, 1, 2)
    return seg, cor


if __name__ == "__main__":
    key = jax.random.PRNGKey(0)
    pkey, xkey = jax.random.split(key)
    params = init_params(pkey)
    packed = pack_params(params)

    B = 2
    x = jax.random.normal(xkey, (B, 3, IN_H, IN_W), dtype=jnp.float32)

    seg, cornermap = jax.jit(functools.partial(forward, packed))(x)
    jax.block_until_ready((seg, cornermap))

    assert seg.shape == (B, 1, IN_H, IN_W), seg.shape
    assert cornermap.shape == (B, 1, IN_H, IN_W), cornermap.shape
    assert bool(jnp.all(jnp.isfinite(seg))) and bool(jnp.all(jnp.isfinite(cornermap)))

    # f32 reference (torch semantics); the bf16 kernel path should agree to a few percent.
    seg_r, cor_r = jax.jit(functools.partial(reference_forward, params))(x)
    err = max(float(jnp.max(jnp.abs(seg - seg_r))), float(jnp.max(jnp.abs(cornermap - cor_r))))
    scale = max(float(jnp.max(jnp.abs(seg_r))), float(jnp.max(jnp.abs(cor_r))))
    assert err <= 0.1 * scale + 1e-2, (err, scale)

    print("KERNEL_OK")
</pallas_src>

<mosaic_0001>
module attributes {stable_mosaic.version = 11 : i64} {
  func.func @_mm_bias_relu_kernel(%arg0: i32, %arg1: memref<512x8xbf16, #tpu.memory_space<vmem>>, %arg2: memref<8x64xbf16, #tpu.memory_space<vmem>>, %arg3: memref<1x64xf32, #tpu.memory_space<vmem>>, %arg4: memref<512x64xf32, #tpu.memory_space<vmem>>) attributes {dimension_semantics = [#tpu.dimension_semantics<parallel>], iteration_bounds = array<i64: 1>, scalar_prefetch = 0 : i64, scratch_operands = 0 : i64, tpu.core_type = #tpu.core_type<tc>, window_params = [{transform_indices = @transform_0, window_bounds = array<i64: 512, 8>}, {pipeline_mode = #tpu.pipeline_mode<synchronous>, transform_indices = @transform_1, window_bounds = array<i64: 8, 64>}, {pipeline_mode = #tpu.pipeline_mode<synchronous>, transform_indices = @transform_2, window_bounds = array<i64: 1, 64>}, {transform_indices = @transform_3, window_bounds = array<i64: 512, 64>}]} {
    %c0 = arith.constant 0 : index
    %c0_0 = arith.constant 0 : index
    %0 = vector.load %arg1[%c0, %c0_0] : memref<512x8xbf16, #tpu.memory_space<vmem>>, vector<512x8xbf16>
    %c0_1 = arith.constant 0 : index
    %c0_2 = arith.constant 0 : index
    %1 = vector.load %arg2[%c0_1, %c0_2] : memref<8x64xbf16, #tpu.memory_space<vmem>>, vector<8x64xbf16>
    %cst = arith.constant dense<0.000000e+00> : vector<512x64xf32>
    %2 = tpu.matmul %0, %1, %cst {dimension_numbers = #tpu.dot_dimension_numbers<[1], [0], [0], [1], [0, 0, 1, 1], [], []>} : vector<512x8xbf16>, vector<8x64xbf16>, vector<512x64xf32> -> vector<512x64xf32>
    %c0_3 = arith.constant 0 : index
    %c0_4 = arith.constant 0 : index
    %3 = vector.load %arg3[%c0_3, %c0_4] : memref<1x64xf32, #tpu.memory_space<vmem>>, vector<1x64xf32>
    %4 = vector.broadcast %3 : vector<1x64xf32> to vector<512x64xf32>
    %5 = arith.addf %2, %4 : vector<512x64xf32>
    %cst_5 = arith.constant 0.000000e+00 : f32
    %6 = vector.broadcast %cst_5 : f32 to vector<512x64xf32>
    %7 = arith.maximumf %5, %6 : vector<512x64xf32>
    %c0_6 = arith.constant 0 : index
    %c0_7 = arith.constant 0 : index
    %8 = vector.load %arg4[%c0_6, %c0_7] : memref<512x64xf32, #tpu.memory_space<vmem>>, vector<512x64xf32>
    tpu.vector_store %arg4[%c0_6, %c0_7], %7 {strides = array<i32>} : memref<512x64xf32, #tpu.memory_space<vmem>>, vector<512x64xf32>,
    return
  }
  func.func @transform_0(%arg0: i32) -> (i32, i32) {
    %c0_i32 = arith.constant 0 : i32
    %c0_i32_0 = arith.constant 0 : i32
    return %arg0, %c0_i32 : i32, i32
  }
  func.func @transform_1(%arg0: i32) -> (i32, i32) {
    %c0_i32 = arith.constant 0 : i32
    %c0_i32_0 = arith.constant 0 : i32
    %c0_i32_1 = arith.constant 0 : i32
    return %c0_i32, %c0_i32_0 : i32, i32
  }
  func.func @transform_2(%arg0: i32) -> (i32, i32) {
    %c0_i32 = arith.constant 0 : i32
    %c0_i32_0 = arith.constant 0 : i32
    %c0_i32_1 = arith.constant 0 : i32
    return %c0_i32, %c0_i32_0 : i32, i32
  }
  func.func @transform_3(%arg0: i32) -> (i32, i32) {
    %c0_i32 = arith.constant 0 : i32
    %c0_i32_0 = arith.constant 0 : i32
    return %arg0, %c0_i32 : i32, i32
  }
}

module attributes {stable_mosaic.version = 11 : i64} {
  func.func @_fused_kernel(%arg0: i32, %arg1: i32, %arg2: memref<1x64x576xbf16, #tpu.memory_space<vmem>>, %arg3: memref<64x64xf32, #tpu.memory_space<vmem>>, %arg4: memref<576x64xbf16, #tpu.memory_space<vmem>>, %arg5: memref<1x64xf32, #tpu.memory_space<vmem>>, %arg6: memref<64x64xbf16, #tpu.memory_space<vmem>>, %arg7: memref<1x64xf32, #tpu.memory_space<vmem>>, %arg8: memref<64x64xbf16, #tpu.memory_space<vmem>>, %arg9: memref<1x64xf32, #tpu.memory_space<vmem>>, %arg10: memref<64x64xbf16, #tpu.memory_space<vmem>>, %arg11: memref<1x64xf32, #tpu.memory_space<vmem>>, %arg12: memref<256x64xbf16, #tpu.memory_space<vmem>>, %arg13: memref<64x64xbf16, #tpu.memory_space<vmem>>, %arg14: memref<64x1xf32, #tpu.memory_space<vmem>>, %arg15: memref<64x64xbf16, #tpu.memory_space<vmem>>, %arg16: memref<64x1xf32, #tpu.memory_space<vmem>>, %arg17: memref<128x64xbf16, #tpu.memory_space<vmem>>, %arg18: memref<128x1xf32, #tpu.memory_space<vmem>>, %arg19: memref<2x128xbf16, #tpu.memory_space<vmem>>, %arg20: memref<2x1xf32, #tpu.memory_space<vmem>>, %arg21: memref<64x4096xbf16, #tpu.memory_space<vmem>>, %arg22: memref<1x2x4096xf32, #tpu.memory_space<vmem>>) attributes {dimension_semantics = [#tpu.dimension_semantics<parallel>, #tpu.dimension_semantics<parallel>], iteration_bounds = array<i64: 2, 1>, scalar_prefetch = 0 : i64, scratch_operands = 0 : i64, tpu.core_type = #tpu.core_type<tc>, window_params = [{transform_indices = @transform_0, window_bounds = array<i64: 1, 64, 576>}, {pipeline_mode = #tpu.pipeline_mode<synchronous>, transform_indices = @transform_1, window_bounds = array<i64: 64, 64>}, {pipeline_mode = #tpu.pipeline_mode<synchronous>, transform_indices = @transform_2, window_bounds = array<i64: 576, 64>}, {pipeline_mode = #tpu.pipeline_mode<synchronous>, transform_indices = @transform_3, window_bounds = array<i64: 1, 64>}, {pipeline_mode = #tpu.pipeline_mode<synchronous>, transform_indices = @transform_4, window_bounds = array<i64: 64, 64>}, {pipeline_mode = #tpu.pipeline_mode<synchronous>, transform_indices = @transform_5, window_bounds = array<i64: 1, 64>}, {pipeline_mode = #tpu.pipeline_mode<synchronous>, transform_indices = @transform_6, window_bounds = array<i64: 64, 64>}, {pipeline_mode = #tpu.pipeline_mode<synchronous>, transform_indices = @transform_7, window_bounds = array<i64: 1, 64>}, {pipeline_mode = #tpu.pipeline_mode<synchronous>, transform_indices = @transform_8, window_bounds = array<i64: 64, 64>}, {pipeline_mode = #tpu.pipeline_mode<synchronous>, transform_indices = @transform_9, window_bounds = array<i64: 1, 64>}, {pipeline_mode = #tpu.pipeline_mode<synchronous>, transform_indices = @transform_10, window_bounds = array<i64: 256, 64>}, {pipeline_mode = #tpu.pipeline_mode<synchronous>, transform_indices = @transform_11, window_bounds = array<i64: 64, 64>}, {pipeline_mode = #tpu.pipeline_mode<synchronous>, transform_indices = @transform_12, window_bounds = array<i64: 64, 1>}, {pipeline_mode = #tpu.pipeline_mode<synchronous>, transform_indices = @transform_13, window_bounds = array<i64: 64, 64>}, {pipeline_mode = #tpu.pipeline_mode<synchronous>, transform_indices = @transform_14, window_bounds = array<i64: 64, 1>}, {pipeline_mode = #tpu.pipeline_mode<synchronous>, transform_indices = @transform_15, window_bounds = array<i64: 128, 64>}, {pipeline_mode = #tpu.pipeline_mode<synchronous>, transform_indices = @transform_16, window_bounds = array<i64: 128, 1>}, {pipeline_mode = #tpu.pipeline_mode<synchronous>, transform_indices = @transform_17, window_bounds = array<i64: 2, 128>}, {pipeline_mode = #tpu.pipeline_mode<synchronous>, transform_indices = @transform_18, window_bounds = array<i64: 2, 1>}, {transform_indices = @transform_19, window_bounds = array<i64: 64, 4096>}, {transform_indices = @transform_20, window_bounds = array<i64: 1, 2, 4096>}]} {
    %c0 = arith.constant 0 : index
    %c0_0 = arith.constant 0 : index
    %c0_1 = arith.constant 0 : index
    %0 = vector.load %arg2[%c0, %c0_0, %c0_1] : memref<1x64x576xbf16, #tpu.memory_space<vmem>>, vector<1x64x576xbf16>
    %1 = vector.shape_cast %0 : vector<1x64x576xbf16> to vector<64x576xbf16>
    %c0_2 = arith.constant 0 : index
    %c0_3 = arith.constant 0 : index
    %2 = vector.load %arg4[%c0_2, %c0_3] : memref<576x64xbf16, #tpu.memory_space<vmem>>, vector<576x64xbf16>
    %cst = arith.constant dense<0.000000e+00> : vector<64x64xf32>
    %3 = tpu.matmul %1, %2, %cst {dimension_numbers = #tpu.dot_dimension_numbers<[1], [0], [0], [1], [0, 0, 1, 1], [], []>} : vector<64x576xbf16>, vector<576x64xbf16>, vector<64x64xf32> -> vector<64x64xf32>
    %c0_4 = arith.constant 0 : index
    %c0_5 = arith.constant 0 : index
    %4 = vector.load %arg5[%c0_4, %c0_5] : memref<1x64xf32, #tpu.memory_space<vmem>>, vector<1x64xf32>
    %5 = vector.broadcast %4 : vector<1x64xf32> to vector<64x64xf32>
    %6 = arith.addf %3, %5 : vector<64x64xf32>
    %cst_6 = arith.constant 0.000000e+00 : f32
    %7 = vector.broadcast %cst_6 : f32 to vector<64x64xf32>
    %8 = arith.maximumf %6, %7 : vector<64x64xf32>
    %c0_7 = arith.constant 0 : index
    %c0_8 = arith.constant 0 : index
    %9 = vector.load %arg3[%c0_7, %c0_8] : memref<64x64xf32, #tpu.memory_space<vmem>>, vector<64x64xf32>
    %10 = arith.addf %8, %9 : vector<64x64xf32>
    %11 = arith.truncf %10 : vector<64x64xf32> to vector<64x64xbf16>
    %c0_9 = arith.constant 0 : index
    %c0_10 = arith.constant 0 : index
    %12 = vector.load %arg6[%c0_9, %c0_10] : memref<64x64xbf16, #tpu.memory_space<vmem>>, vector<64x64xbf16>
    %cst_11 = arith.constant dense<0.000000e+00> : vector<64x64xf32>
    %13 = tpu.matmul %11, %12, %cst_11 {dimension_numbers = #tpu.dot_dimension_numbers<[1], [0], [0], [1], [0, 0, 1, 1], [], []>} : vector<64x64xbf16>, vector<64x64xbf16>, vector<64x64xf32> -> vector<64x64xf32>
    %c0_12 = arith.constant 0 : index
    %c0_13 = arith.constant 0 : index
    %14 = vector.load %arg7[%c0_12, %c0_13] : memref<1x64xf32, #tpu.memory_space<vmem>>, vector<1x64xf32>
    %15 = vector.broadcast %14 : vector<1x64xf32> to vector<64x64xf32>
    %16 = arith.addf %13, %15 : vector<64x64xf32>
    %c0_14 = arith.constant 0 : index
    %c0_15 = arith.constant 0 : index
    %17 = vector.load %arg8[%c0_14, %c0_15] : memref<64x64xbf16, #tpu.memory_space<vmem>>, vector<64x64xbf16>
    %cst_16 = arith.constant dense<0.000000e+00> : vector<64x64xf32>
    %18 = tpu.matmul %11, %17, %cst_16 {dimension_numbers = #tpu.dot_dimension_numbers<[1], [0], [0], [1], [0, 0, 1, 1], [], []>} : vector<64x64xbf16>, vector<64x64xbf16>, vector<64x64xf32> -> vector<64x64xf32>
    %c0_17 = arith.constant 0 : index
    %c0_18 = arith.constant 0 : index
    %19 = vector.load %arg9[%c0_17, %c0_18] : memref<1x64xf32, #tpu.memory_space<vmem>>, vector<1x64xf32>
    %20 = vector.broadcast %19 : vector<1x64xf32> to vector<64x64xf32>
    %21 = arith.addf %18, %20 : vector<64x64xf32>
    %c0_19 = arith.constant 0 : index
    %c0_20 = arith.constant 0 : index
    %22 = vector.load %arg10[%c0_19, %c0_20] : memref<64x64xbf16, #tpu.memory_space<vmem>>, vector<64x64xbf16>
    %cst_21 = arith.constant dense<0.000000e+00> : vector<64x64xf32>
    %23 = tpu.matmul %11, %22, %cst_21 {dimension_numbers = #tpu.dot_dimension_numbers<[1], [0], [0], [1], [0, 0, 1, 1], [], []>} : vector<64x64xbf16>, vector<64x64xbf16>, vector<64x64xf32> -> vector<64x64xf32>
    %c0_22 = arith.constant 0 : index
    %c0_23 = arith.constant 0 : index
    %24 = vector.load %arg11[%c0_22, %c0_23] : memref<1x64xf32, #tpu.memory_space<vmem>>, vector<1x64xf32>
    %25 = vector.broadcast %24 : vector<1x64xf32> to vector<64x64xf32>
    %26 = arith.addf %23, %25 : vector<64x64xf32>
    %c0_24 = arith.constant 0 : index
    %c0_25 = arith.constant 0 : index
    %27 = vector.load %arg12[%c0_24, %c0_25] : memref<256x64xbf16, #tpu.memory_space<vmem>>, vector<256x64xbf16>
    %28 = arith.truncf %16 : vector<64x64xf32> to vector<64x64xbf16>
    %29 = vector.shape_cast %28 : vector<64x64xbf16> to vector<1x64x64xbf16>
    %30 = vector.shape_cast %29 : vector<1x64x64xbf16> to vector<1x64x64xbf16>
    %31 = vector.broadcast %30 : vector<1x64x64xbf16> to vector<4x64x64xbf16>
    %32 = vector.shape_cast %31 : vector<4x64x64xbf16> to vector<256x64xbf16>
    %33 = arith.mulf %32, %27 : vector<256x64xbf16>
    %34 = arith.truncf %21 : vector<64x64xf32> to vector<64x64xbf16>
    %cst_26 = arith.constant dense<0.000000e+00> : vector<256x64xf32>
    %35 = tpu.matmul %33, %34, %cst_26 {dimension_numbers = #tpu.dot_dimension_numbers<[1], [1], [0], [0], [0, 0, 1, 0], [], []>} : vector<256x64xbf16>, vector<64x64xbf16>, vector<256x64xf32> -> vector<256x64xf32>
    %cst_27 = arith.constant dense<0xFF800000> : vector<256xf32>
    %36 = vector.multi_reduction <maximumf>, %35, %cst_27 [1] : vector<256x64xf32> to vector<256xf32>
    %37 = vector.shape_cast %36 : vector<256xf32> to vector<256x1xf32>
    %38 = vector.broadcast %37 : vector<256x1xf32> to vector<256x64xf32>
    %39 = arith.subf %35, %38 : vector<256x64xf32>
    %40 = math.exp %39 : vector<256x64xf32>
    %cst_28 = arith.constant dense<0.000000e+00> : vector<256xf32>
    %41 = vector.multi_reduction <add>, %40, %cst_28 [1] : vector<256x64xf32> to vector<256xf32>
    %42 = vector.shape_cast %41 : vector<256xf32> to vector<256x1xf32>
    %43 = tpu.reciprocal %42 {approx = true} : vector<256x1xf32> -> vector<256x1xf32>
    %44 = vector.broadcast %43 : vector<256x1xf32> to vector<256x64xf32>
    %45 = arith.mulf %40, %44 : vector<256x64xf32>
    %46 = arith.truncf %45 : vector<256x64xf32> to vector<256x64xbf16>
    %47 = arith.truncf %26 : vector<64x64xf32> to vector<64x64xbf16>
    %cst_29 = arith.constant dense<0.000000e+00> : vector<256x64xf32>
    %48 = tpu.matmul %46, %47, %cst_29 {dimension_numbers = #tpu.dot_dimension_numbers<[1], [0], [0], [1], [0, 0, 1, 1], [], []>} : vector<256x64xbf16>, vector<64x64xbf16>, vector<256x64xf32> -> vector<256x64xf32>
    %49 = arith.extf %27 : vector<256x64xbf16> to vector<256x64xf32>
    %50 = arith.mulf %48, %49 : vector<256x64xf32>
    %51 = vector.extract_strided_slice %50 {offsets = [0, 0], sizes = [64, 64], strides = [1, 1]} : vector<256x64xf32> to vector<64x64xf32>
    %52 = vector.extract_strided_slice %50 {offsets = [64, 0], sizes = [64, 64], strides = [1, 1]} : vector<256x64xf32> to vector<64x64xf32>
    %53 = arith.addf %51, %52 : vector<64x64xf32>
    %54 = vector.extract_strided_slice %50 {offsets = [128, 0], sizes = [64, 64], strides = [1, 1]} : vector<256x64xf32> to vector<64x64xf32>
    %55 = arith.addf %53, %54 : vector<64x64xf32>
    %56 = vector.extract_strided_slice %50 {offsets = [192, 0], sizes = [64, 64], strides = [1, 1]} : vector<256x64xf32> to vector<64x64xf32>
    %57 = arith.addf %55, %56 : vector<64x64xf32>
    %c0_30 = arith.constant 0 : index
    %c0_31 = arith.constant 0 : index
    %58 = vector.load %arg13[%c0_30, %c0_31] : memref<64x64xbf16, #tpu.memory_space<vmem>>, vector<64x64xbf16>
    %59 = arith.truncf %57 : vector<64x64xf32> to vector<64x64xbf16>
    %cst_32 = arith.constant dense<0.000000e+00> : vector<64x64xf32>
    %60 = tpu.matmul %58, %59, %cst_32 {dimension_numbers = #tpu.dot_dimension_numbers<[1], [1], [0], [0], [0, 0, 1, 0], [], []>} : vector<64x64xbf16>, vector<64x64xbf16>, vector<64x64xf32> -> vector<64x64xf32>
    %c0_33 = arith.constant 0 : index
    %c0_34 = arith.constant 0 : index
    %61 = vector.load %arg14[%c0_33, %c0_34] : memref<64x1xf32, #tpu.memory_space<vmem>>, vector<64x1xf32>
    %62 = vector.broadcast %61 : vector<64x1xf32> to vector<64x64xf32>
    %63 = arith.addf %60, %62 : vector<64x64xf32>
    %cst_35 = arith.constant 0.000000e+00 : f32
    %64 = vector.broadcast %cst_35 : f32 to vector<64x64xf32>
    %65 = arith.maximumf %63, %64 : vector<64x64xf32>
    %c0_36 = arith.constant 0 : index
    %c0_37 = arith.constant 0 : index
    %66 = vector.load %arg15[%c0_36, %c0_37] : memref<64x64xbf16, #tpu.memory_space<vmem>>, vector<64x64xbf16>
    %67 = arith.truncf %65 : vector<64x64xf32> to vector<64x64xbf16>
    %cst_38 = arith.constant dense<0.000000e+00> : vector<64x64xf32>
    %68 = tpu.matmul %66, %67, %cst_38 {dimension_numbers = #tpu.dot_dimension_numbers<[1], [0], [0], [1], [0, 0, 1, 1], [], []>} : vector<64x64xbf16>, vector<64x64xbf16>, vector<64x64xf32> -> vector<64x64xf32>
    %c0_39 = arith.constant 0 : index
    %c0_40 = arith.constant 0 : index
    %69 = vector.load %arg16[%c0_39, %c0_40] : memref<64x1xf32, #tpu.memory_space<vmem>>, vector<64x1xf32>
    %70 = vector.broadcast %69 : vector<64x1xf32> to vector<64x64xf32>
    %71 = arith.addf %68, %70 : vector<64x64xf32>
    %cst_41 = arith.constant 0.000000e+00 : f32
    %72 = vector.broadcast %cst_41 : f32 to vector<64x64xf32>
    %73 = arith.maximumf %71, %72 : vector<64x64xf32>
    %c0_42 = arith.constant 0 : index
    %c0_43 = arith.constant 0 : index
    %74 = vector.load %arg17[%c0_42, %c0_43] : memref<128x64xbf16, #tpu.memory_space<vmem>>, vector<128x64xbf16>
    %75 = arith.truncf %73 : vector<64x64xf32> to vector<64x64xbf16>
    %cst_44 = arith.constant dense<0.000000e+00> : vector<128x64xf32>
    %76 = tpu.matmul %74, %75, %cst_44 {dimension_numbers = #tpu.dot_dimension_numbers<[1], [0], [0], [1], [0, 0, 1, 1], [], []>} : vector<128x64xbf16>, vector<64x64xbf16>, vector<128x64xf32> -> vector<128x64xf32>
    %77 = arith.truncf %76 : vector<128x64xf32> to vector<128x64xbf16>
    %c0_45 = arith.constant 0 : index
    %c0_46 = arith.constant 0 : index
    %78 = vector.load %arg21[%c0_45, %c0_46] : memref<64x4096xbf16, #tpu.memory_space<vmem>>, vector<64x4096xbf16>
    %cst_47 = arith.constant dense<0.000000e+00> : vector<128x4096xf32>
    %79 = tpu.matmul %77, %78, %cst_47 {dimension_numbers = #tpu.dot_dimension_numbers<[1], [0], [0], [1], [0, 0, 1, 1], [], []>} : vector<128x64xbf16>, vector<64x4096xbf16>, vector<128x4096xf32> -> vector<128x4096xf32>
    %c0_48 = arith.constant 0 : index
    %c0_49 = arith.constant 0 : index
    %80 = vector.load %arg18[%c0_48, %c0_49] : memref<128x1xf32, #tpu.memory_space<vmem>>, vector<128x1xf32>
    %81 = vector.broadcast %80 : vector<128x1xf32> to vector<128x4096xf32>
    %82 = arith.addf %79, %81 : vector<128x4096xf32>
    %cst_50 = arith.constant 0.000000e+00 : f32
    %83 = vector.broadcast %cst_50 : f32 to vector<128x4096xf32>
    %84 = arith.maximumf %82, %83 : vector<128x4096xf32>
    %c0_51 = arith.constant 0 : index
    %c0_52 = arith.constant 0 : index
    %85 = vector.load %arg19[%c0_51, %c0_52] : memref<2x128xbf16, #tpu.memory_space<vmem>>, vector<2x128xbf16>
    %86 = arith.truncf %84 : vector<128x4096xf32> to vector<128x4096xbf16>
    %cst_53 = arith.constant dense<0.000000e+00> : vector<2x4096xf32>
    %87 = tpu.matmul %85, %86, %cst_53 {dimension_numbers = #tpu.dot_dimension_numbers<[1], [0], [0], [1], [0, 0, 1, 1], [], []>} : vector<2x128xbf16>, vector<128x4096xbf16>, vector<2x4096xf32> -> vector<2x4096xf32>
    %c0_54 = arith.constant 0 : index
    %c0_55 = arith.constant 0 : index
    %88 = vector.load %arg20[%c0_54, %c0_55] : memref<2x1xf32, #tpu.memory_space<vmem>>, vector<2x1xf32>
    %89 = vector.broadcast %88 : vector<2x1xf32> to vector<2x4096xf32>
    %90 = arith.addf %87, %89 : vector<2x4096xf32>
    %c0_56 = arith.constant 0 : index
    %c0_57 = arith.constant 0 : index
    %c0_58 = arith.constant 0 : index
    %91 = vector.load %arg22[%c0_56, %c0_57, %c0_58] : memref<1x2x4096xf32, #tpu.memory_space<vmem>>, vector<1x2x4096xf32>
    %92 = vector.shape_cast %91 : vector<1x2x4096xf32> to vector<2x4096xf32>
    %93 = vector.shape_cast %90 : vector<2x4096xf32> to vector<1x2x4096xf32>
    tpu.vector_store %arg22[%c0_56, %c0_57, %c0_58], %93 {strides = array<i32>} : memref<1x2x4096xf32, #tpu.memory_space<vmem>>, vector<1x2x4096xf32>,
    return
  }
  func.func @transform_0(%arg0: i32, %arg1: i32) -> (i32, i32, i32) {
    %c0_i32 = arith.constant 0 : i32
    %c0_i32_0 = arith.constant 0 : i32
    %c0_i32_1 = arith.constant 0 : i32
    return %arg0, %c0_i32, %c0_i32_0 : i32, i32, i32
  }
  func.func @transform_1(%arg0: i32, %arg1: i32) -> (i32, i32) {
    %c0_i32 = arith.constant 0 : i32
    %c0_i32_0 = arith.constant 0 : i32
    %c0_i32_1 = arith.constant 0 : i32
    return %c0_i32, %c0_i32_0 : i32, i32
  }
  func.func @transform_2(%arg0: i32, %arg1: i32) -> (i32, i32) {
    %c0_i32 = arith.constant 0 : i32
    %c0_i32_0 = arith.constant 0 : i32
    %c0_i32_1 = arith.constant 0 : i32
    return %c0_i32, %c0_i32_0 : i32, i32
  }
  func.func @transform_3(%arg0: i32, %arg1: i32) -> (i32, i32) {
    %c0_i32 = arith.constant 0 : i32
    %c0_i32_0 = arith.constant 0 : i32
    %c0_i32_1 = arith.constant 0 : i32
    return %c0_i32, %c0_i32_0 : i32, i32
  }
  func.func @transform_4(%arg0: i32, %arg1: i32) -> (i32, i32) {
    %c0_i32 = arith.constant 0 : i32
    %c0_i32_0 = arith.constant 0 : i32
    %c0_i32_1 = arith.constant 0 : i32
    return %c0_i32, %c0_i32_0 : i32, i32
  }
  func.func @transform_5(%arg0: i32, %arg1: i32) -> (i32, i32) {
    %c0_i32 = arith.constant 0 : i32
    %c0_i32_0 = arith.constant 0 : i32
    %c0_i32_1 = arith.constant 0 : i32
    return %c0_i32, %c0_i32_0 : i32, i32
  }
  func.func @transform_6(%arg0: i32, %arg1: i32) -> (i32, i32) {
    %c0_i32 = arith.constant 0 : i32
    %c0_i32_0 = arith.constant 0 : i32
    %c0_i32_1 = arith.constant 0 : i32
    return %c0_i32, %c0_i32_0 : i32, i32
  }
  func.func @transform_7(%arg0: i32, %arg1: i32) -> (i32, i32) {
    %c0_i32 = arith.constant 0 : i32
    %c0_i32_0 = arith.constant 0 : i32
    %c0_i32_1 = arith.constant 0 : i32
    return %c0_i32, %c0_i32_0 : i32, i32
  }
  func.func @transform_8(%arg0: i32, %arg1: i32) -> (i32, i32) {
    %c0_i32 = arith.constant 0 : i32
    %c0_i32_0 = arith.constant 0 : i32
    %c0_i32_1 = arith.constant 0 : i32
    return %c0_i32, %c0_i32_0 : i32, i32
  }
  func.func @transform_9(%arg0: i32, %arg1: i32) -> (i32, i32) {
    %c0_i32 = arith.constant 0 : i32
    %c0_i32_0 = arith.constant 0 : i32
    %c0_i32_1 = arith.constant 0 : i32
    return %c0_i32, %c0_i32_0 : i32, i32
  }
  func.func @transform_10(%arg0: i32, %arg1: i32) -> (i32, i32) {
    %c0_i32 = arith.constant 0 : i32
    %c0_i32_0 = arith.constant 0 : i32
    %c0_i32_1 = arith.constant 0 : i32
    return %c0_i32, %c0_i32_0 : i32, i32
  }
  func.func @transform_11(%arg0: i32, %arg1: i32) -> (i32, i32) {
    %c0_i32 = arith.constant 0 : i32
    %c0_i32_0 = arith.constant 0 : i32
    %c0_i32_1 = arith.constant 0 : i32
    return %c0_i32, %c0_i32_0 : i32, i32
  }
  func.func @transform_12(%arg0: i32, %arg1: i32) -> (i32, i32) {
    %c0_i32 = arith.constant 0 : i32
    %c0_i32_0 = arith.constant 0 : i32
    %c0_i32_1 = arith.constant 0 : i32
    return %c0_i32, %c0_i32_0 : i32, i32
  }
  func.func @transform_13(%arg0: i32, %arg1: i32) -> (i32, i32) {
    %c0_i32 = arith.constant 0 : i32
    %c0_i32_0 = arith.constant 0 : i32
    %c0_i32_1 = arith.constant 0 : i32
    return %c0_i32, %c0_i32_0 : i32, i32
  }
  func.func @transform_14(%arg0: i32, %arg1: i32) -> (i32, i32) {
    %c0_i32 = arith.constant 0 : i32
    %c0_i32_0 = arith.constant 0 : i32
    %c0_i32_1 = arith.constant 0 : i32
    return %c0_i32, %c0_i32_0 : i32, i32
  }
  func.func @transform_15(%arg0: i32, %arg1: i32) -> (i32, i32) {
    %c0_i32 = arith.constant 0 : i32
    %c0_i32_0 = arith.constant 0 : i32
    %c0_i32_1 = arith.constant 0 : i32
    return %c0_i32, %c0_i32_0 : i32, i32
  }
  func.func @transform_16(%arg0: i32, %arg1: i32) -> (i32, i32) {
    %c0_i32 = arith.constant 0 : i32
    %c0_i32_0 = arith.constant 0 : i32
    %c0_i32_1 = arith.constant 0 : i32
    return %c0_i32, %c0_i32_0 : i32, i32
  }
  func.func @transform_17(%arg0: i32, %arg1: i32) -> (i32, i32) {
    %c0_i32 = arith.constant 0 : i32
    %c0_i32_0 = arith.constant 0 : i32
    %c0_i32_1 = arith.constant 0 : i32
    return %c0_i32, %c0_i32_0 : i32, i32
  }
  func.func @transform_18(%arg0: i32, %arg1: i32) -> (i32, i32) {
    %c0_i32 = arith.constant 0 : i32
    %c0_i32_0 = arith.constant 0 : i32
    %c0_i32_1 = arith.constant 0 : i32
    return %c0_i32, %c0_i32_0 : i32, i32
  }
  func.func @transform_19(%arg0: i32, %arg1: i32) -> (i32, i32) {
    %c0_i32 = arith.constant 0 : i32
    %c0_i32_0 = arith.constant 0 : i32
    return %c0_i32, %arg1 : i32, i32
  }
  func.func @transform_20(%arg0: i32, %arg1: i32) -> (i32, i32, i32) {
    %c0_i32 = arith.constant 0 : i32
    %c0_i32_0 = arith.constant 0 : i32
    return %arg0, %c0_i32, %arg1 : i32, i32, i32
  }
}

</mosaic_0001>

<llo_original>
// kernel: forward.2
$region0: #{forward.2}
  #allocation0 [shape = 'u32[]', space=smem, size = 0x4, offset = 0x4, fixed_abs, tag = 'smem constant byte address 0x4 - core index']
  #allocation1 [shape = 'u32[144,128]{1,0:T(1,128)}', space=vmem, size = 0x12000, scoped, tag = 'internal scratch']
  %s0 = inlined_call_operand.vmem [shape: bf16[512,8], index: 0, kind: input, shape index: {}]
  %s1 = inlined_call_operand.vmem [shape: bf16[8,64], index: 1, kind: input, shape index: {}]
  %s2 = inlined_call_operand.vmem [shape: f32[1,64], index: 2, kind: input, shape index: {}]
  %s3 = inlined_call_operand.vmem [shape: f32[512,64], index: 3, kind: output, shape index: {}]
  %s4 = sld [smem:[#allocation0]]
  $region22: #{forward.2} parent=0
    _
  %s6 = ssub.s32 1, %s4
  %s7 = scalar_select 0, %s6, %s4
  // Predicated region
  $region2: #{forward.2} parent=0 // pred_check
    _
  $region3: #{forward.2} parent=0 // pred_check_branch
    %9 = sbr.rel (0) target = $region5
  $region4: #{forward.2} parent=0 // pred_region
    _
  $region5: #{forward.2} parent=0 // pred_fallthru
    _
  // Predicated region
  $region6: #{forward.2} parent=0 // pred_check
    _
  $region7: #{forward.2} parent=0 // pred_check_branch
    %11 = sbr.rel (0) target = $region9
  $region8: #{forward.2} parent=0 // pred_region
    _
  $region9: #{forward.2} parent=0 // pred_fallthru
    _
  // Predicated region
  $region10: #{forward.2} parent=0 // pred_check
    _
  $region11: #{forward.2} parent=0 // pred_check_branch
    %13 = sbr.rel (0) target = $region13
  $region12: #{forward.2} parent=0 // pred_region
    _
  $region13: #{forward.2} parent=0 // pred_fallthru
    _
  %v15 = vld [vmem:[%s0] sm:$0xf]
  %v16 = vld [vmem:[%s0 + $0x4] sm:$0xf]
  %v17 = vld [vmem:[%s0 + $0x8] sm:$0xf]
  %v18 = vld [vmem:[%s0 + $0xc] sm:$0xf]
  %v19 = vld [vmem:[%s0 + $0x10] sm:$0xf]
  %v20 = vld [vmem:[%s0 + $0x14] sm:$0xf]
  %v21 = vld [vmem:[%s0 + $0x18] sm:$0xf]
  %v22 = vld [vmem:[%s0 + $0x1c] sm:$0xf]
  %v23 = vld [vmem:[%s0 + $0x20] sm:$0xf]
  %v24 = vld [vmem:[%s0 + $0x24] sm:$0xf]
  %v25 = vld [vmem:[%s0 + $0x28] sm:$0xf]
  %v26 = vld [vmem:[%s0 + $0x2c] sm:$0xf]
  %v27 = vld [vmem:[%s0 + $0x30] sm:$0xf]
  %v28 = vld [vmem:[%s0 + $0x34] sm:$0xf]
  %v29 = vld [vmem:[%s0 + $0x38] sm:$0xf]
  %v30 = vld [vmem:[%s0 + $0x3c] sm:$0xf]
  %v31 = vld [vmem:[%s0 + $0x40] sm:$0xf]
  %v32 = vld [vmem:[%s0 + $0x44] sm:$0xf]
  %v33 = vld [vmem:[%s0 + $0x48] sm:$0xf]
  %v34 = vld [vmem:[%s0 + $0x4c] sm:$0xf]
  %v35 = vld [vmem:[%s0 + $0x50] sm:$0xf]
  %v36 = vld [vmem:[%s0 + $0x54] sm:$0xf]
  %v37 = vld [vmem:[%s0 + $0x58] sm:$0xf]
  %v38 = vld [vmem:[%s0 + $0x5c] sm:$0xf]
  %v39 = vld [vmem:[%s0 + $0x60] sm:$0xf]
  %v40 = vld [vmem:[%s0 + $0x64] sm:$0xf]
  %v41 = vld [vmem:[%s0 + $0x68] sm:$0xf]
  %v42 = vld [vmem:[%s0 + $0x6c] sm:$0xf]
  %v43 = vld [vmem:[%s0 + $0x70] sm:$0xf]
  %v44 = vld [vmem:[%s0 + $0x74] sm:$0xf]
  %v45 = vld [vmem:[%s0 + $0x78] sm:$0xf]
  %v46 = vld [vmem:[%s0 + $0x7c] sm:$0xf]
  %v47 = vld [vmem:[%s0 + $0x80] sm:$0xf]
  %v48 = vld [vmem:[%s0 + $0x84] sm:$0xf]
  %v49 = vld [vmem:[%s0 + $0x88] sm:$0xf]
  %v50 = vld [vmem:[%s0 + $0x8c] sm:$0xf]
  %v51 = vld [vmem:[%s0 + $0x90] sm:$0xf]
  %v52 = vld [vmem:[%s0 + $0x94] sm:$0xf]
  %v53 = vld [vmem:[%s0 + $0x98] sm:$0xf]
  %v54 = vld [vmem:[%s0 + $0x9c] sm:$0xf]
  %v55 = vld [vmem:[%s0 + $0xa0] sm:$0xf]
  %v56 = vld [vmem:[%s0 + $0xa4] sm:$0xf]
  %v57 = vld [vmem:[%s0 + $0xa8] sm:$0xf]
  %v58 = vld [vmem:[%s0 + $0xac] sm:$0xf]
  %v59 = vld [vmem:[%s0 + $0xb0] sm:$0xf]
  %v60 = vld [vmem:[%s0 + $0xb4] sm:$0xf]
  %v61 = vld [vmem:[%s0 + $0xb8] sm:$0xf]
  %v62 = vld [vmem:[%s0 + $0xbc] sm:$0xf]
  %v63 = vld [vmem:[%s0 + $0xc0] sm:$0xf]
  %v64 = vld [vmem:[%s0 + $0xc4] sm:$0xf]
  %v65 = vld [vmem:[%s0 + $0xc8] sm:$0xf]
  %v66 = vld [vmem:[%s0 + $0xcc] sm:$0xf]
  %v67 = vld [vmem:[%s0 + $0xd0] sm:$0xf]
  %v68 = vld [vmem:[%s0 + $0xd4] sm:$0xf]
  %v69 = vld [vmem:[%s0 + $0xd8] sm:$0xf]
  %v70 = vld [vmem:[%s0 + $0xdc] sm:$0xf]
  %v71 = vld [vmem:[%s0 + $0xe0] sm:$0xf]
  %v72 = vld [vmem:[%s0 + $0xe4] sm:$0xf]
  %v73 = vld [vmem:[%s0 + $0xe8] sm:$0xf]
  %v74 = vld [vmem:[%s0 + $0xec] sm:$0xf]
  %v75 = vld [vmem:[%s0 + $0xf0] sm:$0xf]
  %v76 = vld [vmem:[%s0 + $0xf4] sm:$0xf]
  %v77 = vld [vmem:[%s0 + $0xf8] sm:$0xf]
  %v78 = vld [vmem:[%s0 + $0xfc] sm:$0xf]
  %v79 = vld [vmem:[%s1] sm:$0xf]
  %v80 = vld [vmem:[%s2] sm:$0x1]
  %v82 = vlaneseq
  %v83 = vshrl.u32 %v82, 7
  %v84 = vsub.s32 0, %v83
  %v85 = vrot.slane %v80, %v84
  %v151 = vunpack.c.l.b16 %v15
  %v152 = vunpack.c.l.b16 %v16
  %v153 = vunpack.c.l.b16 %v17
  %v154 = vunpack.c.l.b16 %v18
  %v155 = vunpack.c.l.b16 %v19
  %v156 = vunpack.c.l.b16 %v20
  %v157 = vunpack.c.l.b16 %v21
  %v158 = vunpack.c.l.b16 %v22
  %v159 = vunpack.c.l.b16 %v23
  %v160 = vunpack.c.l.b16 %v24
  %v161 = vunpack.c.l.b16 %v25
  %v162 = vunpack.c.l.b16 %v26
  %v163 = vunpack.c.l.b16 %v27
  %v164 = vunpack.c.l.b16 %v28
  %v165 = vunpack.c.l.b16 %v29
  %v166 = vunpack.c.l.b16 %v30
  %v167 = vunpack.c.l.b16 %v31
  %v168 = vunpack.c.l.b16 %v32
  %v169 = vunpack.c.l.b16 %v33
  %v170 = vunpack.c.l.b16 %v34
  %v171 = vunpack.c.l.b16 %v35
  %v172 = vunpack.c.l.b16 %v36
  %v173 = vunpack.c.l.b16 %v37
  %v174 = vunpack.c.l.b16 %v38
  %v175 = vunpack.c.l.b16 %v39
  %v176 = vunpack.c.l.b16 %v40
  %v177 = vunpack.c.l.b16 %v41
  %v178 = vunpack.c.l.b16 %v42
  %v179 = vunpack.c.l.b16 %v43
  %v180 = vunpack.c.l.b16 %v44
  %v181 = vunpack.c.l.b16 %v45
  %v182 = vunpack.c.l.b16 %v46
  %v183 = vunpack.c.l.b16 %v47
  %v184 = vunpack.c.l.b16 %v48
  %v185 = vunpack.c.l.b16 %v49
  %v186 = vunpack.c.l.b16 %v50
  %v187 = vunpack.c.l.b16 %v51
  %v188 = vunpack.c.l.b16 %v52
  %v189 = vunpack.c.l.b16 %v53
  %v190 = vunpack.c.l.b16 %v54
  %v191 = vunpack.c.l.b16 %v55
  %v192 = vunpack.c.l.b16 %v56
  %v193 = vunpack.c.l.b16 %v57
  %v194 = vunpack.c.l.b16 %v58
  %v195 = vunpack.c.l.b16 %v59
  %v196 = vunpack.c.l.b16 %v60
  %v197 = vunpack.c.l.b16 %v61
  %v198 = vunpack.c.l.b16 %v62
  %v199 = vunpack.c.l.b16 %v63
  %v200 = vunpack.c.l.b16 %v64
  %v201 = vunpack.c.l.b16 %v65
  %v202 = vunpack.c.l.b16 %v66
  %v203 = vunpack.c.l.b16 %v67
  %v204 = vunpack.c.l.b16 %v68
  %v205 = vunpack.c.l.b16 %v69
  %v206 = vunpack.c.l.b16 %v70
  %v207 = vunpack.c.l.b16 %v71
  %v208 = vunpack.c.l.b16 %v72
  %v209 = vunpack.c.l.b16 %v73
  %v210 = vunpack.c.l.b16 %v74
  %v211 = vunpack.c.l.b16 %v75
  %v212 = vunpack.c.l.b16 %v76
  %v213 = vunpack.c.l.b16 %v77
  %v214 = vunpack.c.l.b16 %v78
  %v215 = vpack.c.b16 %v152, %v151
  %v216 = vpack.c.b16 %v154, %v153
  %v217 = vpack.c.b16 %v156, %v155
  %v218 = vpack.c.b16 %v158, %v157
  %v219 = vpack.c.b16 %v160, %v159
  %v220 = vpack.c.b16 %v162, %v161
  %v221 = vpack.c.b16 %v164, %v163
  %v222 = vpack.c.b16 %v166, %v165
  %v223 = vpack.c.b16 %v168, %v167
  %v224 = vpack.c.b16 %v170, %v169
  %v225 = vpack.c.b16 %v172, %v171
  %v226 = vpack.c.b16 %v174, %v173
  %v227 = vpack.c.b16 %v176, %v175
  %v228 = vpack.c.b16 %v178, %v177
  %v229 = vpack.c.b16 %v180, %v179
  %v230 = vpack.c.b16 %v182, %v181
  %v231 = vpack.c.b16 %v184, %v183
  %v232 = vpack.c.b16 %v186, %v185
  %v233 = vpack.c.b16 %v188, %v187
  %v234 = vpack.c.b16 %v190, %v189
  %v235 = vpack.c.b16 %v192, %v191
  %v236 = vpack.c.b16 %v194, %v193
  %v237 = vpack.c.b16 %v196, %v195
  %v238 = vpack.c.b16 %v198, %v197
  %v239 = vpack.c.b16 %v200, %v199
  %v240 = vpack.c.b16 %v202, %v201
  %v241 = vpack.c.b16 %v204, %v203
  %v242 = vpack.c.b16 %v206, %v205
  %v243 = vpack.c.b16 %v208, %v207
  %v244 = vpack.c.b16 %v210, %v209
  %v245 = vpack.c.b16 %v212, %v211
  %v246 = vpack.c.b16 %v214, %v213
  %vm247 = vcmask 64512
  %v249 = vsel %vm247, %v215, 0
  %v252 = vsel %vm247, %v216, 0
  %v255 = vsel %vm247, %v217, 0
  %v258 = vsel %vm247, %v218, 0
  %v261 = vsel %vm247, %v219, 0
  %v264 = vsel %vm247, %v220, 0
  %v267 = vsel %vm247, %v221, 0
  %v270 = vsel %vm247, %v222, 0
  %v273 = vsel %vm247, %v223, 0
  %v276 = vsel %vm247, %v224, 0
  %v279 = vsel %vm247, %v225, 0
  %v282 = vsel %vm247, %v226, 0
  %v285 = vsel %vm247, %v227, 0
  %v288 = vsel %vm247, %v228, 0
  %v291 = vsel %vm247, %v229, 0
  %v294 = vsel %vm247, %v230, 0
  %v297 = vsel %vm247, %v231, 0
  %v300 = vsel %vm247, %v232, 0
  %v303 = vsel %vm247, %v233, 0
  %v306 = vsel %vm247, %v234, 0
  %v309 = vsel %vm247, %v235, 0
  %v312 = vsel %vm247, %v236, 0
  %v315 = vsel %vm247, %v237, 0
  %v318 = vsel %vm247, %v238, 0
  %v321 = vsel %vm247, %v239, 0
  %v324 = vsel %vm247, %v240, 0
  %v327 = vsel %vm247, %v241, 0
  %v330 = vsel %vm247, %v242, 0
  %v333 = vsel %vm247, %v243, 0
  %v336 = vsel %vm247, %v244, 0
  %v339 = vsel %vm247, %v245, 0
  %v342 = vsel %vm247, %v246, 0
  %vm344 = vcmask 1043456
  %v346 = vsel %vm344, %v79, 0
  %348 = vmatprep.subr.bf16.mxu0 0
  %349 = vmatpush1.bf16.msra.mxu0 %v346
  %350 = vmatprep.subr.bf16.mxu0 0
  %351 = vmatpush1.bf16.msra.mxu0 0
  %352 = vmatprep.subr.bf16.mxu0 0
  %353 = vmatpush1.bf16.msra.mxu0 0
  %354 = vmatprep.subr.bf16.mxu0 0
  %355 = vmatpush1.bf16.msra.mxu0 0
  %356 = vmatprep.subr.bf16.mxu0 0
  %357 = vmatpush1.bf16.msra.mxu0 0
  %358 = vmatprep.subr.bf16.mxu0 0
  %359 = vmatpush1.bf16.msra.mxu0 0
  %360 = vmatprep.subr.bf16.mxu0 0
  %361 = vmatpush1.bf16.msra.mxu0 0
  %362 = vmatprep.subr.bf16.mxu0 0
  %363 = vmatpush1.bf16.msra.mxu0 0
  %364 = vmatprep.subr.bf16.mxu0 0
  %365 = vmatpush1.bf16.msra.mxu0 0
  %366 = vmatprep.subr.bf16.mxu0 0
  %367 = vmatpush1.bf16.msra.mxu0 0
  %368 = vmatprep.subr.bf16.mxu0 0
  %369 = vmatpush1.bf16.msra.mxu0 0
  %370 = vmatprep.subr.bf16.mxu0 0
  %371 = vmatpush1.bf16.msra.mxu0 0
  %372 = vmatprep.subr.bf16.mxu0 0
  %373 = vmatpush1.bf16.msra.mxu0 0
  %374 = vmatprep.subr.bf16.mxu0 0
  %375 = vmatpush1.bf16.msra.mxu0 0
  %376 = vmatprep.subr.bf16.mxu0 0
  %377 = vmatpush1.bf16.msra.mxu0 0
  %378 = vmatprep.subr.bf16.mxu0 0
  %379 = vmatpush1.bf16.msra.mxu0 0
  %380 = vmatprep.mubr.bf16.mxu0 0
  %381 = vmatmul.mubr.bf16.gmra.mrb[0].mxu0 %v249
  %v382 = vpop.f32.mrb[0].mxu0
  %v383 = vadd.f32 %v85, %v382
  %v384 = vpop.f32.mrb[0].mxu0
  %v385 = vpop.f32.mrb[0].mxu0
  %v386 = vadd.f32 %v85, %v385
  %v387 = vpop.f32.mrb[0].mxu0
  %388 = vmatprep.mubr.bf16.mxu0 0
  %389 = vmatmul.mubr.bf16.gmra.mrb[0].mxu0 %v252
  %v390 = vpop.f32.mrb[0].mxu0
  %v391 = vadd.f32 %v85, %v390
  %v392 = vpop.f32.mrb[0].mxu0
  %v393 = vpop.f32.mrb[0].mxu0
  %v394 = vadd.f32 %v85, %v393
  %v395 = vpop.f32.mrb[0].mxu0
  %396 = vmatprep.mubr.bf16.mxu0 0
  %397 = vmatmul.mubr.bf16.gmra.mrb[0].mxu0 %v255
  %v398 = vpop.f32.mrb[0].mxu0
  %v399 = vadd.f32 %v85, %v398
  %v400 = vpop.f32.mrb[0].mxu0
  %v401 = vpop.f32.mrb[0].mxu0
  %v402 = vadd.f32 %v85, %v401
  %v403 = vpop.f32.mrb[0].mxu0
  %404 = vmatprep.mubr.bf16.mxu0 0
  %405 = vmatmul.mubr.bf16.gmra.mrb[0].mxu0 %v258
  %v406 = vpop.f32.mrb[0].mxu0
  %v407 = vadd.f32 %v85, %v406
  %v408 = vpop.f32.mrb[0].mxu0
  %v409 = vpop.f32.mrb[0].mxu0
  %v410 = vadd.f32 %v85, %v409
  %v411 = vpop.f32.mrb[0].mxu0
  %412 = vmatprep.mubr.bf16.mxu0 0
  %413 = vmatmul.mubr.bf16.gmra.mrb[0].mxu0 %v261
  %v414 = vpop.f32.mrb[0].mxu0
  %v415 = vadd.f32 %v85, %v414
  %v416 = vpop.f32.mrb[0].mxu0
  %v417 = vpop.f32.mrb[0].mxu0
  %v418 = vadd.f32 %v85, %v417
  %v419 = vpop.f32.mrb[0].mxu0
  %420 = vmatprep.mubr.bf16.mxu0 0
  %421 = vmatmul.mubr.bf16.gmra.mrb[0].mxu0 %v264
  %v422 = vpop.f32.mrb[0].mxu0
  %v423 = vadd.f32 %v85, %v422
  %v424 = vpop.f32.mrb[0].mxu0
  %v425 = vpop.f32.mrb[0].mxu0
  %v426 = vadd.f32 %v85, %v425
  %v427 = vpop.f32.mrb[0].mxu0
  %428 = vmatprep.mubr.bf16.mxu0 0
  %429 = vmatmul.mubr.bf16.gmra.mrb[0].mxu0 %v267
  %v430 = vpop.f32.mrb[0].mxu0
  %v431 = vadd.f32 %v85, %v430
  %v432 = vpop.f32.mrb[0].mxu0
  %v433 = vpop.f32.mrb[0].mxu0
  %v434 = vadd.f32 %v85, %v433
  %v435 = vpop.f32.mrb[0].mxu0
  %436 = vmatprep.mubr.bf16.mxu0 0
  %437 = vmatmul.mubr.bf16.gmra.mrb[0].mxu0 %v270
  %v438 = vpop.f32.mrb[0].mxu0
  %v439 = vadd.f32 %v85, %v438
  %v440 = vpop.f32.mrb[0].mxu0
  %v441 = vpop.f32.mrb[0].mxu0
  %v442 = vadd.f32 %v85, %v441
  %v443 = vpop.f32.mrb[0].mxu0
  %444 = vmatprep.mubr.bf16.mxu0 0
  %445 = vmatmul.mubr.bf16.gmra.mrb[0].mxu0 %v273
  %v446 = vpop.f32.mrb[0].mxu0
  %v447 = vadd.f32 %v85, %v446
  %v448 = vpop.f32.mrb[0].mxu0
  %v449 = vpop.f32.mrb[0].mxu0
  %v450 = vadd.f32 %v85, %v449
  %v451 = vpop.f32.mrb[0].mxu0
  %452 = vmatprep.mubr.bf16.mxu0 0
  %453 = vmatmul.mubr.bf16.gmra.mrb[0].mxu0 %v276
  %v454 = vpop.f32.mrb[0].mxu0
  %v455 = vadd.f32 %v85, %v454
  %v456 = vpop.f32.mrb[0].mxu0
  %v457 = vpop.f32.mrb[0].mxu0
  %v458 = vadd.f32 %v85, %v457
  %v459 = vpop.f32.mrb[0].mxu0
  %460 = vmatprep.mubr.bf16.mxu0 0
  %461 = vmatmul.mubr.bf16.gmra.mrb[0].mxu0 %v279
  %v462 = vpop.f32.mrb[0].mxu0
  %v463 = vadd.f32 %v85, %v462
  %v464 = vpop.f32.mrb[0].mxu0
  %v465 = vpop.f32.mrb[0].mxu0
  %v466 = vadd.f32 %v85, %v465
  %v467 = vpop.f32.mrb[0].mxu0
  %468 = vmatprep.mubr.bf16.mxu0 0
  %469 = vmatmul.mubr.bf16.gmra.mrb[0].mxu0 %v282
  %v470 = vpop.f32.mrb[0].mxu0
  %v471 = vadd.f32 %v85, %v470
  %v472 = vpop.f32.mrb[0].mxu0
  %v473 = vpop.f32.mrb[0].mxu0
  %v474 = vadd.f32 %v85, %v473
  %v475 = vpop.f32.mrb[0].mxu0
  %476 = vmatprep.mubr.bf16.mxu0 0
  %477 = vmatmul.mubr.bf16.gmra.mrb[0].mxu0 %v285
  %v478 = vpop.f32.mrb[0].mxu0
  %v479 = vadd.f32 %v85, %v478
  %v480 = vpop.f32.mrb[0].mxu0
  %v481 = vpop.f32.mrb[0].mxu0
  %v482 = vadd.f32 %v85, %v481
  %v483 = vpop.f32.mrb[0].mxu0
  %484 = vmatprep.mubr.bf16.mxu0 0
  %485 = vmatmul.mubr.bf16.gmra.mrb[0].mxu0 %v288
  %v486 = vpop.f32.mrb[0].mxu0
  %v487 = vadd.f32 %v85, %v486
  %v488 = vpop.f32.mrb[0].mxu0
  %v489 = vpop.f32.mrb[0].mxu0
  %v490 = vadd.f32 %v85, %v489
  %v491 = vpop.f32.mrb[0].mxu0
  %492 = vmatprep.mubr.bf16.mxu0 0
  %493 = vmatmul.mubr.bf16.gmra.mrb[0].mxu0 %v291
  %v494 = vpop.f32.mrb[0].mxu0
  %v495 = vadd.f32 %v85, %v494
  %v496 = vpop.f32.mrb[0].mxu0
  %v497 = vpop.f32.mrb[0].mxu0
  %v498 = vadd.f32 %v85, %v497
  %v499 = vpop.f32.mrb[0].mxu0
  %500 = vmatprep.mubr.bf16.mxu0 0
  %501 = vmatmul.mubr.bf16.gmra.mrb[0].mxu0 %v294
  %v502 = vpop.f32.mrb[0].mxu0
  %v503 = vadd.f32 %v85, %v502
  %v504 = vpop.f32.mrb[0].mxu0
  %v505 = vpop.f32.mrb[0].mxu0
  %v506 = vadd.f32 %v85, %v505
  %v507 = vpop.f32.mrb[0].mxu0
  %508 = vmatprep.mubr.bf16.mxu0 0
  %509 = vmatmul.mubr.bf16.gmra.mrb[0].mxu0 %v297
  %v510 = vpop.f32.mrb[0].mxu0
  %v511 = vadd.f32 %v85, %v510
  %v512 = vpop.f32.mrb[0].mxu0
  %v513 = vpop.f32.mrb[0].mxu0
  %v514 = vadd.f32 %v85, %v513
  %v515 = vpop.f32.mrb[0].mxu0
  %516 = vmatprep.mubr.bf16.mxu0 0
  %517 = vmatmul.mubr.bf16.gmra.mrb[0].mxu0 %v300
  %v518 = vpop.f32.mrb[0].mxu0
  %v519 = vadd.f32 %v85, %v518
  %v520 = vpop.f32.mrb[0].mxu0
  %v521 = vpop.f32.mrb[0].mxu0
  %v522 = vadd.f32 %v85, %v521
  %v523 = vpop.f32.mrb[0].mxu0
  %524 = vmatprep.mubr.bf16.mxu0 0
  %525 = vmatmul.mubr.bf16.gmra.mrb[0].mxu0 %v303
  %v526 = vpop.f32.mrb[0].mxu0
  %v527 = vadd.f32 %v85, %v526
  %v528 = vpop.f32.mrb[0].mxu0
  %v529 = vpop.f32.mrb[0].mxu0
  %v530 = vadd.f32 %v85, %v529
  %v531 = vpop.f32.mrb[0].mxu0
  %532 = vmatprep.mubr.bf16.mxu0 0
  %533 = vmatmul.mubr.bf16.gmra.mrb[0].mxu0 %v306
  %v534 = vpop.f32.mrb[0].mxu0
  %v535 = vadd.f32 %v85, %v534
  %v536 = vpop.f32.mrb[0].mxu0
  %v537 = vpop.f32.mrb[0].mxu0
  %v538 = vadd.f32 %v85, %v537
  %v539 = vpop.f32.mrb[0].mxu0
  %540 = vmatprep.mubr.bf16.mxu0 0
  %541 = vmatmul.mubr.bf16.gmra.mrb[0].mxu0 %v309
  %v542 = vpop.f32.mrb[0].mxu0
  %v543 = vadd.f32 %v85, %v542
  %v544 = vpop.f32.mrb[0].mxu0
  %v545 = vpop.f32.mrb[0].mxu0
  %v546 = vadd.f32 %v85, %v545
  %v547 = vpop.f32.mrb[0].mxu0
  %548 = vmatprep.mubr.bf16.mxu0 0
  %549 = vmatmul.mubr.bf16.gmra.mrb[0].mxu0 %v312
  %v550 = vpop.f32.mrb[0].mxu0
  %v551 = vadd.f32 %v85, %v550
  %v552 = vpop.f32.mrb[0].mxu0
  %v553 = vpop.f32.mrb[0].mxu0
  %v554 = vadd.f32 %v85, %v553
  %v555 = vpop.f32.mrb[0].mxu0
  %556 = vmatprep.mubr.bf16.mxu0 0
  %557 = vmatmul.mubr.bf16.gmra.mrb[0].mxu0 %v315
  %v558 = vpop.f32.mrb[0].mxu0
  %v559 = vadd.f32 %v85, %v558
  %v560 = vpop.f32.mrb[0].mxu0
  %v561 = vpop.f32.mrb[0].mxu0
  %v562 = vadd.f32 %v85, %v561
  %v563 = vpop.f32.mrb[0].mxu0
  %564 = vmatprep.mubr.bf16.mxu0 0
  %565 = vmatmul.mubr.bf16.gmra.mrb[0].mxu0 %v318
  %v566 = vpop.f32.mrb[0].mxu0
  %v567 = vadd.f32 %v85, %v566
  %v568 = vpop.f32.mrb[0].mxu0
  %v569 = vpop.f32.mrb[0].mxu0
  %v570 = vadd.f32 %v85, %v569
  %v571 = vpop.f32.mrb[0].mxu0
  %572 = vmatprep.mubr.bf16.mxu0 0
  %573 = vmatmul.mubr.bf16.gmra.mrb[0].mxu0 %v321
  %v574 = vpop.f32.mrb[0].mxu0
  %v575 = vadd.f32 %v85, %v574
  %v576 = vpop.f32.mrb[0].mxu0
  %v577 = vpop.f32.mrb[0].mxu0
  %v578 = vadd.f32 %v85, %v577
  %v579 = vpop.f32.mrb[0].mxu0
  %580 = vmatprep.mubr.bf16.mxu0 0
  %581 = vmatmul.mubr.bf16.gmra.mrb[0].mxu0 %v324
  %v582 = vpop.f32.mrb[0].mxu0
  %v583 = vadd.f32 %v85, %v582
  %v584 = vpop.f32.mrb[0].mxu0
  %v585 = vpop.f32.mrb[0].mxu0
  %v586 = vadd.f32 %v85, %v585
  %v587 = vpop.f32.mrb[0].mxu0
  %588 = vmatprep.mubr.bf16.mxu0 0
  %589 = vmatmul.mubr.bf16.gmra.mrb[0].mxu0 %v327
  %v590 = vpop.f32.mrb[0].mxu0
  %v591 = vadd.f32 %v85, %v590
  %v592 = vpop.f32.mrb[0].mxu0
  %v593 = vpop.f32.mrb[0].mxu0
  %v594 = vadd.f32 %v85, %v593
  %v595 = vpop.f32.mrb[0].mxu0
  %596 = vmatprep.mubr.bf16.mxu0 0
  %597 = vmatmul.mubr.bf16.gmra.mrb[0].mxu0 %v330
  %v598 = vpop.f32.mrb[0].mxu0
  %v599 = vadd.f32 %v85, %v598
  %v600 = vpop.f32.mrb[0].mxu0
  %v601 = vpop.f32.mrb[0].mxu0
  %v602 = vadd.f32 %v85, %v601
  %v603 = vpop.f32.mrb[0].mxu0
  %604 = vmatprep.mubr.bf16.mxu0 0
  %605 = vmatmul.mubr.bf16.gmra.mrb[0].mxu0 %v333
  %v606 = vpop.f32.mrb[0].mxu0
  %v607 = vadd.f32 %v85, %v606
  %v608 = vpop.f32.mrb[0].mxu0
  %v609 = vpop.f32.mrb[0].mxu0
  %v610 = vadd.f32 %v85, %v609
  %v611 = vpop.f32.mrb[0].mxu0
  %612 = vmatprep.mubr.bf16.mxu0 0
  %613 = vmatmul.mubr.bf16.gmra.mrb[0].mxu0 %v336
  %v614 = vpop.f32.mrb[0].mxu0
  %v615 = vadd.f32 %v85, %v614
  %v616 = vpop.f32.mrb[0].mxu0
  %v617 = vpop.f32.mrb[0].mxu0
  %v618 = vadd.f32 %v85, %v617
  %v619 = vpop.f32.mrb[0].mxu0
  %620 = vmatprep.mubr.bf16.mxu0 0
  %621 = vmatmul.mubr.bf16.gmra.mrb[0].mxu0 %v339
  %v622 = vpop.f32.mrb[0].mxu0
  %v623 = vadd.f32 %v85, %v622
  %v624 = vpop.f32.mrb[0].mxu0
  %v625 = vpop.f32.mrb[0].mxu0
  %v626 = vadd.f32 %v85, %v625
  %v627 = vpop.f32.mrb[0].mxu0
  %628 = vmatprep.mubr.bf16.mxu0 0
  %629 = vmatmul.mubr.bf16.gmra.mrb[0].mxu0 %v342
  %v630 = vpop.f32.mrb[0].mxu0
  %v631 = vadd.f32 %v85, %v630
  %v632 = vpop.f32.mrb[0].mxu0
  %v633 = vpop.f32.mrb[0].mxu0
  %v634 = vadd.f32 %v85, %v633
  %v635 = vpop.f32.mrb[0].mxu0
  %636 = vdwg.mxu0
  %v637 = vmax.f32 %v383, 0.0
  %v638 = vmax.f32 %v386, 0.0
  %v639 = vmax.f32 %v391, 0.0
  %v640 = vmax.f32 %v394, 0.0
  %v641 = vmax.f32 %v399, 0.0
  %v642 = vmax.f32 %v402, 0.0
  %v643 = vmax.f32 %v407, 0.0
  %v644 = vmax.f32 %v410, 0.0
  %v645 = vmax.f32 %v415, 0.0
  %v646 = vmax.f32 %v418, 0.0
  %v647 = vmax.f32 %v423, 0.0
  %v648 = vmax.f32 %v426, 0.0
  %v649 = vmax.f32 %v431, 0.0
  %v650 = vmax.f32 %v434, 0.0
  %v651 = vmax.f32 %v439, 0.0
  %v652 = vmax.f32 %v442, 0.0
  %v653 = vmax.f32 %v447, 0.0
  %v654 = vmax.f32 %v450, 0.0
  %v655 = vmax.f32 %v455, 0.0
  %v656 = vmax.f32 %v458, 0.0
  %v657 = vmax.f32 %v463, 0.0
  %v658 = vmax.f32 %v466, 0.0
  %v659 = vmax.f32 %v471, 0.0
  %v660 = vmax.f32 %v474, 0.0
  %v661 = vmax.f32 %v479, 0.0
  %v662 = vmax.f32 %v482, 0.0
  %v663 = vmax.f32 %v487, 0.0
  %v664 = vmax.f32 %v490, 0.0
  %v665 = vmax.f32 %v495, 0.0
  %v666 = vmax.f32 %v498, 0.0
  %v667 = vmax.f32 %v503, 0.0
  %v668 = vmax.f32 %v506, 0.0
  %v669 = vmax.f32 %v511, 0.0
  %v670 = vmax.f32 %v514, 0.0
  %v671 = vmax.f32 %v519, 0.0
  %v672 = vmax.f32 %v522, 0.0
  %v673 = vmax.f32 %v527, 0.0
  %v674 = vmax.f32 %v530, 0.0
  %v675 = vmax.f32 %v535, 0.0
  %v676 = vmax.f32 %v538, 0.0
  %v677 = vmax.f32 %v543, 0.0
  %v678 = vmax.f32 %v546, 0.0
  %v679 = vmax.f32 %v551, 0.0
  %v680 = vmax.f32 %v554, 0.0
  %v681 = vmax.f32 %v559, 0.0
  %v682 = vmax.f32 %v562, 0.0
  %v683 = vmax.f32 %v567, 0.0
  %v684 = vmax.f32 %v570, 0.0
  %v685 = vmax.f32 %v575, 0.0
  %v686 = vmax.f32 %v578, 0.0
  %v687 = vmax.f32 %v583, 0.0
  %v688 = vmax.f32 %v586, 0.0
  %v689 = vmax.f32 %v591, 0.0
  %v690 = vmax.f32 %v594, 0.0
  %v691 = vmax.f32 %v599, 0.0
  %v692 = vmax.f32 %v602, 0.0
  %v693 = vmax.f32 %v607, 0.0
  %v694 = vmax.f32 %v610, 0.0
  %v695 = vmax.f32 %v615, 0.0
  %v696 = vmax.f32 %v618, 0.0
  %v697 = vmax.f32 %v623, 0.0
  %v698 = vmax.f32 %v626, 0.0
  %v699 = vmax.f32 %v631, 0.0
  %v700 = vmax.f32 %v634, 0.0
  %vm701 = vcmask 523264
  %702 = vst.msk [vmem:[%s3] sm:$0xff] %vm701, %v637
  %703 = vst.msk [vmem:[%s3 + $0x8] sm:$0xff] %vm701, %v638
  %704 = vst.msk [vmem:[%s3 + $0x10] sm:$0xff] %vm701, %v639
  %705 = vst.msk [vmem:[%s3 + $0x18] sm:$0xff] %vm701, %v640
  %706 = vst.msk [vmem:[%s3 + $0x20] sm:$0xff] %vm701, %v641
  %707 = vst.msk [vmem:[%s3 + $0x28] sm:$0xff] %vm701, %v642
  %708 = vst.msk [vmem:[%s3 + $0x30] sm:$0xff] %vm701, %v643
  %709 = vst.msk [vmem:[%s3 + $0x38] sm:$0xff] %vm701, %v644
  %710 = vst.msk [vmem:[%s3 + $0x40] sm:$0xff] %vm701, %v645
  %711 = vst.msk [vmem:[%s3 + $0x48] sm:$0xff] %vm701, %v646
  %712 = vst.msk [vmem:[%s3 + $0x50] sm:$0xff] %vm701, %v647
  %713 = vst.msk [vmem:[%s3 + $0x58] sm:$0xff] %vm701, %v648
  %714 = vst.msk [vmem:[%s3 + $0x60] sm:$0xff] %vm701, %v649
  %715 = vst.msk [vmem:[%s3 + $0x68] sm:$0xff] %vm701, %v650
  %716 = vst.msk [vmem:[%s3 + $0x70] sm:$0xff] %vm701, %v651
  %717 = vst.msk [vmem:[%s3 + $0x78] sm:$0xff] %vm701, %v652
  %718 = vst.msk [vmem:[%s3 + $0x80] sm:$0xff] %vm701, %v653
  %719 = vst.msk [vmem:[%s3 + $0x88] sm:$0xff] %vm701, %v654
  %720 = vst.msk [vmem:[%s3 + $0x90] sm:$0xff] %vm701, %v655
  %721 = vst.msk [vmem:[%s3 + $0x98] sm:$0xff] %vm701, %v656
  %722 = vst.msk [vmem:[%s3 + $0xa0] sm:$0xff] %vm701, %v657
  %723 = vst.msk [vmem:[%s3 + $0xa8] sm:$0xff] %vm701, %v658
  %724 = vst.msk [vmem:[%s3 + $0xb0] sm:$0xff] %vm701, %v659
  %725 = vst.msk [vmem:[%s3 + $0xb8] sm:$0xff] %vm701, %v660
  %726 = vst.msk [vmem:[%s3 + $0xc0] sm:$0xff] %vm701, %v661
  %727 = vst.msk [vmem:[%s3 + $0xc8] sm:$0xff] %vm701, %v662
  %728 = vst.msk [vmem:[%s3 + $0xd0] sm:$0xff] %vm701, %v663
  %729 = vst.msk [vmem:[%s3 + $0xd8] sm:$0xff] %vm701, %v664
  %730 = vst.msk [vmem:[%s3 + $0xe0] sm:$0xff] %vm701, %v665
  %731 = vst.msk [vmem:[%s3 + $0xe8] sm:$0xff] %vm701, %v666
  %732 = vst.msk [vmem:[%s3 + $0xf0] sm:$0xff] %vm701, %v667
  %733 = vst.msk [vmem:[%s3 + $0xf8] sm:$0xff] %vm701, %v668
  %734 = vst.msk [vmem:[%s3 + $0x100] sm:$0xff] %vm701, %v669
  %735 = vst.msk [vmem:[%s3 + $0x108] sm:$0xff] %vm701, %v670
  %736 = vst.msk [vmem:[%s3 + $0x110] sm:$0xff] %vm701, %v671
  %737 = vst.msk [vmem:[%s3 + $0x118] sm:$0xff] %vm701, %v672
  %738 = vst.msk [vmem:[%s3 + $0x120] sm:$0xff] %vm701, %v673
  %739 = vst.msk [vmem:[%s3 + $0x128] sm:$0xff] %vm701, %v674
  %740 = vst.msk [vmem:[%s3 + $0x130] sm:$0xff] %vm701, %v675
  %741 = vst.msk [vmem:[%s3 + $0x138] sm:$0xff] %vm701, %v676
  %742 = vst.msk [vmem:[%s3 + $0x140] sm:$0xff] %vm701, %v677
  %743 = vst.msk [vmem:[%s3 + $0x148] sm:$0xff] %vm701, %v678
  %744 = vst.msk [vmem:[%s3 + $0x150] sm:$0xff] %vm701, %v679
  %745 = vst.msk [vmem:[%s3 + $0x158] sm:$0xff] %vm701, %v680
  %746 = vst.msk [vmem:[%s3 + $0x160] sm:$0xff] %vm701, %v681
  %747 = vst.msk [vmem:[%s3 + $0x168] sm:$0xff] %vm701, %v682
  %748 = vst.msk [vmem:[%s3 + $0x170] sm:$0xff] %vm701, %v683
  %749 = vst.msk [vmem:[%s3 + $0x178] sm:$0xff] %vm701, %v684
  %750 = vst.msk [vmem:[%s3 + $0x180] sm:$0xff] %vm701, %v685
  %751 = vst.msk [vmem:[%s3 + $0x188] sm:$0xff] %vm701, %v686
  %752 = vst.msk [vmem:[%s3 + $0x190] sm:$0xff] %vm701, %v687
  %753 = vst.msk [vmem:[%s3 + $0x198] sm:$0xff] %vm701, %v688
  %754 = vst.msk [vmem:[%s3 + $0x1a0] sm:$0xff] %vm701, %v689
  %755 = vst.msk [vmem:[%s3 + $0x1a8] sm:$0xff] %vm701, %v690
  %756 = vst.msk [vmem:[%s3 + $0x1b0] sm:$0xff] %vm701, %v691
  %757 = vst.msk [vmem:[%s3 + $0x1b8] sm:$0xff] %vm701, %v692
  %758 = vst.msk [vmem:[%s3 + $0x1c0] sm:$0xff] %vm701, %v693
  %759 = vst.msk [vmem:[%s3 + $0x1c8] sm:$0xff] %vm701, %v694
  %760 = vst.msk [vmem:[%s3 + $0x1d0] sm:$0xff] %vm701, %v695
  %761 = vst.msk [vmem:[%s3 + $0x1d8] sm:$0xff] %vm701, %v696
  %762 = vst.msk [vmem:[%s3 + $0x1e0] sm:$0xff] %vm701, %v697
  %763 = vst.msk [vmem:[%s3 + $0x1e8] sm:$0xff] %vm701, %v698
  %764 = vst.msk [vmem:[%s3 + $0x1f0] sm:$0xff] %vm701, %v699
  %765 = vst.msk [vmem:[%s3 + $0x1f8] sm:$0xff] %vm701, %v700
  // Predicated region
  $region14: #{forward.2} parent=0 // pred_check
    _
  $region15: #{forward.2} parent=0 // pred_check_branch
    %767 = sbr.rel (0) target = $region17
  $region16: #{forward.2} parent=0 // pred_region
    _
  $region17: #{forward.2} parent=0 // pred_fallthru
    _
  // Predicated region
  $region18: #{forward.2} parent=0 // pred_check
    _
  $region19: #{forward.2} parent=0 // pred_check_branch
    %769 = sbr.rel (0) target = $region21
  $region20: #{forward.2} parent=0 // pred_region
    _
  $region21: #{forward.2} parent=0 // pred_fallthru
    _

// kernel: squeeze.2
$region0: #{squeeze.2}
  %s0 = inlined_call_operand.vmem [shape: f32[2,4096], index: 0, kind: input, shape index: {}]
  %s1 = inlined_call_operand.hbm [shape: f32[2,1,64,64], index: 1, kind: output, shape index: {}]
  $region1: #{squeeze.2} parent=0
    #allocation0 [shape = 'u8[65536]{0}', space=vmem, size = 0x10000, scoped, tag = 'operand span for operand 1']
    #allocation1 [shape = 's32[1]{0}', space=sflag, size = 0x4, scoped, tag = 'scoped memory for squeeze.2']
    #allocation2 [shape = 'u8[131072]{0}', space=vmem, size = 0x20000, scoped, tag = 'scoped mem for input reshape']
    %2 = vsyncpa [#allocation1], 0
    %s4 = sshllo.u32 0, 2
    %s5 = smul.addr 2, 31
    %s6 = scalar_lea.vmem %s0, %s5
    %v7 = vld [vmem:[%s6] sm:%s4]
    %s8 = scalar_lea.vmem [#allocation2], 248
    %9 = vst [vmem:[%s8] sm:%s4] %v7
    %s10 = smul.addr 2, 30
    %s11 = scalar_lea.vmem %s0, %s10
    %v12 = vld [vmem:[%s11] sm:%s4]
    %s13 = scalar_lea.vmem [#allocation2], 240
    %14 = vst [vmem:[%s13] sm:%s4] %v12
    %s15 = smul.addr 2, 29
    %s16 = scalar_lea.vmem %s0, %s15
    %v17 = vld [vmem:[%s16] sm:%s4]
    %s18 = scalar_lea.vmem [#allocation2], 232
    %19 = vst [vmem:[%s18] sm:%s4] %v17
    %s20 = smul.addr 2, 28
    %s21 = scalar_lea.vmem %s0, %s20
    %v22 = vld [vmem:[%s21] sm:%s4]
    %s23 = scalar_lea.vmem [#allocation2], 224
    %24 = vst [vmem:[%s23] sm:%s4] %v22
    %s25 = smul.addr 2, 27
    %s26 = scalar_lea.vmem %s0, %s25
    %v27 = vld [vmem:[%s26] sm:%s4]
    %s28 = scalar_lea.vmem [#allocation2], 216
    %29 = vst [vmem:[%s28] sm:%s4] %v27
    %s30 = smul.addr 2, 26
    %s31 = scalar_lea.vmem %s0, %s30
    %v32 = vld [vmem:[%s31] sm:%s4]
    %s33 = scalar_lea.vmem [#allocation2], 208
    %34 = vst [vmem:[%s33] sm:%s4] %v32
    %s35 = smul.addr 2, 25
    %s36 = scalar_lea.vmem %s0, %s35
    %v37 = vld [vmem:[%s36] sm:%s4]
    %s38 = scalar_lea.vmem [#allocation2], 200
    %39 = vst [vmem:[%s38] sm:%s4] %v37
    %s40 = smul.addr 2, 24
    %s41 = scalar_lea.vmem %s0, %s40
    %v42 = vld [vmem:[%s41] sm:%s4]
    %s43 = scalar_lea.vmem [#allocation2], 192
    %44 = vst [vmem:[%s43] sm:%s4] %v42
    %s45 = smul.addr 2, 23
    %s46 = scalar_lea.vmem %s0, %s45
    %v47 = vld [vmem:[%s46] sm:%s4]
    %s48 = scalar_lea.vmem [#allocation2], 184
    %49 = vst [vmem:[%s48] sm:%s4] %v47
    %s50 = smul.addr 2, 22
    %s51 = scalar_lea.vmem %s0, %s50
    %v52 = vld [vmem:[%s51] sm:%s4]
    %s53 = scalar_lea.vmem [#allocation2], 176
    %54 = vst [vmem:[%s53] sm:%s4] %v52
    %s55 = smul.addr 2, 21
    %s56 = scalar_lea.vmem %s0, %s55
    %v57 = vld [vmem:[%s56] sm:%s4]
    %s58 = scalar_lea.vmem [#allocation2], 168
    %59 = vst [vmem:[%s58] sm:%s4] %v57
    %s60 = smul.addr 2, 20
    %s61 = scalar_lea.vmem %s0, %s60
    %v62 = vld [vmem:[%s61] sm:%s4]
    %s63 = scalar_lea.vmem [#allocation2], 160
    %64 = vst [vmem:[%s63] sm:%s4] %v62
    %s65 = smul.addr 2, 19
    %s66 = scalar_lea.vmem %s0, %s65
    %v67 = vld [vmem:[%s66] sm:%s4]
    %s68 = scalar_lea.vmem [#allocation2], 152
    %69 = vst [vmem:[%s68] sm:%s4] %v67
    %s70 = smul.addr 2, 18
    %s71 = scalar_lea.vmem %s0, %s70
    %v72 = vld [vmem:[%s71] sm:%s4]
    %s73 = scalar_lea.vmem [#allocation2], 144
    %74 = vst [vmem:[%s73] sm:%s4] %v72
    %s75 = smul.addr 2, 17
    %s76 = scalar_lea.vmem %s0, %s75
    %v77 = vld [vmem:[%s76] sm:%s4]
    %s78 = scalar_lea.vmem [#allocation2], 136
    %79 = vst [vmem:[%s78] sm:%s4] %v77
    %s80 = smul.addr 2, 16
    %s81 = scalar_lea.vmem %s0, %s80
    %v82 = vld [vmem:[%s81] sm:%s4]
    %s83 = scalar_lea.vmem [#allocation2], 128
    %84 = vst [vmem:[%s83] sm:%s4] %v82
    %s85 = smul.addr 2, 15
    %s86 = scalar_lea.vmem %s0, %s85
    %v87 = vld [vmem:[%s86] sm:%s4]
    %s88 = scalar_lea.vmem [#allocation2], 120
    %89 = vst [vmem:[%s88] sm:%s4] %v87
    %s90 = smul.addr 2, 14
    %s91 = scalar_lea.vmem %s0, %s90
    %v92 = vld [vmem:[%s91] sm:%s4]
    %s93 = scalar_lea.vmem [#allocation2], 112
    %94 = vst [vmem:[%s93] sm:%s4] %v92
    %s95 = smul.addr 2, 13
    %s96 = scalar_lea.vmem %s0, %s95
    %v97 = vld [vmem:[%s96] sm:%s4]
    %s98 = scalar_lea.vmem [#allocation2], 104
    %99 = vst [vmem:[%s98] sm:%s4] %v97
    %s100 = smul.addr 2, 12
    %s101 = scalar_lea.vmem %s0, %s100
    %v102 = vld [vmem:[%s101] sm:%s4]
    %s103 = scalar_lea.vmem [#allocation2], 96
    %104 = vst [vmem:[%s103] sm:%s4] %v102
    %s105 = smul.addr 2, 11
    %s106 = scalar_lea.vmem %s0, %s105
    %v107 = vld [vmem:[%s106] sm:%s4]
    %s108 = scalar_lea.vmem [#allocation2], 88
    %109 = vst [vmem:[%s108] sm:%s4] %v107
    %s110 = smul.addr 2, 10
    %s111 = scalar_lea.vmem %s0, %s110
    %v112 = vld [vmem:[%s111] sm:%s4]
    %s113 = scalar_lea.vmem [#allocation2], 80
    %114 = vst [vmem:[%s113] sm:%s4] %v112
    %s115 = smul.addr 2, 9
    %s116 = scalar_lea.vmem %s0, %s115
    %v117 = vld [vmem:[%s116] sm:%s4]
    %s118 = scalar_lea.vmem [#allocation2], 72
    %119 = vst [vmem:[%s118] sm:%s4] %v117
    %s120 = smul.addr 2, 8
    %s121 = scalar_lea.vmem %s0, %s120
    %v122 = vld [vmem:[%s121] sm:%s4]
    %s123 = scalar_lea.vmem [#allocation2], 64
    %124 = vst [vmem:[%s123] sm:%s4] %v122
    %s125 = smul.addr 2, 7
    %s126 = scalar_lea.vmem %s0, %s125
    %v127 = vld [vmem:[%s126] sm:%s4]
    %s128 = scalar_lea.vmem [#allocation2], 56
    %129 = vst [vmem:[%s128] sm:%s4] %v127
    %s130 = smul.addr 2, 6
    %s131 = scalar_lea.vmem %s0, %s130
    %v132 = vld [vmem:[%s131] sm:%s4]
    %s133 = scalar_lea.vmem [#allocation2], 48
    %134 = vst [vmem:[%s133] sm:%s4] %v132
    %s135 = smul.addr 2, 5
    %s136 = scalar_lea.vmem %s0, %s135
    %v137 = vld [vmem:[%s136] sm:%s4]
    %s138 = scalar_lea.vmem [#allocation2], 40
    %139 = vst [vmem:[%s138] sm:%s4] %v137
    %s140 = smul.addr 2, 4
    %s141 = scalar_lea.vmem %s0, %s140
    %v142 = vld [vmem:[%s141] sm:%s4]
    %s143 = scalar_lea.vmem [#allocation2], 32
    %144 = vst [vmem:[%s143] sm:%s4] %v142
    %s145 = smul.addr 2, 3
    %s146 = scalar_lea.vmem %s0, %s145
    %v147 = vld [vmem:[%s146] sm:%s4]
    %s148 = scalar_lea.vmem [#allocation2], 24
    %149 = vst [vmem:[%s148] sm:%s4] %v147
    %s150 = smul.addr 2, 2
    %s151 = scalar_lea.vmem %s0, %s150
    %v152 = vld [vmem:[%s151] sm:%s4]
    %s153 = scalar_lea.vmem [#allocation2], 16
    %154 = vst [vmem:[%s153] sm:%s4] %v152
    %s155 = scalar_lea.vmem %s0, 2
    %v156 = vld [vmem:[%s155] sm:%s4]
    %s157 = scalar_lea.vmem [#allocation2], 8
    %158 = vst [vmem:[%s157] sm:%s4] %v156
    %v159 = vld [vmem:[%s0] sm:%s4]
    %160 = vst [vmem:[#allocation2] sm:%s4] %v159
    %v161 = vld [vmem:[#allocation2] sm:$0x3]
    %vm162 = vcmask 523264
    %163 = vst.msk [vmem:[#allocation0] sm:$0x1] %vm162, %v161
    %s164 = scalar_lea.vmem [#allocation0], 63
    %165 = vst.msk [vmem:[%s164] sm:$0x2] %vm162, %v161
    %s166 = scalar_lea.vmem [#allocation2], 8
    %v167 = vld [vmem:[%s166] sm:$0x3]
    %vm168 = vcmask 523264
    %s169 = scalar_lea.vmem [#allocation0], 2
    %170 = vst.msk [vmem:[%s169] sm:$0x1] %vm168, %v167
    %s171 = scalar_lea.vmem [#allocation0], 65
    %172 = vst.msk [vmem:[%s171] sm:$0x2] %vm168, %v167
    %s173 = scalar_lea.vmem [#allocation2], 16
    %v174 = vld [vmem:[%s173] sm:$0x3]
    %vm175 = vcmask 523264
    %s176 = scalar_lea.vmem [#allocation0], 4
    %177 = vst.msk [vmem:[%s176] sm:$0x1] %vm175, %v174
    %s178 = scalar_lea.vmem [#allocation0], 67
    %179 = vst.msk [vmem:[%s178] sm:$0x2] %vm175, %v174
    %s180 = scalar_lea.vmem [#allocation2], 24
    %v181 = vld [vmem:[%s180] sm:$0x3]
    %vm182 = vcmask 523264
    %s183 = scalar_lea.vmem [#allocation0], 6
    %184 = vst.msk [vmem:[%s183] sm:$0x1] %vm182, %v181
    %s185 = scalar_lea.vmem [#allocation0], 69
    %186 = vst.msk [vmem:[%s185] sm:$0x2] %vm182, %v181
    %s187 = scalar_lea.vmem [#allocation2], 32
    %v188 = vld [vmem:[%s187] sm:$0x3]
    %vm189 = vcmask 523264
    %s190 = scalar_lea.vmem [#allocation0], 8
    %191 = vst.msk [vmem:[%s190] sm:$0x1] %vm189, %v188
    %s192 = scalar_lea.vmem [#allocation0], 71
    %193 = vst.msk [vmem:[%s192] sm:$0x2] %vm189, %v188
    %s194 = scalar_lea.vmem [#allocation2], 40
    %v195 = vld [vmem:[%s194] sm:$0x3]
    %vm196 = vcmask 523264
    %s197 = scalar_lea.vmem [#allocation0], 10
    %198 = vst.msk [vmem:[%s197] sm:$0x1] %vm196, %v195
    %s199 = scalar_lea.vmem [#allocation0], 73
    %200 = vst.msk [vmem:[%s199] sm:$0x2] %vm196, %v195
    %s201 = scalar_lea.vmem [#allocation2], 48
    %v202 = vld [vmem:[%s201] sm:$0x3]
    %vm203 = vcmask 523264
    %s204 = scalar_lea.vmem [#allocation0], 12
    %205 = vst.msk [vmem:[%s204] sm:$0x1] %vm203, %v202
    %s206 = scalar_lea.vmem [#allocation0], 75
    %207 = vst.msk [vmem:[%s206] sm:$0x2] %vm203, %v202
    %s208 = scalar_lea.vmem [#allocation2], 56
    %v209 = vld [vmem:[%s208] sm:$0x3]
    %vm210 = vcmask 523264
    %s211 = scalar_lea.vmem [#allocation0], 14
    %212 = vst.msk [vmem:[%s211] sm:$0x1] %vm210, %v209
    %s213 = scalar_lea.vmem [#allocation0], 77
    %214 = vst.msk [vmem:[%s213] sm:$0x2] %vm210, %v209
    %s215 = scalar_lea.vmem [#allocation2], 64
    %v216 = vld [vmem:[%s215] sm:$0x3]
    %vm217 = vcmask 523264
    %s218 = scalar_lea.vmem [#allocation0], 16
    %219 = vst.msk [vmem:[%s218] sm:$0x1] %vm217, %v216
    %s220 = scalar_lea.vmem [#allocation0], 79
    %221 = vst.msk [vmem:[%s220] sm:$0x2] %vm217, %v216
    %s222 = scalar_lea.vmem [#allocation2], 72
    %v223 = vld [vmem:[%s222] sm:$0x3]
    %vm224 = vcmask 523264
    %s225 = scalar_lea.vmem [#allocation0], 18
    %226 = vst.msk [vmem:[%s225] sm:$0x1] %vm224, %v223
    %s227 = scalar_lea.vmem [#allocation0], 81
    %228 = vst.msk [vmem:[%s227] sm:$0x2] %vm224, %v223
    %s229 = scalar_lea.vmem [#allocation2], 80
    %v230 = vld [vmem:[%s229] sm:$0x3]
    %vm231 = vcmask 523264
    %s232 = scalar_lea.vmem [#allocation0], 20
    %233 = vst.msk [vmem:[%s232] sm:$0x1] %vm231, %v230
    %s234 = scalar_lea.vmem [#allocation0], 83
    %235 = vst.msk [vmem:[%s234] sm:$0x2] %vm231, %v230
    %s236 = scalar_lea.vmem [#allocation2], 88
    %v237 = vld [vmem:[%s236] sm:$0x3]
    %vm238 = vcmask 523264
    %s239 = scalar_lea.vmem [#allocation0], 22
    %240 = vst.msk [vmem:[%s239] sm:$0x1] %vm238, %v237
    %s241 = scalar_lea.vmem [#allocation0], 85
    %242 = vst.msk [vmem:[%s241] sm:$0x2] %vm238, %v237
    %s243 = scalar_lea.vmem [#allocation2], 96
    %v244 = vld [vmem:[%s243] sm:$0x3]
    %vm245 = vcmask 523264
    %s246 = scalar_lea.vmem [#allocation0], 24
    %247 = vst.msk [vmem:[%s246] sm:$0x1] %vm245, %v244
    %s248 = scalar_lea.vmem [#allocation0], 87
    %249 = vst.msk [vmem:[%s248] sm:$0x2] %vm245, %v244
    %s250 = scalar_lea.vmem [#allocation2], 104
    %v251 = vld [vmem:[%s250] sm:$0x3]
    %vm252 = vcmask 523264
    %s253 = scalar_lea.vmem [#allocation0], 26
    %254 = vst.msk [vmem:[%s253] sm:$0x1] %vm252, %v251
    %s255 = scalar_lea.vmem [#allocation0], 89
    %256 = vst.msk [vmem:[%s255] sm:$0x2] %vm252, %v251
    %s257 = scalar_lea.vmem [#allocation2], 112
    %v258 = vld [vmem:[%s257] sm:$0x3]
    %vm259 = vcmask 523264
    %s260 = scalar_lea.vmem [#allocation0], 28
    %261 = vst.msk [vmem:[%s260] sm:$0x1] %vm259, %v258
    %s262 = scalar_lea.vmem [#allocation0], 91
    %263 = vst.msk [vmem:[%s262] sm:$0x2] %vm259, %v258
    %s264 = scalar_lea.vmem [#allocation2], 120
    %v265 = vld [vmem:[%s264] sm:$0x3]
    %vm266 = vcmask 523264
    %s267 = scalar_lea.vmem [#allocation0], 30
    %268 = vst.msk [vmem:[%s267] sm:$0x1] %vm266, %v265
    %s269 = scalar_lea.vmem [#allocation0], 93
    %270 = vst.msk [vmem:[%s269] sm:$0x2] %vm266, %v265
    %s271 = scalar_lea.vmem [#allocation2], 128
    %v272 = vld [vmem:[%s271] sm:$0x3]
    %vm273 = vcmask 523264
    %s274 = scalar_lea.vmem [#allocation0], 32
    %275 = vst.msk [vmem:[%s274] sm:$0x1] %vm273, %v272
    %s276 = scalar_lea.vmem [#allocation0], 95
    %277 = vst.msk [vmem:[%s276] sm:$0x2] %vm273, %v272
    %s278 = scalar_lea.vmem [#allocation2], 136
    %v279 = vld [vmem:[%s278] sm:$0x3]
    %vm280 = vcmask 523264
    %s281 = scalar_lea.vmem [#allocation0], 34
    %282 = vst.msk [vmem:[%s281] sm:$0x1] %vm280, %v279
    %s283 = scalar_lea.vmem [#allocation0], 97
    %284 = vst.msk [vmem:[%s283] sm:$0x2] %vm280, %v279
    %s285 = scalar_lea.vmem [#allocation2], 144
    %v286 = vld [vmem:[%s285] sm:$0x3]
    %vm287 = vcmask 523264
    %s288 = scalar_lea.vmem [#allocation0], 36
    %289 = vst.msk [vmem:[%s288] sm:$0x1] %vm287, %v286
    %s290 = scalar_lea.vmem [#allocation0], 99
    %291 = vst.msk [vmem:[%s290] sm:$0x2] %vm287, %v286
    %s292 = scalar_lea.vmem [#allocation2], 152
    %v293 = vld [vmem:[%s292] sm:$0x3]
    %vm294 = vcmask 523264
    %s295 = scalar_lea.vmem [#allocation0], 38
    %296 = vst.msk [vmem:[%s295] sm:$0x1] %vm294, %v293
    %s297 = scalar_lea.vmem [#allocation0], 101
    %298 = vst.msk [vmem:[%s297] sm:$0x2] %vm294, %v293
    %s299 = scalar_lea.vmem [#allocation2], 160
    %v300 = vld [vmem:[%s299] sm:$0x3]
    %vm301 = vcmask 523264
    %s302 = scalar_lea.vmem [#allocation0], 40
    %303 = vst.msk [vmem:[%s302] sm:$0x1] %vm301, %v300
    %s304 = scalar_lea.vmem [#allocation0], 103
    %305 = vst.msk [vmem:[%s304] sm:$0x2] %vm301, %v300
    %s306 = scalar_lea.vmem [#allocation2], 168
    %v307 = vld [vmem:[%s306] sm:$0x3]
    %vm308 = vcmask 523264
    %s309 = scalar_lea.vmem [#allocation0], 42
    %310 = vst.msk [vmem:[%s309] sm:$0x1] %vm308, %v307
    %s311 = scalar_lea.vmem [#allocation0], 105
    %312 = vst.msk [vmem:[%s311] sm:$0x2] %vm308, %v307
    %s313 = scalar_lea.vmem [#allocation2], 176
    %v314 = vld [vmem:[%s313] sm:$0x3]
    %vm315 = vcmask 523264
    %s316 = scalar_lea.vmem [#allocation0], 44
    %317 = vst.msk [vmem:[%s316] sm:$0x1] %vm315, %v314
    %s318 = scalar_lea.vmem [#allocation0], 107
    %319 = vst.msk [vmem:[%s318] sm:$0x2] %vm315, %v314
    %s320 = scalar_lea.vmem [#allocation2], 184
    %v321 = vld [vmem:[%s320] sm:$0x3]
    %vm322 = vcmask 523264
    %s323 = scalar_lea.vmem [#allocation0], 46
    %324 = vst.msk [vmem:[%s323] sm:$0x1] %vm322, %v321
    %s325 = scalar_lea.vmem [#allocation0], 109
    %326 = vst.msk [vmem:[%s325] sm:$0x2] %vm322, %v321
    %s327 = scalar_lea.vmem [#allocation2], 192
    %v328 = vld [vmem:[%s327] sm:$0x3]
    %vm329 = vcmask 523264
    %s330 = scalar_lea.vmem [#allocation0], 48
    %331 = vst.msk [vmem:[%s330] sm:$0x1] %vm329, %v328
    %s332 = scalar_lea.vmem [#allocation0], 111
    %333 = vst.msk [vmem:[%s332] sm:$0x2] %vm329, %v328
    %s334 = scalar_lea.vmem [#allocation2], 200
    %v335 = vld [vmem:[%s334] sm:$0x3]
    %vm336 = vcmask 523264
    %s337 = scalar_lea.vmem [#allocation0], 50
    %338 = vst.msk [vmem:[%s337] sm:$0x1] %vm336, %v335
    %s339 = scalar_lea.vmem [#allocation0], 113
    %340 = vst.msk [vmem:[%s339] sm:$0x2] %vm336, %v335
    %s341 = scalar_lea.vmem [#allocation2], 208
    %v342 = vld [vmem:[%s341] sm:$0x3]
    %vm343 = vcmask 523264
    %s344 = scalar_lea.vmem [#allocation0], 52
    %345 = vst.msk [vmem:[%s344] sm:$0x1] %vm343, %v342
    %s346 = scalar_lea.vmem [#allocation0], 115
    %347 = vst.msk [vmem:[%s346] sm:$0x2] %vm343, %v342
    %s348 = scalar_lea.vmem [#allocation2], 216
    %v349 = vld [vmem:[%s348] sm:$0x3]
    %vm350 = vcmask 523264
    %s351 = scalar_lea.vmem [#allocation0], 54
    %352 = vst.msk [vmem:[%s351] sm:$0x1] %vm350, %v349
    %s353 = scalar_lea.vmem [#allocation0], 117
    %354 = vst.msk [vmem:[%s353] sm:$0x2] %vm350, %v349
    %s355 = scalar_lea.vmem [#allocation2], 224
    %v356 = vld [vmem:[%s355] sm:$0x3]
    %vm357 = vcmask 523264
    %s358 = scalar_lea.vmem [#allocation0], 56
    %359 = vst.msk [vmem:[%s358] sm:$0x1] %vm357, %v356
    %s360 = scalar_lea.vmem [#allocation0], 119
    %361 = vst.msk [vmem:[%s360] sm:$0x2] %vm357, %v356
    %s362 = scalar_lea.vmem [#allocation2], 232
    %v363 = vld [vmem:[%s362] sm:$0x3]
    %vm364 = vcmask 523264
    %s365 = scalar_lea.vmem [#allocation0], 58
    %366 = vst.msk [vmem:[%s365] sm:$0x1] %vm364, %v363
    %s367 = scalar_lea.vmem [#allocation0], 121
    %368 = vst.msk [vmem:[%s367] sm:$0x2] %vm364, %v363
    %s369 = scalar_lea.vmem [#allocation2], 240
    %v370 = vld [vmem:[%s369] sm:$0x3]
    %vm371 = vcmask 523264
    %s372 = scalar_lea.vmem [#allocation0], 60
    %373 = vst.msk [vmem:[%s372] sm:$0x1] %vm371, %v370
    %s374 = scalar_lea.vmem [#allocation0], 123
    %375 = vst.msk [vmem:[%s374] sm:$0x2] %vm371, %v370
    %s376 = scalar_lea.vmem [#allocation2], 248
    %v377 = vld [vmem:[%s376] sm:$0x3]
    %vm378 = vcmask 523264
    %s379 = scalar_lea.vmem [#allocation0], 62
    %380 = vst.msk [vmem:[%s379] sm:$0x1] %vm378, %v377
    %s381 = scalar_lea.vmem [#allocation0], 125
    %382 = vst.msk [vmem:[%s381] sm:$0x2] %vm378, %v377
    %v383 = vld [vmem:[#allocation2] ss:$8 sm:$0xf]
    %v384 = vld [vmem:[#allocation2] ss:$8 sm:$0xf0]
    %vm385 = vcmask 1047556
    %v386 = vsel %vm385, %v384, %v383
    %387 = vrot.lane.b32.xlu0 %v386, 64
    %v388 = vpop.permute.xlu0 %387
    %vm389 = vcmask 523264
    %s390 = scalar_lea.vmem [#allocation0], 1
    %391 = vst.msk [vmem:[%s390] ss:$2 sm:$0xff] %vm389, %v388
    %s392 = scalar_lea.vmem [#allocation2], 1
    %v393 = vld [vmem:[%s392] ss:$8 sm:$0xf]
    %s394 = scalar_lea.vmem [#allocation2], 1
    %v395 = vld [vmem:[%s394] ss:$8 sm:$0xf0]
    %vm396 = vcmask 1047556
    %v397 = vsel %vm396, %v395, %v393
    %398 = vrot.lane.b32.xlu0 %v397, 64
    %v399 = vpop.permute.xlu0 %398
    %vm400 = vcmask 523264
    %s401 = scalar_lea.vmem [#allocation0], 65
    %402 = vst.msk [vmem:[%s401] ss:$2 sm:$0xff] %vm400, %v399
    %s403 = scalar_lea.vmem [#allocation2], 128
    %v404 = vld [vmem:[%s403] ss:$8 sm:$0xf]
    %s405 = scalar_lea.vmem [#allocation2], 128
    %v406 = vld [vmem:[%s405] ss:$8 sm:$0xf0]
    %vm407 = vcmask 1047556
    %v408 = vsel %vm407, %v406, %v404
    %409 = vrot.lane.b32.xlu0 %v408, 64
    %v410 = vpop.permute.xlu0 %409
    %vm411 = vcmask 523264
    %s412 = scalar_lea.vmem [#allocation0], 33
    %413 = vst.msk [vmem:[%s412] ss:$2 sm:$0xff] %vm411, %v410
    %s414 = scalar_lea.vmem [#allocation2], 129
    %v415 = vld [vmem:[%s414] ss:$8 sm:$0xf]
    %s416 = scalar_lea.vmem [#allocation2], 129
    %v417 = vld [vmem:[%s416] ss:$8 sm:$0xf0]
    %vm418 = vcmask 1047556
    %v419 = vsel %vm418, %v417, %v415
    %420 = vrot.lane.b32.xlu0 %v419, 64
    %v421 = vpop.permute.xlu0 %420
    %vm422 = vcmask 523264
    %s423 = scalar_lea.vmem [#allocation0], 97
    %424 = vst.msk [vmem:[%s423] ss:$2 sm:$0xff] %vm422, %v421
    %s425 = scalar_lea.vmem [#allocation2], 64
    %v426 = vld [vmem:[%s425] ss:$8 sm:$0xf]
    %s427 = scalar_lea.vmem [#allocation2], 64
    %v428 = vld [vmem:[%s427] ss:$8 sm:$0xf0]
    %vm429 = vcmask 1047556
    %v430 = vsel %vm429, %v428, %v426
    %431 = vrot.lane.b32.xlu0 %v430, 64
    %v432 = vpop.permute.xlu0 %431
    %vm433 = vcmask 523264
    %s434 = scalar_lea.vmem [#allocation0], 17
    %435 = vst.msk [vmem:[%s434] ss:$2 sm:$0xff] %vm433, %v432
    %s436 = scalar_lea.vmem [#allocation2], 65
    %v437 = vld [vmem:[%s436] ss:$8 sm:$0xf]
    %s438 = scalar_lea.vmem [#allocation2], 65
    %v439 = vld [vmem:[%s438] ss:$8 sm:$0xf0]
    %vm440 = vcmask 1047556
    %v441 = vsel %vm440, %v439, %v437
    %442 = vrot.lane.b32.xlu0 %v441, 64
    %v443 = vpop.permute.xlu0 %442
    %vm444 = vcmask 523264
    %s445 = scalar_lea.vmem [#allocation0], 81
    %446 = vst.msk [vmem:[%s445] ss:$2 sm:$0xff] %vm444, %v443
    %s447 = scalar_lea.vmem [#allocation2], 192
    %v448 = vld [vmem:[%s447] ss:$8 sm:$0xf]
    %s449 = scalar_lea.vmem [#allocation2], 192
    %v450 = vld [vmem:[%s449] ss:$8 sm:$0xf0]
    %vm451 = vcmask 1047556
    %v452 = vsel %vm451, %v450, %v448
    %453 = vrot.lane.b32.xlu0 %v452, 64
    %v454 = vpop.permute.xlu0 %453
    %vm455 = vcmask 523264
    %s456 = scalar_lea.vmem [#allocation0], 49
    %457 = vst.msk [vmem:[%s456] ss:$2 sm:$0xff] %vm455, %v454
    %s458 = scalar_lea.vmem [#allocation2], 193
    %v459 = vld [vmem:[%s458] ss:$8 sm:$0xf]
    %s460 = scalar_lea.vmem [#allocation2], 193
    %v461 = vld [vmem:[%s460] ss:$8 sm:$0xf0]
    %vm462 = vcmask 1047556
    %v463 = vsel %vm462, %v461, %v459
    %464 = vrot.lane.b32.xlu0 %v463, 64
    %v465 = vpop.permute.xlu0 %464
    %vm466 = vcmask 523264
    %s467 = scalar_lea.vmem [#allocation0], 113
    %468 = vst.msk [vmem:[%s467] ss:$2 sm:$0xff] %vm466, %v465
    %s470 = ssub.s32 2048, 2048
    %471 = vsyncadd [#allocation1], %s470
    %s473 = sshll.u32 [#allocation0], 4
    %s474 = int_to_ptr.vmem [resolvable:$true] %s473
    %476 = dma.vmem_to_hbm [thread:$0]  %s474, 2048, %s1, [#allocation1]
    %477 = dma.done [#allocation1], 2048
    %478 = vsyncpa [#allocation1], 1

// kernel: forward.3
$region0: #{forward.3}
  #allocation0 [shape = 'u32[]', space=smem, size = 0x4, offset = 0x4, fixed_abs, tag = 'smem constant byte address 0x4 - core index']
  #allocation1 [shape = 'u32[144,128]{1,0:T(1,128)}', space=vmem, size = 0x12000, scoped, tag = 'internal scratch']
  %s0 = inlined_call_operand.vmem [shape: bf16[2,64,576], index: 0, kind: input, shape index: {}]
  %s1 = inlined_call_operand.vmem [shape: f32[64,64], index: 1, kind: input, shape index: {}]
  %s2 = inlined_call_operand.vmem [shape: bf16[576,64], index: 2, kind: input, shape index: {}]
  %s3 = inlined_call_operand.vmem [shape: f32[1,64], index: 3, kind: input, shape index: {}]
  %s4 = inlined_call_operand.vmem [shape: bf16[64,64], index: 4, kind: input, shape index: {}]
  %s5 = inlined_call_operand.vmem [shape: f32[1,64], index: 5, kind: input, shape index: {}]
  %s6 = inlined_call_operand.vmem [shape: bf16[64,64], index: 6, kind: input, shape index: {}]
  %s7 = inlined_call_operand.vmem [shape: f32[1,64], index: 7, kind: input, shape index: {}]
  %s8 = inlined_call_operand.vmem [shape: bf16[64,64], index: 8, kind: input, shape index: {}]
  %s9 = inlined_call_operand.vmem [shape: f32[1,64], index: 9, kind: input, shape index: {}]
  %s10 = inlined_call_operand.vmem [shape: bf16[256,64], index: 10, kind: input, shape index: {}]
  %s11 = inlined_call_operand.vmem [shape: bf16[64,64], index: 11, kind: input, shape index: {}]
  %s12 = inlined_call_operand.vmem [shape: f32[64,1], index: 12, kind: input, shape index: {}]
  %s13 = inlined_call_operand.vmem [shape: bf16[64,64], index: 13, kind: input, shape index: {}]
  %s14 = inlined_call_operand.vmem [shape: f32[64,1], index: 14, kind: input, shape index: {}]
  %s15 = inlined_call_operand.vmem [shape: bf16[128,64], index: 15, kind: input, shape index: {}]
  %s16 = inlined_call_operand.vmem [shape: f32[128,1], index: 16, kind: input, shape index: {}]
  %s17 = inlined_call_operand.vmem [shape: bf16[2,128], index: 17, kind: input, shape index: {}]
  %s18 = inlined_call_operand.vmem [shape: f32[2,1], index: 18, kind: input, shape index: {}]
  %s19 = inlined_call_operand.vmem [shape: bf16[64,4096], index: 19, kind: input, shape index: {}]
  %s20 = inlined_call_operand.vmem [shape: f32[2,2,4096], index: 20, kind: output, shape index: {}]
  %s21 = sld [smem:[#allocation0]]
  $region113: #{forward.3} parent=0
    _
  %s23 = ssub.s32 1, %s21
  %s24 = scalar_select 0, %s23, %s21
  loop: start=0, step=1, limit=4
  $region2: #{forward.3} parent=0 // loop_pre_header
    _
  $region3: #{forward.3} parent=0 // loop_header
    %s26 = sphi 0, %s30
    %p27 = scmp.ge.s32.totalorder %s26, 4
    %s33 = sphi 0, %s45
    %s34 = sphi 0, %s41
    %s35 = sphi 0, %s33
    %s36 = sphi 0, %s34
    %s37 = sphi 0, %s35
    %s38 = sphi 0, %s36
    %s48 = sphi 0, %s50
    %s51 = sphi 0, %s48
    %s52 = sphi 0, %s51
    %s68 = sphi 0, %s52
    %s72 = sphi 0, %s72
    %s74 = sphi 0, %s72
    %s75 = sphi 0, %s74
    %s89 = sphi 0, %s75
    %s93 = sphi 0, %s93
    %s95 = sphi 0, %s93
    %s96 = sphi 0, %s95
    %s110 = sphi 0, %s96
    %s114 = sphi 0, %s114
    %s116 = sphi 0, %s114
    %s117 = sphi 0, %s116
    %s131 = sphi 0, %s117
    %s135 = sphi 0, %s135
    %s137 = sphi 0, %s135
    %s138 = sphi 0, %s137
    %s152 = sphi 0, %s138
    %s156 = sphi 0, %s156
    %s158 = sphi 0, %s156
    %s159 = sphi 0, %s158
    %s173 = sphi 0, %s159
    %s177 = sphi 0, %s177
    %s179 = sphi 0, %s177
    %s180 = sphi 0, %s179
    %s194 = sphi 0, %s180
    %s198 = sphi 0, %s198
    %s200 = sphi 0, %s198
    %s201 = sphi 0, %s200
    %s215 = sphi 0, %s201
    %s219 = sphi 0, %s219
    %s221 = sphi 0, %s219
    %s222 = sphi 0, %s221
    %s236 = sphi 0, %s222
    %s240 = sphi 0, %s240
    %s242 = sphi 0, %s240
    %s243 = sphi 0, %s242
    %s257 = sphi 0, %s243
    %s261 = sphi 0, %s261
    %s263 = sphi 0, %s261
    %s264 = sphi 0, %s263
    %s278 = sphi 0, %s264
    %s282 = sphi 0, %s282
    %s284 = sphi 0, %s282
    %s285 = sphi 0, %s284
    %s299 = sphi 0, %s285
    %s303 = sphi 0, %s303
    %s305 = sphi 0, %s303
    %s306 = sphi 0, %s305
    %s320 = sphi 0, %s306
    %s324 = sphi 0, %s324
    %s326 = sphi 0, %s324
    %s327 = sphi 0, %s326
    %s341 = sphi 0, %s327
    %s345 = sphi 0, %s345
    %s347 = sphi 0, %s345
    %s348 = sphi 0, %s347
    %s362 = sphi 0, %s348
    %s366 = sphi 0, %s366
    %s368 = sphi 0, %s366
    %s369 = sphi 0, %s368
    %s383 = sphi 0, %s369
    %s387 = sphi 0, %s387
    %s389 = sphi 0, %s387
    %s390 = sphi 0, %s389
    %s404 = sphi 0, %s390
    %s408 = sphi 0, %s408
    %s410 = sphi 0, %s408
    %s411 = sphi 0, %s410
    %s425 = sphi 0, %s411
    %s429 = sphi 0, %s429
    %s431 = sphi 0, %s429
    %s432 = sphi 0, %s431
    %s446 = sphi 0, %s432
    %s452 = sphi 0, %s454
    %s455 = sphi 0, %s452
    %s456 = sphi 0, %s455
    %s472 = sphi 0, %s456
    %s480 = sphi 0, %s482
    %s483 = sphi 0, %s480
    %s484 = sphi 0, %s483
    %s500 = sphi 0, %s484
  $region4: #{forward.3} parent=0 // loop_header_branch
    %29 = sbr.rel (%p27) target = $region8
  $region5: #{forward.3} parent=0 // loop_body
    %s31 = ssub.s32 %s26, 1
    %s32 = ssub.s32 %s26, 2
    %s39 = sadd.s32 1, %s34
    %p40 = scmp.ge.s32.totalorder %s39, 1
    %s41 = scalar_select %p40, 0, %s39
    %s42 = sadd.s32 1, %s33
    %s43 = scalar_select %p40, %s42, %s33
    %p44 = scmp.ge.s32.totalorder %s43, 2
    %s45 = scalar_select %p44, 0, %s43
    %s46 = ssub.s32 %s33, %s45
    %p47 = scmp.eq.s32.totalorder %s46, 0
    %s49 = sadd.s32 %s48, 1
    %s50 = scalar_select %p47, %s48, %s49
    %p53 = pneg %p47
    %p54 = scmp.eq.s32.totalorder %s26, 1
    %p55 = por %p53, %p54
    %p56 = scmp.ne.s32.totalorder %s48, %s51
    %p57 = scmp.eq.s32.totalorder %s26, 0
    %p58 = por %p56, %p57
    %p59 = scmp.ne.s32.totalorder %s48, %s51
    %p60 = scmp.eq.s32.totalorder %s31, 1
    %p61 = por %p59, %p60
    %p62 = scmp.ne.s32.totalorder %s51, %s52
    %p63 = scmp.eq.s32.totalorder %s31, 0
    %p64 = por %p62, %p63
    %p65 = scmp.ne.s32.totalorder %s51, %s52
    %p66 = scmp.eq.s32.totalorder %s32, 1
    %p67 = por %p65, %p66
    %p69 = scmp.ne.s32.totalorder %s52, %s68
    %p70 = scmp.eq.s32.totalorder %s32, 0
    %p71 = por %p69, %p70
    %s73 = sadd.s32 %s72, 1
    %p76 = scmp.eq.s32.totalorder %s26, 1
    %p77 = scmp.ne.s32.totalorder %s72, %s74
    %p78 = scmp.eq.s32.totalorder %s26, 0
    %p79 = por %p77, %p78
    %p80 = scmp.ne.s32.totalorder %s72, %s74
    %p81 = scmp.eq.s32.totalorder %s31, 1
    %p82 = por %p80, %p81
    %p83 = scmp.ne.s32.totalorder %s74, %s75
    %p84 = scmp.eq.s32.totalorder %s31, 0
    %p85 = por %p83, %p84
    %p86 = scmp.ne.s32.totalorder %s74, %s75
    %p87 = scmp.eq.s32.totalorder %s32, 1
    %p88 = por %p86, %p87
    %p90 = scmp.ne.s32.totalorder %s75, %s89
    %p91 = scmp.eq.s32.totalorder %s32, 0
    %p92 = por %p90, %p91
    %s94 = sadd.s32 %s93, 1
    %p97 = scmp.eq.s32.totalorder %s26, 1
    %p98 = scmp.ne.s32.totalorder %s93, %s95
    %p99 = scmp.eq.s32.totalorder %s26, 0
    %p100 = por %p98, %p99
    %p101 = scmp.ne.s32.totalorder %s93, %s95
    %p102 = scmp.eq.s32.totalorder %s31, 1
    %p103 = por %p101, %p102
    %p104 = scmp.ne.s32.totalorder %s95, %s96
    %p105 = scmp.eq.s32.totalorder %s31, 0
    %p106 = por %p104, %p105
    %p107 = scmp.ne.s32.totalorder %s95, %s96
    %p108 = scmp.eq.s32.totalorder %s32, 1
    %p109 = por %p107, %p108
    %p111 = scmp.ne.s32.totalorder %s96, %s110
    %p112 = scmp.eq.s32.totalorder %s32, 0
    %p113 = por %p111, %p112
    %s115 = sadd.s32 %s114, 1
    %p118 = scmp.eq.s32.totalorder %s26, 1
    %p119 = scmp.ne.s32.totalorder %s114, %s116
    %p120 = scmp.eq.s32.totalorder %s26, 0
    %p121 = por %p119, %p120
    %p122 = scmp.ne.s32.totalorder %s114, %s116
    %p123 = scmp.eq.s32.totalorder %s31, 1
    %p124 = por %p122, %p123
    %p125 = scmp.ne.s32.totalorder %s116, %s117
    %p126 = scmp.eq.s32.totalorder %s31, 0
    %p127 = por %p125, %p126
    %p128 = scmp.ne.s32.totalorder %s116, %s117
    %p129 = scmp.eq.s32.totalorder %s32, 1
    %p130 = por %p128, %p129
    %p132 = scmp.ne.s32.totalorder %s117, %s131
    %p133 = scmp.eq.s32.totalorder %s32, 0
    %p134 = por %p132, %p133
    %s136 = sadd.s32 %s135, 1
    %p139 = scmp.eq.s32.totalorder %s26, 1
    %p140 = scmp.ne.s32.totalorder %s135, %s137
    %p141 = scmp.eq.s32.totalorder %s26, 0
    %p142 = por %p140, %p141
    %p143 = scmp.ne.s32.totalorder %s135, %s137
    %p144 = scmp.eq.s32.totalorder %s31, 1
    %p145 = por %p143, %p144
    %p146 = scmp.ne.s32.totalorder %s137, %s138
    %p147 = scmp.eq.s32.totalorder %s31, 0
    %p148 = por %p146, %p147
    %p149 = scmp.ne.s32.totalorder %s137, %s138
    %p150 = scmp.eq.s32.totalorder %s32, 1
    %p151 = por %p149, %p150
    %p153 = scmp.ne.s32.totalorder %s138, %s152
    %p154 = scmp.eq.s32.totalorder %s32, 0
    %p155 = por %p153, %p154
    %s157 = sadd.s32 %s156, 1
    %p160 = scmp.eq.s32.totalorder %s26, 1
    %p161 = scmp.ne.s32.totalorder %s156, %s158
    %p162 = scmp.eq.s32.totalorder %s26, 0
    %p163 = por %p161, %p162
    %p164 = scmp.ne.s32.totalorder %s156, %s158
    %p165 = scmp.eq.s32.totalorder %s31, 1
    %p166 = por %p164, %p165
    %p167 = scmp.ne.s32.totalorder %s158, %s159
    %p168 = scmp.eq.s32.totalorder %s31, 0
    %p169 = por %p167, %p168
    %p170 = scmp.ne.s32.totalorder %s158, %s159
    %p171 = scmp.eq.s32.totalorder %s32, 1
    %p172 = por %p170, %p171
    %p174 = scmp.ne.s32.totalorder %s159, %s173
    %p175 = scmp.eq.s32.totalorder %s32, 0
    %p176 = por %p174, %p175
    %s178 = sadd.s32 %s177, 1
    %p181 = scmp.eq.s32.totalorder %s26, 1
    %p182 = scmp.ne.s32.totalorder %s177, %s179
    %p183 = scmp.eq.s32.totalorder %s26, 0
    %p184 = por %p182, %p183
    %p185 = scmp.ne.s32.totalorder %s177, %s179
    %p186 = scmp.eq.s32.totalorder %s31, 1
    %p187 = por %p185, %p186
    %p188 = scmp.ne.s32.totalorder %s179, %s180
    %p189 = scmp.eq.s32.totalorder %s31, 0
    %p190 = por %p188, %p189
    %p191 = scmp.ne.s32.totalorder %s179, %s180
    %p192 = scmp.eq.s32.totalorder %s32, 1
    %p193 = por %p191, %p192
    %p195 = scmp.ne.s32.totalorder %s180, %s194
    %p196 = scmp.eq.s32.totalorder %s32, 0
    %p197 = por %p195, %p196
    %s199 = sadd.s32 %s198, 1
    %p202 = scmp.eq.s32.totalorder %s26, 1
    %p203 = scmp.ne.s32.totalorder %s198, %s200
    %p204 = scmp.eq.s32.totalorder %s26, 0
    %p205 = por %p203, %p204
    %p206 = scmp.ne.s32.totalorder %s198, %s200
    %p207 = scmp.eq.s32.totalorder %s31, 1
    %p208 = por %p206, %p207
    %p209 = scmp.ne.s32.totalorder %s200, %s201
    %p210 = scmp.eq.s32.totalorder %s31, 0
    %p211 = por %p209, %p210
    %p212 = scmp.ne.s32.totalorder %s200, %s201
    %p213 = scmp.eq.s32.totalorder %s32, 1
    %p214 = por %p212, %p213
    %p216 = scmp.ne.s32.totalorder %s201, %s215
    %p217 = scmp.eq.s32.totalorder %s32, 0
    %p218 = por %p216, %p217
    %s220 = sadd.s32 %s219, 1
    %p223 = scmp.eq.s32.totalorder %s26, 1
    %p224 = scmp.ne.s32.totalorder %s219, %s221
    %p225 = scmp.eq.s32.totalorder %s26, 0
    %p226 = por %p224, %p225
    %p227 = scmp.ne.s32.totalorder %s219, %s221
    %p228 = scmp.eq.s32.totalorder %s31, 1
    %p229 = por %p227, %p228
    %p230 = scmp.ne.s32.totalorder %s221, %s222
    %p231 = scmp.eq.s32.totalorder %s31, 0
    %p232 = por %p230, %p231
    %p233 = scmp.ne.s32.totalorder %s221, %s222
    %p234 = scmp.eq.s32.totalorder %s32, 1
    %p235 = por %p233, %p234
    %p237 = scmp.ne.s32.totalorder %s222, %s236
    %p238 = scmp.eq.s32.totalorder %s32, 0
    %p239 = por %p237, %p238
    %s241 = sadd.s32 %s240, 1
    %p244 = scmp.eq.s32.totalorder %s26, 1
    %p245 = scmp.ne.s32.totalorder %s240, %s242
    %p246 = scmp.eq.s32.totalorder %s26, 0
    %p247 = por %p245, %p246
    %p248 = scmp.ne.s32.totalorder %s240, %s242
    %p249 = scmp.eq.s32.totalorder %s31, 1
    %p250 = por %p248, %p249
    %p251 = scmp.ne.s32.totalorder %s242, %s243
    %p252 = scmp.eq.s32.totalorder %s31, 0
    %p253 = por %p251, %p252
    %p254 = scmp.ne.s32.totalorder %s242, %s243
    %p255 = scmp.eq.s32.totalorder %s32, 1
    %p256 = por %p254, %p255
    %p258 = scmp.ne.s32.totalorder %s243, %s257
    %p259 = scmp.eq.s32.totalorder %s32, 0
    %p260 = por %p258, %p259
    %s262 = sadd.s32 %s261, 1
    %p265 = scmp.eq.s32.totalorder %s26, 1
    %p266 = scmp.ne.s32.totalorder %s261, %s263
    %p267 = scmp.eq.s32.totalorder %s26, 0
    %p268 = por %p266, %p267
    %p269 = scmp.ne.s32.totalorder %s261, %s263
    %p270 = scmp.eq.s32.totalorder %s31, 1
    %p271 = por %p269, %p270
    %p272 = scmp.ne.s32.totalorder %s263, %s264
    %p273 = scmp.eq.s32.totalorder %s31, 0
    %p274 = por %p272, %p273
    %p275 = scmp.ne.s32.totalorder %s263, %s264
    %p276 = scmp.eq.s32.totalorder %s32, 1
    %p277 = por %p275, %p276
    %p279 = scmp.ne.s32.totalorder %s264, %s278
    %p280 = scmp.eq.s32.totalorder %s32, 0
    %p281 = por %p279, %p280
    %s283 = sadd.s32 %s282, 1
    %p286 = scmp.eq.s32.totalorder %s26, 1
    %p287 = scmp.ne.s32.totalorder %s282, %s284
    %p288 = scmp.eq.s32.totalorder %s26, 0
    %p289 = por %p287, %p288
    %p290 = scmp.ne.s32.totalorder %s282, %s284
    %p291 = scmp.eq.s32.totalorder %s31, 1
    %p292 = por %p290, %p291
    %p293 = scmp.ne.s32.totalorder %s284, %s285
    %p294 = scmp.eq.s32.totalorder %s31, 0
    %p295 = por %p293, %p294
    %p296 = scmp.ne.s32.totalorder %s284, %s285
    %p297 = scmp.eq.s32.totalorder %s32, 1
    %p298 = por %p296, %p297
    %p300 = scmp.ne.s32.totalorder %s285, %s299
    %p301 = scmp.eq.s32.totalorder %s32, 0
    %p302 = por %p300, %p301
    %s304 = sadd.s32 %s303, 1
    %p307 = scmp.eq.s32.totalorder %s26, 1
    %p308 = scmp.ne.s32.totalorder %s303, %s305
    %p309 = scmp.eq.s32.totalorder %s26, 0
    %p310 = por %p308, %p309
    %p311 = scmp.ne.s32.totalorder %s303, %s305
    %p312 = scmp.eq.s32.totalorder %s31, 1
    %p313 = por %p311, %p312
    %p314 = scmp.ne.s32.totalorder %s305, %s306
    %p315 = scmp.eq.s32.totalorder %s31, 0
    %p316 = por %p314, %p315
    %p317 = scmp.ne.s32.totalorder %s305, %s306
    %p318 = scmp.eq.s32.totalorder %s32, 1
    %p319 = por %p317, %p318
    %p321 = scmp.ne.s32.totalorder %s306, %s320
    %p322 = scmp.eq.s32.totalorder %s32, 0
    %p323 = por %p321, %p322
    %s325 = sadd.s32 %s324, 1
    %p328 = scmp.eq.s32.totalorder %s26, 1
    %p329 = scmp.ne.s32.totalorder %s324, %s326
    %p330 = scmp.eq.s32.totalorder %s26, 0
    %p331 = por %p329, %p330
    %p332 = scmp.ne.s32.totalorder %s324, %s326
    %p333 = scmp.eq.s32.totalorder %s31, 1
    %p334 = por %p332, %p333
    %p335 = scmp.ne.s32.totalorder %s326, %s327
    %p336 = scmp.eq.s32.totalorder %s31, 0
    %p337 = por %p335, %p336
    %p338 = scmp.ne.s32.totalorder %s326, %s327
    %p339 = scmp.eq.s32.totalorder %s32, 1
    %p340 = por %p338, %p339
    %p342 = scmp.ne.s32.totalorder %s327, %s341
    %p343 = scmp.eq.s32.totalorder %s32, 0
    %p344 = por %p342, %p343
    %s346 = sadd.s32 %s345, 1
    %p349 = scmp.eq.s32.totalorder %s26, 1
    %p350 = scmp.ne.s32.totalorder %s345, %s347
    %p351 = scmp.eq.s32.totalorder %s26, 0
    %p352 = por %p350, %p351
    %p353 = scmp.ne.s32.totalorder %s345, %s347
    %p354 = scmp.eq.s32.totalorder %s31, 1
    %p355 = por %p353, %p354
    %p356 = scmp.ne.s32.totalorder %s347, %s348
    %p357 = scmp.eq.s32.totalorder %s31, 0
    %p358 = por %p356, %p357
    %p359 = scmp.ne.s32.totalorder %s347, %s348
    %p360 = scmp.eq.s32.totalorder %s32, 1
    %p361 = por %p359, %p360
    %p363 = scmp.ne.s32.totalorder %s348, %s362
    %p364 = scmp.eq.s32.totalorder %s32, 0
    %p365 = por %p363, %p364
    %s367 = sadd.s32 %s366, 1
    %p370 = scmp.eq.s32.totalorder %s26, 1
    %p371 = scmp.ne.s32.totalorder %s366, %s368
    %p372 = scmp.eq.s32.totalorder %s26, 0
    %p373 = por %p371, %p372
    %p374 = scmp.ne.s32.totalorder %s366, %s368
    %p375 = scmp.eq.s32.totalorder %s31, 1
    %p376 = por %p374, %p375
    %p377 = scmp.ne.s32.totalorder %s368, %s369
    %p378 = scmp.eq.s32.totalorder %s31, 0
    %p379 = por %p377, %p378
    %p380 = scmp.ne.s32.totalorder %s368, %s369
    %p381 = scmp.eq.s32.totalorder %s32, 1
    %p382 = por %p380, %p381
    %p384 = scmp.ne.s32.totalorder %s369, %s383
    %p385 = scmp.eq.s32.totalorder %s32, 0
    %p386 = por %p384, %p385
    %s388 = sadd.s32 %s387, 1
    %p391 = scmp.eq.s32.totalorder %s26, 1
    %p392 = scmp.ne.s32.totalorder %s387, %s389
    %p393 = scmp.eq.s32.totalorder %s26, 0
    %p394 = por %p392, %p393
    %p395 = scmp.ne.s32.totalorder %s387, %s389
    %p396 = scmp.eq.s32.totalorder %s31, 1
    %p397 = por %p395, %p396
    %p398 = scmp.ne.s32.totalorder %s389, %s390
    %p399 = scmp.eq.s32.totalorder %s31, 0
    %p400 = por %p398, %p399
    %p401 = scmp.ne.s32.totalorder %s389, %s390
    %p402 = scmp.eq.s32.totalorder %s32, 1
    %p403 = por %p401, %p402
    %p405 = scmp.ne.s32.totalorder %s390, %s404
    %p406 = scmp.eq.s32.totalorder %s32, 0
    %p407 = por %p405, %p406
    %s409 = sadd.s32 %s408, 1
    %p412 = scmp.eq.s32.totalorder %s26, 1
    %p413 = scmp.ne.s32.totalorder %s408, %s410
    %p414 = scmp.eq.s32.totalorder %s26, 0
    %p415 = por %p413, %p414
    %p416 = scmp.ne.s32.totalorder %s408, %s410
    %p417 = scmp.eq.s32.totalorder %s31, 1
    %p418 = por %p416, %p417
    %p419 = scmp.ne.s32.totalorder %s410, %s411
    %p420 = scmp.eq.s32.totalorder %s31, 0
    %p421 = por %p419, %p420
    %p422 = scmp.ne.s32.totalorder %s410, %s411
    %p423 = scmp.eq.s32.totalorder %s32, 1
    %p424 = por %p422, %p423
    %p426 = scmp.ne.s32.totalorder %s411, %s425
    %p427 = scmp.eq.s32.totalorder %s32, 0
    %p428 = por %p426, %p427
    %s430 = sadd.s32 %s429, 1
    %p433 = scmp.eq.s32.totalorder %s26, 1
    %p434 = scmp.ne.s32.totalorder %s429, %s431
    %p435 = scmp.eq.s32.totalorder %s26, 0
    %p436 = por %p434, %p435
    %p437 = scmp.ne.s32.totalorder %s429, %s431
    %p438 = scmp.eq.s32.totalorder %s31, 1
    %p439 = por %p437, %p438
    %p440 = scmp.ne.s32.totalorder %s431, %s432
    %p441 = scmp.eq.s32.totalorder %s31, 0
    %p442 = por %p440, %p441
    %p443 = scmp.ne.s32.totalorder %s431, %s432
    %p444 = scmp.eq.s32.totalorder %s32, 1
    %p445 = por %p443, %p444
    %p447 = scmp.ne.s32.totalorder %s432, %s446
    %p448 = scmp.eq.s32.totalorder %s32, 0
    %p449 = por %p447, %p448
    %s450 = ssub.s32 %s34, %s41
    %p451 = scmp.eq.s32.totalorder %s450, 0
    %s453 = sadd.s32 %s452, 1
    %s454 = scalar_select %p451, %s452, %s453
    %p457 = pneg %p451
    %p458 = scmp.eq.s32.totalorder %s26, 1
    %p459 = por %p457, %p458
    %p460 = scmp.ne.s32.totalorder %s452, %s455
    %p461 = scmp.eq.s32.totalorder %s26, 0
    %p462 = por %p460, %p461
    %p463 = scmp.ne.s32.totalorder %s452, %s455
    %p464 = scmp.eq.s32.totalorder %s31, 1
    %p465 = por %p463, %p464
    %p466 = scmp.ne.s32.totalorder %s455, %s456
    %p467 = scmp.eq.s32.totalorder %s31, 0
    %p468 = por %p466, %p467
    %p469 = scmp.ne.s32.totalorder %s455, %s456
    %p470 = scmp.eq.s32.totalorder %s32, 1
    %p471 = por %p469, %p470
    %p473 = scmp.ne.s32.totalorder %s456, %s472
    %p474 = scmp.eq.s32.totalorder %s32, 0
    %p475 = por %p473, %p474
    %s476 = ssub.s32 %s33, %s45
    %s477 = ssub.s32 %s34, %s41
    %s478 = sor.u32 %s476, %s477
    %p479 = scmp.eq.s32.totalorder %s478, 0
    %s481 = sadd.s32 %s480, 1
    %s482 = scalar_select %p479, %s480, %s481
    %p485 = pneg %p479
    %p486 = scmp.eq.s32.totalorder %s26, 1
    %p487 = por %p485, %p486
    %p488 = scmp.ne.s32.totalorder %s480, %s483
    %p489 = scmp.eq.s32.totalorder %s26, 0
    %p490 = por %p488, %p489
    %p491 = scmp.ne.s32.totalorder %s480, %s483
    %p492 = scmp.eq.s32.totalorder %s31, 1
    %p493 = por %p491, %p492
    %p494 = scmp.ne.s32.totalorder %s483, %s484
    %p495 = scmp.eq.s32.totalorder %s31, 0
    %p496 = por %p494, %p495
    %p497 = scmp.ne.s32.totalorder %s483, %s484
    %p498 = scmp.eq.s32.totalorder %s32, 1
    %p499 = por %p497, %p498
    %p501 = scmp.ne.s32.totalorder %s484, %s500
    %p502 = scmp.eq.s32.totalorder %s32, 0
    %p503 = por %p501, %p502
    %p504 = scmp.le.s32.totalorder 1, %s26
    %p505 = scmp.lt.s32.totalorder %s26, 3
    %p506 = pnand %p504, %p505
    %p507 = pneg %p506
    // Predicated region
    $region9: #{forward.3} parent=5 // pred_check
      _
    $region10: #{forward.3} parent=5 // pred_check_branch
      %509 = sbr.rel (%p506) target = $region12
    $region11: #{forward.3} parent=5 // pred_region
      %s510 = ssub.s32 %s26, 1
      // Predicated region
      $region13: #{forward.3} parent=11 // pred_check
        %p511 = pneg %p85
      $region14: #{forward.3} parent=11 // pred_check_branch
        %513 = sbr.rel (%p511) target = $region16
      $region15: #{forward.3} parent=11 // pred_region
        _
      $region16: #{forward.3} parent=11 // pred_fallthru
        _
      // Predicated region
      $region17: #{forward.3} parent=11 // pred_check
        %p514 = pneg %p106
      $region18: #{forward.3} parent=11 // pred_check_branch
        %516 = sbr.rel (%p514) target = $region20
      $region19: #{forward.3} parent=11 // pred_region
        _
      $region20: #{forward.3} parent=11 // pred_fallthru
        _
      // Predicated region
      $region21: #{forward.3} parent=11 // pred_check
        %p517 = pneg %p127
      $region22: #{forward.3} parent=11 // pred_check_branch
        %519 = sbr.rel (%p517) target = $region24
      $region23: #{forward.3} parent=11 // pred_region
        _
      $region24: #{forward.3} parent=11 // pred_fallthru
        _
      // Predicated region
      $region25: #{forward.3} parent=11 // pred_check
        %p520 = pneg %p148
      $region26: #{forward.3} parent=11 // pred_check_branch
        %522 = sbr.rel (%p520) target = $region28
      $region27: #{forward.3} parent=11 // pred_region
        _
      $region28: #{forward.3} parent=11 // pred_fallthru
        _
      // Predicated region
      $region29: #{forward.3} parent=11 // pred_check
        %p523 = pneg %p169
      $region30: #{forward.3} parent=11 // pred_check_branch
        %525 = sbr.rel (%p523) target = $region32
      $region31: #{forward.3} parent=11 // pred_region
        _
      $region32: #{forward.3} parent=11 // pred_fallthru
        _
      // Predicated region
      $region33: #{forward.3} parent=11 // pred_check
        %p526 = pneg %p190
      $region34: #{forward.3} parent=11 // pred_check_branch
        %528 = sbr.rel (%p526) target = $region36
      $region35: #{forward.3} parent=11 // pred_region
        _
      $region36: #{forward.3} parent=11 // pred_fallthru
        _
      // Predicated region
      $region37: #{forward.3} parent=11 // pred_check
        %p529 = pneg %p211
      $region38: #{forward.3} parent=11 // pred_check_branch
        %531 = sbr.rel (%p529) target = $region40
      $region39: #{forward.3} parent=11 // pred_region
        _
      $region40: #{forward.3} parent=11 // pred_fallthru
        _
      // Predicated region
      $region41: #{forward.3} parent=11 // pred_check
        %p532 = pneg %p232
      $region42: #{forward.3} parent=11 // pred_check_branch
        %534 = sbr.rel (%p532) target = $region44
      $region43: #{forward.3} parent=11 // pred_region
        _
      $region44: #{forward.3} parent=11 // pred_fallthru
        _
      // Predicated region
      $region45: #{forward.3} parent=11 // pred_check
        %p535 = pneg %p253
      $region46: #{forward.3} parent=11 // pred_check_branch
        %537 = sbr.rel (%p535) target = $region48
      $region47: #{forward.3} parent=11 // pred_region
        _
      $region48: #{forward.3} parent=11 // pred_fallthru
        _
      // Predicated region
      $region49: #{forward.3} parent=11 // pred_check
        %p538 = pneg %p274
      $region50: #{forward.3} parent=11 // pred_check_branch
        %540 = sbr.rel (%p538) target = $region52
      $region51: #{forward.3} parent=11 // pred_region
        _
      $region52: #{forward.3} parent=11 // pred_fallthru
        _
      // Predicated region
      $region53: #{forward.3} parent=11 // pred_check
        %p541 = pneg %p295
      $region54: #{forward.3} parent=11 // pred_check_branch
        %543 = sbr.rel (%p541) target = $region56
      $region55: #{forward.3} parent=11 // pred_region
        _
      $region56: #{forward.3} parent=11 // pred_fallthru
        _
      // Predicated region
      $region57: #{forward.3} parent=11 // pred_check
        %p544 = pneg %p316
      $region58: #{forward.3} parent=11 // pred_check_branch
        %546 = sbr.rel (%p544) target = $region60
      $region59: #{forward.3} parent=11 // pred_region
        _
      $region60: #{forward.3} parent=11 // pred_fallthru
        _
      // Predicated region
      $region61: #{forward.3} parent=11 // pred_check
        %p547 = pneg %p337
      $region62: #{forward.3} parent=11 // pred_check_branch
        %549 = sbr.rel (%p547) target = $region64
      $region63: #{forward.3} parent=11 // pred_region
        _
      $region64: #{forward.3} parent=11 // pred_fallthru
        _
      // Predicated region
      $region65: #{forward.3} parent=11 // pred_check
        %p550 = pneg %p358
      $region66: #{forward.3} parent=11 // pred_check_branch
        %552 = sbr.rel (%p550) target = $region68
      $region67: #{forward.3} parent=11 // pred_region
        _
      $region68: #{forward.3} parent=11 // pred_fallthru
        _
      // Predicated region
      $region69: #{forward.3} parent=11 // pred_check
        %p553 = pneg %p379
      $region70: #{forward.3} parent=11 // pred_check_branch
        %555 = sbr.rel (%p553) target = $region72
      $region71: #{forward.3} parent=11 // pred_region
        _
      $region72: #{forward.3} parent=11 // pred_fallthru
        _
      // Predicated region
      $region73: #{forward.3} parent=11 // pred_check
        %p556 = pneg %p400
      $region74: #{forward.3} parent=11 // pred_check_branch
        %558 = sbr.rel (%p556) target = $region76
      $region75: #{forward.3} parent=11 // pred_region
        _
      $region76: #{forward.3} parent=11 // pred_fallthru
        _
      // Predicated region
      $region77: #{forward.3} parent=11 // pred_check
        %p559 = pneg %p421
      $region78: #{forward.3} parent=11 // pred_check_branch
        %561 = sbr.rel (%p559) target = $region80
      $region79: #{forward.3} parent=11 // pred_region
        _
      $region80: #{forward.3} parent=11 // pred_fallthru
        _
      // Predicated region
      $region81: #{forward.3} parent=11 // pred_check
        %p562 = pneg %p442
      $region82: #{forward.3} parent=11 // pred_check_branch
        %564 = sbr.rel (%p562) target = $region84
      $region83: #{forward.3} parent=11 // pred_region
        _
      $region84: #{forward.3} parent=11 // pred_fallthru
        _
      // Predicated region
      $region85: #{forward.3} parent=11 // pred_check
        %p565 = pneg %p468
      $region86: #{forward.3} parent=11 // pred_check_branch
        %567 = sbr.rel (%p565) target = $region88
      $region87: #{forward.3} parent=11 // pred_region
        %s568 = smul.u32 32, %s36
        %p569 = scmp.lt.s32.totalorder %s568, 31
        %s570 = scalar_select %p569, %s568, 31
        %s571 = smul.addr %s570, 4
        %s572 = scalar_lea.vmem %s19, %s571
        %s573 = smul.u32 32, %s36
      $region88: #{forward.3} parent=11 // pred_fallthru
        _
    $region12: #{forward.3} parent=5 // pred_fallthru
      _
    %p574 = scmp.lt.s32.totalorder %s26, 2
    // Predicated region
    $region89: #{forward.3} parent=5 // pred_check
      %p575 = pneg %p574
    $region90: #{forward.3} parent=5 // pred_check_branch
      %577 = sbr.rel (%p575) target = $region92
    $region91: #{forward.3} parent=5 // pred_region
      // Predicated region
      $region93: #{forward.3} parent=91 // pred_check
        %p578 = pneg %p58
      $region94: #{forward.3} parent=91 // pred_check_branch
        %580 = sbr.rel (%p578) target = $region96
      $region95: #{forward.3} parent=91 // pred_region
        %p581 = scmp.lt.s32.totalorder %s33, 1
        %s582 = scalar_select %p581, %s33, 1
        %s583 = smul.addr %s582, 40
        %s584 = smul.addr %s583, 4
        %s585 = scalar_lea.vmem %s0, %s584
      $region96: #{forward.3} parent=91 // pred_fallthru
        _
    $region92: #{forward.3} parent=5 // pred_fallthru
      _
    %p586 = scmp.le.s32.totalorder 1, %s26
    %p587 = scmp.lt.s32.totalorder %s26, 3
    %p588 = pnand %p586, %p587
    %p589 = pneg %p588
    // Predicated region
    $region97: #{forward.3} parent=5 // pred_check
      _
    $region98: #{forward.3} parent=5 // pred_check_branch
      %591 = sbr.rel (%p588) target = $region100
    $region99: #{forward.3} parent=5 // pred_region
      %s592 = ssub.s32 %s26, 1
      %p593 = scmp.lt.s32.totalorder %s35, 1
      %s594 = scalar_select %p593, %s35, 1
      %s595 = smul.addr %s594, 40
      %s596 = smul.addr %s595, 4
      %s597 = scalar_lea.vmem %s0, %s596
      %p598 = pneg %p64
      %p599 = pneg %p61
      %p600 = pneg %p85
      %p601 = pneg %p82
      %p602 = pneg %p106
      %p603 = pneg %p103
      %p604 = pneg %p127
      %p605 = pneg %p124
      %p606 = pneg %p148
      %p607 = pneg %p145
      %p608 = pneg %p169
      %p609 = pneg %p166
      %p610 = pneg %p190
      %p611 = pneg %p187
      %p612 = pneg %p211
      %p613 = pneg %p208
      %p614 = pneg %p232
      %p615 = pneg %p229
      %p616 = pneg %p253
      %p617 = pneg %p250
      %p618 = pneg %p274
      %p619 = pneg %p271
      %p620 = pneg %p295
      %p621 = pneg %p292
      %p622 = pneg %p316
      %p623 = pneg %p313
      %p624 = pneg %p337
      %p625 = pneg %p334
      %p626 = pneg %p358
      %p627 = pneg %p355
      %p628 = pneg %p379
      %p629 = pneg %p376
      %p630 = pneg %p400
      %p631 = pneg %p397
      %p632 = pneg %p421
      %p633 = pneg %p418
      %p634 = pneg %p442
      %p635 = pneg %p439
      %s636 = smul.u32 32, %s36
      %p637 = scmp.lt.s32.totalorder %s636, 31
      %s638 = scalar_select %p637, %s636, 31
      %s639 = smul.addr %s638, 4
      %s640 = scalar_lea.vmem %s19, %s639
      %p641 = pneg %p468
      %p642 = pneg %p465
      %p643 = pneg %p496
      %p644 = pneg %p493
      %s645 = smul.u32 32, %s36
      %p646 = scmp.lt.s32.totalorder %s35, 1
      %s647 = scalar_select %p646, %s35, 1
      %p648 = scmp.lt.s32.totalorder %s645, 31
      %s649 = scalar_select %p648, %s645, 31
      %s650 = smul.addr %s647, 32
      %s651 = sadd.s32 %s649, %s650
      %s652 = smul.addr %s651, 2
      %s653 = scalar_lea.vmem %s20, %s652
      %p654 = scmp.lt.s32.totalorder %s35, 1
      %s655 = scalar_select %p654, %s35, 1
      %s656 = smul.addr %s655, 40
      %s657 = smul.addr %s656, 4
      %s658 = scalar_lea.vmem %s0, %s657
      %s659 = smul.u32 32, %s36
      %p660 = scmp.lt.s32.totalorder %s659, 31
      %s661 = scalar_select %p660, %s659, 31
      %s662 = smul.addr %s661, 4
      %s663 = scalar_lea.vmem %s19, %s662
      %s664 = smul.u32 32, %s36
      %s665 = smul.u32 32, %s36
      %p666 = scmp.lt.s32.totalorder %s35, 1
      %s667 = scalar_select %p666, %s35, 1
      %p668 = scmp.lt.s32.totalorder %s665, 31
      %s669 = scalar_select %p668, %s665, 31
      %s670 = smul.addr %s667, 32
      %s671 = sadd.s32 %s669, %s670
      %s672 = smul.addr %s671, 2
      %s673 = scalar_lea.vmem %s20, %s672
      %s674 = smul.u32 32, %s36
      %v676 = vld [vmem:[%s658] sm:$0xff]
      %v677 = vld [vmem:[%s658 + $0x8] sm:$0xff]
      %v678 = vld [vmem:[%s658 + $0x10] sm:$0xf]
      %v679 = vld [vmem:[%s658 + $0x14] sm:$0xff]
      %v680 = vld [vmem:[%s658 + $0x1c] sm:$0xff]
      %v681 = vld [vmem:[%s658 + $0x24] sm:$0xf]
      %v682 = vld [vmem:[%s658 + $0x28] sm:$0xff]
      %v683 = vld [vmem:[%s658 + $0x30] sm:$0xff]
      %v684 = vld [vmem:[%s658 + $0x38] sm:$0xf]
      %v685 = vld [vmem:[%s658 + $0x3c] sm:$0xff]
      %v686 = vld [vmem:[%s658 + $0x44] sm:$0xff]
      %v687 = vld [vmem:[%s658 + $0x4c] sm:$0xf]
      %v688 = vld [vmem:[%s658 + $0x50] sm:$0xff]
      %v689 = vld [vmem:[%s658 + $0x58] sm:$0xff]
      %v690 = vld [vmem:[%s658 + $0x60] sm:$0xf]
      %v691 = vld [vmem:[%s658 + $0x64] sm:$0xff]
      %v692 = vld [vmem:[%s658 + $0x6c] sm:$0xff]
      %v693 = vld [vmem:[%s658 + $0x74] sm:$0xf]
      %v694 = vld [vmem:[%s658 + $0x78] sm:$0xff]
      %v695 = vld [vmem:[%s658 + $0x80] sm:$0xff]
      %v696 = vld [vmem:[%s658 + $0x88] sm:$0xf]
      %v697 = vld [vmem:[%s658 + $0x8c] sm:$0xff]
      %v698 = vld [vmem:[%s658 + $0x94] sm:$0xff]
      %v699 = vld [vmem:[%s658 + $0x9c] sm:$0xf]
      %v700 = vld [vmem:[%s2] sm:$0xf]
      %v701 = vld [vmem:[%s2 + $0x4] sm:$0xf]
      %v702 = vld [vmem:[%s2 + $0x8] sm:$0xf]
      %v703 = vld [vmem:[%s2 + $0xc] sm:$0xf]
      %v704 = vld [vmem:[%s2 + $0x10] sm:$0xf]
      %v705 = vld [vmem:[%s2 + $0x14] sm:$0xf]
      %v706 = vld [vmem:[%s2 + $0x18] sm:$0xf]
      %v707 = vld [vmem:[%s2 + $0x1c] sm:$0xf]
      %v708 = vld [vmem:[%s2 + $0x20] sm:$0xf]
      %v709 = vld [vmem:[%s2 + $0x24] sm:$0xf]
      %v710 = vld [vmem:[%s2 + $0x28] sm:$0xf]
      %v711 = vld [vmem:[%s2 + $0x2c] sm:$0xf]
      %v712 = vld [vmem:[%s2 + $0x30] sm:$0xf]
      %v713 = vld [vmem:[%s2 + $0x34] sm:$0xf]
      %v714 = vld [vmem:[%s2 + $0x38] sm:$0xf]
      %v715 = vld [vmem:[%s2 + $0x3c] sm:$0xf]
      %v716 = vld [vmem:[%s2 + $0x40] sm:$0xf]
      %v717 = vld [vmem:[%s2 + $0x44] sm:$0xf]
      %v718 = vld [vmem:[%s2 + $0x48] sm:$0xf]
      %v719 = vld [vmem:[%s2 + $0x4c] sm:$0xf]
      %v720 = vld [vmem:[%s2 + $0x50] sm:$0xf]
      %v721 = vld [vmem:[%s2 + $0x54] sm:$0xf]
      %v722 = vld [vmem:[%s2 + $0x58] sm:$0xf]
      %v723 = vld [vmem:[%s2 + $0x5c] sm:$0xf]
      %v724 = vld [vmem:[%s2 + $0x60] sm:$0xf]
      %v725 = vld [vmem:[%s2 + $0x64] sm:$0xf]
      %v726 = vld [vmem:[%s2 + $0x68] sm:$0xf]
      %v727 = vld [vmem:[%s2 + $0x6c] sm:$0xf]
      %v728 = vld [vmem:[%s2 + $0x70] sm:$0xf]
      %v729 = vld [vmem:[%s2 + $0x74] sm:$0xf]
      %v730 = vld [vmem:[%s2 + $0x78] sm:$0xf]
      %v731 = vld [vmem:[%s2 + $0x7c] sm:$0xf]
      %v732 = vld [vmem:[%s2 + $0x80] sm:$0xf]
      %v733 = vld [vmem:[%s2 + $0x84] sm:$0xf]
      %v734 = vld [vmem:[%s2 + $0x88] sm:$0xf]
      %v735 = vld [vmem:[%s2 + $0x8c] sm:$0xf]
      %v736 = vld [vmem:[%s2 + $0x90] sm:$0xf]
      %v737 = vld [vmem:[%s2 + $0x94] sm:$0xf]
      %v738 = vld [vmem:[%s2 + $0x98] sm:$0xf]
      %v739 = vld [vmem:[%s2 + $0x9c] sm:$0xf]
      %v740 = vld [vmem:[%s2 + $0xa0] sm:$0xf]
      %v741 = vld [vmem:[%s2 + $0xa4] sm:$0xf]
      %v742 = vld [vmem:[%s2 + $0xa8] sm:$0xf]
      %v743 = vld [vmem:[%s2 + $0xac] sm:$0xf]
      %v744 = vld [vmem:[%s2 + $0xb0] sm:$0xf]
      %v745 = vld [vmem:[%s2 + $0xb4] sm:$0xf]
      %v746 = vld [vmem:[%s2 + $0xb8] sm:$0xf]
      %v747 = vld [vmem:[%s2 + $0xbc] sm:$0xf]
      %v748 = vld [vmem:[%s2 + $0xc0] sm:$0xf]
      %v749 = vld [vmem:[%s2 + $0xc4] sm:$0xf]
      %v750 = vld [vmem:[%s2 + $0xc8] sm:$0xf]
      %v751 = vld [vmem:[%s2 + $0xcc] sm:$0xf]
      %v752 = vld [vmem:[%s2 + $0xd0] sm:$0xf]
      %v753 = vld [vmem:[%s2 + $0xd4] sm:$0xf]
      %v754 = vld [vmem:[%s2 + $0xd8] sm:$0xf]
      %v755 = vld [vmem:[%s2 + $0xdc] sm:$0xf]
      %v756 = vld [vmem:[%s2 + $0xe0] sm:$0xf]
      %v757 = vld [vmem:[%s2 + $0xe4] sm:$0xf]
      %v758 = vld [vmem:[%s2 + $0xe8] sm:$0xf]
      %v759 = vld [vmem:[%s2 + $0xec] sm:$0xf]
      %v760 = vld [vmem:[%s2 + $0xf0] sm:$0xf]
      %v761 = vld [vmem:[%s2 + $0xf4] sm:$0xf]
      %v762 = vld [vmem:[%s2 + $0xf8] sm:$0xf]
      %v763 = vld [vmem:[%s2 + $0xfc] sm:$0xf]
      %v764 = vld [vmem:[%s2 + $0x100] sm:$0xf]
      %v765 = vld [vmem:[%s2 + $0x104] sm:$0xf]
      %v766 = vld [vmem:[%s2 + $0x108] sm:$0xf]
      %v767 = vld [vmem:[%s2 + $0x10c] sm:$0xf]
      %v768 = vld [vmem:[%s2 + $0x110] sm:$0xf]
      %v769 = vld [vmem:[%s2 + $0x114] sm:$0xf]
      %v770 = vld [vmem:[%s2 + $0x118] sm:$0xf]
      %v771 = vld [vmem:[%s2 + $0x11c] sm:$0xf]
      %v772 = vld [vmem:[%s3] sm:$0x1]
      %v774 = vlaneseq
      %v775 = vshrl.u32 %v774, 7
      %v776 = vsub.s32 0, %v775
      %v777 = vrot.slane %v772, %v776
      %v803 = vunpack.c.l.b16 %v676
      %v804 = vunpack.c.h.b16 %v676
      %v805 = vunpack.c.l.b16 %v677
      %v806 = vunpack.c.h.b16 %v677
      %v807 = vunpack.c.l.b16 %v678
      %v808 = vunpack.c.l.b16 %v679
      %v809 = vunpack.c.h.b16 %v679
      %v810 = vunpack.c.l.b16 %v680
      %v811 = vunpack.c.h.b16 %v680
      %v812 = vunpack.c.l.b16 %v681
      %v813 = vunpack.c.l.b16 %v682
      %v814 = vunpack.c.h.b16 %v682
      %v815 = vunpack.c.l.b16 %v683
      %v816 = vunpack.c.h.b16 %v683
      %v817 = vunpack.c.l.b16 %v684
      %v818 = vunpack.c.l.b16 %v685
      %v819 = vunpack.c.h.b16 %v685
      %v820 = vunpack.c.l.b16 %v686
      %v821 = vunpack.c.h.b16 %v686
      %v822 = vunpack.c.l.b16 %v687
      %v823 = vunpack.c.l.b16 %v688
      %v824 = vunpack.c.h.b16 %v688
      %v825 = vunpack.c.l.b16 %v689
      %v826 = vunpack.c.h.b16 %v689
      %v827 = vunpack.c.l.b16 %v690
      %v828 = vunpack.c.l.b16 %v691
      %v829 = vunpack.c.h.b16 %v691
      %v830 = vunpack.c.l.b16 %v692
      %v831 = vunpack.c.h.b16 %v692
      %v832 = vunpack.c.l.b16 %v693
      %v833 = vunpack.c.l.b16 %v694
      %v834 = vunpack.c.h.b16 %v694
      %v835 = vunpack.c.l.b16 %v695
      %v836 = vunpack.c.h.b16 %v695
      %v837 = vunpack.c.l.b16 %v696
      %v838 = vunpack.c.l.b16 %v697
      %v839 = vunpack.c.h.b16 %v697
      %v840 = vunpack.c.l.b16 %v698
      %v841 = vunpack.c.h.b16 %v698
      %v842 = vunpack.c.l.b16 %v699
      %v843 = vpack.c.b16 %v808, %v803
      %v844 = vpack.c.b16 %v809, %v804
      %v845 = vpack.c.b16 %v810, %v805
      %v846 = vpack.c.b16 %v811, %v806
      %v847 = vpack.c.b16 %v812, %v807
      %v848 = vpack.c.b16 %v818, %v813
      %v849 = vpack.c.b16 %v819, %v814
      %v850 = vpack.c.b16 %v820, %v815
      %v851 = vpack.c.b16 %v821, %v816
      %v852 = vpack.c.b16 %v822, %v817
      %v853 = vpack.c.b16 %v828, %v823
      %v854 = vpack.c.b16 %v829, %v824
      %v855 = vpack.c.b16 %v830, %v825
      %v856 = vpack.c.b16 %v831, %v826
      %v857 = vpack.c.b16 %v832, %v827
      %v858 = vpack.c.b16 %v838, %v833
      %v859 = vpack.c.b16 %v839, %v834
      %v860 = vpack.c.b16 %v840, %v835
      %v861 = vpack.c.b16 %v841, %v836
      %v862 = vpack.c.b16 %v842, %v837
      %v951 = vunpack.c.l.b16 %v700
      %v952 = vunpack.c.l.b16 %v701
      %v953 = vunpack.c.l.b16 %v702
      %v954 = vunpack.c.l.b16 %v703
      %v955 = vunpack.c.l.b16 %v704
      %v956 = vunpack.c.l.b16 %v705
      %v957 = vunpack.c.l.b16 %v706
      %v958 = vunpack.c.l.b16 %v707
      %v959 = vunpack.c.l.b16 %v708
      %v960 = vunpack.c.l.b16 %v709
      %v961 = vunpack.c.l.b16 %v710
      %v962 = vunpack.c.l.b16 %v711
      %v963 = vunpack.c.l.b16 %v712
      %v964 = vunpack.c.l.b16 %v713
      %v965 = vunpack.c.l.b16 %v714
      %v966 = vunpack.c.l.b16 %v715
      %v967 = vunpack.c.l.b16 %v716
      %v968 = vunpack.c.l.b16 %v717
      %v969 = vunpack.c.l.b16 %v718
      %v970 = vunpack.c.l.b16 %v719
      %v971 = vunpack.c.l.b16 %v720
      %v972 = vunpack.c.l.b16 %v721
      %v973 = vunpack.c.l.b16 %v722
      %v974 = vunpack.c.l.b16 %v723
      %v975 = vunpack.c.l.b16 %v724
      %v976 = vunpack.c.l.b16 %v725
      %v977 = vunpack.c.l.b16 %v726
      %v978 = vunpack.c.l.b16 %v727
      %v979 = vunpack.c.l.b16 %v728
      %v980 = vunpack.c.l.b16 %v729
      %v981 = vunpack.c.l.b16 %v730
      %v982 = vunpack.c.l.b16 %v731
      %v983 = vunpack.c.l.b16 %v732
      %v984 = vunpack.c.l.b16 %v733
      %v985 = vunpack.c.l.b16 %v734
      %v986 = vunpack.c.l.b16 %v735
      %v987 = vunpack.c.l.b16 %v736
      %v988 = vunpack.c.l.b16 %v737
      %v989 = vunpack.c.l.b16 %v738
      %v990 = vunpack.c.l.b16 %v739
      %v991 = vunpack.c.l.b16 %v740
      %v992 = vunpack.c.l.b16 %v741
      %v993 = vunpack.c.l.b16 %v742
      %v994 = vunpack.c.l.b16 %v743
      %v995 = vunpack.c.l.b16 %v744
      %v996 = vunpack.c.l.b16 %v745
      %v997 = vunpack.c.l.b16 %v746
      %v998 = vunpack.c.l.b16 %v747
      %v999 = vunpack.c.l.b16 %v748
      %v1000 = vunpack.c.l.b16 %v749
      %v1001 = vunpack.c.l.b16 %v750
      %v1002 = vunpack.c.l.b16 %v751
      %v1003 = vunpack.c.l.b16 %v752
      %v1004 = vunpack.c.l.b16 %v753
      %v1005 = vunpack.c.l.b16 %v754
      %v1006 = vunpack.c.l.b16 %v755
      %v1007 = vunpack.c.l.b16 %v756
      %v1008 = vunpack.c.l.b16 %v757
      %v1009 = vunpack.c.l.b16 %v758
      %v1010 = vunpack.c.l.b16 %v759
      %v1011 = vunpack.c.l.b16 %v760
      %v1012 = vunpack.c.l.b16 %v761
      %v1013 = vunpack.c.l.b16 %v762
      %v1014 = vunpack.c.l.b16 %v763
      %v1015 = vunpack.c.l.b16 %v764
      %v1016 = vunpack.c.l.b16 %v765
      %v1017 = vunpack.c.l.b16 %v766
      %v1018 = vunpack.c.l.b16 %v767
      %v1019 = vunpack.c.l.b16 %v768
      %v1020 = vunpack.c.l.b16 %v769
      %v1021 = vunpack.c.l.b16 %v770
      %v1022 = vunpack.c.l.b16 %v771
      %v1023 = vpack.c.b16 %v952, %v951
      %v1024 = vpack.c.b16 %v954, %v953
      %v1025 = vpack.c.b16 %v956, %v955
      %v1026 = vpack.c.b16 %v958, %v957
      %v1027 = vpack.c.b16 %v960, %v959
      %v1028 = vpack.c.b16 %v962, %v961
      %v1029 = vpack.c.b16 %v964, %v963
      %v1030 = vpack.c.b16 %v966, %v965
      %v1031 = vpack.c.b16 %v968, %v967
      %v1032 = vpack.c.b16 %v970, %v969
      %v1033 = vpack.c.b16 %v972, %v971
      %v1034 = vpack.c.b16 %v974, %v973
      %v1035 = vpack.c.b16 %v976, %v975
      %v1036 = vpack.c.b16 %v978, %v977
      %v1037 = vpack.c.b16 %v980, %v979
      %v1038 = vpack.c.b16 %v982, %v981
      %v1039 = vpack.c.b16 %v984, %v983
      %v1040 = vpack.c.b16 %v986, %v985
      %v1041 = vpack.c.b16 %v988, %v987
      %v1042 = vpack.c.b16 %v990, %v989
      %v1043 = vpack.c.b16 %v992, %v991
      %v1044 = vpack.c.b16 %v994, %v993
      %v1045 = vpack.c.b16 %v996, %v995
      %v1046 = vpack.c.b16 %v998, %v997
      %v1047 = vpack.c.b16 %v1000, %v999
      %v1048 = vpack.c.b16 %v1002, %v1001
      %v1049 = vpack.c.b16 %v1004, %v1003
      %v1050 = vpack.c.b16 %v1006, %v1005
      %v1051 = vpack.c.b16 %v1008, %v1007
      %v1052 = vpack.c.b16 %v1010, %v1009
      %v1053 = vpack.c.b16 %v1012, %v1011
      %v1054 = vpack.c.b16 %v1014, %v1013
      %v1055 = vpack.c.b16 %v1016, %v1015
      %v1056 = vpack.c.b16 %v1018, %v1017
      %v1057 = vpack.c.b16 %v1020, %v1019
      %v1058 = vpack.c.b16 %v1022, %v1021
      %vm1095 = vcmask 523264
      %v1097 = vsel %vm1095, %v847, 0
      %v1100 = vsel %vm1095, %v852, 0
      %v1103 = vsel %vm1095, %v857, 0
      %v1106 = vsel %vm1095, %v862, 0
      %1108 = vmatprep.subr.bf16.mxu0 0
      %1109 = vmatpush1.bf16.msra.mxu0 %v1023
      %1110 = vmatprep.subr.bf16.mxu0 0
      %1111 = vmatpush1.bf16.msra.mxu0 %v1024
      %1112 = vmatprep.subr.bf16.mxu0 0
      %1113 = vmatpush1.bf16.msra.mxu0 %v1025
      %1114 = vmatprep.subr.bf16.mxu0 0
      %1115 = vmatpush1.bf16.msra.mxu0 %v1026
      %1116 = vmatprep.subr.bf16.mxu0 0
      %1117 = vmatpush1.bf16.msra.mxu0 %v1027
      %1118 = vmatprep.subr.bf16.mxu0 0
      %1119 = vmatpush1.bf16.msra.mxu0 %v1028
      %1120 = vmatprep.subr.bf16.mxu0 0
      %1121 = vmatpush1.bf16.msra.mxu0 %v1029
      %1122 = vmatprep.subr.bf16.mxu0 0
      %1123 = vmatpush1.bf16.msra.mxu0 %v1030
      %1124 = vmatprep.subr.bf16.mxu0 0
      %1125 = vmatpush1.bf16.msra.mxu0 %v1031
      %1126 = vmatprep.subr.bf16.mxu0 0
      %1127 = vmatpush1.bf16.msra.mxu0 %v1032
      %1128 = vmatprep.subr.bf16.mxu0 0
      %1129 = vmatpush1.bf16.msra.mxu0 %v1033
      %1130 = vmatprep.subr.bf16.mxu0 0
      %1131 = vmatpush1.bf16.msra.mxu0 %v1034
      %1132 = vmatprep.subr.bf16.mxu0 0
      %1133 = vmatpush1.bf16.msra.mxu0 %v1035
      %1134 = vmatprep.subr.bf16.mxu0 0
      %1135 = vmatpush1.bf16.msra.mxu0 %v1036
      %1136 = vmatprep.subr.bf16.mxu0 0
      %1137 = vmatpush1.bf16.msra.mxu0 %v1037
      %1138 = vmatprep.subr.bf16.mxu0 0
      %1139 = vmatpush1.bf16.msra.mxu0 %v1038
      %1140 = vmatprep.mubr.bf16.mxu0 %v844
      %1141 = vmatmul.mubr.bf16.gmra.mrb[0].mxu0 %v843
      %v1142 = vpop.f32.mrb[0].mxu0
      %v1143 = vadd.f32 %v777, %v1142
      %v1144 = vpop.f32.mrb[0].mxu0
      %v1145 = vpop.f32.mrb[0].mxu0
      %v1146 = vadd.f32 %v777, %v1145
      %v1147 = vpop.f32.mrb[0].mxu0
      %1148 = vmatprep.mubr.bf16.mxu0 %v849
      %1149 = vmatmul.mubr.bf16.gmra.mrb[0].mxu0 %v848
      %v1150 = vpop.f32.mrb[0].mxu0
      %v1151 = vadd.f32 %v777, %v1150
      %v1152 = vpop.f32.mrb[0].mxu0
      %v1153 = vpop.f32.mrb[0].mxu0
      %v1154 = vadd.f32 %v777, %v1153
      %v1155 = vpop.f32.mrb[0].mxu0
      %1156 = vmatprep.mubr.bf16.mxu0 %v854
      %1157 = vmatmul.mubr.bf16.gmra.mrb[0].mxu0 %v853
      %v1158 = vpop.f32.mrb[0].mxu0
      %v1159 = vadd.f32 %v777, %v1158
      %v1160 = vpop.f32.mrb[0].mxu0
      %v1161 = vpop.f32.mrb[0].mxu0
      %v1162 = vadd.f32 %v777, %v1161
      %v1163 = vpop.f32.mrb[0].mxu0
      %1164 = vmatprep.mubr.bf16.mxu0 %v859
      %1165 = vmatmul.mubr.bf16.gmra.mrb[0].mxu0 %v858
      %v1166 = vpop.f32.mrb[0].mxu0
      %v1167 = vadd.f32 %v777, %v1166
      %v1168 = vpop.f32.mrb[0].mxu0
      %v1169 = vpop.f32.mrb[0].mxu0
      %v1170 = vadd.f32 %v777, %v1169
      %v1171 = vpop.f32.mrb[0].mxu0
      %1172 = vdwg.mxu0
      %1173 = vmatprep.subr.bf16.mxu0 0
      %1174 = vmatpush1.bf16.msra.mxu0 %v1039
      %1175 = vmatprep.subr.bf16.mxu0 0
      %1176 = vmatpush1.bf16.msra.mxu0 %v1040
      %1177 = vmatprep.subr.bf16.mxu0 0
      %1178 = vmatpush1.bf16.msra.mxu0 %v1041
      %1179 = vmatprep.subr.bf16.mxu0 0
      %1180 = vmatpush1.bf16.msra.mxu0 %v1042
      %1181 = vmatprep.subr.bf16.mxu0 0
      %1182 = vmatpush1.bf16.msra.mxu0 %v1043
      %1183 = vmatprep.subr.bf16.mxu0 0
      %1184 = vmatpush1.bf16.msra.mxu0 %v1044
      %1185 = vmatprep.subr.bf16.mxu0 0
      %1186 = vmatpush1.bf16.msra.mxu0 %v1045
      %1187 = vmatprep.subr.bf16.mxu0 0
      %1188 = vmatpush1.bf16.msra.mxu0 %v1046
      %1189 = vmatprep.subr.bf16.mxu0 0
      %1190 = vmatpush1.bf16.msra.mxu0 %v1047
      %1191 = vmatprep.subr.bf16.mxu0 0
      %1192 = vmatpush1.bf16.msra.mxu0 %v1048
      %1193 = vmatprep.subr.bf16.mxu0 0
      %1194 = vmatpush1.bf16.msra.mxu0 %v1049
      %1195 = vmatprep.subr.bf16.mxu0 0
      %1196 = vmatpush1.bf16.msra.mxu0 %v1050
      %1197 = vmatprep.subr.bf16.mxu0 0
      %1198 = vmatpush1.bf16.msra.mxu0 %v1051
      %1199 = vmatprep.subr.bf16.mxu0 0
      %1200 = vmatpush1.bf16.msra.mxu0 %v1052
      %1201 = vmatprep.subr.bf16.mxu0 0
      %1202 = vmatpush1.bf16.msra.mxu0 %v1053
      %1203 = vmatprep.subr.bf16.mxu0 0
      %1204 = vmatpush1.bf16.msra.mxu0 %v1054
      %1205 = vmatprep.mubr.bf16.mxu0 %v846
      %1206 = vmatmul.mubr.bf16.gmra.mrb[0].mxu0 %v845
      %v1207 = vpop.f32.mrb[0].mxu0
      %v1208 = vadd.f32 %v1143, %v1207
      %v1209 = vpop.f32.mrb[0].mxu0
      %v1210 = vpop.f32.mrb[0].mxu0
      %v1211 = vadd.f32 %v1146, %v1210
      %v1212 = vpop.f32.mrb[0].mxu0
      %1213 = vmatprep.mubr.bf16.mxu0 %v851
      %1214 = vmatmul.mubr.bf16.gmra.mrb[0].mxu0 %v850
      %v1215 = vpop.f32.mrb[0].mxu0
      %v1216 = vadd.f32 %v1151, %v1215
      %v1217 = vpop.f32.mrb[0].mxu0
      %v1218 = vpop.f32.mrb[0].mxu0
      %v1219 = vadd.f32 %v1154, %v1218
      %v1220 = vpop.f32.mrb[0].mxu0
      %1221 = vmatprep.mubr.bf16.mxu0 %v856
      %1222 = vmatmul.mubr.bf16.gmra.mrb[0].mxu0 %v855
      %v1223 = vpop.f32.mrb[0].mxu0
      %v1224 = vadd.f32 %v1159, %v1223
      %v1225 = vpop.f32.mrb[0].mxu0
      %v1226 = vpop.f32.mrb[0].mxu0
      %v1227 = vadd.f32 %v1162, %v1226
      %v1228 = vpop.f32.mrb[0].mxu0
      %1229 = vmatprep.mubr.bf16.mxu0 %v861
      %1230 = vmatmul.mubr.bf16.gmra.mrb[0].mxu0 %v860
      %v1231 = vpop.f32.mrb[0].mxu0
      %v1232 = vadd.f32 %v1167, %v1231
      %v1233 = vpop.f32.mrb[0].mxu0
      %v1234 = vpop.f32.mrb[0].mxu0
      %v1235 = vadd.f32 %v1170, %v1234
      %v1236 = vpop.f32.mrb[0].mxu0
      %1237 = vdwg.mxu0
      %1238 = vmatprep.subr.bf16.mxu0 0
      %1239 = vmatpush1.bf16.msra.mxu0 %v1055
      %1240 = vmatprep.subr.bf16.mxu0 0
      %1241 = vmatpush1.bf16.msra.mxu0 %v1056
      %1242 = vmatprep.subr.bf16.mxu0 0
      %1243 = vmatpush1.bf16.msra.mxu0 %v1057
      %1244 = vmatprep.subr.bf16.mxu0 0
      %1245 = vmatpush1.bf16.msra.mxu0 %v1058
      %1246 = vmatprep.subr.bf16.mxu0 0
      %1247 = vmatpush1.bf16.msra.mxu0 0
      %1248 = vmatprep.subr.bf16.mxu0 0
      %1249 = vmatpush1.bf16.msra.mxu0 0
      %1250 = vmatprep.subr.bf16.mxu0 0
      %1251 = vmatpush1.bf16.msra.mxu0 0
      %1252 = vmatprep.subr.bf16.mxu0 0
      %1253 = vmatpush1.bf16.msra.mxu0 0
      %1254 = vmatprep.subr.bf16.mxu0 0
      %1255 = vmatpush1.bf16.msra.mxu0 0
      %1256 = vmatprep.subr.bf16.mxu0 0
      %1257 = vmatpush1.bf16.msra.mxu0 0
      %1258 = vmatprep.subr.bf16.mxu0 0
      %1259 = vmatpush1.bf16.msra.mxu0 0
      %1260 = vmatprep.subr.bf16.mxu0 0
      %1261 = vmatpush1.bf16.msra.mxu0 0
      %1262 = vmatprep.subr.bf16.mxu0 0
      %1263 = vmatpush1.bf16.msra.mxu0 0
      %1264 = vmatprep.subr.bf16.mxu0 0
      %1265 = vmatpush1.bf16.msra.mxu0 0
      %1266 = vmatprep.subr.bf16.mxu0 0
      %1267 = vmatpush1.bf16.msra.mxu0 0
      %1268 = vmatprep.subr.bf16.mxu0 0
      %1269 = vmatpush1.bf16.msra.mxu0 0
      %1270 = vmatprep.mubr.bf16.mxu0 0
      %1271 = vmatmul.mubr.bf16.gmra.mrb[0].mxu0 %v1097
      %v1272 = vpop.f32.mrb[0].mxu0
      %v1273 = vadd.f32 %v1208, %v1272
      %v1274 = vpop.f32.mrb[0].mxu0
      %v1275 = vpop.f32.mrb[0].mxu0
      %v1276 = vadd.f32 %v1211, %v1275
      %v1277 = vpop.f32.mrb[0].mxu0
      %1278 = vmatprep.mubr.bf16.mxu0 0
      %1279 = vmatmul.mubr.bf16.gmra.mrb[0].mxu0 %v1100
      %v1280 = vpop.f32.mrb[0].mxu0
      %v1281 = vadd.f32 %v1216, %v1280
      %v1282 = vpop.f32.mrb[0].mxu0
      %v1283 = vpop.f32.mrb[0].mxu0
      %v1284 = vadd.f32 %v1219, %v1283
      %v1285 = vpop.f32.mrb[0].mxu0
      %1286 = vmatprep.mubr.bf16.mxu0 0
      %1287 = vmatmul.mubr.bf16.gmra.mrb[0].mxu0 %v1103
      %v1288 = vpop.f32.mrb[0].mxu0
      %v1289 = vadd.f32 %v1224, %v1288
      %v1290 = vpop.f32.mrb[0].mxu0
      %v1291 = vpop.f32.mrb[0].mxu0
      %v1292 = vadd.f32 %v1227, %v1291
      %v1293 = vpop.f32.mrb[0].mxu0
      %1294 = vmatprep.mubr.bf16.mxu0 0
      %1295 = vmatmul.mubr.bf16.gmra.mrb[0].mxu0 %v1106
      %v1296 = vpop.f32.mrb[0].mxu0
      %v1297 = vadd.f32 %v1232, %v1296
      %v1298 = vpop.f32.mrb[0].mxu0
      %v1299 = vpop.f32.mrb[0].mxu0
      %v1300 = vadd.f32 %v1235, %v1299
      %v1301 = vpop.f32.mrb[0].mxu0
      %1302 = vdwg.mxu0
      %v1303 = vmax.f32 %v1273, 0.0
      %v1304 = vmax.f32 %v1276, 0.0
      %v1305 = vmax.f32 %v1281, 0.0
      %v1306 = vmax.f32 %v1284, 0.0
      %v1307 = vmax.f32 %v1289, 0.0
      %v1308 = vmax.f32 %v1292, 0.0
      %v1309 = vmax.f32 %v1297, 0.0
      %v1310 = vmax.f32 %v1300, 0.0
      %v1311 = vld [vmem:[%s1] sm:$0xff]
      %v1312 = vld [vmem:[%s1 + $0x8] sm:$0xff]
      %v1313 = vld [vmem:[%s1 + $0x10] sm:$0xff]
      %v1314 = vld [vmem:[%s1 + $0x18] sm:$0xff]
      %v1315 = vld [vmem:[%s1 + $0x20] sm:$0xff]
      %v1316 = vld [vmem:[%s1 + $0x28] sm:$0xff]
      %v1317 = vld [vmem:[%s1 + $0x30] sm:$0xff]
      %v1318 = vld [vmem:[%s1 + $0x38] sm:$0xff]
      %v1319 = vadd.f32 %v1303, %v1311
      %v1320 = vadd.f32 %v1304, %v1312
      %v1321 = vadd.f32 %v1305, %v1313
      %v1322 = vadd.f32 %v1306, %v1314
      %v1323 = vadd.f32 %v1307, %v1315
      %v1324 = vadd.f32 %v1308, %v1316
      %v1325 = vadd.f32 %v1309, %v1317
      %v1326 = vadd.f32 %v1310, %v1318
      %v1327 = vpack.c.bf16 %v1320, %v1319
      %v1328 = vpack.c.bf16 %v1322, %v1321
      %v1329 = vpack.c.bf16 %v1324, %v1323
      %v1330 = vpack.c.bf16 %v1326, %v1325
      %v1331 = vld [vmem:[%s4] sm:$0xf]
      %v1332 = vld [vmem:[%s4 + $0x4] sm:$0xf]
      %v1333 = vld [vmem:[%s4 + $0x8] sm:$0xf]
      %v1334 = vld [vmem:[%s4 + $0xc] sm:$0xf]
      %v1335 = vld [vmem:[%s4 + $0x10] sm:$0xf]
      %v1336 = vld [vmem:[%s4 + $0x14] sm:$0xf]
      %v1337 = vld [vmem:[%s4 + $0x18] sm:$0xf]
      %v1338 = vld [vmem:[%s4 + $0x1c] sm:$0xf]
      %v1339 = vld [vmem:[%s5] sm:$0x1]
      %v1341 = vlaneseq
      %v1342 = vshrl.u32 %v1341, 7
      %v1343 = vsub.s32 0, %v1342
      %v1344 = vrot.slane %v1339, %v1343
      %v1354 = vunpack.c.l.b16 %v1331
      %v1355 = vunpack.c.l.b16 %v1332
      %v1356 = vunpack.c.l.b16 %v1333
      %v1357 = vunpack.c.l.b16 %v1334
      %v1358 = vunpack.c.l.b16 %v1335
      %v1359 = vunpack.c.l.b16 %v1336
      %v1360 = vunpack.c.l.b16 %v1337
      %v1361 = vunpack.c.l.b16 %v1338
      %v1362 = vpack.c.b16 %v1355, %v1354
      %v1363 = vpack.c.b16 %v1357, %v1356
      %v1364 = vpack.c.b16 %v1359, %v1358
      %v1365 = vpack.c.b16 %v1361, %v1360
      %v1371 = vsel %vm1095, %v1327, 0
      %v1374 = vsel %vm1095, %v1328, 0
      %v1377 = vsel %vm1095, %v1329, 0
      %v1380 = vsel %vm1095, %v1330, 0
      %1382 = vmatprep.subr.bf16.mxu0 0
      %1383 = vmatpush1.bf16.msra.mxu0 %v1362
      %1384 = vmatprep.subr.bf16.mxu0 0
      %1385 = vmatpush1.bf16.msra.mxu0 %v1363
      %1386 = vmatprep.subr.bf16.mxu0 0
      %1387 = vmatpush1.bf16.msra.mxu0 %v1364
      %1388 = vmatprep.subr.bf16.mxu0 0
      %1389 = vmatpush1.bf16.msra.mxu0 %v1365
      %1390 = vmatprep.subr.bf16.mxu0 0
      %1391 = vmatpush1.bf16.msra.mxu0 0
      %1392 = vmatprep.subr.bf16.mxu0 0
      %1393 = vmatpush1.bf16.msra.mxu0 0
      %1394 = vmatprep.subr.bf16.mxu0 0
      %1395 = vmatpush1.bf16.msra.mxu0 0
      %1396 = vmatprep.subr.bf16.mxu0 0
      %1397 = vmatpush1.bf16.msra.mxu0 0
      %1398 = vmatprep.subr.bf16.mxu0 0
      %1399 = vmatpush1.bf16.msra.mxu0 0
      %1400 = vmatprep.subr.bf16.mxu0 0
      %1401 = vmatpush1.bf16.msra.mxu0 0
      %1402 = vmatprep.subr.bf16.mxu0 0
      %1403 = vmatpush1.bf16.msra.mxu0 0
      %1404 = vmatprep.subr.bf16.mxu0 0
      %1405 = vmatpush1.bf16.msra.mxu0 0
      %1406 = vmatprep.subr.bf16.mxu0 0
      %1407 = vmatpush1.bf16.msra.mxu0 0
      %1408 = vmatprep.subr.bf16.mxu0 0
      %1409 = vmatpush1.bf16.msra.mxu0 0
      %1410 = vmatprep.subr.bf16.mxu0 0
      %1411 = vmatpush1.bf16.msra.mxu0 0
      %1412 = vmatprep.subr.bf16.mxu0 0
      %1413 = vmatpush1.bf16.msra.mxu0 0
      %1414 = vmatprep.mubr.bf16.mxu0 0
      %1415 = vmatmul.mubr.bf16.gmra.mrb[0].mxu0 %v1371
      %v1416 = vpop.f32.mrb[0].mxu0
      %v1417 = vadd.f32 %v1344, %v1416
      %v1418 = vpop.f32.mrb[0].mxu0
      %v1419 = vpop.f32.mrb[0].mxu0
      %v1420 = vadd.f32 %v1344, %v1419
      %v1421 = vpop.f32.mrb[0].mxu0
      %1422 = vmatprep.mubr.bf16.mxu0 0
      %1423 = vmatmul.mubr.bf16.gmra.mrb[0].mxu0 %v1374
      %v1424 = vpop.f32.mrb[0].mxu0
      %v1425 = vadd.f32 %v1344, %v1424
      %v1426 = vpop.f32.mrb[0].mxu0
      %v1427 = vpop.f32.mrb[0].mxu0
      %v1428 = vadd.f32 %v1344, %v1427
      %v1429 = vpop.f32.mrb[0].mxu0
      %1430 = vmatprep.mubr.bf16.mxu0 0
      %1431 = vmatmul.mubr.bf16.gmra.mrb[0].mxu0 %v1377
      %v1432 = vpop.f32.mrb[0].mxu0
      %v1433 = vadd.f32 %v1344, %v1432
      %v1434 = vpop.f32.mrb[0].mxu0
      %v1435 = vpop.f32.mrb[0].mxu0
      %v1436 = vadd.f32 %v1344, %v1435
      %v1437 = vpop.f32.mrb[0].mxu0
      %1438 = vmatprep.mubr.bf16.mxu0 0
      %1439 = vmatmul.mubr.bf16.gmra.mrb[0].mxu0 %v1380
      %v1440 = vpop.f32.mrb[0].mxu0
      %v1441 = vadd.f32 %v1344, %v1440
      %v1442 = vpop.f32.mrb[0].mxu0
      %v1443 = vpop.f32.mrb[0].mxu0
      %v1444 = vadd.f32 %v1344, %v1443
      %v1445 = vpop.f32.mrb[0].mxu0
      %1446 = vdwg.mxu0
      %v1447 = vld [vmem:[%s6] sm:$0xf]
      %v1448 = vld [vmem:[%s6 + $0x4] sm:$0xf]
      %v1449 = vld [vmem:[%s6 + $0x8] sm:$0xf]
      %v1450 = vld [vmem:[%s6 + $0xc] sm:$0xf]
      %v1451 = vld [vmem:[%s6 + $0x10] sm:$0xf]
      %v1452 = vld [vmem:[%s6 + $0x14] sm:$0xf]
      %v1453 = vld [vmem:[%s6 + $0x18] sm:$0xf]
      %v1454 = vld [vmem:[%s6 + $0x1c] sm:$0xf]
      %v1455 = vld [vmem:[%s7] sm:$0x1]
      %v1457 = vlaneseq
      %v1458 = vshrl.u32 %v1457, 7
      %v1459 = vsub.s32 0, %v1458
      %v1460 = vrot.slane %v1455, %v1459
      %v1470 = vunpack.c.l.b16 %v1447
      %v1471 = vunpack.c.l.b16 %v1448
      %v1472 = vunpack.c.l.b16 %v1449
      %v1473 = vunpack.c.l.b16 %v1450
      %v1474 = vunpack.c.l.b16 %v1451
      %v1475 = vunpack.c.l.b16 %v1452
      %v1476 = vunpack.c.l.b16 %v1453
      %v1477 = vunpack.c.l.b16 %v1454
      %v1478 = vpack.c.b16 %v1471, %v1470
      %v1479 = vpack.c.b16 %v1473, %v1472
      %v1480 = vpack.c.b16 %v1475, %v1474
      %v1481 = vpack.c.b16 %v1477, %v1476
      %1486 = vmatprep.subr.bf16.mxu0 0
      %1487 = vmatpush1.bf16.msra.mxu0 %v1478
      %1488 = vmatprep.subr.bf16.mxu0 0
      %1489 = vmatpush1.bf16.msra.mxu0 %v1479
      %1490 = vmatprep.subr.bf16.mxu0 0
      %1491 = vmatpush1.bf16.msra.mxu0 %v1480
      %1492 = vmatprep.subr.bf16.mxu0 0
      %1493 = vmatpush1.bf16.msra.mxu0 %v1481
      %1494 = vmatprep.subr.bf16.mxu0 0
      %1495 = vmatpush1.bf16.msra.mxu0 0
      %1496 = vmatprep.subr.bf16.mxu0 0
      %1497 = vmatpush1.bf16.msra.mxu0 0
      %1498 = vmatprep.subr.bf16.mxu0 0
      %1499 = vmatpush1.bf16.msra.mxu0 0
      %1500 = vmatprep.subr.bf16.mxu0 0
      %1501 = vmatpush1.bf16.msra.mxu0 0
      %1502 = vmatprep.subr.bf16.mxu0 0
      %1503 = vmatpush1.bf16.msra.mxu0 0
      %1504 = vmatprep.subr.bf16.mxu0 0
      %1505 = vmatpush1.bf16.msra.mxu0 0
      %1506 = vmatprep.subr.bf16.mxu0 0
      %1507 = vmatpush1.bf16.msra.mxu0 0
      %1508 = vmatprep.subr.bf16.mxu0 0
      %1509 = vmatpush1.bf16.msra.mxu0 0
      %1510 = vmatprep.subr.bf16.mxu0 0
      %1511 = vmatpush1.bf16.msra.mxu0 0
      %1512 = vmatprep.subr.bf16.mxu0 0
      %1513 = vmatpush1.bf16.msra.mxu0 0
      %1514 = vmatprep.subr.bf16.mxu0 0
      %1515 = vmatpush1.bf16.msra.mxu0 0
      %1516 = vmatprep.subr.bf16.mxu0 0
      %1517 = vmatpush1.bf16.msra.mxu0 0
      %1518 = vmatprep.mubr.bf16.mxu0 0
      %1519 = vmatmul.mubr.bf16.gmra.mrb[0].mxu0 %v1371
      %v1520 = vpop.f32.mrb[0].mxu0
      %v1521 = vadd.f32 %v1460, %v1520
      %v1522 = vpop.f32.mrb[0].mxu0
      %v1523 = vpop.f32.mrb[0].mxu0
      %v1524 = vadd.f32 %v1460, %v1523
      %v1525 = vpop.f32.mrb[0].mxu0
      %1526 = vmatprep.mubr.bf16.mxu0 0
      %1527 = vmatmul.mubr.bf16.gmra.mrb[0].mxu0 %v1374
      %v1528 = vpop.f32.mrb[0].mxu0
      %v1529 = vadd.f32 %v1460, %v1528
      %v1530 = vpop.f32.mrb[0].mxu0
      %v1531 = vpop.f32.mrb[0].mxu0
      %v1532 = vadd.f32 %v1460, %v1531
      %v1533 = vpop.f32.mrb[0].mxu0
      %1534 = vmatprep.mubr.bf16.mxu0 0
      %1535 = vmatmul.mubr.bf16.gmra.mrb[0].mxu0 %v1377
      %v1536 = vpop.f32.mrb[0].mxu0
      %v1537 = vadd.f32 %v1460, %v1536
      %v1538 = vpop.f32.mrb[0].mxu0
      %v1539 = vpop.f32.mrb[0].mxu0
      %v1540 = vadd.f32 %v1460, %v1539
      %v1541 = vpop.f32.mrb[0].mxu0
      %1542 = vmatprep.mubr.bf16.mxu0 0
      %1543 = vmatmul.mubr.bf16.gmra.mrb[0].mxu0 %v1380
      %v1544 = vpop.f32.mrb[0].mxu0
      %v1545 = vadd.f32 %v1460, %v1544
      %v1546 = vpop.f32.mrb[0].mxu0
      %v1547 = vpop.f32.mrb[0].mxu0
      %v1548 = vadd.f32 %v1460, %v1547
      %v1549 = vpop.f32.mrb[0].mxu0
      %1550 = vdwg.mxu0
      %v1551 = vld [vmem:[%s8] sm:$0xf]
      %v1552 = vld [vmem:[%s8 + $0x4] sm:$0xf]
      %v1553 = vld [vmem:[%s8 + $0x8] sm:$0xf]
      %v1554 = vld [vmem:[%s8 + $0xc] sm:$0xf]
      %v1555 = vld [vmem:[%s8 + $0x10] sm:$0xf]
      %v1556 = vld [vmem:[%s8 + $0x14] sm:$0xf]
      %v1557 = vld [vmem:[%s8 + $0x18] sm:$0xf]
      %v1558 = vld [vmem:[%s8 + $0x1c] sm:$0xf]
      %v1559 = vld [vmem:[%s9] sm:$0x1]
      %v1561 = vlaneseq
      %v1562 = vshrl.u32 %v1561, 7
      %v1563 = vsub.s32 0, %v1562
      %v1564 = vrot.slane %v1559, %v1563
      %v1574 = vunpack.c.l.b16 %v1551
      %v1575 = vunpack.c.l.b16 %v1552
      %v1576 = vunpack.c.l.b16 %v1553
      %v1577 = vunpack.c.l.b16 %v1554
      %v1578 = vunpack.c.l.b16 %v1555
      %v1579 = vunpack.c.l.b16 %v1556
      %v1580 = vunpack.c.l.b16 %v1557
      %v1581 = vunpack.c.l.b16 %v1558
      %v1582 = vpack.c.b16 %v1575, %v1574
      %v1583 = vpack.c.b16 %v1577, %v1576
      %v1584 = vpack.c.b16 %v1579, %v1578
      %v1585 = vpack.c.b16 %v1581, %v1580
      %1590 = vmatprep.subr.bf16.mxu0 0
      %1591 = vmatpush1.bf16.msra.mxu0 %v1582
      %1592 = vmatprep.subr.bf16.mxu0 0
      %1593 = vmatpush1.bf16.msra.mxu0 %v1583
      %1594 = vmatprep.subr.bf16.mxu0 0
      %1595 = vmatpush1.bf16.msra.mxu0 %v1584
      %1596 = vmatprep.subr.bf16.mxu0 0
      %1597 = vmatpush1.bf16.msra.mxu0 %v1585
      %1598 = vmatprep.subr.bf16.mxu0 0
      %1599 = vmatpush1.bf16.msra.mxu0 0
      %1600 = vmatprep.subr.bf16.mxu0 0
      %1601 = vmatpush1.bf16.msra.mxu0 0
      %1602 = vmatprep.subr.bf16.mxu0 0
      %1603 = vmatpush1.bf16.msra.mxu0 0
      %1604 = vmatprep.subr.bf16.mxu0 0
      %1605 = vmatpush1.bf16.msra.mxu0 0
      %1606 = vmatprep.subr.bf16.mxu0 0
      %1607 = vmatpush1.bf16.msra.mxu0 0
      %1608 = vmatprep.subr.bf16.mxu0 0
      %1609 = vmatpush1.bf16.msra.mxu0 0
      %1610 = vmatprep.subr.bf16.mxu0 0
      %1611 = vmatpush1.bf16.msra.mxu0 0
      %1612 = vmatprep.subr.bf16.mxu0 0
      %1613 = vmatpush1.bf16.msra.mxu0 0
      %1614 = vmatprep.subr.bf16.mxu0 0
      %1615 = vmatpush1.bf16.msra.mxu0 0
      %1616 = vmatprep.subr.bf16.mxu0 0
      %1617 = vmatpush1.bf16.msra.mxu0 0
      %1618 = vmatprep.subr.bf16.mxu0 0
      %1619 = vmatpush1.bf16.msra.mxu0 0
      %1620 = vmatprep.subr.bf16.mxu0 0
      %1621 = vmatpush1.bf16.msra.mxu0 0
      %1622 = vmatprep.mubr.bf16.mxu0 0
      %1623 = vmatmul.mubr.bf16.gmra.mrb[0].mxu0 %v1371
      %v1624 = vpop.f32.mrb[0].mxu0
      %v1625 = vadd.f32 %v1564, %v1624
      %v1626 = vpop.f32.mrb[0].mxu0
      %v1627 = vpop.f32.mrb[0].mxu0
      %v1628 = vadd.f32 %v1564, %v1627
      %v1629 = vpop.f32.mrb[0].mxu0
      %1630 = vmatprep.mubr.bf16.mxu0 0
      %1631 = vmatmul.mubr.bf16.gmra.mrb[0].mxu0 %v1374
      %v1632 = vpop.f32.mrb[0].mxu0
      %v1633 = vadd.f32 %v1564, %v1632
      %v1634 = vpop.f32.mrb[0].mxu0
      %v1635 = vpop.f32.mrb[0].mxu0
      %v1636 = vadd.f32 %v1564, %v1635
      %v1637 = vpop.f32.mrb[0].mxu0
      %1638 = vmatprep.mubr.bf16.mxu0 0
      %1639 = vmatmul.mubr.bf16.gmra.mrb[0].mxu0 %v1377
      %v1640 = vpop.f32.mrb[0].mxu0
      %v1641 = vadd.f32 %v1564, %v1640
      %v1642 = vpop.f32.mrb[0].mxu0
      %v1643 = vpop.f32.mrb[0].mxu0
      %v1644 = vadd.f32 %v1564, %v1643
      %v1645 = vpop.f32.mrb[0].mxu0
      %1646 = vmatprep.mubr.bf16.mxu0 0
      %1647 = vmatmul.mubr.bf16.gmra.mrb[0].mxu0 %v1380
      %v1648 = vpop.f32.mrb[0].mxu0
      %v1649 = vadd.f32 %v1564, %v1648
      %v1650 = vpop.f32.mrb[0].mxu0
      %v1651 = vpop.f32.mrb[0].mxu0
      %v1652 = vadd.f32 %v1564, %v1651
      %v1653 = vpop.f32.mrb[0].mxu0
      %1654 = vdwg.mxu0
      %v1655 = vld [vmem:[%s10] sm:$0xf]
      %v1656 = vld [vmem:[%s10 + $0x4] sm:$0xf]
      %v1657 = vld [vmem:[%s10 + $0x8] sm:$0xf]
      %v1658 = vld [vmem:[%s10 + $0xc] sm:$0xf]
      %v1659 = vld [vmem:[%s10 + $0x10] sm:$0xf]
      %v1660 = vld [vmem:[%s10 + $0x14] sm:$0xf]
      %v1661 = vld [vmem:[%s10 + $0x18] sm:$0xf]
      %v1662 = vld [vmem:[%s10 + $0x1c] sm:$0xf]
      %v1663 = vld [vmem:[%s10 + $0x20] sm:$0xf]
      %v1664 = vld [vmem:[%s10 + $0x24] sm:$0xf]
      %v1665 = vld [vmem:[%s10 + $0x28] sm:$0xf]
      %v1666 = vld [vmem:[%s10 + $0x2c] sm:$0xf]
      %v1667 = vld [vmem:[%s10 + $0x30] sm:$0xf]
      %v1668 = vld [vmem:[%s10 + $0x34] sm:$0xf]
      %v1669 = vld [vmem:[%s10 + $0x38] sm:$0xf]
      %v1670 = vld [vmem:[%s10 + $0x3c] sm:$0xf]
      %v1671 = vld [vmem:[%s10 + $0x40] sm:$0xf]
      %v1672 = vld [vmem:[%s10 + $0x44] sm:$0xf]
      %v1673 = vld [vmem:[%s10 + $0x48] sm:$0xf]
      %v1674 = vld [vmem:[%s10 + $0x4c] sm:$0xf]
      %v1675 = vld [vmem:[%s10 + $0x50] sm:$0xf]
      %v1676 = vld [vmem:[%s10 + $0x54] sm:$0xf]
      %v1677 = vld [vmem:[%s10 + $0x58] sm:$0xf]
      %v1678 = vld [vmem:[%s10 + $0x5c] sm:$0xf]
      %v1679 = vld [vmem:[%s10 + $0x60] sm:$0xf]
      %v1680 = vld [vmem:[%s10 + $0x64] sm:$0xf]
      %v1681 = vld [vmem:[%s10 + $0x68] sm:$0xf]
      %v1682 = vld [vmem:[%s10 + $0x6c] sm:$0xf]
      %v1683 = vld [vmem:[%s10 + $0x70] sm:$0xf]
      %v1684 = vld [vmem:[%s10 + $0x74] sm:$0xf]
      %v1685 = vld [vmem:[%s10 + $0x78] sm:$0xf]
      %v1686 = vld [vmem:[%s10 + $0x7c] sm:$0xf]
      %v1687 = vpack.c.bf16 %v1420, %v1417
      %v1688 = vpack.c.bf16 %v1428, %v1425
      %v1689 = vpack.c.bf16 %v1436, %v1433
      %v1690 = vpack.c.bf16 %v1444, %v1441
      %v1723 = vunpack.c.l.b16 %v1655
      %v1724 = vunpack.c.l.b16 %v1656
      %v1725 = vunpack.c.l.b16 %v1657
      %v1726 = vunpack.c.l.b16 %v1658
      %v1727 = vunpack.c.l.b16 %v1659
      %v1728 = vunpack.c.l.b16 %v1660
      %v1729 = vunpack.c.l.b16 %v1661
      %v1730 = vunpack.c.l.b16 %v1662
      %v1731 = vunpack.c.l.b16 %v1663
      %v1732 = vunpack.c.l.b16 %v1664
      %v1733 = vunpack.c.l.b16 %v1665
      %v1734 = vunpack.c.l.b16 %v1666
      %v1735 = vunpack.c.l.b16 %v1667
      %v1736 = vunpack.c.l.b16 %v1668
      %v1737 = vunpack.c.l.b16 %v1669
      %v1738 = vunpack.c.l.b16 %v1670
      %v1739 = vunpack.c.l.b16 %v1671
      %v1740 = vunpack.c.l.b16 %v1672
      %v1741 = vunpack.c.l.b16 %v1673
      %v1742 = vunpack.c.l.b16 %v1674
      %v1743 = vunpack.c.l.b16 %v1675
      %v1744 = vunpack.c.l.b16 %v1676
      %v1745 = vunpack.c.l.b16 %v1677
      %v1746 = vunpack.c.l.b16 %v1678
      %v1747 = vunpack.c.l.b16 %v1679
      %v1748 = vunpack.c.l.b16 %v1680
      %v1749 = vunpack.c.l.b16 %v1681
      %v1750 = vunpack.c.l.b16 %v1682
      %v1751 = vunpack.c.l.b16 %v1683
      %v1752 = vunpack.c.l.b16 %v1684
      %v1753 = vunpack.c.l.b16 %v1685
      %v1754 = vunpack.c.l.b16 %v1686
      %v1755 = vpack.c.b16 %v1724, %v1723
      %v1756 = vpack.c.b16 %v1726, %v1725
      %v1757 = vpack.c.b16 %v1728, %v1727
      %v1758 = vpack.c.b16 %v1730, %v1729
      %v1759 = vpack.c.b16 %v1732, %v1731
      %v1760 = vpack.c.b16 %v1734, %v1733
      %v1761 = vpack.c.b16 %v1736, %v1735
      %v1762 = vpack.c.b16 %v1738, %v1737
      %v1763 = vpack.c.b16 %v1740, %v1739
      %v1764 = vpack.c.b16 %v1742, %v1741
      %v1765 = vpack.c.b16 %v1744, %v1743
      %v1766 = vpack.c.b16 %v1746, %v1745
      %v1767 = vpack.c.b16 %v1748, %v1747
      %v1768 = vpack.c.b16 %v1750, %v1749
      %v1769 = vpack.c.b16 %v1752, %v1751
      %v1770 = vpack.c.b16 %v1754, %v1753
      %v1787 = vmul.bf16 %v1687, %v1755
      %v1788 = vmul.bf16 %v1688, %v1756
      %v1789 = vmul.bf16 %v1689, %v1757
      %v1790 = vmul.bf16 %v1690, %v1758
      %v1791 = vmul.bf16 %v1687, %v1759
      %v1792 = vmul.bf16 %v1688, %v1760
      %v1793 = vmul.bf16 %v1689, %v1761
      %v1794 = vmul.bf16 %v1690, %v1762
      %v1795 = vmul.bf16 %v1687, %v1763
      %v1796 = vmul.bf16 %v1688, %v1764
      %v1797 = vmul.bf16 %v1689, %v1765
      %v1798 = vmul.bf16 %v1690, %v1766
      %v1799 = vmul.bf16 %v1687, %v1767
      %v1800 = vmul.bf16 %v1688, %v1768
      %v1801 = vmul.bf16 %v1689, %v1769
      %v1802 = vmul.bf16 %v1690, %v1770
      %v1803 = vpack.c.bf16 %v1524, %v1521
      %v1804 = vpack.c.bf16 %v1532, %v1529
      %v1805 = vpack.c.bf16 %v1540, %v1537
      %v1806 = vpack.c.bf16 %v1548, %v1545
      %v1808 = vsel %vm1095, %v1787, 0
      %v1811 = vsel %vm1095, %v1788, 0
      %v1814 = vsel %vm1095, %v1789, 0
      %v1817 = vsel %vm1095, %v1790, 0
      %v1820 = vsel %vm1095, %v1791, 0
      %v1823 = vsel %vm1095, %v1792, 0
      %v1826 = vsel %vm1095, %v1793, 0
      %v1829 = vsel %vm1095, %v1794, 0
      %v1832 = vsel %vm1095, %v1795, 0
      %v1835 = vsel %vm1095, %v1796, 0
      %v1838 = vsel %vm1095, %v1797, 0
      %v1841 = vsel %vm1095, %v1798, 0
      %v1844 = vsel %vm1095, %v1799, 0
      %v1847 = vsel %vm1095, %v1800, 0
      %v1850 = vsel %vm1095, %v1801, 0
      %v1853 = vsel %vm1095, %v1802, 0
      %v1856 = vsel %vm1095, %v1803, 0
      %v1859 = vsel %vm1095, %v1804, 0
      %v1862 = vsel %vm1095, %v1805, 0
      %v1865 = vsel %vm1095, %v1806, 0
      %1867 = vmatprep.subr.bf16.mxu0 0
      %1868 = vmatpush1.bf16.xpose.msra.mxu0 %v1856
      %1869 = vmatprep.subr.bf16.mxu0 0
      %1870 = vmatpush1.bf16.xpose.msra.mxu0 %v1859
      %1871 = vmatprep.subr.bf16.mxu0 0
      %1872 = vmatpush1.bf16.xpose.msra.mxu0 %v1862
      %1873 = vmatprep.subr.bf16.mxu0 0
      %1874 = vmatpush1.bf16.xpose.msra.mxu0 %v1865
      %1875 = vmatprep.subr.bf16.mxu0 0
      %1876 = vmatpush1.bf16.xpose.msra.mxu0 0
      %1877 = vmatprep.subr.bf16.mxu0 0
      %1878 = vmatpush1.bf16.xpose.msra.mxu0 0
      %1879 = vmatprep.subr.bf16.mxu0 0
      %1880 = vmatpush1.bf16.xpose.msra.mxu0 0
      %1881 = vmatprep.subr.bf16.mxu0 0
      %1882 = vmatpush1.bf16.xpose.msra.mxu0 0
      %1883 = vmatprep.subr.bf16.mxu0 0
      %1884 = vmatpush1.bf16.xpose.msra.mxu0 0
      %1885 = vmatprep.subr.bf16.mxu0 0
      %1886 = vmatpush1.bf16.xpose.msra.mxu0 0
      %1887 = vmatprep.subr.bf16.mxu0 0
      %1888 = vmatpush1.bf16.xpose.msra.mxu0 0
      %1889 = vmatprep.subr.bf16.mxu0 0
      %1890 = vmatpush1.bf16.xpose.msra.mxu0 0
      %1891 = vmatprep.subr.bf16.mxu0 0
      %1892 = vmatpush1.bf16.xpose.msra.mxu0 0
      %1893 = vmatprep.subr.bf16.mxu0 0
      %1894 = vmatpush1.bf16.xpose.msra.mxu0 0
      %1895 = vmatprep.subr.bf16.mxu0 0
      %1896 = vmatpush1.bf16.xpose.msra.mxu0 0
      %1897 = vmatprep.subr.bf16.mxu0 0
      %1898 = vmatpush1.bf16.xpose.msra.mxu0 0
      %1899 = vmatprep.mubr.bf16.mxu0 0
      %1900 = vmatmul.mubr.bf16.gmra.mrb[0].mxu0 %v1808
      %v1901 = vpop.f32.mrb[0].mxu0
      %v1902 = vadd.f32 0.0, %v1901
      %v1903 = vpop.f32.mrb[0].mxu0
      %v1904 = vpop.f32.mrb[0].mxu0
      %v1905 = vadd.f32 0.0, %v1904
      %v1906 = vpop.f32.mrb[0].mxu0
      %1907 = vmatprep.mubr.bf16.mxu0 0
      %1908 = vmatmul.mubr.bf16.gmra.mrb[0].mxu0 %v1811
      %v1909 = vpop.f32.mrb[0].mxu0
      %v1910 = vadd.f32 0.0, %v1909
      %v1911 = vpop.f32.mrb[0].mxu0
      %v1912 = vpop.f32.mrb[0].mxu0
      %v1913 = vadd.f32 0.0, %v1912
      %v1914 = vpop.f32.mrb[0].mxu0
      %1915 = vmatprep.mubr.bf16.mxu0 0
      %1916 = vmatmul.mubr.bf16.gmra.mrb[0].mxu0 %v1814
      %v1917 = vpop.f32.mrb[0].mxu0
      %v1918 = vadd.f32 0.0, %v1917
      %v1919 = vpop.f32.mrb[0].mxu0
      %v1920 = vpop.f32.mrb[0].mxu0
      %v1921 = vadd.f32 0.0, %v1920
      %v1922 = vpop.f32.mrb[0].mxu0
      %1923 = vmatprep.mubr.bf16.mxu0 0
      %1924 = vmatmul.mubr.bf16.gmra.mrb[0].mxu0 %v1817
      %v1925 = vpop.f32.mrb[0].mxu0
      %v1926 = vadd.f32 0.0, %v1925
      %v1927 = vpop.f32.mrb[0].mxu0
      %v1928 = vpop.f32.mrb[0].mxu0
      %v1929 = vadd.f32 0.0, %v1928
      %v1930 = vpop.f32.mrb[0].mxu0
      %1931 = vmatprep.mubr.bf16.mxu0 0
      %1932 = vmatmul.mubr.bf16.gmra.mrb[0].mxu0 %v1820
      %v1933 = vpop.f32.mrb[0].mxu0
      %v1934 = vadd.f32 0.0, %v1933
      %v1935 = vpop.f32.mrb[0].mxu0
      %v1936 = vpop.f32.mrb[0].mxu0
      %v1937 = vadd.f32 0.0, %v1936
      %v1938 = vpop.f32.mrb[0].mxu0
      %1939 = vmatprep.mubr.bf16.mxu0 0
      %1940 = vmatmul.mubr.bf16.gmra.mrb[0].mxu0 %v1823
      %v1941 = vpop.f32.mrb[0].mxu0
      %v1942 = vadd.f32 0.0, %v1941
      %v1943 = vpop.f32.mrb[0].mxu0
      %v1944 = vpop.f32.mrb[0].mxu0
      %v1945 = vadd.f32 0.0, %v1944
      %v1946 = vpop.f32.mrb[0].mxu0
      %1947 = vmatprep.mubr.bf16.mxu0 0
      %1948 = vmatmul.mubr.bf16.gmra.mrb[0].mxu0 %v1826
      %v1949 = vpop.f32.mrb[0].mxu0
      %v1950 = vadd.f32 0.0, %v1949
      %v1951 = vpop.f32.mrb[0].mxu0
      %v1952 = vpop.f32.mrb[0].mxu0
      %v1953 = vadd.f32 0.0, %v1952
      %v1954 = vpop.f32.mrb[0].mxu0
      %1955 = vmatprep.mubr.bf16.mxu0 0
      %1956 = vmatmul.mubr.bf16.gmra.mrb[0].mxu0 %v1829
      %v1957 = vpop.f32.mrb[0].mxu0
      %v1958 = vadd.f32 0.0, %v1957
      %v1959 = vpop.f32.mrb[0].mxu0
      %v1960 = vpop.f32.mrb[0].mxu0
      %v1961 = vadd.f32 0.0, %v1960
      %v1962 = vpop.f32.mrb[0].mxu0
      %1963 = vmatprep.mubr.bf16.mxu0 0
      %1964 = vmatmul.mubr.bf16.gmra.mrb[0].mxu0 %v1832
      %v1965 = vpop.f32.mrb[0].mxu0
      %v1966 = vadd.f32 0.0, %v1965
      %v1967 = vpop.f32.mrb[0].mxu0
      %v1968 = vpop.f32.mrb[0].mxu0
      %v1969 = vadd.f32 0.0, %v1968
      %v1970 = vpop.f32.mrb[0].mxu0
      %1971 = vmatprep.mubr.bf16.mxu0 0
      %1972 = vmatmul.mubr.bf16.gmra.mrb[0].mxu0 %v1835
      %v1973 = vpop.f32.mrb[0].mxu0
      %v1974 = vadd.f32 0.0, %v1973
      %v1975 = vpop.f32.mrb[0].mxu0
      %v1976 = vpop.f32.mrb[0].mxu0
      %v1977 = vadd.f32 0.0, %v1976
      %v1978 = vpop.f32.mrb[0].mxu0
      %1979 = vmatprep.mubr.bf16.mxu0 0
      %1980 = vmatmul.mubr.bf16.gmra.mrb[0].mxu0 %v1838
      %v1981 = vpop.f32.mrb[0].mxu0
      %v1982 = vadd.f32 0.0, %v1981
      %v1983 = vpop.f32.mrb[0].mxu0
      %v1984 = vpop.f32.mrb[0].mxu0
      %v1985 = vadd.f32 0.0, %v1984
      %v1986 = vpop.f32.mrb[0].mxu0
      %1987 = vmatprep.mubr.bf16.mxu0 0
      %1988 = vmatmul.mubr.bf16.gmra.mrb[0].mxu0 %v1841
      %v1989 = vpop.f32.mrb[0].mxu0
      %v1990 = vadd.f32 0.0, %v1989
      %v1991 = vpop.f32.mrb[0].mxu0
      %v1992 = vpop.f32.mrb[0].mxu0
      %v1993 = vadd.f32 0.0, %v1992
      %v1994 = vpop.f32.mrb[0].mxu0
      %1995 = vmatprep.mubr.bf16.mxu0 0
      %1996 = vmatmul.mubr.bf16.gmra.mrb[0].mxu0 %v1844
      %v1997 = vpop.f32.mrb[0].mxu0
      %v1998 = vadd.f32 0.0, %v1997
      %v1999 = vpop.f32.mrb[0].mxu0
      %v2000 = vpop.f32.mrb[0].mxu0
      %v2001 = vadd.f32 0.0, %v2000
      %v2002 = vpop.f32.mrb[0].mxu0
      %2003 = vmatprep.mubr.bf16.mxu0 0
      %2004 = vmatmul.mubr.bf16.gmra.mrb[0].mxu0 %v1847
      %v2005 = vpop.f32.mrb[0].mxu0
      %v2006 = vadd.f32 0.0, %v2005
      %v2007 = vpop.f32.mrb[0].mxu0
      %v2008 = vpop.f32.mrb[0].mxu0
      %v2009 = vadd.f32 0.0, %v2008
      %v2010 = vpop.f32.mrb[0].mxu0
      %2011 = vmatprep.mubr.bf16.mxu0 0
      %2012 = vmatmul.mubr.bf16.gmra.mrb[0].mxu0 %v1850
      %v2013 = vpop.f32.mrb[0].mxu0
      %v2014 = vadd.f32 0.0, %v2013
      %v2015 = vpop.f32.mrb[0].mxu0
      %v2016 = vpop.f32.mrb[0].mxu0
      %v2017 = vadd.f32 0.0, %v2016
      %v2018 = vpop.f32.mrb[0].mxu0
      %2019 = vmatprep.mubr.bf16.mxu0 0
      %2020 = vmatmul.mubr.bf16.gmra.mrb[0].mxu0 %v1853
      %v2021 = vpop.f32.mrb[0].mxu0
      %v2022 = vadd.f32 0.0, %v2021
      %v2023 = vpop.f32.mrb[0].mxu0
      %v2024 = vpop.f32.mrb[0].mxu0
      %v2025 = vadd.f32 0.0, %v2024
      %v2026 = vpop.f32.mrb[0].mxu0
      %2027 = vdwg.mxu0
      %v2028 = vsel %vm1095, %v1902, -inf
      %2029 = vmax.xlane.f32.xlu0 %v2028
      %v2030 = vpop.xlane.xlu0 %2029
      %v2031 = vsel %vm1095, %v1905, -inf
      %2032 = vmax.xlane.f32.xlu0 %v2031
      %v2033 = vpop.xlane.xlu0 %2032
      %v2034 = vsel %vm1095, %v1910, -inf
      %2035 = vmax.xlane.f32.xlu0 %v2034
      %v2036 = vpop.xlane.xlu0 %2035
      %v2037 = vsel %vm1095, %v1913, -inf
      %2038 = vmax.xlane.f32.xlu0 %v2037
      %v2039 = vpop.xlane.xlu0 %2038
      %v2040 = vsel %vm1095, %v1918, -inf
      %2041 = vmax.xlane.f32.xlu0 %v2040
      %v2042 = vpop.xlane.xlu0 %2041
      %v2043 = vsel %vm1095, %v1921, -inf
      %2044 = vmax.xlane.f32.xlu0 %v2043
      %v2045 = vpop.xlane.xlu0 %2044
      %v2046 = vsel %vm1095, %v1926, -inf
      %2047 = vmax.xlane.f32.xlu0 %v2046
      %v2048 = vpop.xlane.xlu0 %2047
      %v2049 = vsel %vm1095, %v1929, -inf
      %2050 = vmax.xlane.f32.xlu0 %v2049
      %v2051 = vpop.xlane.xlu0 %2050
      %v2052 = vsel %vm1095, %v1934, -inf
      %2053 = vmax.xlane.f32.xlu0 %v2052
      %v2054 = vpop.xlane.xlu0 %2053
      %v2055 = vsel %vm1095, %v1937, -inf
      %2056 = vmax.xlane.f32.xlu0 %v2055
      %v2057 = vpop.xlane.xlu0 %2056
      %v2058 = vsel %vm1095, %v1942, -inf
      %2059 = vmax.xlane.f32.xlu0 %v2058
      %v2060 = vpop.xlane.xlu0 %2059
      %v2061 = vsel %vm1095, %v1945, -inf
      %2062 = vmax.xlane.f32.xlu0 %v2061
      %v2063 = vpop.xlane.xlu0 %2062
      %v2064 = vsel %vm1095, %v1950, -inf
      %2065 = vmax.xlane.f32.xlu0 %v2064
      %v2066 = vpop.xlane.xlu0 %2065
      %v2067 = vsel %vm1095, %v1953, -inf
      %2068 = vmax.xlane.f32.xlu0 %v2067
      %v2069 = vpop.xlane.xlu0 %2068
      %v2070 = vsel %vm1095, %v1958, -inf
      %2071 = vmax.xlane.f32.xlu0 %v2070
      %v2072 = vpop.xlane.xlu0 %2071
      %v2073 = vsel %vm1095, %v1961, -inf
      %2074 = vmax.xlane.f32.xlu0 %v2073
      %v2075 = vpop.xlane.xlu0 %2074
      %v2076 = vsel %vm1095, %v1966, -inf
      %2077 = vmax.xlane.f32.xlu0 %v2076
      %v2078 = vpop.xlane.xlu0 %2077
      %v2079 = vsel %vm1095, %v1969, -inf
      %2080 = vmax.xlane.f32.xlu0 %v2079
      %v2081 = vpop.xlane.xlu0 %2080
      %v2082 = vsel %vm1095, %v1974, -inf
      %2083 = vmax.xlane.f32.xlu0 %v2082
      %v2084 = vpop.xlane.xlu0 %2083
      %v2085 = vsel %vm1095, %v1977, -inf
      %2086 = vmax.xlane.f32.xlu0 %v2085
      %v2087 = vpop.xlane.xlu0 %2086
      %v2088 = vsel %vm1095, %v1982, -inf
      %2089 = vmax.xlane.f32.xlu0 %v2088
      %v2090 = vpop.xlane.xlu0 %2089
      %v2091 = vsel %vm1095, %v1985, -inf
      %2092 = vmax.xlane.f32.xlu0 %v2091
      %v2093 = vpop.xlane.xlu0 %2092
      %v2094 = vsel %vm1095, %v1990, -inf
      %2095 = vmax.xlane.f32.xlu0 %v2094
      %v2096 = vpop.xlane.xlu0 %2095
      %v2097 = vsel %vm1095, %v1993, -inf
      %2098 = vmax.xlane.f32.xlu0 %v2097
      %v2099 = vpop.xlane.xlu0 %2098
      %v2100 = vsel %vm1095, %v1998, -inf
      %2101 = vmax.xlane.f32.xlu0 %v2100
      %v2102 = vpop.xlane.xlu0 %2101
      %v2103 = vsel %vm1095, %v2001, -inf
      %2104 = vmax.xlane.f32.xlu0 %v2103
      %v2105 = vpop.xlane.xlu0 %2104
      %v2106 = vsel %vm1095, %v2006, -inf
      %2107 = vmax.xlane.f32.xlu0 %v2106
      %v2108 = vpop.xlane.xlu0 %2107
      %v2109 = vsel %vm1095, %v2009, -inf
      %2110 = vmax.xlane.f32.xlu0 %v2109
      %v2111 = vpop.xlane.xlu0 %2110
      %v2112 = vsel %vm1095, %v2014, -inf
      %2113 = vmax.xlane.f32.xlu0 %v2112
      %v2114 = vpop.xlane.xlu0 %2113
      %v2115 = vsel %vm1095, %v2017, -inf
      %2116 = vmax.xlane.f32.xlu0 %v2115
      %v2117 = vpop.xlane.xlu0 %2116
      %v2118 = vsel %vm1095, %v2022, -inf
      %2119 = vmax.xlane.f32.xlu0 %v2118
      %v2120 = vpop.xlane.xlu0 %2119
      %v2121 = vsel %vm1095, %v2025, -inf
      %2122 = vmax.xlane.f32.xlu0 %v2121
      %v2123 = vpop.xlane.xlu0 %2122
      %v2124 = vsub.f32 %v1902, %v2030
      %v2125 = vsub.f32 %v1905, %v2033
      %v2126 = vsub.f32 %v1910, %v2036
      %v2127 = vsub.f32 %v1913, %v2039
      %v2128 = vsub.f32 %v1918, %v2042
      %v2129 = vsub.f32 %v1921, %v2045
      %v2130 = vsub.f32 %v1926, %v2048
      %v2131 = vsub.f32 %v1929, %v2051
      %v2132 = vsub.f32 %v1934, %v2054
      %v2133 = vsub.f32 %v1937, %v2057
      %v2134 = vsub.f32 %v1942, %v2060
      %v2135 = vsub.f32 %v1945, %v2063
      %v2136 = vsub.f32 %v1950, %v2066
      %v2137 = vsub.f32 %v1953, %v2069
      %v2138 = vsub.f32 %v1958, %v2072
      %v2139 = vsub.f32 %v1961, %v2075
      %v2140 = vsub.f32 %v1966, %v2078
      %v2141 = vsub.f32 %v1969, %v2081
      %v2142 = vsub.f32 %v1974, %v2084
      %v2143 = vsub.f32 %v1977, %v2087
      %v2144 = vsub.f32 %v1982, %v2090
      %v2145 = vsub.f32 %v1985, %v2093
      %v2146 = vsub.f32 %v1990, %v2096
      %v2147 = vsub.f32 %v1993, %v2099
      %v2148 = vsub.f32 %v1998, %v2102
      %v2149 = vsub.f32 %v2001, %v2105
      %v2150 = vsub.f32 %v2006, %v2108
      %v2151 = vsub.f32 %v2009, %v2111
      %v2152 = vsub.f32 %v2014, %v2114
      %v2153 = vsub.f32 %v2017, %v2117
      %v2154 = vsub.f32 %v2022, %v2120
      %v2155 = vsub.f32 %v2025, %v2123
      %v2156 = vmul.f32 %v2124, 1.442695
      %v2157 = vpow.pop %v2156
      %v2158 = vmul.f32 %v2125, 1.442695
      %v2159 = vpow.pop %v2158
      %v2160 = vmul.f32 %v2126, 1.442695
      %v2161 = vpow.pop %v2160
      %v2162 = vmul.f32 %v2127, 1.442695
      %v2163 = vpow.pop %v2162
      %v2164 = vmul.f32 %v2128, 1.442695
      %v2165 = vpow.pop %v2164
      %v2166 = vmul.f32 %v2129, 1.442695
      %v2167 = vpow.pop %v2166
      %v2168 = vmul.f32 %v2130, 1.442695
      %v2169 = vpow.pop %v2168
      %v2170 = vmul.f32 %v2131, 1.442695
      %v2171 = vpow.pop %v2170
      %v2172 = vmul.f32 %v2132, 1.442695
      %v2173 = vpow.pop %v2172
      %v2174 = vmul.f32 %v2133, 1.442695
      %v2175 = vpow.pop %v2174
      %v2176 = vmul.f32 %v2134, 1.442695
      %v2177 = vpow.pop %v2176
      %v2178 = vmul.f32 %v2135, 1.442695
      %v2179 = vpow.pop %v2178
      %v2180 = vmul.f32 %v2136, 1.442695
      %v2181 = vpow.pop %v2180
      %v2182 = vmul.f32 %v2137, 1.442695
      %v2183 = vpow.pop %v2182
      %v2184 = vmul.f32 %v2138, 1.442695
      %v2185 = vpow.pop %v2184
      %v2186 = vmul.f32 %v2139, 1.442695
      %v2187 = vpow.pop %v2186
      %v2188 = vmul.f32 %v2140, 1.442695
      %v2189 = vpow.pop %v2188
      %v2190 = vmul.f32 %v2141, 1.442695
      %v2191 = vpow.pop %v2190
      %v2192 = vmul.f32 %v2142, 1.442695
      %v2193 = vpow.pop %v2192
      %v2194 = vmul.f32 %v2143, 1.442695
      %v2195 = vpow.pop %v2194
      %v2196 = vmul.f32 %v2144, 1.442695
      %v2197 = vpow.pop %v2196
      %v2198 = vmul.f32 %v2145, 1.442695
      %v2199 = vpow.pop %v2198
      %v2200 = vmul.f32 %v2146, 1.442695
      %v2201 = vpow.pop %v2200
      %v2202 = vmul.f32 %v2147, 1.442695
      %v2203 = vpow.pop %v2202
      %v2204 = vmul.f32 %v2148, 1.442695
      %v2205 = vpow.pop %v2204
      %v2206 = vmul.f32 %v2149, 1.442695
      %v2207 = vpow.pop %v2206
      %v2208 = vmul.f32 %v2150, 1.442695
      %v2209 = vpow.pop %v2208
      %v2210 = vmul.f32 %v2151, 1.442695
      %v2211 = vpow.pop %v2210
      %v2212 = vmul.f32 %v2152, 1.442695
      %v2213 = vpow.pop %v2212
      %v2214 = vmul.f32 %v2153, 1.442695
      %v2215 = vpow.pop %v2214
      %v2216 = vmul.f32 %v2154, 1.442695
      %v2217 = vpow.pop %v2216
      %v2218 = vmul.f32 %v2155, 1.442695
      %v2219 = vpow.pop %v2218
      %v2220 = vsel %vm1095, %v2157, 0.0
      %2221 = vadd.xlane.f32.xlu0 %v2220
      %v2222 = vpop.xlane.xlu0 %2221
      %v2223 = vsel %vm1095, %v2159, 0.0
      %2224 = vadd.xlane.f32.xlu0 %v2223
      %v2225 = vpop.xlane.xlu0 %2224
      %v2226 = vsel %vm1095, %v2161, 0.0
      %2227 = vadd.xlane.f32.xlu0 %v2226
      %v2228 = vpop.xlane.xlu0 %2227
      %v2229 = vsel %vm1095, %v2163, 0.0
      %2230 = vadd.xlane.f32.xlu0 %v2229
      %v2231 = vpop.xlane.xlu0 %2230
      %v2232 = vsel %vm1095, %v2165, 0.0
      %2233 = vadd.xlane.f32.xlu0 %v2232
      %v2234 = vpop.xlane.xlu0 %2233
      %v2235 = vsel %vm1095, %v2167, 0.0
      %2236 = vadd.xlane.f32.xlu0 %v2235
      %v2237 = vpop.xlane.xlu0 %2236
      %v2238 = vsel %vm1095, %v2169, 0.0
      %2239 = vadd.xlane.f32.xlu0 %v2238
      %v2240 = vpop.xlane.xlu0 %2239
      %v2241 = vsel %vm1095, %v2171, 0.0
      %2242 = vadd.xlane.f32.xlu0 %v2241
      %v2243 = vpop.xlane.xlu0 %2242
      %v2244 = vsel %vm1095, %v2173, 0.0
      %2245 = vadd.xlane.f32.xlu0 %v2244
      %v2246 = vpop.xlane.xlu0 %2245
      %v2247 = vsel %vm1095, %v2175, 0.0
      %2248 = vadd.xlane.f32.xlu0 %v2247
      %v2249 = vpop.xlane.xlu0 %2248
      %v2250 = vsel %vm1095, %v2177, 0.0
      %2251 = vadd.xlane.f32.xlu0 %v2250
      %v2252 = vpop.xlane.xlu0 %2251
      %v2253 = vsel %vm1095, %v2179, 0.0
      %2254 = vadd.xlane.f32.xlu0 %v2253
      %v2255 = vpop.xlane.xlu0 %2254
      %v2256 = vsel %vm1095, %v2181, 0.0
      %2257 = vadd.xlane.f32.xlu0 %v2256
      %v2258 = vpop.xlane.xlu0 %2257
      %v2259 = vsel %vm1095, %v2183, 0.0
      %2260 = vadd.xlane.f32.xlu0 %v2259
      %v2261 = vpop.xlane.xlu0 %2260
      %v2262 = vsel %vm1095, %v2185, 0.0
      %2263 = vadd.xlane.f32.xlu0 %v2262
      %v2264 = vpop.xlane.xlu0 %2263
      %v2265 = vsel %vm1095, %v2187, 0.0
      %2266 = vadd.xlane.f32.xlu0 %v2265
      %v2267 = vpop.xlane.xlu0 %2266
      %v2268 = vsel %vm1095, %v2189, 0.0
      %2269 = vadd.xlane.f32.xlu0 %v2268
      %v2270 = vpop.xlane.xlu0 %2269
      %v2271 = vsel %vm1095, %v2191, 0.0
      %2272 = vadd.xlane.f32.xlu0 %v2271
      %v2273 = vpop.xlane.xlu0 %2272
      %v2274 = vsel %vm1095, %v2193, 0.0
      %2275 = vadd.xlane.f32.xlu0 %v2274
      %v2276 = vpop.xlane.xlu0 %2275
      %v2277 = vsel %vm1095, %v2195, 0.0
      %2278 = vadd.xlane.f32.xlu0 %v2277
      %v2279 = vpop.xlane.xlu0 %2278
      %v2280 = vsel %vm1095, %v2197, 0.0
      %2281 = vadd.xlane.f32.xlu0 %v2280
      %v2282 = vpop.xlane.xlu0 %2281
      %v2283 = vsel %vm1095, %v2199, 0.0
      %2284 = vadd.xlane.f32.xlu0 %v2283
      %v2285 = vpop.xlane.xlu0 %2284
      %v2286 = vsel %vm1095, %v2201, 0.0
      %2287 = vadd.xlane.f32.xlu0 %v2286
      %v2288 = vpop.xlane.xlu0 %2287
      %v2289 = vsel %vm1095, %v2203, 0.0
      %2290 = vadd.xlane.f32.xlu0 %v2289
      %v2291 = vpop.xlane.xlu0 %2290
      %v2292 = vsel %vm1095, %v2205, 0.0
      %2293 = vadd.xlane.f32.xlu0 %v2292
      %v2294 = vpop.xlane.xlu0 %2293
      %v2295 = vsel %vm1095, %v2207, 0.0
      %2296 = vadd.xlane.f32.xlu0 %v2295
      %v2297 = vpop.xlane.xlu0 %2296
      %v2298 = vsel %vm1095, %v2209, 0.0
      %2299 = vadd.xlane.f32.xlu0 %v2298
      %v2300 = vpop.xlane.xlu0 %2299
      %v2301 = vsel %vm1095, %v2211, 0.0
      %2302 = vadd.xlane.f32.xlu0 %v2301
      %v2303 = vpop.xlane.xlu0 %2302
      %v2304 = vsel %vm1095, %v2213, 0.0
      %2305 = vadd.xlane.f32.xlu0 %v2304
      %v2306 = vpop.xlane.xlu0 %2305
      %v2307 = vsel %vm1095, %v2215, 0.0
      %2308 = vadd.xlane.f32.xlu0 %v2307
      %v2309 = vpop.xlane.xlu0 %2308
      %v2310 = vsel %vm1095, %v2217, 0.0
      %2311 = vadd.xlane.f32.xlu0 %v2310
      %v2312 = vpop.xlane.xlu0 %2311
      %v2313 = vsel %vm1095, %v2219, 0.0
      %2314 = vadd.xlane.f32.xlu0 %v2313
      %v2315 = vpop.xlane.xlu0 %2314
      %v2316 = vrcp.pop %v2222
      %v2317 = vrcp.pop %v2225
      %v2318 = vrcp.pop %v2228
      %v2319 = vrcp.pop %v2231
      %v2320 = vrcp.pop %v2234
      %v2321 = vrcp.pop %v2237
      %v2322 = vrcp.pop %v2240
      %v2323 = vrcp.pop %v2243
      %v2324 = vrcp.pop %v2246
      %v2325 = vrcp.pop %v2249
      %v2326 = vrcp.pop %v2252
      %v2327 = vrcp.pop %v2255
      %v2328 = vrcp.pop %v2258
      %v2329 = vrcp.pop %v2261
      %v2330 = vrcp.pop %v2264
      %v2331 = vrcp.pop %v2267
      %v2332 = vrcp.pop %v2270
      %v2333 = vrcp.pop %v2273
      %v2334 = vrcp.pop %v2276
      %v2335 = vrcp.pop %v2279
      %v2336 = vrcp.pop %v2282
      %v2337 = vrcp.pop %v2285
      %v2338 = vrcp.pop %v2288
      %v2339 = vrcp.pop %v2291
      %v2340 = vrcp.pop %v2294
      %v2341 = vrcp.pop %v2297
      %v2342 = vrcp.pop %v2300
      %v2343 = vrcp.pop %v2303
      %v2344 = vrcp.pop %v2306
      %v2345 = vrcp.pop %v2309
      %v2346 = vrcp.pop %v2312
      %v2347 = vrcp.pop %v2315
      %v2348 = vmul.f32 %v2157, %v2316
      %v2349 = vmul.f32 %v2159, %v2317
      %v2350 = vmul.f32 %v2161, %v2318
      %v2351 = vmul.f32 %v2163, %v2319
      %v2352 = vmul.f32 %v2165, %v2320
      %v2353 = vmul.f32 %v2167, %v2321
      %v2354 = vmul.f32 %v2169, %v2322
      %v2355 = vmul.f32 %v2171, %v2323
      %v2356 = vmul.f32 %v2173, %v2324
      %v2357 = vmul.f32 %v2175, %v2325
      %v2358 = vmul.f32 %v2177, %v2326
      %v2359 = vmul.f32 %v2179, %v2327
      %v2360 = vmul.f32 %v2181, %v2328
      %v2361 = vmul.f32 %v2183, %v2329
      %v2362 = vmul.f32 %v2185, %v2330
      %v2363 = vmul.f32 %v2187, %v2331
      %v2364 = vmul.f32 %v2189, %v2332
      %v2365 = vmul.f32 %v2191, %v2333
      %v2366 = vmul.f32 %v2193, %v2334
      %v2367 = vmul.f32 %v2195, %v2335
      %v2368 = vmul.f32 %v2197, %v2336
      %v2369 = vmul.f32 %v2199, %v2337
      %v2370 = vmul.f32 %v2201, %v2338
      %v2371 = vmul.f32 %v2203, %v2339
      %v2372 = vmul.f32 %v2205, %v2340
      %v2373 = vmul.f32 %v2207, %v2341
      %v2374 = vmul.f32 %v2209, %v2342
      %v2375 = vmul.f32 %v2211, %v2343
      %v2376 = vmul.f32 %v2213, %v2344
      %v2377 = vmul.f32 %v2215, %v2345
      %v2378 = vmul.f32 %v2217, %v2346
      %v2379 = vmul.f32 %v2219, %v2347
      %v2380 = vpack.c.bf16 %v2349, %v2348
      %v2381 = vpack.c.bf16 %v2351, %v2350
      %v2382 = vpack.c.bf16 %v2353, %v2352
      %v2383 = vpack.c.bf16 %v2355, %v2354
      %v2384 = vpack.c.bf16 %v2357, %v2356
      %v2385 = vpack.c.bf16 %v2359, %v2358
      %v2386 = vpack.c.bf16 %v2361, %v2360
      %v2387 = vpack.c.bf16 %v2363, %v2362
      %v2388 = vpack.c.bf16 %v2365, %v2364
      %v2389 = vpack.c.bf16 %v2367, %v2366
      %v2390 = vpack.c.bf16 %v2369, %v2368
      %v2391 = vpack.c.bf16 %v2371, %v2370
      %v2392 = vpack.c.bf16 %v2373, %v2372
      %v2393 = vpack.c.bf16 %v2375, %v2374
      %v2394 = vpack.c.bf16 %v2377, %v2376
      %v2395 = vpack.c.bf16 %v2379, %v2378
      %v2396 = vpack.c.bf16 %v1628, %v1625
      %v2397 = vpack.c.bf16 %v1636, %v1633
      %v2398 = vpack.c.bf16 %v1644, %v1641
      %v2399 = vpack.c.bf16 %v1652, %v1649
      %v2401 = vsel %vm1095, %v2380, 0
      %v2404 = vsel %vm1095, %v2381, 0
      %v2407 = vsel %vm1095, %v2382, 0
      %v2410 = vsel %vm1095, %v2383, 0
      %v2413 = vsel %vm1095, %v2384, 0
      %v2416 = vsel %vm1095, %v2385, 0
      %v2419 = vsel %vm1095, %v2386, 0
      %v2422 = vsel %vm1095, %v2387, 0
      %v2425 = vsel %vm1095, %v2388, 0
      %v2428 = vsel %vm1095, %v2389, 0
      %v2431 = vsel %vm1095, %v2390, 0
      %v2434 = vsel %vm1095, %v2391, 0
      %v2437 = vsel %vm1095, %v2392, 0
      %v2440 = vsel %vm1095, %v2393, 0
      %v2443 = vsel %vm1095, %v2394, 0
      %v2446 = vsel %vm1095, %v2395, 0
      %2448 = vmatprep.subr.bf16.mxu0 0
      %2449 = vmatpush1.bf16.msra.mxu0 %v2396
      %2450 = vmatprep.subr.bf16.mxu0 0
      %2451 = vmatpush1.bf16.msra.mxu0 %v2397
      %2452 = vmatprep.subr.bf16.mxu0 0
      %2453 = vmatpush1.bf16.msra.mxu0 %v2398
      %2454 = vmatprep.subr.bf16.mxu0 0
      %2455 = vmatpush1.bf16.msra.mxu0 %v2399
      %2456 = vmatprep.subr.bf16.mxu0 0
      %2457 = vmatpush1.bf16.msra.mxu0 0
      %2458 = vmatprep.subr.bf16.mxu0 0
      %2459 = vmatpush1.bf16.msra.mxu0 0
      %2460 = vmatprep.subr.bf16.mxu0 0
      %2461 = vmatpush1.bf16.msra.mxu0 0
      %2462 = vmatprep.subr.bf16.mxu0 0
      %2463 = vmatpush1.bf16.msra.mxu0 0
      %2464 = vmatprep.subr.bf16.mxu0 0
      %2465 = vmatpush1.bf16.msra.mxu0 0
      %2466 = vmatprep.subr.bf16.mxu0 0
      %2467 = vmatpush1.bf16.msra.mxu0 0
      %2468 = vmatprep.subr.bf16.mxu0 0
      %2469 = vmatpush1.bf16.msra.mxu0 0
      %2470 = vmatprep.subr.bf16.mxu0 0
      %2471 = vmatpush1.bf16.msra.mxu0 0
      %2472 = vmatprep.subr.bf16.mxu0 0
      %2473 = vmatpush1.bf16.msra.mxu0 0
      %2474 = vmatprep.subr.bf16.mxu0 0
      %2475 = vmatpush1.bf16.msra.mxu0 0
      %2476 = vmatprep.subr.bf16.mxu0 0
      %2477 = vmatpush1.bf16.msra.mxu0 0
      %2478 = vmatprep.subr.bf16.mxu0 0
      %2479 = vmatpush1.bf16.msra.mxu0 0
      %2480 = vmatprep.mubr.bf16.mxu0 0
      %2481 = vmatmul.mubr.bf16.gmra.mrb[0].mxu0 %v2401
      %v2482 = vpop.f32.mrb[0].mxu0
      %v2483 = vadd.f32 0.0, %v2482
      %v2484 = vpop.f32.mrb[0].mxu0
      %v2485 = vpop.f32.mrb[0].mxu0
      %v2486 = vadd.f32 0.0, %v2485
      %v2487 = vpop.f32.mrb[0].mxu0
      %2488 = vmatprep.mubr.bf16.mxu0 0
      %2489 = vmatmul.mubr.bf16.gmra.mrb[0].mxu0 %v2404
      %v2490 = vpop.f32.mrb[0].mxu0
      %v2491 = vadd.f32 0.0, %v2490
      %v2492 = vpop.f32.mrb[0].mxu0
      %v2493 = vpop.f32.mrb[0].mxu0
      %v2494 = vadd.f32 0.0, %v2493
      %v2495 = vpop.f32.mrb[0].mxu0
      %2496 = vmatprep.mubr.bf16.mxu0 0
      %2497 = vmatmul.mubr.bf16.gmra.mrb[0].mxu0 %v2407
      %v2498 = vpop.f32.mrb[0].mxu0
      %v2499 = vadd.f32 0.0, %v2498
      %v2500 = vpop.f32.mrb[0].mxu0
      %v2501 = vpop.f32.mrb[0].mxu0
      %v2502 = vadd.f32 0.0, %v2501
      %v2503 = vpop.f32.mrb[0].mxu0
      %2504 = vmatprep.mubr.bf16.mxu0 0
      %2505 = vmatmul.mubr.bf16.gmra.mrb[0].mxu0 %v2410
      %v2506 = vpop.f32.mrb[0].mxu0
      %v2507 = vadd.f32 0.0, %v2506
      %v2508 = vpop.f32.mrb[0].mxu0
      %v2509 = vpop.f32.mrb[0].mxu0
      %v2510 = vadd.f32 0.0, %v2509
      %v2511 = vpop.f32.mrb[0].mxu0
      %2512 = vmatprep.mubr.bf16.mxu0 0
      %2513 = vmatmul.mubr.bf16.gmra.mrb[0].mxu0 %v2413
      %v2514 = vpop.f32.mrb[0].mxu0
      %v2515 = vadd.f32 0.0, %v2514
      %v2516 = vpop.f32.mrb[0].mxu0
      %v2517 = vpop.f32.mrb[0].mxu0
      %v2518 = vadd.f32 0.0, %v2517
      %v2519 = vpop.f32.mrb[0].mxu0
      %2520 = vmatprep.mubr.bf16.mxu0 0
      %2521 = vmatmul.mubr.bf16.gmra.mrb[0].mxu0 %v2416
      %v2522 = vpop.f32.mrb[0].mxu0
      %v2523 = vadd.f32 0.0, %v2522
      %v2524 = vpop.f32.mrb[0].mxu0
      %v2525 = vpop.f32.mrb[0].mxu0
      %v2526 = vadd.f32 0.0, %v2525
      %v2527 = vpop.f32.mrb[0].mxu0
      %2528 = vmatprep.mubr.bf16.mxu0 0
      %2529 = vmatmul.mubr.bf16.gmra.mrb[0].mxu0 %v2419
      %v2530 = vpop.f32.mrb[0].mxu0
      %v2531 = vadd.f32 0.0, %v2530
      %v2532 = vpop.f32.mrb[0].mxu0
      %v2533 = vpop.f32.mrb[0].mxu0
      %v2534 = vadd.f32 0.0, %v2533
      %v2535 = vpop.f32.mrb[0].mxu0
      %2536 = vmatprep.mubr.bf16.mxu0 0
      %2537 = vmatmul.mubr.bf16.gmra.mrb[0].mxu0 %v2422
      %v2538 = vpop.f32.mrb[0].mxu0
      %v2539 = vadd.f32 0.0, %v2538
      %v2540 = vpop.f32.mrb[0].mxu0
      %v2541 = vpop.f32.mrb[0].mxu0
      %v2542 = vadd.f32 0.0, %v2541
      %v2543 = vpop.f32.mrb[0].mxu0
      %2544 = vmatprep.mubr.bf16.mxu0 0
      %2545 = vmatmul.mubr.bf16.gmra.mrb[0].mxu0 %v2425
      %v2546 = vpop.f32.mrb[0].mxu0
      %v2547 = vadd.f32 0.0, %v2546
      %v2548 = vpop.f32.mrb[0].mxu0
      %v2549 = vpop.f32.mrb[0].mxu0
      %v2550 = vadd.f32 0.0, %v2549
      %v2551 = vpop.f32.mrb[0].mxu0
      %2552 = vmatprep.mubr.bf16.mxu0 0
      %2553 = vmatmul.mubr.bf16.gmra.mrb[0].mxu0 %v2428
      %v2554 = vpop.f32.mrb[0].mxu0
      %v2555 = vadd.f32 0.0, %v2554
      %v2556 = vpop.f32.mrb[0].mxu0
      %v2557 = vpop.f32.mrb[0].mxu0
      %v2558 = vadd.f32 0.0, %v2557
      %v2559 = vpop.f32.mrb[0].mxu0
      %2560 = vmatprep.mubr.bf16.mxu0 0
      %2561 = vmatmul.mubr.bf16.gmra.mrb[0].mxu0 %v2431
      %v2562 = vpop.f32.mrb[0].mxu0
      %v2563 = vadd.f32 0.0, %v2562
      %v2564 = vpop.f32.mrb[0].mxu0
      %v2565 = vpop.f32.mrb[0].mxu0
      %v2566 = vadd.f32 0.0, %v2565
      %v2567 = vpop.f32.mrb[0].mxu0
      %2568 = vmatprep.mubr.bf16.mxu0 0
      %2569 = vmatmul.mubr.bf16.gmra.mrb[0].mxu0 %v2434
      %v2570 = vpop.f32.mrb[0].mxu0
      %v2571 = vadd.f32 0.0, %v2570
      %v2572 = vpop.f32.mrb[0].mxu0
      %v2573 = vpop.f32.mrb[0].mxu0
      %v2574 = vadd.f32 0.0, %v2573
      %v2575 = vpop.f32.mrb[0].mxu0
      %2576 = vmatprep.mubr.bf16.mxu0 0
      %2577 = vmatmul.mubr.bf16.gmra.mrb[0].mxu0 %v2437
      %v2578 = vpop.f32.mrb[0].mxu0
      %v2579 = vadd.f32 0.0, %v2578
      %v2580 = vpop.f32.mrb[0].mxu0
      %v2581 = vpop.f32.mrb[0].mxu0
      %v2582 = vadd.f32 0.0, %v2581
      %v2583 = vpop.f32.mrb[0].mxu0
      %2584 = vmatprep.mubr.bf16.mxu0 0
      %2585 = vmatmul.mubr.bf16.gmra.mrb[0].mxu0 %v2440
      %v2586 = vpop.f32.mrb[0].mxu0
      %v2587 = vadd.f32 0.0, %v2586
      %v2588 = vpop.f32.mrb[0].mxu0
      %v2589 = vpop.f32.mrb[0].mxu0
      %v2590 = vadd.f32 0.0, %v2589
      %v2591 = vpop.f32.mrb[0].mxu0
      %2592 = vmatprep.mubr.bf16.mxu0 0
      %2593 = vmatmul.mubr.bf16.gmra.mrb[0].mxu0 %v2443
      %v2594 = vpop.f32.mrb[0].mxu0
      %v2595 = vadd.f32 0.0, %v2594
      %v2596 = vpop.f32.mrb[0].mxu0
      %v2597 = vpop.f32.mrb[0].mxu0
      %v2598 = vadd.f32 0.0, %v2597
      %v2599 = vpop.f32.mrb[0].mxu0
      %2600 = vmatprep.mubr.bf16.mxu0 0
      %2601 = vmatmul.mubr.bf16.gmra.mrb[0].mxu0 %v2446
      %v2602 = vpop.f32.mrb[0].mxu0
      %v2603 = vadd.f32 0.0, %v2602
      %v2604 = vpop.f32.mrb[0].mxu0
      %v2605 = vpop.f32.mrb[0].mxu0
      %v2606 = vadd.f32 0.0, %v2605
      %v2607 = vpop.f32.mrb[0].mxu0
      %2608 = vdwg.mxu0
      %v2609 = vunpack.c.l.bf16 %v1655
      %v2610 = vunpack.c.l.bf16 %v1656
      %v2611 = vunpack.c.l.bf16 %v1657
      %v2612 = vunpack.c.l.bf16 %v1658
      %v2613 = vunpack.c.l.bf16 %v1659
      %v2614 = vunpack.c.l.bf16 %v1660
      %v2615 = vunpack.c.l.bf16 %v1661
      %v2616 = vunpack.c.l.bf16 %v1662
      %v2617 = vunpack.c.l.bf16 %v1663
      %v2618 = vunpack.c.l.bf16 %v1664
      %v2619 = vunpack.c.l.bf16 %v1665
      %v2620 = vunpack.c.l.bf16 %v1666
      %v2621 = vunpack.c.l.bf16 %v1667
      %v2622 = vunpack.c.l.bf16 %v1668
      %v2623 = vunpack.c.l.bf16 %v1669
      %v2624 = vunpack.c.l.bf16 %v1670
      %v2625 = vunpack.c.l.bf16 %v1671
      %v2626 = vunpack.c.l.bf16 %v1672
      %v2627 = vunpack.c.l.bf16 %v1673
      %v2628 = vunpack.c.l.bf16 %v1674
      %v2629 = vunpack.c.l.bf16 %v1675
      %v2630 = vunpack.c.l.bf16 %v1676
      %v2631 = vunpack.c.l.bf16 %v1677
      %v2632 = vunpack.c.l.bf16 %v1678
      %v2633 = vunpack.c.l.bf16 %v1679
      %v2634 = vunpack.c.l.bf16 %v1680
      %v2635 = vunpack.c.l.bf16 %v1681
      %v2636 = vunpack.c.l.bf16 %v1682
      %v2637 = vunpack.c.l.bf16 %v1683
      %v2638 = vunpack.c.l.bf16 %v1684
      %v2639 = vunpack.c.l.bf16 %v1685
      %v2640 = vunpack.c.l.bf16 %v1686
      %v2641 = vmul.f32 %v2483, %v2609
      %v2642 = vmul.f32 %v2486, %v2610
      %v2643 = vmul.f32 %v2491, %v2611
      %v2644 = vmul.f32 %v2494, %v2612
      %v2645 = vmul.f32 %v2499, %v2613
      %v2646 = vmul.f32 %v2502, %v2614
      %v2647 = vmul.f32 %v2507, %v2615
      %v2648 = vmul.f32 %v2510, %v2616
      %v2649 = vmul.f32 %v2515, %v2617
      %v2650 = vmul.f32 %v2518, %v2618
      %v2651 = vmul.f32 %v2523, %v2619
      %v2652 = vmul.f32 %v2526, %v2620
      %v2653 = vmul.f32 %v2531, %v2621
      %v2654 = vmul.f32 %v2534, %v2622
      %v2655 = vmul.f32 %v2539, %v2623
      %v2656 = vmul.f32 %v2542, %v2624
      %v2657 = vmul.f32 %v2547, %v2625
      %v2658 = vmul.f32 %v2550, %v2626
      %v2659 = vmul.f32 %v2555, %v2627
      %v2660 = vmul.f32 %v2558, %v2628
      %v2661 = vmul.f32 %v2563, %v2629
      %v2662 = vmul.f32 %v2566, %v2630
      %v2663 = vmul.f32 %v2571, %v2631
      %v2664 = vmul.f32 %v2574, %v2632
      %v2665 = vmul.f32 %v2579, %v2633
      %v2666 = vmul.f32 %v2582, %v2634
      %v2667 = vmul.f32 %v2587, %v2635
      %v2668 = vmul.f32 %v2590, %v2636
      %v2669 = vmul.f32 %v2595, %v2637
      %v2670 = vmul.f32 %v2598, %v2638
      %v2671 = vmul.f32 %v2603, %v2639
      %v2672 = vmul.f32 %v2606, %v2640
      %v2673 = vadd.f32 %v2641, %v2649
      %v2674 = vadd.f32 %v2642, %v2650
      %v2675 = vadd.f32 %v2643, %v2651
      %v2676 = vadd.f32 %v2644, %v2652
      %v2677 = vadd.f32 %v2645, %v2653
      %v2678 = vadd.f32 %v2646, %v2654
      %v2679 = vadd.f32 %v2647, %v2655
      %v2680 = vadd.f32 %v2648, %v2656
      %v2681 = vadd.f32 %v2673, %v2657
      %v2682 = vadd.f32 %v2674, %v2658
      %v2683 = vadd.f32 %v2675, %v2659
      %v2684 = vadd.f32 %v2676, %v2660
      %v2685 = vadd.f32 %v2677, %v2661
      %v2686 = vadd.f32 %v2678, %v2662
      %v2687 = vadd.f32 %v2679, %v2663
      %v2688 = vadd.f32 %v2680, %v2664
      %v2689 = vadd.f32 %v2681, %v2665
      %v2690 = vadd.f32 %v2682, %v2666
      %v2691 = vadd.f32 %v2683, %v2667
      %v2692 = vadd.f32 %v2684, %v2668
      %v2693 = vadd.f32 %v2685, %v2669
      %v2694 = vadd.f32 %v2686, %v2670
      %v2695 = vadd.f32 %v2687, %v2671
      %v2696 = vadd.f32 %v2688, %v2672
      %v2697 = vld [vmem:[%s11] sm:$0xf]
      %v2698 = vld [vmem:[%s11 + $0x4] sm:$0xf]
      %v2699 = vld [vmem:[%s11 + $0x8] sm:$0xf]
      %v2700 = vld [vmem:[%s11 + $0xc] sm:$0xf]
      %v2701 = vld [vmem:[%s11 + $0x10] sm:$0xf]
      %v2702 = vld [vmem:[%s11 + $0x14] sm:$0xf]
      %v2703 = vld [vmem:[%s11 + $0x18] sm:$0xf]
      %v2704 = vld [vmem:[%s11 + $0x1c] sm:$0xf]
      %v2705 = vpack.c.bf16 %v2690, %v2689
      %v2706 = vpack.c.bf16 %v2692, %v2691
      %v2707 = vpack.c.bf16 %v2694, %v2693
      %v2708 = vpack.c.bf16 %v2696, %v2695
      %v2709 = vld [vmem:[%s12] sm:$0xff]
      %v2710 = vld [vmem:[%s12 + $0x8] sm:$0xff]
      %v2711 = vld [vmem:[%s12 + $0x10] sm:$0xff]
      %v2712 = vld [vmem:[%s12 + $0x18] sm:$0xff]
      %v2713 = vld [vmem:[%s12 + $0x20] sm:$0xff]
      %v2714 = vld [vmem:[%s12 + $0x28] sm:$0xff]
      %v2715 = vld [vmem:[%s12 + $0x30] sm:$0xff]
      %v2716 = vld [vmem:[%s12 + $0x38] sm:$0xff]
      %2718 = vset.pattern.permute.xlu0 0
      %2719 = vperm.xlu0 %2718, %v2709
      %v2720 = vpop.permute.xlu0 %2719
      %2723 = vset.pattern.permute.xlu0 0
      %2724 = vperm.xlu0 %2723, %v2710
      %v2725 = vpop.permute.xlu0 %2724
      %2728 = vset.pattern.permute.xlu0 0
      %2729 = vperm.xlu0 %2728, %v2711
      %v2730 = vpop.permute.xlu0 %2729
      %2733 = vset.pattern.permute.xlu0 0
      %2734 = vperm.xlu0 %2733, %v2712
      %v2735 = vpop.permute.xlu0 %2734
      %2738 = vset.pattern.permute.xlu0 0
      %2739 = vperm.xlu0 %2738, %v2713
      %v2740 = vpop.permute.xlu0 %2739
      %2743 = vset.pattern.permute.xlu0 0
      %2744 = vperm.xlu0 %2743, %v2714
      %v2745 = vpop.permute.xlu0 %2744
      %2748 = vset.pattern.permute.xlu0 0
      %2749 = vperm.xlu0 %2748, %v2715
      %v2750 = vpop.permute.xlu0 %2749
      %2753 = vset.pattern.permute.xlu0 0
      %2754 = vperm.xlu0 %2753, %v2716
      %v2755 = vpop.permute.xlu0 %2754
      %v2765 = vunpack.c.l.b16 %v2697
      %v2766 = vunpack.c.l.b16 %v2698
      %v2767 = vunpack.c.l.b16 %v2699
      %v2768 = vunpack.c.l.b16 %v2700
      %v2769 = vunpack.c.l.b16 %v2701
      %v2770 = vunpack.c.l.b16 %v2702
      %v2771 = vunpack.c.l.b16 %v2703
      %v2772 = vunpack.c.l.b16 %v2704
      %v2773 = vpack.c.b16 %v2766, %v2765
      %v2774 = vpack.c.b16 %v2768, %v2767
      %v2775 = vpack.c.b16 %v2770, %v2769
      %v2776 = vpack.c.b16 %v2772, %v2771
      %v2778 = vsel %vm1095, %v2773, 0
      %v2781 = vsel %vm1095, %v2774, 0
      %v2784 = vsel %vm1095, %v2775, 0
      %v2787 = vsel %vm1095, %v2776, 0
      %v2790 = vsel %vm1095, %v2705, 0
      %v2793 = vsel %vm1095, %v2706, 0
      %v2796 = vsel %vm1095, %v2707, 0
      %v2799 = vsel %vm1095, %v2708, 0
      %2801 = vmatprep.subr.bf16.mxu0 0
      %2802 = vmatpush1.bf16.xpose.msra.mxu0 %v2790
      %2803 = vmatprep.subr.bf16.mxu0 0
      %2804 = vmatpush1.bf16.xpose.msra.mxu0 %v2793
      %2805 = vmatprep.subr.bf16.mxu0 0
      %2806 = vmatpush1.bf16.xpose.msra.mxu0 %v2796
      %2807 = vmatprep.subr.bf16.mxu0 0
      %2808 = vmatpush1.bf16.xpose.msra.mxu0 %v2799
      %2809 = vmatprep.subr.bf16.mxu0 0
      %2810 = vmatpush1.bf16.xpose.msra.mxu0 0
      %2811 = vmatprep.subr.bf16.mxu0 0
      %2812 = vmatpush1.bf16.xpose.msra.mxu0 0
      %2813 = vmatprep.subr.bf16.mxu0 0
      %2814 = vmatpush1.bf16.xpose.msra.mxu0 0
      %2815 = vmatprep.subr.bf16.mxu0 0
      %2816 = vmatpush1.bf16.xpose.msra.mxu0 0
      %2817 = vmatprep.subr.bf16.mxu0 0
      %2818 = vmatpush1.bf16.xpose.msra.mxu0 0
      %2819 = vmatprep.subr.bf16.mxu0 0
      %2820 = vmatpush1.bf16.xpose.msra.mxu0 0
      %2821 = vmatprep.subr.bf16.mxu0 0
      %2822 = vmatpush1.bf16.xpose.msra.mxu0 0
      %2823 = vmatprep.subr.bf16.mxu0 0
      %2824 = vmatpush1.bf16.xpose.msra.mxu0 0
      %2825 = vmatprep.subr.bf16.mxu0 0
      %2826 = vmatpush1.bf16.xpose.msra.mxu0 0
      %2827 = vmatprep.subr.bf16.mxu0 0
      %2828 = vmatpush1.bf16.xpose.msra.mxu0 0
      %2829 = vmatprep.subr.bf16.mxu0 0
      %2830 = vmatpush1.bf16.xpose.msra.mxu0 0
      %2831 = vmatprep.subr.bf16.mxu0 0
      %2832 = vmatpush1.bf16.xpose.msra.mxu0 0
      %2833 = vmatprep.mubr.bf16.mxu0 0
      %2834 = vmatmul.mubr.bf16.gmra.mrb[0].mxu0 %v2778
      %v2835 = vpop.f32.mrb[0].mxu0
      %v2836 = vadd.f32 %v2720, %v2835
      %v2837 = vpop.f32.mrb[0].mxu0
      %v2838 = vpop.f32.mrb[0].mxu0
      %v2839 = vadd.f32 %v2725, %v2838
      %v2840 = vpop.f32.mrb[0].mxu0
      %2841 = vmatprep.mubr.bf16.mxu0 0
      %2842 = vmatmul.mubr.bf16.gmra.mrb[0].mxu0 %v2781
      %v2843 = vpop.f32.mrb[0].mxu0
      %v2844 = vadd.f32 %v2730, %v2843
      %v2845 = vpop.f32.mrb[0].mxu0
      %v2846 = vpop.f32.mrb[0].mxu0
      %v2847 = vadd.f32 %v2735, %v2846
      %v2848 = vpop.f32.mrb[0].mxu0
      %2849 = vmatprep.mubr.bf16.mxu0 0
      %2850 = vmatmul.mubr.bf16.gmra.mrb[0].mxu0 %v2784
      %v2851 = vpop.f32.mrb[0].mxu0
      %v2852 = vadd.f32 %v2740, %v2851
      %v2853 = vpop.f32.mrb[0].mxu0
      %v2854 = vpop.f32.mrb[0].mxu0
      %v2855 = vadd.f32 %v2745, %v2854
      %v2856 = vpop.f32.mrb[0].mxu0
      %2857 = vmatprep.mubr.bf16.mxu0 0
      %2858 = vmatmul.mubr.bf16.gmra.mrb[0].mxu0 %v2787
      %v2859 = vpop.f32.mrb[0].mxu0
      %v2860 = vadd.f32 %v2750, %v2859
      %v2861 = vpop.f32.mrb[0].mxu0
      %v2862 = vpop.f32.mrb[0].mxu0
      %v2863 = vadd.f32 %v2755, %v2862
      %v2864 = vpop.f32.mrb[0].mxu0
      %2865 = vdwg.mxu0
      %v2866 = vmax.f32 %v2836, 0.0
      %v2867 = vmax.f32 %v2839, 0.0
      %v2868 = vmax.f32 %v2844, 0.0
      %v2869 = vmax.f32 %v2847, 0.0
      %v2870 = vmax.f32 %v2852, 0.0
      %v2871 = vmax.f32 %v2855, 0.0
      %v2872 = vmax.f32 %v2860, 0.0
      %v2873 = vmax.f32 %v2863, 0.0
      %v2874 = vld [vmem:[%s13] sm:$0xf]
      %v2875 = vld [vmem:[%s13 + $0x4] sm:$0xf]
      %v2876 = vld [vmem:[%s13 + $0x8] sm:$0xf]
      %v2877 = vld [vmem:[%s13 + $0xc] sm:$0xf]
      %v2878 = vld [vmem:[%s13 + $0x10] sm:$0xf]
      %v2879 = vld [vmem:[%s13 + $0x14] sm:$0xf]
      %v2880 = vld [vmem:[%s13 + $0x18] sm:$0xf]
      %v2881 = vld [vmem:[%s13 + $0x1c] sm:$0xf]
      %v2882 = vpack.c.bf16 %v2867, %v2866
      %v2883 = vpack.c.bf16 %v2869, %v2868
      %v2884 = vpack.c.bf16 %v2871, %v2870
      %v2885 = vpack.c.bf16 %v2873, %v2872
      %v2886 = vld [vmem:[%s14] sm:$0xff]
      %v2887 = vld [vmem:[%s14 + $0x8] sm:$0xff]
      %v2888 = vld [vmem:[%s14 + $0x10] sm:$0xff]
      %v2889 = vld [vmem:[%s14 + $0x18] sm:$0xff]
      %v2890 = vld [vmem:[%s14 + $0x20] sm:$0xff]
      %v2891 = vld [vmem:[%s14 + $0x28] sm:$0xff]
      %v2892 = vld [vmem:[%s14 + $0x30] sm:$0xff]
      %v2893 = vld [vmem:[%s14 + $0x38] sm:$0xff]
      %2895 = vset.pattern.permute.xlu0 0
      %2896 = vperm.xlu0 %2895, %v2886
      %v2897 = vpop.permute.xlu0 %2896
      %2900 = vset.pattern.permute.xlu0 0
      %2901 = vperm.xlu0 %2900, %v2887
      %v2902 = vpop.permute.xlu0 %2901
      %2905 = vset.pattern.permute.xlu0 0
      %2906 = vperm.xlu0 %2905, %v2888
      %v2907 = vpop.permute.xlu0 %2906
      %2910 = vset.pattern.permute.xlu0 0
      %2911 = vperm.xlu0 %2910, %v2889
      %v2912 = vpop.permute.xlu0 %2911
      %2915 = vset.pattern.permute.xlu0 0
      %2916 = vperm.xlu0 %2915, %v2890
      %v2917 = vpop.permute.xlu0 %2916
      %2920 = vset.pattern.permute.xlu0 0
      %2921 = vperm.xlu0 %2920, %v2891
      %v2922 = vpop.permute.xlu0 %2921
      %2925 = vset.pattern.permute.xlu0 0
      %2926 = vperm.xlu0 %2925, %v2892
      %v2927 = vpop.permute.xlu0 %2926
      %2930 = vset.pattern.permute.xlu0 0
      %2931 = vperm.xlu0 %2930, %v2893
      %v2932 = vpop.permute.xlu0 %2931
      %v2942 = vunpack.c.l.b16 %v2874
      %v2943 = vunpack.c.l.b16 %v2875
      %v2944 = vunpack.c.l.b16 %v2876
      %v2945 = vunpack.c.l.b16 %v2877
      %v2946 = vunpack.c.l.b16 %v2878
      %v2947 = vunpack.c.l.b16 %v2879
      %v2948 = vunpack.c.l.b16 %v2880
      %v2949 = vunpack.c.l.b16 %v2881
      %v2950 = vpack.c.b16 %v2943, %v2942
      %v2951 = vpack.c.b16 %v2945, %v2944
      %v2952 = vpack.c.b16 %v2947, %v2946
      %v2953 = vpack.c.b16 %v2949, %v2948
      %v2955 = vsel %vm1095, %v2950, 0
      %v2958 = vsel %vm1095, %v2951, 0
      %v2961 = vsel %vm1095, %v2952, 0
      %v2964 = vsel %vm1095, %v2953, 0
      %2966 = vmatprep.subr.bf16.mxu0 0
      %2967 = vmatpush1.bf16.msra.mxu0 %v2882
      %2968 = vmatprep.subr.bf16.mxu0 0
      %2969 = vmatpush1.bf16.msra.mxu0 %v2883
      %2970 = vmatprep.subr.bf16.mxu0 0
      %2971 = vmatpush1.bf16.msra.mxu0 %v2884
      %2972 = vmatprep.subr.bf16.mxu0 0
      %2973 = vmatpush1.bf16.msra.mxu0 %v2885
      %2974 = vmatprep.subr.bf16.mxu0 0
      %2975 = vmatpush1.bf16.msra.mxu0 0
      %2976 = vmatprep.subr.bf16.mxu0 0
      %2977 = vmatpush1.bf16.msra.mxu0 0
      %2978 = vmatprep.subr.bf16.mxu0 0
      %2979 = vmatpush1.bf16.msra.mxu0 0
      %2980 = vmatprep.subr.bf16.mxu0 0
      %2981 = vmatpush1.bf16.msra.mxu0 0
      %2982 = vmatprep.subr.bf16.mxu0 0
      %2983 = vmatpush1.bf16.msra.mxu0 0
      %2984 = vmatprep.subr.bf16.mxu0 0
      %2985 = vmatpush1.bf16.msra.mxu0 0
      %2986 = vmatprep.subr.bf16.mxu0 0
      %2987 = vmatpush1.bf16.msra.mxu0 0
      %2988 = vmatprep.subr.bf16.mxu0 0
      %2989 = vmatpush1.bf16.msra.mxu0 0
      %2990 = vmatprep.subr.bf16.mxu0 0
      %2991 = vmatpush1.bf16.msra.mxu0 0
      %2992 = vmatprep.subr.bf16.mxu0 0
      %2993 = vmatpush1.bf16.msra.mxu0 0
      %2994 = vmatprep.subr.bf16.mxu0 0
      %2995 = vmatpush1.bf16.msra.mxu0 0
      %2996 = vmatprep.subr.bf16.mxu0 0
      %2997 = vmatpush1.bf16.msra.mxu0 0
      %2998 = vmatprep.mubr.bf16.mxu0 0
      %2999 = vmatmul.mubr.bf16.gmra.mrb[0].mxu0 %v2955
      %v3000 = vpop.f32.mrb[0].mxu0
      %v3001 = vadd.f32 %v2897, %v3000
      %v3002 = vpop.f32.mrb[0].mxu0
      %v3003 = vpop.f32.mrb[0].mxu0
      %v3004 = vadd.f32 %v2902, %v3003
      %v3005 = vpop.f32.mrb[0].mxu0
      %3006 = vmatprep.mubr.bf16.mxu0 0
      %3007 = vmatmul.mubr.bf16.gmra.mrb[0].mxu0 %v2958
      %v3008 = vpop.f32.mrb[0].mxu0
      %v3009 = vadd.f32 %v2907, %v3008
      %v3010 = vpop.f32.mrb[0].mxu0
      %v3011 = vpop.f32.mrb[0].mxu0
      %v3012 = vadd.f32 %v2912, %v3011
      %v3013 = vpop.f32.mrb[0].mxu0
      %3014 = vmatprep.mubr.bf16.mxu0 0
      %3015 = vmatmul.mubr.bf16.gmra.mrb[0].mxu0 %v2961
      %v3016 = vpop.f32.mrb[0].mxu0
      %v3017 = vadd.f32 %v2917, %v3016
      %v3018 = vpop.f32.mrb[0].mxu0
      %v3019 = vpop.f32.mrb[0].mxu0
      %v3020 = vadd.f32 %v2922, %v3019
      %v3021 = vpop.f32.mrb[0].mxu0
      %3022 = vmatprep.mubr.bf16.mxu0 0
      %3023 = vmatmul.mubr.bf16.gmra.mrb[0].mxu0 %v2964
      %v3024 = vpop.f32.mrb[0].mxu0
      %v3025 = vadd.f32 %v2927, %v3024
      %v3026 = vpop.f32.mrb[0].mxu0
      %v3027 = vpop.f32.mrb[0].mxu0
      %v3028 = vadd.f32 %v2932, %v3027
      %v3029 = vpop.f32.mrb[0].mxu0
      %3030 = vdwg.mxu0
      %v3031 = vmax.f32 %v3001, 0.0
      %v3032 = vmax.f32 %v3004, 0.0
      %v3033 = vmax.f32 %v3009, 0.0
      %v3034 = vmax.f32 %v3012, 0.0
      %v3035 = vmax.f32 %v3017, 0.0
      %v3036 = vmax.f32 %v3020, 0.0
      %v3037 = vmax.f32 %v3025, 0.0
      %v3038 = vmax.f32 %v3028, 0.0
      %v3039 = vld [vmem:[%s15] sm:$0xf]
      %v3040 = vld [vmem:[%s15 + $0x4] sm:$0xf]
      %v3041 = vld [vmem:[%s15 + $0x8] sm:$0xf]
      %v3042 = vld [vmem:[%s15 + $0xc] sm:$0xf]
      %v3043 = vld [vmem:[%s15 + $0x10] sm:$0xf]
      %v3044 = vld [vmem:[%s15 + $0x14] sm:$0xf]
      %v3045 = vld [vmem:[%s15 + $0x18] sm:$0xf]
      %v3046 = vld [vmem:[%s15 + $0x1c] sm:$0xf]
      %v3047 = vld [vmem:[%s15 + $0x20] sm:$0xf]
      %v3048 = vld [vmem:[%s15 + $0x24] sm:$0xf]
      %v3049 = vld [vmem:[%s15 + $0x28] sm:$0xf]
      %v3050 = vld [vmem:[%s15 + $0x2c] sm:$0xf]
      %v3051 = vld [vmem:[%s15 + $0x30] sm:$0xf]
      %v3052 = vld [vmem:[%s15 + $0x34] sm:$0xf]
      %v3053 = vld [vmem:[%s15 + $0x38] sm:$0xf]
      %v3054 = vld [vmem:[%s15 + $0x3c] sm:$0xf]
      %v3055 = vpack.c.bf16 %v3032, %v3031
      %v3056 = vpack.c.bf16 %v3034, %v3033
      %v3057 = vpack.c.bf16 %v3036, %v3035
      %v3058 = vpack.c.bf16 %v3038, %v3037
      %v3075 = vunpack.c.l.b16 %v3039
      %v3076 = vunpack.c.l.b16 %v3040
      %v3077 = vunpack.c.l.b16 %v3041
      %v3078 = vunpack.c.l.b16 %v3042
      %v3079 = vunpack.c.l.b16 %v3043
      %v3080 = vunpack.c.l.b16 %v3044
      %v3081 = vunpack.c.l.b16 %v3045
      %v3082 = vunpack.c.l.b16 %v3046
      %v3083 = vunpack.c.l.b16 %v3047
      %v3084 = vunpack.c.l.b16 %v3048
      %v3085 = vunpack.c.l.b16 %v3049
      %v3086 = vunpack.c.l.b16 %v3050
      %v3087 = vunpack.c.l.b16 %v3051
      %v3088 = vunpack.c.l.b16 %v3052
      %v3089 = vunpack.c.l.b16 %v3053
      %v3090 = vunpack.c.l.b16 %v3054
      %v3091 = vpack.c.b16 %v3076, %v3075
      %v3092 = vpack.c.b16 %v3078, %v3077
      %v3093 = vpack.c.b16 %v3080, %v3079
      %v3094 = vpack.c.b16 %v3082, %v3081
      %v3095 = vpack.c.b16 %v3084, %v3083
      %v3096 = vpack.c.b16 %v3086, %v3085
      %v3097 = vpack.c.b16 %v3088, %v3087
      %v3098 = vpack.c.b16 %v3090, %v3089
      %v3100 = vsel %vm1095, %v3091, 0
      %v3103 = vsel %vm1095, %v3092, 0
      %v3106 = vsel %vm1095, %v3093, 0
      %v3109 = vsel %vm1095, %v3094, 0
      %v3112 = vsel %vm1095, %v3095, 0
      %v3115 = vsel %vm1095, %v3096, 0
      %v3118 = vsel %vm1095, %v3097, 0
      %v3121 = vsel %vm1095, %v3098, 0
      %3123 = vmatprep.subr.bf16.mxu0 0
      %3124 = vmatpush1.bf16.msra.mxu0 %v3055
      %3125 = vmatprep.subr.bf16.mxu0 0
      %3126 = vmatpush1.bf16.msra.mxu0 %v3056
      %3127 = vmatprep.subr.bf16.mxu0 0
      %3128 = vmatpush1.bf16.msra.mxu0 %v3057
      %3129 = vmatprep.subr.bf16.mxu0 0
      %3130 = vmatpush1.bf16.msra.mxu0 %v3058
      %3131 = vmatprep.subr.bf16.mxu0 0
      %3132 = vmatpush1.bf16.msra.mxu0 0
      %3133 = vmatprep.subr.bf16.mxu0 0
      %3134 = vmatpush1.bf16.msra.mxu0 0
      %3135 = vmatprep.subr.bf16.mxu0 0
      %3136 = vmatpush1.bf16.msra.mxu0 0
      %3137 = vmatprep.subr.bf16.mxu0 0
      %3138 = vmatpush1.bf16.msra.mxu0 0
      %3139 = vmatprep.subr.bf16.mxu0 0
      %3140 = vmatpush1.bf16.msra.mxu0 0
      %3141 = vmatprep.subr.bf16.mxu0 0
      %3142 = vmatpush1.bf16.msra.mxu0 0
      %3143 = vmatprep.subr.bf16.mxu0 0
      %3144 = vmatpush1.bf16.msra.mxu0 0
      %3145 = vmatprep.subr.bf16.mxu0 0
      %3146 = vmatpush1.bf16.msra.mxu0 0
      %3147 = vmatprep.subr.bf16.mxu0 0
      %3148 = vmatpush1.bf16.msra.mxu0 0
      %3149 = vmatprep.subr.bf16.mxu0 0
      %3150 = vmatpush1.bf16.msra.mxu0 0
      %3151 = vmatprep.subr.bf16.mxu0 0
      %3152 = vmatpush1.bf16.msra.mxu0 0
      %3153 = vmatprep.subr.bf16.mxu0 0
      %3154 = vmatpush1.bf16.msra.mxu0 0
      %3155 = vmatprep.mubr.bf16.mxu0 0
      %3156 = vmatmul.mubr.bf16.gmra.mrb[0].mxu0 %v3100
      %v3157 = vpop.f32.mrb[0].mxu0
      %v3158 = vadd.f32 0.0, %v3157
      %v3159 = vpop.f32.mrb[0].mxu0
      %v3160 = vpop.f32.mrb[0].mxu0
      %v3161 = vadd.f32 0.0, %v3160
      %v3162 = vpop.f32.mrb[0].mxu0
      %3163 = vmatprep.mubr.bf16.mxu0 0
      %3164 = vmatmul.mubr.bf16.gmra.mrb[0].mxu0 %v3103
      %v3165 = vpop.f32.mrb[0].mxu0
      %v3166 = vadd.f32 0.0, %v3165
      %v3167 = vpop.f32.mrb[0].mxu0
      %v3168 = vpop.f32.mrb[0].mxu0
      %v3169 = vadd.f32 0.0, %v3168
      %v3170 = vpop.f32.mrb[0].mxu0
      %3171 = vmatprep.mubr.bf16.mxu0 0
      %3172 = vmatmul.mubr.bf16.gmra.mrb[0].mxu0 %v3106
      %v3173 = vpop.f32.mrb[0].mxu0
      %v3174 = vadd.f32 0.0, %v3173
      %v3175 = vpop.f32.mrb[0].mxu0
      %v3176 = vpop.f32.mrb[0].mxu0
      %v3177 = vadd.f32 0.0, %v3176
      %v3178 = vpop.f32.mrb[0].mxu0
      %3179 = vmatprep.mubr.bf16.mxu0 0
      %3180 = vmatmul.mubr.bf16.gmra.mrb[0].mxu0 %v3109
      %v3181 = vpop.f32.mrb[0].mxu0
      %v3182 = vadd.f32 0.0, %v3181
      %v3183 = vpop.f32.mrb[0].mxu0
      %v3184 = vpop.f32.mrb[0].mxu0
      %v3185 = vadd.f32 0.0, %v3184
      %v3186 = vpop.f32.mrb[0].mxu0
      %3187 = vmatprep.mubr.bf16.mxu0 0
      %3188 = vmatmul.mubr.bf16.gmra.mrb[0].mxu0 %v3112
      %v3189 = vpop.f32.mrb[0].mxu0
      %v3190 = vadd.f32 0.0, %v3189
      %v3191 = vpop.f32.mrb[0].mxu0
      %v3192 = vpop.f32.mrb[0].mxu0
      %v3193 = vadd.f32 0.0, %v3192
      %v3194 = vpop.f32.mrb[0].mxu0
      %3195 = vmatprep.mubr.bf16.mxu0 0
      %3196 = vmatmul.mubr.bf16.gmra.mrb[0].mxu0 %v3115
      %v3197 = vpop.f32.mrb[0].mxu0
      %v3198 = vadd.f32 0.0, %v3197
      %v3199 = vpop.f32.mrb[0].mxu0
      %v3200 = vpop.f32.mrb[0].mxu0
      %v3201 = vadd.f32 0.0, %v3200
      %v3202 = vpop.f32.mrb[0].mxu0
      %3203 = vmatprep.mubr.bf16.mxu0 0
      %3204 = vmatmul.mubr.bf16.gmra.mrb[0].mxu0 %v3118
      %v3205 = vpop.f32.mrb[0].mxu0
      %v3206 = vadd.f32 0.0, %v3205
      %v3207 = vpop.f32.mrb[0].mxu0
      %v3208 = vpop.f32.mrb[0].mxu0
      %v3209 = vadd.f32 0.0, %v3208
      %v3210 = vpop.f32.mrb[0].mxu0
      %3211 = vmatprep.mubr.bf16.mxu0 0
      %3212 = vmatmul.mubr.bf16.gmra.mrb[0].mxu0 %v3121
      %v3213 = vpop.f32.mrb[0].mxu0
      %v3214 = vadd.f32 0.0, %v3213
      %v3215 = vpop.f32.mrb[0].mxu0
      %v3216 = vpop.f32.mrb[0].mxu0
      %v3217 = vadd.f32 0.0, %v3216
      %v3218 = vpop.f32.mrb[0].mxu0
      %3219 = vdwg.mxu0
      %v3220 = vpack.c.bf16 %v3161, %v3158
      %v3221 = vpack.c.bf16 %v3169, %v3166
      %v3222 = vpack.c.bf16 %v3177, %v3174
      %v3223 = vpack.c.bf16 %v3185, %v3182
      %v3224 = vpack.c.bf16 %v3193, %v3190
      %v3225 = vpack.c.bf16 %v3201, %v3198
      %v3226 = vpack.c.bf16 %v3209, %v3206
      %v3227 = vpack.c.bf16 %v3217, %v3214
      %v3228 = vld [vmem:[%s663] sm:$0xff]
      %v3229 = vld [vmem:[%s663 + $0x8] sm:$0xff]
      %v3230 = vld [vmem:[%s663 + $0x10] sm:$0xff]
      %v3231 = vld [vmem:[%s663 + $0x18] sm:$0xff]
      %v3232 = vld [vmem:[%s663 + $0x20] sm:$0xff]
      %v3233 = vld [vmem:[%s663 + $0x28] sm:$0xff]
      %v3234 = vld [vmem:[%s663 + $0x30] sm:$0xff]
      %v3235 = vld [vmem:[%s663 + $0x38] sm:$0xff]
      %v3236 = vld [vmem:[%s663 + $0x40] sm:$0xff]
      %v3237 = vld [vmem:[%s663 + $0x48] sm:$0xff]
      %v3238 = vld [vmem:[%s663 + $0x50] sm:$0xff]
      %v3239 = vld [vmem:[%s663 + $0x58] sm:$0xff]
      %v3240 = vld [vmem:[%s663 + $0x60] sm:$0xff]
      %v3241 = vld [vmem:[%s663 + $0x68] sm:$0xff]
      %v3242 = vld [vmem:[%s663 + $0x70] sm:$0xff]
      %v3243 = vld [vmem:[%s663 + $0x78] sm:$0xff]
      %v3244 = vld [vmem:[%s663 + $0x80] sm:$0xff]
      %v3245 = vld [vmem:[%s663 + $0x88] sm:$0xff]
      %v3246 = vld [vmem:[%s663 + $0x90] sm:$0xff]
      %v3247 = vld [vmem:[%s663 + $0x98] sm:$0xff]
      %v3248 = vld [vmem:[%s663 + $0xa0] sm:$0xff]
      %v3249 = vld [vmem:[%s663 + $0xa8] sm:$0xff]
      %v3250 = vld [vmem:[%s663 + $0xb0] sm:$0xff]
      %v3251 = vld [vmem:[%s663 + $0xb8] sm:$0xff]
      %v3252 = vld [vmem:[%s663 + $0xc0] sm:$0xff]
      %v3253 = vld [vmem:[%s663 + $0xc8] sm:$0xff]
      %v3254 = vld [vmem:[%s663 + $0xd0] sm:$0xff]
      %v3255 = vld [vmem:[%s663 + $0xd8] sm:$0xff]
      %v3256 = vld [vmem:[%s663 + $0xe0] sm:$0xff]
      %v3257 = vld [vmem:[%s663 + $0xe8] sm:$0xff]
      %v3258 = vld [vmem:[%s663 + $0xf0] sm:$0xff]
      %v3259 = vld [vmem:[%s663 + $0xf8] sm:$0xff]
      %v3260 = vld [vmem:[%s663 + $0x100] sm:$0xff]
      %v3261 = vld [vmem:[%s663 + $0x108] sm:$0xff]
      %v3262 = vld [vmem:[%s663 + $0x110] sm:$0xff]
      %v3263 = vld [vmem:[%s663 + $0x118] sm:$0xff]
      %v3264 = vld [vmem:[%s663 + $0x120] sm:$0xff]
      %v3265 = vld [vmem:[%s663 + $0x128] sm:$0xff]
      %v3266 = vld [vmem:[%s663 + $0x130] sm:$0xff]
      %v3267 = vld [vmem:[%s663 + $0x138] sm:$0xff]
      %v3268 = vld [vmem:[%s663 + $0x140] sm:$0xff]
      %v3269 = vld [vmem:[%s663 + $0x148] sm:$0xff]
      %v3270 = vld [vmem:[%s663 + $0x150] sm:$0xff]
      %v3271 = vld [vmem:[%s663 + $0x158] sm:$0xff]
      %v3272 = vld [vmem:[%s663 + $0x160] sm:$0xff]
      %v3273 = vld [vmem:[%s663 + $0x168] sm:$0xff]
      %v3274 = vld [vmem:[%s663 + $0x170] sm:$0xff]
      %v3275 = vld [vmem:[%s663 + $0x178] sm:$0xff]
      %v3276 = vld [vmem:[%s663 + $0x180] sm:$0xff]
      %v3277 = vld [vmem:[%s663 + $0x188] sm:$0xff]
      %v3278 = vld [vmem:[%s663 + $0x190] sm:$0xff]
      %v3279 = vld [vmem:[%s663 + $0x198] sm:$0xff]
      %v3280 = vld [vmem:[%s663 + $0x1a0] sm:$0xff]
      %v3281 = vld [vmem:[%s663 + $0x1a8] sm:$0xff]
      %v3282 = vld [vmem:[%s663 + $0x1b0] sm:$0xff]
      %v3283 = vld [vmem:[%s663 + $0x1b8] sm:$0xff]
      %v3284 = vld [vmem:[%s663 + $0x1c0] sm:$0xff]
      %v3285 = vld [vmem:[%s663 + $0x1c8] sm:$0xff]
      %v3286 = vld [vmem:[%s663 + $0x1d0] sm:$0xff]
      %v3287 = vld [vmem:[%s663 + $0x1d8] sm:$0xff]
      %v3288 = vld [vmem:[%s663 + $0x1e0] sm:$0xff]
      %v3289 = vld [vmem:[%s663 + $0x1e8] sm:$0xff]
      %v3290 = vld [vmem:[%s663 + $0x1f0] sm:$0xff]
      %v3291 = vld [vmem:[%s663 + $0x1f8] sm:$0xff]
      %v3292 = vld [vmem:[%s663 + $0x200] sm:$0xff]
      %v3293 = vld [vmem:[%s663 + $0x208] sm:$0xff]
      %v3294 = vld [vmem:[%s663 + $0x210] sm:$0xff]
      %v3295 = vld [vmem:[%s663 + $0x218] sm:$0xff]
      %v3296 = vld [vmem:[%s663 + $0x220] sm:$0xff]
      %v3297 = vld [vmem:[%s663 + $0x228] sm:$0xff]
      %v3298 = vld [vmem:[%s663 + $0x230] sm:$0xff]
      %v3299 = vld [vmem:[%s663 + $0x238] sm:$0xff]
      %v3300 = vld [vmem:[%s663 + $0x240] sm:$0xff]
      %v3301 = vld [vmem:[%s663 + $0x248] sm:$0xff]
      %v3302 = vld [vmem:[%s663 + $0x250] sm:$0xff]
      %v3303 = vld [vmem:[%s663 + $0x258] sm:$0xff]
      %v3304 = vld [vmem:[%s663 + $0x260] sm:$0xff]
      %v3305 = vld [vmem:[%s663 + $0x268] sm:$0xff]
      %v3306 = vld [vmem:[%s663 + $0x270] sm:$0xff]
      %v3307 = vld [vmem:[%s663 + $0x278] sm:$0xff]
      %v3308 = vld [vmem:[%s663 + $0x280] sm:$0xff]
      %v3309 = vld [vmem:[%s663 + $0x288] sm:$0xff]
      %v3310 = vld [vmem:[%s663 + $0x290] sm:$0xff]
      %v3311 = vld [vmem:[%s663 + $0x298] sm:$0xff]
      %v3312 = vld [vmem:[%s663 + $0x2a0] sm:$0xff]
      %v3313 = vld [vmem:[%s663 + $0x2a8] sm:$0xff]
      %v3314 = vld [vmem:[%s663 + $0x2b0] sm:$0xff]
      %v3315 = vld [vmem:[%s663 + $0x2b8] sm:$0xff]
      %v3316 = vld [vmem:[%s663 + $0x2c0] sm:$0xff]
      %v3317 = vld [vmem:[%s663 + $0x2c8] sm:$0xff]
      %v3318 = vld [vmem:[%s663 + $0x2d0] sm:$0xff]
      %v3319 = vld [vmem:[%s663 + $0x2d8] sm:$0xff]
      %v3320 = vld [vmem:[%s663 + $0x2e0] sm:$0xff]
      %v3321 = vld [vmem:[%s663 + $0x2e8] sm:$0xff]
      %v3322 = vld [vmem:[%s663 + $0x2f0] sm:$0xff]
      %v3323 = vld [vmem:[%s663 + $0x2f8] sm:$0xff]
      %v3324 = vld [vmem:[%s663 + $0x300] sm:$0xff]
      %v3325 = vld [vmem:[%s663 + $0x308] sm:$0xff]
      %v3326 = vld [vmem:[%s663 + $0x310] sm:$0xff]
      %v3327 = vld [vmem:[%s663 + $0x318] sm:$0xff]
      %v3328 = vld [vmem:[%s663 + $0x320] sm:$0xff]
      %v3329 = vld [vmem:[%s663 + $0x328] sm:$0xff]
      %v3330 = vld [vmem:[%s663 + $0x330] sm:$0xff]
      %v3331 = vld [vmem:[%s663 + $0x338] sm:$0xff]
      %v3332 = vld [vmem:[%s663 + $0x340] sm:$0xff]
      %v3333 = vld [vmem:[%s663 + $0x348] sm:$0xff]
      %v3334 = vld [vmem:[%s663 + $0x350] sm:$0xff]
      %v3335 = vld [vmem:[%s663 + $0x358] sm:$0xff]
      %v3336 = vld [vmem:[%s663 + $0x360] sm:$0xff]
      %v3337 = vld [vmem:[%s663 + $0x368] sm:$0xff]
      %v3338 = vld [vmem:[%s663 + $0x370] sm:$0xff]
      %v3339 = vld [vmem:[%s663 + $0x378] sm:$0xff]
      %v3340 = vld [vmem:[%s663 + $0x380] sm:$0xff]
      %v3341 = vld [vmem:[%s663 + $0x388] sm:$0xff]
      %v3342 = vld [vmem:[%s663 + $0x390] sm:$0xff]
      %v3343 = vld [vmem:[%s663 + $0x398] sm:$0xff]
      %v3344 = vld [vmem:[%s663 + $0x3a0] sm:$0xff]
      %v3345 = vld [vmem:[%s663 + $0x3a8] sm:$0xff]
      %v3346 = vld [vmem:[%s663 + $0x3b0] sm:$0xff]
      %v3347 = vld [vmem:[%s663 + $0x3b8] sm:$0xff]
      %v3348 = vld [vmem:[%s663 + $0x3c0] sm:$0xff]
      %v3349 = vld [vmem:[%s663 + $0x3c8] sm:$0xff]
      %v3350 = vld [vmem:[%s663 + $0x3d0] sm:$0xff]
      %v3351 = vld [vmem:[%s663 + $0x3d8] sm:$0xff]
      %v3352 = vld [vmem:[%s663 + $0x3e0] sm:$0xff]
      %v3353 = vld [vmem:[%s663 + $0x3e8] sm:$0xff]
      %v3354 = vld [vmem:[%s663 + $0x3f0] sm:$0xff]
      %v3355 = vld [vmem:[%s663 + $0x3f8] sm:$0xff]
      %v3356 = vld [vmem:[%s16] sm:$0xff]
      %v3357 = vld [vmem:[%s16 + $0x8] sm:$0xff]
      %v3358 = vld [vmem:[%s16 + $0x10] sm:$0xff]
      %v3359 = vld [vmem:[%s16 + $0x18] sm:$0xff]
      %v3360 = vld [vmem:[%s16 + $0x20] sm:$0xff]
      %v3361 = vld [vmem:[%s16 + $0x28] sm:$0xff]
      %v3362 = vld [vmem:[%s16 + $0x30] sm:$0xff]
      %v3363 = vld [vmem:[%s16 + $0x38] sm:$0xff]
      %v3364 = vld [vmem:[%s16 + $0x40] sm:$0xff]
      %v3365 = vld [vmem:[%s16 + $0x48] sm:$0xff]
      %v3366 = vld [vmem:[%s16 + $0x50] sm:$0xff]
      %v3367 = vld [vmem:[%s16 + $0x58] sm:$0xff]
      %v3368 = vld [vmem:[%s16 + $0x60] sm:$0xff]
      %v3369 = vld [vmem:[%s16 + $0x68] sm:$0xff]
      %v3370 = vld [vmem:[%s16 + $0x70] sm:$0xff]
      %v3371 = vld [vmem:[%s16 + $0x78] sm:$0xff]
      %3373 = vset.pattern.permute.xlu0 0
      %3374 = vperm.xlu0 %3373, %v3356
      %v3375 = vpop.permute.xlu0 %3374
      %3378 = vset.pattern.permute.xlu0 0
      %3379 = vperm.xlu0 %3378, %v3357
      %v3380 = vpop.permute.xlu0 %3379
      %3383 = vset.pattern.permute.xlu0 0
      %3384 = vperm.xlu0 %3383, %v3358
      %v3385 = vpop.permute.xlu0 %3384
      %3388 = vset.pattern.permute.xlu0 0
      %3389 = vperm.xlu0 %3388, %v3359
      %v3390 = vpop.permute.xlu0 %3389
      %3393 = vset.pattern.permute.xlu0 0
      %3394 = vperm.xlu0 %3393, %v3360
      %v3395 = vpop.permute.xlu0 %3394
      %3398 = vset.pattern.permute.xlu0 0
      %3399 = vperm.xlu0 %3398, %v3361
      %v3400 = vpop.permute.xlu0 %3399
      %3403 = vset.pattern.permute.xlu0 0
      %3404 = vperm.xlu0 %3403, %v3362
      %v3405 = vpop.permute.xlu0 %3404
      %3408 = vset.pattern.permute.xlu0 0
      %3409 = vperm.xlu0 %3408, %v3363
      %v3410 = vpop.permute.xlu0 %3409
      %3413 = vset.pattern.permute.xlu0 0
      %3414 = vperm.xlu0 %3413, %v3364
      %v3415 = vpop.permute.xlu0 %3414
      %3418 = vset.pattern.permute.xlu0 0
      %3419 = vperm.xlu0 %3418, %v3365
      %v3420 = vpop.permute.xlu0 %3419
      %3423 = vset.pattern.permute.xlu0 0
      %3424 = vperm.xlu0 %3423, %v3366
      %v3425 = vpop.permute.xlu0 %3424
      %3428 = vset.pattern.permute.xlu0 0
      %3429 = vperm.xlu0 %3428, %v3367
      %v3430 = vpop.permute.xlu0 %3429
      %3433 = vset.pattern.permute.xlu0 0
      %3434 = vperm.xlu0 %3433, %v3368
      %v3435 = vpop.permute.xlu0 %3434
      %3438 = vset.pattern.permute.xlu0 0
      %3439 = vperm.xlu0 %3438, %v3369
      %v3440 = vpop.permute.xlu0 %3439
      %3443 = vset.pattern.permute.xlu0 0
      %3444 = vperm.xlu0 %3443, %v3370
      %v3445 = vpop.permute.xlu0 %3444
      %3448 = vset.pattern.permute.xlu0 0
      %3449 = vperm.xlu0 %3448, %v3371
      %v3450 = vpop.permute.xlu0 %3449
      %v3580 = vunpack.c.l.b16 %v3228
      %v3581 = vunpack.c.h.b16 %v3228
      %v3582 = vunpack.c.l.b16 %v3229
      %v3583 = vunpack.c.h.b16 %v3229
      %v3584 = vunpack.c.l.b16 %v3230
      %v3585 = vunpack.c.h.b16 %v3230
      %v3586 = vunpack.c.l.b16 %v3231
      %v3587 = vunpack.c.h.b16 %v3231
      %v3588 = vunpack.c.l.b16 %v3232
      %v3589 = vunpack.c.h.b16 %v3232
      %v3590 = vunpack.c.l.b16 %v3233
      %v3591 = vunpack.c.h.b16 %v3233
      %v3592 = vunpack.c.l.b16 %v3234
      %v3593 = vunpack.c.h.b16 %v3234
      %v3594 = vunpack.c.l.b16 %v3235
      %v3595 = vunpack.c.h.b16 %v3235
      %v3596 = vunpack.c.l.b16 %v3236
      %v3597 = vunpack.c.h.b16 %v3236
      %v3598 = vunpack.c.l.b16 %v3237
      %v3599 = vunpack.c.h.b16 %v3237
      %v3600 = vunpack.c.l.b16 %v3238
      %v3601 = vunpack.c.h.b16 %v3238
      %v3602 = vunpack.c.l.b16 %v3239
      %v3603 = vunpack.c.h.b16 %v3239
      %v3604 = vunpack.c.l.b16 %v3240
      %v3605 = vunpack.c.h.b16 %v3240
      %v3606 = vunpack.c.l.b16 %v3241
      %v3607 = vunpack.c.h.b16 %v3241
      %v3608 = vunpack.c.l.b16 %v3242
      %v3609 = vunpack.c.h.b16 %v3242
      %v3610 = vunpack.c.l.b16 %v3243
      %v3611 = vunpack.c.h.b16 %v3243
      %v3612 = vunpack.c.l.b16 %v3244
      %v3613 = vunpack.c.h.b16 %v3244
      %v3614 = vunpack.c.l.b16 %v3245
      %v3615 = vunpack.c.h.b16 %v3245
      %v3616 = vunpack.c.l.b16 %v3246
      %v3617 = vunpack.c.h.b16 %v3246
      %v3618 = vunpack.c.l.b16 %v3247
      %v3619 = vunpack.c.h.b16 %v3247
      %v3620 = vunpack.c.l.b16 %v3248
      %v3621 = vunpack.c.h.b16 %v3248
      %v3622 = vunpack.c.l.b16 %v3249
      %v3623 = vunpack.c.h.b16 %v3249
      %v3624 = vunpack.c.l.b16 %v3250
      %v3625 = vunpack.c.h.b16 %v3250
      %v3626 = vunpack.c.l.b16 %v3251
      %v3627 = vunpack.c.h.b16 %v3251
      %v3628 = vunpack.c.l.b16 %v3252
      %v3629 = vunpack.c.h.b16 %v3252
      %v3630 = vunpack.c.l.b16 %v3253
      %v3631 = vunpack.c.h.b16 %v3253
      %v3632 = vunpack.c.l.b16 %v3254
      %v3633 = vunpack.c.h.b16 %v3254
      %v3634 = vunpack.c.l.b16 %v3255
      %v3635 = vunpack.c.h.b16 %v3255
      %v3636 = vunpack.c.l.b16 %v3256
      %v3637 = vunpack.c.h.b16 %v3256
      %v3638 = vunpack.c.l.b16 %v3257
      %v3639 = vunpack.c.h.b16 %v3257
      %v3640 = vunpack.c.l.b16 %v3258
      %v3641 = vunpack.c.h.b16 %v3258
      %v3642 = vunpack.c.l.b16 %v3259
      %v3643 = vunpack.c.h.b16 %v3259
      %v3644 = vunpack.c.l.b16 %v3260
      %v3645 = vunpack.c.h.b16 %v3260
      %v3646 = vunpack.c.l.b16 %v3261
      %v3647 = vunpack.c.h.b16 %v3261
      %v3648 = vunpack.c.l.b16 %v3262
      %v3649 = vunpack.c.h.b16 %v3262
      %v3650 = vunpack.c.l.b16 %v3263
      %v3651 = vunpack.c.h.b16 %v3263
      %v3652 = vunpack.c.l.b16 %v3264
      %v3653 = vunpack.c.h.b16 %v3264
      %v3654 = vunpack.c.l.b16 %v3265
      %v3655 = vunpack.c.h.b16 %v3265
      %v3656 = vunpack.c.l.b16 %v3266
      %v3657 = vunpack.c.h.b16 %v3266
      %v3658 = vunpack.c.l.b16 %v3267
      %v3659 = vunpack.c.h.b16 %v3267
      %v3660 = vunpack.c.l.b16 %v3268
      %v3661 = vunpack.c.h.b16 %v3268
      %v3662 = vunpack.c.l.b16 %v3269
      %v3663 = vunpack.c.h.b16 %v3269
      %v3664 = vunpack.c.l.b16 %v3270
      %v3665 = vunpack.c.h.b16 %v3270
      %v3666 = vunpack.c.l.b16 %v3271
      %v3667 = vunpack.c.h.b16 %v3271
      %v3668 = vunpack.c.l.b16 %v3272
      %v3669 = vunpack.c.h.b16 %v3272
      %v3670 = vunpack.c.l.b16 %v3273
      %v3671 = vunpack.c.h.b16 %v3273
      %v3672 = vunpack.c.l.b16 %v3274
      %v3673 = vunpack.c.h.b16 %v3274
      %v3674 = vunpack.c.l.b16 %v3275
      %v3675 = vunpack.c.h.b16 %v3275
      %v3676 = vunpack.c.l.b16 %v3276
      %v3677 = vunpack.c.h.b16 %v3276
      %v3678 = vunpack.c.l.b16 %v3277
      %v3679 = vunpack.c.h.b16 %v3277
      %v3680 = vunpack.c.l.b16 %v3278
      %v3681 = vunpack.c.h.b16 %v3278
      %v3682 = vunpack.c.l.b16 %v3279
      %v3683 = vunpack.c.h.b16 %v3279
      %v3684 = vunpack.c.l.b16 %v3280
      %v3685 = vunpack.c.h.b16 %v3280
      %v3686 = vunpack.c.l.b16 %v3281
      %v3687 = vunpack.c.h.b16 %v3281
      %v3688 = vunpack.c.l.b16 %v3282
      %v3689 = vunpack.c.h.b16 %v3282
      %v3690 = vunpack.c.l.b16 %v3283
      %v3691 = vunpack.c.h.b16 %v3283
      %v3692 = vunpack.c.l.b16 %v3284
      %v3693 = vunpack.c.h.b16 %v3284
      %v3694 = vunpack.c.l.b16 %v3285
      %v3695 = vunpack.c.h.b16 %v3285
      %v3696 = vunpack.c.l.b16 %v3286
      %v3697 = vunpack.c.h.b16 %v3286
      %v3698 = vunpack.c.l.b16 %v3287
      %v3699 = vunpack.c.h.b16 %v3287
      %v3700 = vunpack.c.l.b16 %v3288
      %v3701 = vunpack.c.h.b16 %v3288
      %v3702 = vunpack.c.l.b16 %v3289
      %v3703 = vunpack.c.h.b16 %v3289
      %v3704 = vunpack.c.l.b16 %v3290
      %v3705 = vunpack.c.h.b16 %v3290
      %v3706 = vunpack.c.l.b16 %v3291
      %v3707 = vunpack.c.h.b16 %v3291
      %v3708 = vunpack.c.l.b16 %v3292
      %v3709 = vunpack.c.h.b16 %v3292
      %v3710 = vunpack.c.l.b16 %v3293
      %v3711 = vunpack.c.h.b16 %v3293
      %v3712 = vunpack.c.l.b16 %v3294
      %v3713 = vunpack.c.h.b16 %v3294
      %v3714 = vunpack.c.l.b16 %v3295
      %v3715 = vunpack.c.h.b16 %v3295
      %v3716 = vunpack.c.l.b16 %v3296
      %v3717 = vunpack.c.h.b16 %v3296
      %v3718 = vunpack.c.l.b16 %v3297
      %v3719 = vunpack.c.h.b16 %v3297
      %v3720 = vunpack.c.l.b16 %v3298
      %v3721 = vunpack.c.h.b16 %v3298
      %v3722 = vunpack.c.l.b16 %v3299
      %v3723 = vunpack.c.h.b16 %v3299
      %v3724 = vunpack.c.l.b16 %v3300
      %v3725 = vunpack.c.h.b16 %v3300
      %v3726 = vunpack.c.l.b16 %v3301
      %v3727 = vunpack.c.h.b16 %v3301
      %v3728 = vunpack.c.l.b16 %v3302
      %v3729 = vunpack.c.h.b16 %v3302
      %v3730 = vunpack.c.l.b16 %v3303
      %v3731 = vunpack.c.h.b16 %v3303
      %v3732 = vunpack.c.l.b16 %v3304
      %v3733 = vunpack.c.h.b16 %v3304
      %v3734 = vunpack.c.l.b16 %v3305
      %v3735 = vunpack.c.h.b16 %v3305
      %v3736 = vunpack.c.l.b16 %v3306
      %v3737 = vunpack.c.h.b16 %v3306
      %v3738 = vunpack.c.l.b16 %v3307
      %v3739 = vunpack.c.h.b16 %v3307
      %v3740 = vunpack.c.l.b16 %v3308
      %v3741 = vunpack.c.h.b16 %v3308
      %v3742 = vunpack.c.l.b16 %v3309
      %v3743 = vunpack.c.h.b16 %v3309
      %v3744 = vunpack.c.l.b16 %v3310
      %v3745 = vunpack.c.h.b16 %v3310
      %v3746 = vunpack.c.l.b16 %v3311
      %v3747 = vunpack.c.h.b16 %v3311
      %v3748 = vunpack.c.l.b16 %v3312
      %v3749 = vunpack.c.h.b16 %v3312
      %v3750 = vunpack.c.l.b16 %v3313
      %v3751 = vunpack.c.h.b16 %v3313
      %v3752 = vunpack.c.l.b16 %v3314
      %v3753 = vunpack.c.h.b16 %v3314
      %v3754 = vunpack.c.l.b16 %v3315
      %v3755 = vunpack.c.h.b16 %v3315
      %v3756 = vunpack.c.l.b16 %v3316
      %v3757 = vunpack.c.h.b16 %v3316
      %v3758 = vunpack.c.l.b16 %v3317
      %v3759 = vunpack.c.h.b16 %v3317
      %v3760 = vunpack.c.l.b16 %v3318
      %v3761 = vunpack.c.h.b16 %v3318
      %v3762 = vunpack.c.l.b16 %v3319
      %v3763 = vunpack.c.h.b16 %v3319
      %v3764 = vunpack.c.l.b16 %v3320
      %v3765 = vunpack.c.h.b16 %v3320
      %v3766 = vunpack.c.l.b16 %v3321
      %v3767 = vunpack.c.h.b16 %v3321
      %v3768 = vunpack.c.l.b16 %v3322
      %v3769 = vunpack.c.h.b16 %v3322
      %v3770 = vunpack.c.l.b16 %v3323
      %v3771 = vunpack.c.h.b16 %v3323
      %v3772 = vunpack.c.l.b16 %v3324
      %v3773 = vunpack.c.h.b16 %v3324
      %v3774 = vunpack.c.l.b16 %v3325
      %v3775 = vunpack.c.h.b16 %v3325
      %v3776 = vunpack.c.l.b16 %v3326
      %v3777 = vunpack.c.h.b16 %v3326
      %v3778 = vunpack.c.l.b16 %v3327
      %v3779 = vunpack.c.h.b16 %v3327
      %v3780 = vunpack.c.l.b16 %v3328
      %v3781 = vunpack.c.h.b16 %v3328
      %v3782 = vunpack.c.l.b16 %v3329
      %v3783 = vunpack.c.h.b16 %v3329
      %v3784 = vunpack.c.l.b16 %v3330
      %v3785 = vunpack.c.h.b16 %v3330
      %v3786 = vunpack.c.l.b16 %v3331
      %v3787 = vunpack.c.h.b16 %v3331
      %v3788 = vunpack.c.l.b16 %v3332
      %v3789 = vunpack.c.h.b16 %v3332
      %v3790 = vunpack.c.l.b16 %v3333
      %v3791 = vunpack.c.h.b16 %v3333
      %v3792 = vunpack.c.l.b16 %v3334
      %v3793 = vunpack.c.h.b16 %v3334
      %v3794 = vunpack.c.l.b16 %v3335
      %v3795 = vunpack.c.h.b16 %v3335
      %v3796 = vunpack.c.l.b16 %v3336
      %v3797 = vunpack.c.h.b16 %v3336
      %v3798 = vunpack.c.l.b16 %v3337
      %v3799 = vunpack.c.h.b16 %v3337
      %v3800 = vunpack.c.l.b16 %v3338
      %v3801 = vunpack.c.h.b16 %v3338
      %v3802 = vunpack.c.l.b16 %v3339
      %v3803 = vunpack.c.h.b16 %v3339
      %v3804 = vunpack.c.l.b16 %v3340
      %v3805 = vunpack.c.h.b16 %v3340
      %v3806 = vunpack.c.l.b16 %v3341
      %v3807 = vunpack.c.h.b16 %v3341
      %v3808 = vunpack.c.l.b16 %v3342
      %v3809 = vunpack.c.h.b16 %v3342
      %v3810 = vunpack.c.l.b16 %v3343
      %v3811 = vunpack.c.h.b16 %v3343
      %v3812 = vunpack.c.l.b16 %v3344
      %v3813 = vunpack.c.h.b16 %v3344
      %v3814 = vunpack.c.l.b16 %v3345
      %v3815 = vunpack.c.h.b16 %v3345
      %v3816 = vunpack.c.l.b16 %v3346
      %v3817 = vunpack.c.h.b16 %v3346
      %v3818 = vunpack.c.l.b16 %v3347
      %v3819 = vunpack.c.h.b16 %v3347
      %v3820 = vunpack.c.l.b16 %v3348
      %v3821 = vunpack.c.h.b16 %v3348
      %v3822 = vunpack.c.l.b16 %v3349
      %v3823 = vunpack.c.h.b16 %v3349
      %v3824 = vunpack.c.l.b16 %v3350
      %v3825 = vunpack.c.h.b16 %v3350
      %v3826 = vunpack.c.l.b16 %v3351
      %v3827 = vunpack.c.h.b16 %v3351
      %v3828 = vunpack.c.l.b16 %v3352
      %v3829 = vunpack.c.h.b16 %v3352
      %v3830 = vunpack.c.l.b16 %v3353
      %v3831 = vunpack.c.h.b16 %v3353
      %v3832 = vunpack.c.l.b16 %v3354
      %v3833 = vunpack.c.h.b16 %v3354
      %v3834 = vunpack.c.l.b16 %v3355
      %v3835 = vunpack.c.h.b16 %v3355
      %v3836 = vpack.c.b16 %v3612, %v3580
      %v3837 = vpack.c.b16 %v3613, %v3581
      %v3838 = vpack.c.b16 %v3614, %v3582
      %v3839 = vpack.c.b16 %v3615, %v3583
      %v3840 = vpack.c.b16 %v3616, %v3584
      %v3841 = vpack.c.b16 %v3617, %v3585
      %v3842 = vpack.c.b16 %v3618, %v3586
      %v3843 = vpack.c.b16 %v3619, %v3587
      %v3844 = vpack.c.b16 %v3620, %v3588
      %v3845 = vpack.c.b16 %v3621, %v3589
      %v3846 = vpack.c.b16 %v3622, %v3590
      %v3847 = vpack.c.b16 %v3623, %v3591
      %v3848 = vpack.c.b16 %v3624, %v3592
      %v3849 = vpack.c.b16 %v3625, %v3593
      %v3850 = vpack.c.b16 %v3626, %v3594
      %v3851 = vpack.c.b16 %v3627, %v3595
      %v3852 = vpack.c.b16 %v3628, %v3596
      %v3853 = vpack.c.b16 %v3629, %v3597
      %v3854 = vpack.c.b16 %v3630, %v3598
      %v3855 = vpack.c.b16 %v3631, %v3599
      %v3856 = vpack.c.b16 %v3632, %v3600
      %v3857 = vpack.c.b16 %v3633, %v3601
      %v3858 = vpack.c.b16 %v3634, %v3602
      %v3859 = vpack.c.b16 %v3635, %v3603
      %v3860 = vpack.c.b16 %v3636, %v3604
      %v3861 = vpack.c.b16 %v3637, %v3605
      %v3862 = vpack.c.b16 %v3638, %v3606
      %v3863 = vpack.c.b16 %v3639, %v3607
      %v3864 = vpack.c.b16 %v3640, %v3608
      %v3865 = vpack.c.b16 %v3641, %v3609
      %v3866 = vpack.c.b16 %v3642, %v3610
      %v3867 = vpack.c.b16 %v3643, %v3611
      %v3868 = vpack.c.b16 %v3676, %v3644
      %v3869 = vpack.c.b16 %v3677, %v3645
      %v3870 = vpack.c.b16 %v3678, %v3646
      %v3871 = vpack.c.b16 %v3679, %v3647
      %v3872 = vpack.c.b16 %v3680, %v3648
      %v3873 = vpack.c.b16 %v3681, %v3649
      %v3874 = vpack.c.b16 %v3682, %v3650
      %v3875 = vpack.c.b16 %v3683, %v3651
      %v3876 = vpack.c.b16 %v3684, %v3652
      %v3877 = vpack.c.b16 %v3685, %v3653
      %v3878 = vpack.c.b16 %v3686, %v3654
      %v3879 = vpack.c.b16 %v3687, %v3655
      %v3880 = vpack.c.b16 %v3688, %v3656
      %v3881 = vpack.c.b16 %v3689, %v3657
      %v3882 = vpack.c.b16 %v3690, %v3658
      %v3883 = vpack.c.b16 %v3691, %v3659
      %v3884 = vpack.c.b16 %v3692, %v3660
      %v3885 = vpack.c.b16 %v3693, %v3661
      %v3886 = vpack.c.b16 %v3694, %v3662
      %v3887 = vpack.c.b16 %v3695, %v3663
      %v3888 = vpack.c.b16 %v3696, %v3664
      %v3889 = vpack.c.b16 %v3697, %v3665
      %v3890 = vpack.c.b16 %v3698, %v3666
      %v3891 = vpack.c.b16 %v3699, %v3667
      %v3892 = vpack.c.b16 %v3700, %v3668
      %v3893 = vpack.c.b16 %v3701, %v3669
      %v3894 = vpack.c.b16 %v3702, %v3670
      %v3895 = vpack.c.b16 %v3703, %v3671
      %v3896 = vpack.c.b16 %v3704, %v3672
      %v3897 = vpack.c.b16 %v3705, %v3673
      %v3898 = vpack.c.b16 %v3706, %v3674
      %v3899 = vpack.c.b16 %v3707, %v3675
      %v3900 = vpack.c.b16 %v3740, %v3708
      %v3901 = vpack.c.b16 %v3741, %v3709
      %v3902 = vpack.c.b16 %v3742, %v3710
      %v3903 = vpack.c.b16 %v3743, %v3711
      %v3904 = vpack.c.b16 %v3744, %v3712
      %v3905 = vpack.c.b16 %v3745, %v3713
      %v3906 = vpack.c.b16 %v3746, %v3714
      %v3907 = vpack.c.b16 %v3747, %v3715
      %v3908 = vpack.c.b16 %v3748, %v3716
      %v3909 = vpack.c.b16 %v3749, %v3717
      %v3910 = vpack.c.b16 %v3750, %v3718
      %v3911 = vpack.c.b16 %v3751, %v3719
      %v3912 = vpack.c.b16 %v3752, %v3720
      %v3913 = vpack.c.b16 %v3753, %v3721
      %v3914 = vpack.c.b16 %v3754, %v3722
      %v3915 = vpack.c.b16 %v3755, %v3723
      %v3916 = vpack.c.b16 %v3756, %v3724
      %v3917 = vpack.c.b16 %v3757, %v3725
      %v3918 = vpack.c.b16 %v3758, %v3726
      %v3919 = vpack.c.b16 %v3759, %v3727
      %v3920 = vpack.c.b16 %v3760, %v3728
      %v3921 = vpack.c.b16 %v3761, %v3729
      %v3922 = vpack.c.b16 %v3762, %v3730
      %v3923 = vpack.c.b16 %v3763, %v3731
      %v3924 = vpack.c.b16 %v3764, %v3732
      %v3925 = vpack.c.b16 %v3765, %v3733
      %v3926 = vpack.c.b16 %v3766, %v3734
      %v3927 = vpack.c.b16 %v3767, %v3735
      %v3928 = vpack.c.b16 %v3768, %v3736
      %v3929 = vpack.c.b16 %v3769, %v3737
      %v3930 = vpack.c.b16 %v3770, %v3738
      %v3931 = vpack.c.b16 %v3771, %v3739
      %v3932 = vpack.c.b16 %v3804, %v3772
      %v3933 = vpack.c.b16 %v3805, %v3773
      %v3934 = vpack.c.b16 %v3806, %v3774
      %v3935 = vpack.c.b16 %v3807, %v3775
      %v3936 = vpack.c.b16 %v3808, %v3776
      %v3937 = vpack.c.b16 %v3809, %v3777
      %v3938 = vpack.c.b16 %v3810, %v3778
      %v3939 = vpack.c.b16 %v3811, %v3779
      %v3940 = vpack.c.b16 %v3812, %v3780
      %v3941 = vpack.c.b16 %v3813, %v3781
      %v3942 = vpack.c.b16 %v3814, %v3782
      %v3943 = vpack.c.b16 %v3815, %v3783
      %v3944 = vpack.c.b16 %v3816, %v3784
      %v3945 = vpack.c.b16 %v3817, %v3785
      %v3946 = vpack.c.b16 %v3818, %v3786
      %v3947 = vpack.c.b16 %v3819, %v3787
      %v3948 = vpack.c.b16 %v3820, %v3788
      %v3949 = vpack.c.b16 %v3821, %v3789
      %v3950 = vpack.c.b16 %v3822, %v3790
      %v3951 = vpack.c.b16 %v3823, %v3791
      %v3952 = vpack.c.b16 %v3824, %v3792
      %v3953 = vpack.c.b16 %v3825, %v3793
      %v3954 = vpack.c.b16 %v3826, %v3794
      %v3955 = vpack.c.b16 %v3827, %v3795
      %v3956 = vpack.c.b16 %v3828, %v3796
      %v3957 = vpack.c.b16 %v3829, %v3797
      %v3958 = vpack.c.b16 %v3830, %v3798
      %v3959 = vpack.c.b16 %v3831, %v3799
      %v3960 = vpack.c.b16 %v3832, %v3800
      %v3961 = vpack.c.b16 %v3833, %v3801
      %v3962 = vpack.c.b16 %v3834, %v3802
      %v3963 = vpack.c.b16 %v3835, %v3803
      %v4093 = vsel %vm1095, %v3220, 0
      %v4096 = vsel %vm1095, %v3221, 0
      %v4099 = vsel %vm1095, %v3222, 0
      %v4102 = vsel %vm1095, %v3223, 0
      %v4105 = vsel %vm1095, %v3224, 0
      %v4108 = vsel %vm1095, %v3225, 0
      %v4111 = vsel %vm1095, %v3226, 0
      %v4114 = vsel %vm1095, %v3227, 0
      %4116 = vmatprep.subr.bf16.mxu0 %v3837
      %4117 = vmatpush1.bf16.msra.mxu0 %v3836
      %4118 = vmatprep.subr.bf16.mxu0 %v3869
      %4119 = vmatpush1.bf16.msra.mxu0 %v3868
      %4120 = vmatprep.subr.bf16.mxu0 %v3901
      %4121 = vmatpush1.bf16.msra.mxu0 %v3900
      %4122 = vmatprep.subr.bf16.mxu0 %v3933
      %4123 = vmatpush1.bf16.msra.mxu0 %v3932
      %4124 = vmatprep.subr.bf16.mxu0 0
      %4125 = vmatpush1.bf16.msra.mxu0 0
      %4126 = vmatprep.subr.bf16.mxu0 0
      %4127 = vmatpush1.bf16.msra.mxu0 0
      %4128 = vmatprep.subr.bf16.mxu0 0
      %4129 = vmatpush1.bf16.msra.mxu0 0
      %4130 = vmatprep.subr.bf16.mxu0 0
      %4131 = vmatpush1.bf16.msra.mxu0 0
      %4132 = vmatprep.subr.bf16.mxu0 0
      %4133 = vmatpush1.bf16.msra.mxu0 0
      %4134 = vmatprep.subr.bf16.mxu0 0
      %4135 = vmatpush1.bf16.msra.mxu0 0
      %4136 = vmatprep.subr.bf16.mxu0 0
      %4137 = vmatpush1.bf16.msra.mxu0 0
      %4138 = vmatprep.subr.bf16.mxu0 0
      %4139 = vmatpush1.bf16.msra.mxu0 0
      %4140 = vmatprep.subr.bf16.mxu0 0
      %4141 = vmatpush1.bf16.msra.mxu0 0
      %4142 = vmatprep.subr.bf16.mxu0 0
      %4143 = vmatpush1.bf16.msra.mxu0 0
      %4144 = vmatprep.subr.bf16.mxu0 0
      %4145 = vmatpush1.bf16.msra.mxu0 0
      %4146 = vmatprep.subr.bf16.mxu0 0
      %4147 = vmatpush1.bf16.msra.mxu0 0
      %4148 = vmatprep.mubr.bf16.mxu0 0
      %4149 = vmatmul.mubr.bf16.gmra.mrb[0].mxu0 %v4093
      %v4150 = vpop.f32.mrb[0].mxu0
      %v4151 = vadd.f32 %v3375, %v4150
      %v4152 = vpop.f32.mrb[0].mxu0
      %v4153 = vadd.f32 %v3375, %v4152
      %v4154 = vpop.f32.mrb[0].mxu0
      %v4155 = vadd.f32 %v3380, %v4154
      %v4156 = vpop.f32.mrb[0].mxu0
      %v4157 = vadd.f32 %v3380, %v4156
      %4158 = vmatprep.mubr.bf16.mxu0 0
      %4159 = vmatmul.mubr.bf16.gmra.mrb[0].mxu0 %v4096
      %v4160 = vpop.f32.mrb[0].mxu0
      %v4161 = vadd.f32 %v3385, %v4160
      %v4162 = vpop.f32.mrb[0].mxu0
      %v4163 = vadd.f32 %v3385, %v4162
      %v4164 = vpop.f32.mrb[0].mxu0
      %v4165 = vadd.f32 %v3390, %v4164
      %v4166 = vpop.f32.mrb[0].mxu0
      %v4167 = vadd.f32 %v3390, %v4166
      %4168 = vmatprep.mubr.bf16.mxu0 0
      %4169 = vmatmul.mubr.bf16.gmra.mrb[0].mxu0 %v4099
      %v4170 = vpop.f32.mrb[0].mxu0
      %v4171 = vadd.f32 %v3395, %v4170
      %v4172 = vpop.f32.mrb[0].mxu0
      %v4173 = vadd.f32 %v3395, %v4172
      %v4174 = vpop.f32.mrb[0].mxu0
      %v4175 = vadd.f32 %v3400, %v4174
      %v4176 = vpop.f32.mrb[0].mxu0
      %v4177 = vadd.f32 %v3400, %v4176
      %4178 = vmatprep.mubr.bf16.mxu0 0
      %4179 = vmatmul.mubr.bf16.gmra.mrb[0].mxu0 %v4102
      %v4180 = vpop.f32.mrb[0].mxu0
      %v4181 = vadd.f32 %v3405, %v4180
      %v4182 = vpop.f32.mrb[0].mxu0
      %v4183 = vadd.f32 %v3405, %v4182
      %v4184 = vpop.f32.mrb[0].mxu0
      %v4185 = vadd.f32 %v3410, %v4184
      %v4186 = vpop.f32.mrb[0].mxu0
      %v4187 = vadd.f32 %v3410, %v4186
      %4188 = vmatprep.mubr.bf16.mxu0 0
      %4189 = vmatmul.mubr.bf16.gmra.mrb[0].mxu0 %v4105
      %v4190 = vpop.f32.mrb[0].mxu0
      %v4191 = vadd.f32 %v3415, %v4190
      %v4192 = vpop.f32.mrb[0].mxu0
      %v4193 = vadd.f32 %v3415, %v4192
      %v4194 = vpop.f32.mrb[0].mxu0
      %v4195 = vadd.f32 %v3420, %v4194
      %v4196 = vpop.f32.mrb[0].mxu0
      %v4197 = vadd.f32 %v3420, %v4196
      %4198 = vmatprep.mubr.bf16.mxu0 0
      %4199 = vmatmul.mubr.bf16.gmra.mrb[0].mxu0 %v4108
      %v4200 = vpop.f32.mrb[0].mxu0
      %v4201 = vadd.f32 %v3425, %v4200
      %v4202 = vpop.f32.mrb[0].mxu0
      %v4203 = vadd.f32 %v3425, %v4202
      %v4204 = vpop.f32.mrb[0].mxu0
      %v4205 = vadd.f32 %v3430, %v4204
      %v4206 = vpop.f32.mrb[0].mxu0
      %v4207 = vadd.f32 %v3430, %v4206
      %4208 = vmatprep.mubr.bf16.mxu0 0
      %4209 = vmatmul.mubr.bf16.gmra.mrb[0].mxu0 %v4111
      %v4210 = vpop.f32.mrb[0].mxu0
      %v4211 = vadd.f32 %v3435, %v4210
      %v4212 = vpop.f32.mrb[0].mxu0
      %v4213 = vadd.f32 %v3435, %v4212
      %v4214 = vpop.f32.mrb[0].mxu0
      %v4215 = vadd.f32 %v3440, %v4214
      %v4216 = vpop.f32.mrb[0].mxu0
      %v4217 = vadd.f32 %v3440, %v4216
      %4218 = vmatprep.mubr.bf16.mxu0 0
      %4219 = vmatmul.mubr.bf16.gmra.mrb[0].mxu0 %v4114
      %v4220 = vpop.f32.mrb[0].mxu0
      %v4221 = vadd.f32 %v3445, %v4220
      %v4222 = vpop.f32.mrb[0].mxu0
      %v4223 = vadd.f32 %v3445, %v4222
      %v4224 = vpop.f32.mrb[0].mxu0
      %v4225 = vadd.f32 %v3450, %v4224
      %v4226 = vpop.f32.mrb[0].mxu0
      %v4227 = vadd.f32 %v3450, %v4226
      %4228 = vdwg.mxu0
      %4229 = vmatprep.subr.bf16.mxu0 %v3839
      %4230 = vmatpush1.bf16.msra.mxu0 %v3838
      %4231 = vmatprep.subr.bf16.mxu0 %v3871
      %4232 = vmatpush1.bf16.msra.mxu0 %v3870
      %4233 = vmatprep.subr.bf16.mxu0 %v3903
      %4234 = vmatpush1.bf16.msra.mxu0 %v3902
      %4235 = vmatprep.subr.bf16.mxu0 %v3935
      %4236 = vmatpush1.bf16.msra.mxu0 %v3934
      %4237 = vmatprep.subr.bf16.mxu0 0
      %4238 = vmatpush1.bf16.msra.mxu0 0
      %4239 = vmatprep.subr.bf16.mxu0 0
      %4240 = vmatpush1.bf16.msra.mxu0 0
      %4241 = vmatprep.subr.bf16.mxu0 0
      %4242 = vmatpush1.bf16.msra.mxu0 0
      %4243 = vmatprep.subr.bf16.mxu0 0
      %4244 = vmatpush1.bf16.msra.mxu0 0
      %4245 = vmatprep.subr.bf16.mxu0 0
      %4246 = vmatpush1.bf16.msra.mxu0 0
      %4247 = vmatprep.subr.bf16.mxu0 0
      %4248 = vmatpush1.bf16.msra.mxu0 0
      %4249 = vmatprep.subr.bf16.mxu0 0
      %4250 = vmatpush1.bf16.msra.mxu0 0
      %4251 = vmatprep.subr.bf16.mxu0 0
      %4252 = vmatpush1.bf16.msra.mxu0 0
      %4253 = vmatprep.subr.bf16.mxu0 0
      %4254 = vmatpush1.bf16.msra.mxu0 0
      %4255 = vmatprep.subr.bf16.mxu0 0
      %4256 = vmatpush1.bf16.msra.mxu0 0
      %4257 = vmatprep.subr.bf16.mxu0 0
      %4258 = vmatpush1.bf16.msra.mxu0 0
      %4259 = vmatprep.subr.bf16.mxu0 0
      %4260 = vmatpush1.bf16.msra.mxu0 0
      %4261 = vmatprep.mubr.bf16.mxu0 0
      %4262 = vmatmul.mubr.bf16.gmra.mrb[0].mxu0 %v4093
      %v4263 = vpop.f32.mrb[0].mxu0
      %v4264 = vadd.f32 %v3375, %v4263
      %v4265 = vpop.f32.mrb[0].mxu0
      %v4266 = vadd.f32 %v3375, %v4265
      %v4267 = vpop.f32.mrb[0].mxu0
      %v4268 = vadd.f32 %v3380, %v4267
      %v4269 = vpop.f32.mrb[0].mxu0
      %v4270 = vadd.f32 %v3380, %v4269
      %4271 = vmatprep.mubr.bf16.mxu0 0
      %4272 = vmatmul.mubr.bf16.gmra.mrb[0].mxu0 %v4096
      %v4273 = vpop.f32.mrb[0].mxu0
      %v4274 = vadd.f32 %v3385, %v4273
      %v4275 = vpop.f32.mrb[0].mxu0
      %v4276 = vadd.f32 %v3385, %v4275
      %v4277 = vpop.f32.mrb[0].mxu0
      %v4278 = vadd.f32 %v3390, %v4277
      %v4279 = vpop.f32.mrb[0].mxu0
      %v4280 = vadd.f32 %v3390, %v4279
      %4281 = vmatprep.mubr.bf16.mxu0 0
      %4282 = vmatmul.mubr.bf16.gmra.mrb[0].mxu0 %v4099
      %v4283 = vpop.f32.mrb[0].mxu0
      %v4284 = vadd.f32 %v3395, %v4283
      %v4285 = vpop.f32.mrb[0].mxu0
      %v4286 = vadd.f32 %v3395, %v4285
      %v4287 = vpop.f32.mrb[0].mxu0
      %v4288 = vadd.f32 %v3400, %v4287
      %v4289 = vpop.f32.mrb[0].mxu0
      %v4290 = vadd.f32 %v3400, %v4289
      %4291 = vmatprep.mubr.bf16.mxu0 0
      %4292 = vmatmul.mubr.bf16.gmra.mrb[0].mxu0 %v4102
      %v4293 = vpop.f32.mrb[0].mxu0
      %v4294 = vadd.f32 %v3405, %v4293
      %v4295 = vpop.f32.mrb[0].mxu0
      %v4296 = vadd.f32 %v3405, %v4295
      %v4297 = vpop.f32.mrb[0].mxu0
      %v4298 = vadd.f32 %v3410, %v4297
      %v4299 = vpop.f32.mrb[0].mxu0
      %v4300 = vadd.f32 %v3410, %v4299
      %4301 = vmatprep.mubr.bf16.mxu0 0
      %4302 = vmatmul.mubr.bf16.gmra.mrb[0].mxu0 %v4105
      %v4303 = vpop.f32.mrb[0].mxu0
      %v4304 = vadd.f32 %v3415, %v4303
      %v4305 = vpop.f32.mrb[0].mxu0
      %v4306 = vadd.f32 %v3415, %v4305
      %v4307 = vpop.f32.mrb[0].mxu0
      %v4308 = vadd.f32 %v3420, %v4307
      %v4309 = vpop.f32.mrb[0].mxu0
      %v4310 = vadd.f32 %v3420, %v4309
      %4311 = vmatprep.mubr.bf16.mxu0 0
      %4312 = vmatmul.mubr.bf16.gmra.mrb[0].mxu0 %v4108
      %v4313 = vpop.f32.mrb[0].mxu0
      %v4314 = vadd.f32 %v3425, %v4313
      %v4315 = vpop.f32.mrb[0].mxu0
      %v4316 = vadd.f32 %v3425, %v4315
      %v4317 = vpop.f32.mrb[0].mxu0
      %v4318 = vadd.f32 %v3430, %v4317
      %v4319 = vpop.f32.mrb[0].mxu0
      %v4320 = vadd.f32 %v3430, %v4319
      %4321 = vmatprep.mubr.bf16.mxu0 0
      %4322 = vmatmul.mubr.bf16.gmra.mrb[0].mxu0 %v4111
      %v4323 = vpop.f32.mrb[0].mxu0
      %v4324 = vadd.f32 %v3435, %v4323
      %v4325 = vpop.f32.mrb[0].mxu0
      %v4326 = vadd.f32 %v3435, %v4325
      %v4327 = vpop.f32.mrb[0].mxu0
      %v4328 = vadd.f32 %v3440, %v4327
      %v4329 = vpop.f32.mrb[0].mxu0
      %v4330 = vadd.f32 %v3440, %v4329
      %4331 = vmatprep.mubr.bf16.mxu0 0
      %4332 = vmatmul.mubr.bf16.gmra.mrb[0].mxu0 %v4114
      %v4333 = vpop.f32.mrb[0].mxu0
      %v4334 = vadd.f32 %v3445, %v4333
      %v4335 = vpop.f32.mrb[0].mxu0
      %v4336 = vadd.f32 %v3445, %v4335
      %v4337 = vpop.f32.mrb[0].mxu0
      %v4338 = vadd.f32 %v3450, %v4337
      %v4339 = vpop.f32.mrb[0].mxu0
      %v4340 = vadd.f32 %v3450, %v4339
      %4341 = vdwg.mxu0
      %4342 = vmatprep.subr.bf16.mxu0 %v3841
      %4343 = vmatpush1.bf16.msra.mxu0 %v3840
      %4344 = vmatprep.subr.bf16.mxu0 %v3873
      %4345 = vmatpush1.bf16.msra.mxu0 %v3872
      %4346 = vmatprep.subr.bf16.mxu0 %v3905
      %4347 = vmatpush1.bf16.msra.mxu0 %v3904
      %4348 = vmatprep.subr.bf16.mxu0 %v3937
      %4349 = vmatpush1.bf16.msra.mxu0 %v3936
      %4350 = vmatprep.subr.bf16.mxu0 0
      %4351 = vmatpush1.bf16.msra.mxu0 0
      %4352 = vmatprep.subr.bf16.mxu0 0
      %4353 = vmatpush1.bf16.msra.mxu0 0
      %4354 = vmatprep.subr.bf16.mxu0 0
      %4355 = vmatpush1.bf16.msra.mxu0 0
      %4356 = vmatprep.subr.bf16.mxu0 0
      %4357 = vmatpush1.bf16.msra.mxu0 0
      %4358 = vmatprep.subr.bf16.mxu0 0
      %4359 = vmatpush1.bf16.msra.mxu0 0
      %4360 = vmatprep.subr.bf16.mxu0 0
      %4361 = vmatpush1.bf16.msra.mxu0 0
      %4362 = vmatprep.subr.bf16.mxu0 0
      %4363 = vmatpush1.bf16.msra.mxu0 0
      %4364 = vmatprep.subr.bf16.mxu0 0
      %4365 = vmatpush1.bf16.msra.mxu0 0
      %4366 = vmatprep.subr.bf16.mxu0 0
      %4367 = vmatpush1.bf16.msra.mxu0 0
      %4368 = vmatprep.subr.bf16.mxu0 0
      %4369 = vmatpush1.bf16.msra.mxu0 0
      %4370 = vmatprep.subr.bf16.mxu0 0
      %4371 = vmatpush1.bf16.msra.mxu0 0
      %4372 = vmatprep.subr.bf16.mxu0 0
      %4373 = vmatpush1.bf16.msra.mxu0 0
      %4374 = vmatprep.mubr.bf16.mxu0 0
      %4375 = vmatmul.mubr.bf16.gmra.mrb[0].mxu0 %v4093
      %v4376 = vpop.f32.mrb[0].mxu0
      %v4377 = vadd.f32 %v3375, %v4376
      %v4378 = vpop.f32.mrb[0].mxu0
      %v4379 = vadd.f32 %v3375, %v4378
      %v4380 = vpop.f32.mrb[0].mxu0
      %v4381 = vadd.f32 %v3380, %v4380
      %v4382 = vpop.f32.mrb[0].mxu0
      %v4383 = vadd.f32 %v3380, %v4382
      %4384 = vmatprep.mubr.bf16.mxu0 0
      %4385 = vmatmul.mubr.bf16.gmra.mrb[0].mxu0 %v4096
      %v4386 = vpop.f32.mrb[0].mxu0
      %v4387 = vadd.f32 %v3385, %v4386
      %v4388 = vpop.f32.mrb[0].mxu0
      %v4389 = vadd.f32 %v3385, %v4388
      %v4390 = vpop.f32.mrb[0].mxu0
      %v4391 = vadd.f32 %v3390, %v4390
      %v4392 = vpop.f32.mrb[0].mxu0
      %v4393 = vadd.f32 %v3390, %v4392
      %4394 = vmatprep.mubr.bf16.mxu0 0
      %4395 = vmatmul.mubr.bf16.gmra.mrb[0].mxu0 %v4099
      %v4396 = vpop.f32.mrb[0].mxu0
      %v4397 = vadd.f32 %v3395, %v4396
      %v4398 = vpop.f32.mrb[0].mxu0
      %v4399 = vadd.f32 %v3395, %v4398
      %v4400 = vpop.f32.mrb[0].mxu0
      %v4401 = vadd.f32 %v3400, %v4400
      %v4402 = vpop.f32.mrb[0].mxu0
      %v4403 = vadd.f32 %v3400, %v4402
      %4404 = vmatprep.mubr.bf16.mxu0 0
      %4405 = vmatmul.mubr.bf16.gmra.mrb[0].mxu0 %v4102
      %v4406 = vpop.f32.mrb[0].mxu0
      %v4407 = vadd.f32 %v3405, %v4406
      %v4408 = vpop.f32.mrb[0].mxu0
      %v4409 = vadd.f32 %v3405, %v4408
      %v4410 = vpop.f32.mrb[0].mxu0
      %v4411 = vadd.f32 %v3410, %v4410
      %v4412 = vpop.f32.mrb[0].mxu0
      %v4413 = vadd.f32 %v3410, %v4412
      %4414 = vmatprep.mubr.bf16.mxu0 0
      %4415 = vmatmul.mubr.bf16.gmra.mrb[0].mxu0 %v4105
      %v4416 = vpop.f32.mrb[0].mxu0
      %v4417 = vadd.f32 %v3415, %v4416
      %v4418 = vpop.f32.mrb[0].mxu0
      %v4419 = vadd.f32 %v3415, %v4418
      %v4420 = vpop.f32.mrb[0].mxu0
      %v4421 = vadd.f32 %v3420, %v4420
      %v4422 = vpop.f32.mrb[0].mxu0
      %v4423 = vadd.f32 %v3420, %v4422
      %4424 = vmatprep.mubr.bf16.mxu0 0
      %4425 = vmatmul.mubr.bf16.gmra.mrb[0].mxu0 %v4108
      %v4426 = vpop.f32.mrb[0].mxu0
      %v4427 = vadd.f32 %v3425, %v4426
      %v4428 = vpop.f32.mrb[0].mxu0
      %v4429 = vadd.f32 %v3425, %v4428
      %v4430 = vpop.f32.mrb[0].mxu0
      %v4431 = vadd.f32 %v3430, %v4430
      %v4432 = vpop.f32.mrb[0].mxu0
      %v4433 = vadd.f32 %v3430, %v4432
      %4434 = vmatprep.mubr.bf16.mxu0 0
      %4435 = vmatmul.mubr.bf16.gmra.mrb[0].mxu0 %v4111
      %v4436 = vpop.f32.mrb[0].mxu0
      %v4437 = vadd.f32 %v3435, %v4436
      %v4438 = vpop.f32.mrb[0].mxu0
      %v4439 = vadd.f32 %v3435, %v4438
      %v4440 = vpop.f32.mrb[0].mxu0
      %v4441 = vadd.f32 %v3440, %v4440
      %v4442 = vpop.f32.mrb[0].mxu0
      %v4443 = vadd.f32 %v3440, %v4442
      %4444 = vmatprep.mubr.bf16.mxu0 0
      %4445 = vmatmul.mubr.bf16.gmra.mrb[0].mxu0 %v4114
      %v4446 = vpop.f32.mrb[0].mxu0
      %v4447 = vadd.f32 %v3445, %v4446
      %v4448 = vpop.f32.mrb[0].mxu0
      %v4449 = vadd.f32 %v3445, %v4448
      %v4450 = vpop.f32.mrb[0].mxu0
      %v4451 = vadd.f32 %v3450, %v4450
      %v4452 = vpop.f32.mrb[0].mxu0
      %v4453 = vadd.f32 %v3450, %v4452
      %4454 = vdwg.mxu0
      %4455 = vmatprep.subr.bf16.mxu0 %v3843
      %4456 = vmatpush1.bf16.msra.mxu0 %v3842
      %4457 = vmatprep.subr.bf16.mxu0 %v3875
      %4458 = vmatpush1.bf16.msra.mxu0 %v3874
      %4459 = vmatprep.subr.bf16.mxu0 %v3907
      %4460 = vmatpush1.bf16.msra.mxu0 %v3906
      %4461 = vmatprep.subr.bf16.mxu0 %v3939
      %4462 = vmatpush1.bf16.msra.mxu0 %v3938
      %4463 = vmatprep.subr.bf16.mxu0 0
      %4464 = vmatpush1.bf16.msra.mxu0 0
      %4465 = vmatprep.subr.bf16.mxu0 0
      %4466 = vmatpush1.bf16.msra.mxu0 0
      %4467 = vmatprep.subr.bf16.mxu0 0
      %4468 = vmatpush1.bf16.msra.mxu0 0
      %4469 = vmatprep.subr.bf16.mxu0 0
      %4470 = vmatpush1.bf16.msra.mxu0 0
      %4471 = vmatprep.subr.bf16.mxu0 0
      %4472 = vmatpush1.bf16.msra.mxu0 0
      %4473 = vmatprep.subr.bf16.mxu0 0
      %4474 = vmatpush1.bf16.msra.mxu0 0
      %4475 = vmatprep.subr.bf16.mxu0 0
      %4476 = vmatpush1.bf16.msra.mxu0 0
      %4477 = vmatprep.subr.bf16.mxu0 0
      %4478 = vmatpush1.bf16.msra.mxu0 0
      %4479 = vmatprep.subr.bf16.mxu0 0
      %4480 = vmatpush1.bf16.msra.mxu0 0
      %4481 = vmatprep.subr.bf16.mxu0 0
      %4482 = vmatpush1.bf16.msra.mxu0 0
      %4483 = vmatprep.subr.bf16.mxu0 0
      %4484 = vmatpush1.bf16.msra.mxu0 0
      %4485 = vmatprep.subr.bf16.mxu0 0
      %4486 = vmatpush1.bf16.msra.mxu0 0
      %4487 = vmatprep.mubr.bf16.mxu0 0
      %4488 = vmatmul.mubr.bf16.gmra.mrb[0].mxu0 %v4093
      %v4489 = vpop.f32.mrb[0].mxu0
      %v4490 = vadd.f32 %v3375, %v4489
      %v4491 = vpop.f32.mrb[0].mxu0
      %v4492 = vadd.f32 %v3375, %v4491
      %v4493 = vpop.f32.mrb[0].mxu0
      %v4494 = vadd.f32 %v3380, %v4493
      %v4495 = vpop.f32.mrb[0].mxu0
      %v4496 = vadd.f32 %v3380, %v4495
      %4497 = vmatprep.mubr.bf16.mxu0 0
      %4498 = vmatmul.mubr.bf16.gmra.mrb[0].mxu0 %v4096
      %v4499 = vpop.f32.mrb[0].mxu0
      %v4500 = vadd.f32 %v3385, %v4499
      %v4501 = vpop.f32.mrb[0].mxu0
      %v4502 = vadd.f32 %v3385, %v4501
      %v4503 = vpop.f32.mrb[0].mxu0
      %v4504 = vadd.f32 %v3390, %v4503
      %v4505 = vpop.f32.mrb[0].mxu0
      %v4506 = vadd.f32 %v3390, %v4505
      %4507 = vmatprep.mubr.bf16.mxu0 0
      %4508 = vmatmul.mubr.bf16.gmra.mrb[0].mxu0 %v4099
      %v4509 = vpop.f32.mrb[0].mxu0
      %v4510 = vadd.f32 %v3395, %v4509
      %v4511 = vpop.f32.mrb[0].mxu0
      %v4512 = vadd.f32 %v3395, %v4511
      %v4513 = vpop.f32.mrb[0].mxu0
      %v4514 = vadd.f32 %v3400, %v4513
      %v4515 = vpop.f32.mrb[0].mxu0
      %v4516 = vadd.f32 %v3400, %v4515
      %4517 = vmatprep.mubr.bf16.mxu0 0
      %4518 = vmatmul.mubr.bf16.gmra.mrb[0].mxu0 %v4102
      %v4519 = vpop.f32.mrb[0].mxu0
      %v4520 = vadd.f32 %v3405, %v4519
      %v4521 = vpop.f32.mrb[0].mxu0
      %v4522 = vadd.f32 %v3405, %v4521
      %v4523 = vpop.f32.mrb[0].mxu0
      %v4524 = vadd.f32 %v3410, %v4523
      %v4525 = vpop.f32.mrb[0].mxu0
      %v4526 = vadd.f32 %v3410, %v4525
      %4527 = vmatprep.mubr.bf16.mxu0 0
      %4528 = vmatmul.mubr.bf16.gmra.mrb[0].mxu0 %v4105
      %v4529 = vpop.f32.mrb[0].mxu0
      %v4530 = vadd.f32 %v3415, %v4529
      %v4531 = vpop.f32.mrb[0].mxu0
      %v4532 = vadd.f32 %v3415, %v4531
      %v4533 = vpop.f32.mrb[0].mxu0
      %v4534 = vadd.f32 %v3420, %v4533
      %v4535 = vpop.f32.mrb[0].mxu0
      %v4536 = vadd.f32 %v3420, %v4535
      %4537 = vmatprep.mubr.bf16.mxu0 0
      %4538 = vmatmul.mubr.bf16.gmra.mrb[0].mxu0 %v4108
      %v4539 = vpop.f32.mrb[0].mxu0
      %v4540 = vadd.f32 %v3425, %v4539
      %v4541 = vpop.f32.mrb[0].mxu0
      %v4542 = vadd.f32 %v3425, %v4541
      %v4543 = vpop.f32.mrb[0].mxu0
      %v4544 = vadd.f32 %v3430, %v4543
      %v4545 = vpop.f32.mrb[0].mxu0
      %v4546 = vadd.f32 %v3430, %v4545
      %4547 = vmatprep.mubr.bf16.mxu0 0
      %4548 = vmatmul.mubr.bf16.gmra.mrb[0].mxu0 %v4111
      %v4549 = vpop.f32.mrb[0].mxu0
      %v4550 = vadd.f32 %v3435, %v4549
      %v4551 = vpop.f32.mrb[0].mxu0
      %v4552 = vadd.f32 %v3435, %v4551
      %v4553 = vpop.f32.mrb[0].mxu0
      %v4554 = vadd.f32 %v3440, %v4553
      %v4555 = vpop.f32.mrb[0].mxu0
      %v4556 = vadd.f32 %v3440, %v4555
      %4557 = vmatprep.mubr.bf16.mxu0 0
      %4558 = vmatmul.mubr.bf16.gmra.mrb[0].mxu0 %v4114
      %v4559 = vpop.f32.mrb[0].mxu0
      %v4560 = vadd.f32 %v3445, %v4559
      %v4561 = vpop.f32.mrb[0].mxu0
      %v4562 = vadd.f32 %v3445, %v4561
      %v4563 = vpop.f32.mrb[0].mxu0
      %v4564 = vadd.f32 %v3450, %v4563
      %v4565 = vpop.f32.mrb[0].mxu0
      %v4566 = vadd.f32 %v3450, %v4565
      %4567 = vdwg.mxu0
      %4568 = vmatprep.subr.bf16.mxu0 %v3845
      %4569 = vmatpush1.bf16.msra.mxu0 %v3844
      %4570 = vmatprep.subr.bf16.mxu0 %v3877
      %4571 = vmatpush1.bf16.msra.mxu0 %v3876
      %4572 = vmatprep.subr.bf16.mxu0 %v3909
      %4573 = vmatpush1.bf16.msra.mxu0 %v3908
      %4574 = vmatprep.subr.bf16.mxu0 %v3941
      %4575 = vmatpush1.bf16.msra.mxu0 %v3940
      %4576 = vmatprep.subr.bf16.mxu0 0
      %4577 = vmatpush1.bf16.msra.mxu0 0
      %4578 = vmatprep.subr.bf16.mxu0 0
      %4579 = vmatpush1.bf16.msra.mxu0 0
      %4580 = vmatprep.subr.bf16.mxu0 0
      %4581 = vmatpush1.bf16.msra.mxu0 0
      %4582 = vmatprep.subr.bf16.mxu0 0
      %4583 = vmatpush1.bf16.msra.mxu0 0
      %4584 = vmatprep.subr.bf16.mxu0 0
      %4585 = vmatpush1.bf16.msra.mxu0 0
      %4586 = vmatprep.subr.bf16.mxu0 0
      %4587 = vmatpush1.bf16.msra.mxu0 0
      %4588 = vmatprep.subr.bf16.mxu0 0
      %4589 = vmatpush1.bf16.msra.mxu0 0
      %4590 = vmatprep.subr.bf16.mxu0 0
      %4591 = vmatpush1.bf16.msra.mxu0 0
      %4592 = vmatprep.subr.bf16.mxu0 0
      %4593 = vmatpush1.bf16.msra.mxu0 0
      %4594 = vmatprep.subr.bf16.mxu0 0
      %4595 = vmatpush1.bf16.msra.mxu0 0
      %4596 = vmatprep.subr.bf16.mxu0 0
      %4597 = vmatpush1.bf16.msra.mxu0 0
      %4598 = vmatprep.subr.bf16.mxu0 0
      %4599 = vmatpush1.bf16.msra.mxu0 0
      %4600 = vmatprep.mubr.bf16.mxu0 0
      %4601 = vmatmul.mubr.bf16.gmra.mrb[0].mxu0 %v4093
      %v4602 = vpop.f32.mrb[0].mxu0
      %v4603 = vadd.f32 %v3375, %v4602
      %v4604 = vpop.f32.mrb[0].mxu0
      %v4605 = vadd.f32 %v3375, %v4604
      %v4606 = vpop.f32.mrb[0].mxu0
      %v4607 = vadd.f32 %v3380, %v4606
      %v4608 = vpop.f32.mrb[0].mxu0
      %v4609 = vadd.f32 %v3380, %v4608
      %4610 = vmatprep.mubr.bf16.mxu0 0
      %4611 = vmatmul.mubr.bf16.gmra.mrb[0].mxu0 %v4096
      %v4612 = vpop.f32.mrb[0].mxu0
      %v4613 = vadd.f32 %v3385, %v4612
      %v4614 = vpop.f32.mrb[0].mxu0
      %v4615 = vadd.f32 %v3385, %v4614
      %v4616 = vpop.f32.mrb[0].mxu0
      %v4617 = vadd.f32 %v3390, %v4616
      %v4618 = vpop.f32.mrb[0].mxu0
      %v4619 = vadd.f32 %v3390, %v4618
      %4620 = vmatprep.mubr.bf16.mxu0 0
      %4621 = vmatmul.mubr.bf16.gmra.mrb[0].mxu0 %v4099
      %v4622 = vpop.f32.mrb[0].mxu0
      %v4623 = vadd.f32 %v3395, %v4622
      %v4624 = vpop.f32.mrb[0].mxu0
      %v4625 = vadd.f32 %v3395, %v4624
      %v4626 = vpop.f32.mrb[0].mxu0
      %v4627 = vadd.f32 %v3400, %v4626
      %v4628 = vpop.f32.mrb[0].mxu0
      %v4629 = vadd.f32 %v3400, %v4628
      %4630 = vmatprep.mubr.bf16.mxu0 0
      %4631 = vmatmul.mubr.bf16.gmra.mrb[0].mxu0 %v4102
      %v4632 = vpop.f32.mrb[0].mxu0
      %v4633 = vadd.f32 %v3405, %v4632
      %v4634 = vpop.f32.mrb[0].mxu0
      %v4635 = vadd.f32 %v3405, %v4634
      %v4636 = vpop.f32.mrb[0].mxu0
      %v4637 = vadd.f32 %v3410, %v4636
      %v4638 = vpop.f32.mrb[0].mxu0
      %v4639 = vadd.f32 %v3410, %v4638
      %4640 = vmatprep.mubr.bf16.mxu0 0
      %4641 = vmatmul.mubr.bf16.gmra.mrb[0].mxu0 %v4105
      %v4642 = vpop.f32.mrb[0].mxu0
      %v4643 = vadd.f32 %v3415, %v4642
      %v4644 = vpop.f32.mrb[0].mxu0
      %v4645 = vadd.f32 %v3415, %v4644
      %v4646 = vpop.f32.mrb[0].mxu0
      %v4647 = vadd.f32 %v3420, %v4646
      %v4648 = vpop.f32.mrb[0].mxu0
      %v4649 = vadd.f32 %v3420, %v4648
      %4650 = vmatprep.mubr.bf16.mxu0 0
      %4651 = vmatmul.mubr.bf16.gmra.mrb[0].mxu0 %v4108
      %v4652 = vpop.f32.mrb[0].mxu0
      %v4653 = vadd.f32 %v3425, %v4652
      %v4654 = vpop.f32.mrb[0].mxu0
      %v4655 = vadd.f32 %v3425, %v4654
      %v4656 = vpop.f32.mrb[0].mxu0
      %v4657 = vadd.f32 %v3430, %v4656
      %v4658 = vpop.f32.mrb[0].mxu0
      %v4659 = vadd.f32 %v3430, %v4658
      %4660 = vmatprep.mubr.bf16.mxu0 0
      %4661 = vmatmul.mubr.bf16.gmra.mrb[0].mxu0 %v4111
      %v4662 = vpop.f32.mrb[0].mxu0
      %v4663 = vadd.f32 %v3435, %v4662
      %v4664 = vpop.f32.mrb[0].mxu0
      %v4665 = vadd.f32 %v3435, %v4664
      %v4666 = vpop.f32.mrb[0].mxu0
      %v4667 = vadd.f32 %v3440, %v4666
      %v4668 = vpop.f32.mrb[0].mxu0
      %v4669 = vadd.f32 %v3440, %v4668
      %4670 = vmatprep.mubr.bf16.mxu0 0
      %4671 = vmatmul.mubr.bf16.gmra.mrb[0].mxu0 %v4114
      %v4672 = vpop.f32.mrb[0].mxu0
      %v4673 = vadd.f32 %v3445, %v4672
      %v4674 = vpop.f32.mrb[0].mxu0
      %v4675 = vadd.f32 %v3445, %v4674
      %v4676 = vpop.f32.mrb[0].mxu0
      %v4677 = vadd.f32 %v3450, %v4676
      %v4678 = vpop.f32.mrb[0].mxu0
      %v4679 = vadd.f32 %v3450, %v4678
      %4680 = vdwg.mxu0
      %4681 = vmatprep.subr.bf16.mxu0 %v3847
      %4682 = vmatpush1.bf16.msra.mxu0 %v3846
      %4683 = vmatprep.subr.bf16.mxu0 %v3879
      %4684 = vmatpush1.bf16.msra.mxu0 %v3878
      %4685 = vmatprep.subr.bf16.mxu0 %v3911
      %4686 = vmatpush1.bf16.msra.mxu0 %v3910
      %4687 = vmatprep.subr.bf16.mxu0 %v3943
      %4688 = vmatpush1.bf16.msra.mxu0 %v3942
      %4689 = vmatprep.subr.bf16.mxu0 0
      %4690 = vmatpush1.bf16.msra.mxu0 0
      %4691 = vmatprep.subr.bf16.mxu0 0
      %4692 = vmatpush1.bf16.msra.mxu0 0
      %4693 = vmatprep.subr.bf16.mxu0 0
      %4694 = vmatpush1.bf16.msra.mxu0 0
      %4695 = vmatprep.subr.bf16.mxu0 0
      %4696 = vmatpush1.bf16.msra.mxu0 0
      %4697 = vmatprep.subr.bf16.mxu0 0
      %4698 = vmatpush1.bf16.msra.mxu0 0
      %4699 = vmatprep.subr.bf16.mxu0 0
      %4700 = vmatpush1.bf16.msra.mxu0 0
      %4701 = vmatprep.subr.bf16.mxu0 0
      %4702 = vmatpush1.bf16.msra.mxu0 0
      %4703 = vmatprep.subr.bf16.mxu0 0
      %4704 = vmatpush1.bf16.msra.mxu0 0
      %4705 = vmatprep.subr.bf16.mxu0 0
      %4706 = vmatpush1.bf16.msra.mxu0 0
      %4707 = vmatprep.subr.bf16.mxu0 0
      %4708 = vmatpush1.bf16.msra.mxu0 0
      %4709 = vmatprep.subr.bf16.mxu0 0
      %4710 = vmatpush1.bf16.msra.mxu0 0
      %4711 = vmatprep.subr.bf16.mxu0 0
      %4712 = vmatpush1.bf16.msra.mxu0 0
      %4713 = vmatprep.mubr.bf16.mxu0 0
      %4714 = vmatmul.mubr.bf16.gmra.mrb[0].mxu0 %v4093
      %v4715 = vpop.f32.mrb[0].mxu0
      %v4716 = vadd.f32 %v3375, %v4715
      %v4717 = vpop.f32.mrb[0].mxu0
      %v4718 = vadd.f32 %v3375, %v4717
      %v4719 = vpop.f32.mrb[0].mxu0
      %v4720 = vadd.f32 %v3380, %v4719
      %v4721 = vpop.f32.mrb[0].mxu0
      %v4722 = vadd.f32 %v3380, %v4721
      %4723 = vmatprep.mubr.bf16.mxu0 0
      %4724 = vmatmul.mubr.bf16.gmra.mrb[0].mxu0 %v4096
      %v4725 = vpop.f32.mrb[0].mxu0
      %v4726 = vadd.f32 %v3385, %v4725
      %v4727 = vpop.f32.mrb[0].mxu0
      %v4728 = vadd.f32 %v3385, %v4727
      %v4729 = vpop.f32.mrb[0].mxu0
      %v4730 = vadd.f32 %v3390, %v4729
      %v4731 = vpop.f32.mrb[0].mxu0
      %v4732 = vadd.f32 %v3390, %v4731
      %4733 = vmatprep.mubr.bf16.mxu0 0
      %4734 = vmatmul.mubr.bf16.gmra.mrb[0].mxu0 %v4099
      %v4735 = vpop.f32.mrb[0].mxu0
      %v4736 = vadd.f32 %v3395, %v4735
      %v4737 = vpop.f32.mrb[0].mxu0
      %v4738 = vadd.f32 %v3395, %v4737
      %v4739 = vpop.f32.mrb[0].mxu0
      %v4740 = vadd.f32 %v3400, %v4739
      %v4741 = vpop.f32.mrb[0].mxu0
      %v4742 = vadd.f32 %v3400, %v4741
      %4743 = vmatprep.mubr.bf16.mxu0 0
      %4744 = vmatmul.mubr.bf16.gmra.mrb[0].mxu0 %v4102
      %v4745 = vpop.f32.mrb[0].mxu0
      %v4746 = vadd.f32 %v3405, %v4745
      %v4747 = vpop.f32.mrb[0].mxu0
      %v4748 = vadd.f32 %v3405, %v4747
      %v4749 = vpop.f32.mrb[0].mxu0
      %v4750 = vadd.f32 %v3410, %v4749
      %v4751 = vpop.f32.mrb[0].mxu0
      %v4752 = vadd.f32 %v3410, %v4751
      %4753 = vmatprep.mubr.bf16.mxu0 0
      %4754 = vmatmul.mubr.bf16.gmra.mrb[0].mxu0 %v4105
      %v4755 = vpop.f32.mrb[0].mxu0
      %v4756 = vadd.f32 %v3415, %v4755
      %v4757 = vpop.f32.mrb[0].mxu0
      %v4758 = vadd.f32 %v3415, %v4757
      %v4759 = vpop.f32.mrb[0].mxu0
      %v4760 = vadd.f32 %v3420, %v4759
      %v4761 = vpop.f32.mrb[0].mxu0
      %v4762 = vadd.f32 %v3420, %v4761
      %4763 = vmatprep.mubr.bf16.mxu0 0
      %4764 = vmatmul.mubr.bf16.gmra.mrb[0].mxu0 %v4108
      %v4765 = vpop.f32.mrb[0].mxu0
      %v4766 = vadd.f32 %v3425, %v4765
      %v4767 = vpop.f32.mrb[0].mxu0
      %v4768 = vadd.f32 %v3425, %v4767
      %v4769 = vpop.f32.mrb[0].mxu0
      %v4770 = vadd.f32 %v3430, %v4769
      %v4771 = vpop.f32.mrb[0].mxu0
      %v4772 = vadd.f32 %v3430, %v4771
      %4773 = vmatprep.mubr.bf16.mxu0 0
      %4774 = vmatmul.mubr.bf16.gmra.mrb[0].mxu0 %v4111
      %v4775 = vpop.f32.mrb[0].mxu0
      %v4776 = vadd.f32 %v3435, %v4775
      %v4777 = vpop.f32.mrb[0].mxu0
      %v4778 = vadd.f32 %v3435, %v4777
      %v4779 = vpop.f32.mrb[0].mxu0
      %v4780 = vadd.f32 %v3440, %v4779
      %v4781 = vpop.f32.mrb[0].mxu0
      %v4782 = vadd.f32 %v3440, %v4781
      %4783 = vmatprep.mubr.bf16.mxu0 0
      %4784 = vmatmul.mubr.bf16.gmra.mrb[0].mxu0 %v4114
      %v4785 = vpop.f32.mrb[0].mxu0
      %v4786 = vadd.f32 %v3445, %v4785
      %v4787 = vpop.f32.mrb[0].mxu0
      %v4788 = vadd.f32 %v3445, %v4787
      %v4789 = vpop.f32.mrb[0].mxu0
      %v4790 = vadd.f32 %v3450, %v4789
      %v4791 = vpop.f32.mrb[0].mxu0
      %v4792 = vadd.f32 %v3450, %v4791
      %4793 = vdwg.mxu0
      %4794 = vmatprep.subr.bf16.mxu0 %v3849
      %4795 = vmatpush1.bf16.msra.mxu0 %v3848
      %4796 = vmatprep.subr.bf16.mxu0 %v3881
      %4797 = vmatpush1.bf16.msra.mxu0 %v3880
      %4798 = vmatprep.subr.bf16.mxu0 %v3913
      %4799 = vmatpush1.bf16.msra.mxu0 %v3912
      %4800 = vmatprep.subr.bf16.mxu0 %v3945
      %4801 = vmatpush1.bf16.msra.mxu0 %v3944
      %4802 = vmatprep.subr.bf16.mxu0 0
      %4803 = vmatpush1.bf16.msra.mxu0 0
      %4804 = vmatprep.subr.bf16.mxu0 0
      %4805 = vmatpush1.bf16.msra.mxu0 0
      %4806 = vmatprep.subr.bf16.mxu0 0
      %4807 = vmatpush1.bf16.msra.mxu0 0
      %4808 = vmatprep.subr.bf16.mxu0 0
      %4809 = vmatpush1.bf16.msra.mxu0 0
      %4810 = vmatprep.subr.bf16.mxu0 0
      %4811 = vmatpush1.bf16.msra.mxu0 0
      %4812 = vmatprep.subr.bf16.mxu0 0
      %4813 = vmatpush1.bf16.msra.mxu0 0
      %4814 = vmatprep.subr.bf16.mxu0 0
      %4815 = vmatpush1.bf16.msra.mxu0 0
      %4816 = vmatprep.subr.bf16.mxu0 0
      %4817 = vmatpush1.bf16.msra.mxu0 0
      %4818 = vmatprep.subr.bf16.mxu0 0
      %4819 = vmatpush1.bf16.msra.mxu0 0
      %4820 = vmatprep.subr.bf16.mxu0 0
      %4821 = vmatpush1.bf16.msra.mxu0 0
      %4822 = vmatprep.subr.bf16.mxu0 0
      %4823 = vmatpush1.bf16.msra.mxu0 0
      %4824 = vmatprep.subr.bf16.mxu0 0
      %4825 = vmatpush1.bf16.msra.mxu0 0
      %4826 = vmatprep.mubr.bf16.mxu0 0
      %4827 = vmatmul.mubr.bf16.gmra.mrb[0].mxu0 %v4093
      %v4828 = vpop.f32.mrb[0].mxu0
      %v4829 = vadd.f32 %v3375, %v4828
      %v4830 = vpop.f32.mrb[0].mxu0
      %v4831 = vadd.f32 %v3375, %v4830
      %v4832 = vpop.f32.mrb[0].mxu0
      %v4833 = vadd.f32 %v3380, %v4832
      %v4834 = vpop.f32.mrb[0].mxu0
      %v4835 = vadd.f32 %v3380, %v4834
      %4836 = vmatprep.mubr.bf16.mxu0 0
      %4837 = vmatmul.mubr.bf16.gmra.mrb[0].mxu0 %v4096
      %v4838 = vpop.f32.mrb[0].mxu0
      %v4839 = vadd.f32 %v3385, %v4838
      %v4840 = vpop.f32.mrb[0].mxu0
      %v4841 = vadd.f32 %v3385, %v4840
      %v4842 = vpop.f32.mrb[0].mxu0
      %v4843 = vadd.f32 %v3390, %v4842
      %v4844 = vpop.f32.mrb[0].mxu0
      %v4845 = vadd.f32 %v3390, %v4844
      %4846 = vmatprep.mubr.bf16.mxu0 0
      %4847 = vmatmul.mubr.bf16.gmra.mrb[0].mxu0 %v4099
      %v4848 = vpop.f32.mrb[0].mxu0
      %v4849 = vadd.f32 %v3395, %v4848
      %v4850 = vpop.f32.mrb[0].mxu0
      %v4851 = vadd.f32 %v3395, %v4850
      %v4852 = vpop.f32.mrb[0].mxu0
      %v4853 = vadd.f32 %v3400, %v4852
      %v4854 = vpop.f32.mrb[0].mxu0
      %v4855 = vadd.f32 %v3400, %v4854
      %4856 = vmatprep.mubr.bf16.mxu0 0
      %4857 = vmatmul.mubr.bf16.gmra.mrb[0].mxu0 %v4102
      %v4858 = vpop.f32.mrb[0].mxu0
      %v4859 = vadd.f32 %v3405, %v4858
      %v4860 = vpop.f32.mrb[0].mxu0
      %v4861 = vadd.f32 %v3405, %v4860
      %v4862 = vpop.f32.mrb[0].mxu0
      %v4863 = vadd.f32 %v3410, %v4862
      %v4864 = vpop.f32.mrb[0].mxu0
      %v4865 = vadd.f32 %v3410, %v4864
      %4866 = vmatprep.mubr.bf16.mxu0 0
      %4867 = vmatmul.mubr.bf16.gmra.mrb[0].mxu0 %v4105
      %v4868 = vpop.f32.mrb[0].mxu0
      %v4869 = vadd.f32 %v3415, %v4868
      %v4870 = vpop.f32.mrb[0].mxu0
      %v4871 = vadd.f32 %v3415, %v4870
      %v4872 = vpop.f32.mrb[0].mxu0
      %v4873 = vadd.f32 %v3420, %v4872
      %v4874 = vpop.f32.mrb[0].mxu0
      %v4875 = vadd.f32 %v3420, %v4874
      %4876 = vmatprep.mubr.bf16.mxu0 0
      %4877 = vmatmul.mubr.bf16.gmra.mrb[0].mxu0 %v4108
      %v4878 = vpop.f32.mrb[0].mxu0
      %v4879 = vadd.f32 %v3425, %v4878
      %v4880 = vpop.f32.mrb[0].mxu0
      %v4881 = vadd.f32 %v3425, %v4880
      %v4882 = vpop.f32.mrb[0].mxu0
      %v4883 = vadd.f32 %v3430, %v4882
      %v4884 = vpop.f32.mrb[0].mxu0
      %v4885 = vadd.f32 %v3430, %v4884
      %4886 = vmatprep.mubr.bf16.mxu0 0
      %4887 = vmatmul.mubr.bf16.gmra.mrb[0].mxu0 %v4111
      %v4888 = vpop.f32.mrb[0].mxu0
      %v4889 = vadd.f32 %v3435, %v4888
      %v4890 = vpop.f32.mrb[0].mxu0
      %v4891 = vadd.f32 %v3435, %v4890
      %v4892 = vpop.f32.mrb[0].mxu0
      %v4893 = vadd.f32 %v3440, %v4892
      %v4894 = vpop.f32.mrb[0].mxu0
      %v4895 = vadd.f32 %v3440, %v4894
      %4896 = vmatprep.mubr.bf16.mxu0 0
      %4897 = vmatmul.mubr.bf16.gmra.mrb[0].mxu0 %v4114
      %v4898 = vpop.f32.mrb[0].mxu0
      %v4899 = vadd.f32 %v3445, %v4898
      %v4900 = vpop.f32.mrb[0].mxu0
      %v4901 = vadd.f32 %v3445, %v4900
      %v4902 = vpop.f32.mrb[0].mxu0
      %v4903 = vadd.f32 %v3450, %v4902
      %v4904 = vpop.f32.mrb[0].mxu0
      %v4905 = vadd.f32 %v3450, %v4904
      %4906 = vdwg.mxu0
      %4907 = vmatprep.subr.bf16.mxu0 %v3851
      %4908 = vmatpush1.bf16.msra.mxu0 %v3850
      %4909 = vmatprep.subr.bf16.mxu0 %v3883
      %4910 = vmatpush1.bf16.msra.mxu0 %v3882
      %4911 = vmatprep.subr.bf16.mxu0 %v3915
      %4912 = vmatpush1.bf16.msra.mxu0 %v3914
      %4913 = vmatprep.subr.bf16.mxu0 %v3947
      %4914 = vmatpush1.bf16.msra.mxu0 %v3946
      %4915 = vmatprep.subr.bf16.mxu0 0
      %4916 = vmatpush1.bf16.msra.mxu0 0
      %4917 = vmatprep.subr.bf16.mxu0 0
      %4918 = vmatpush1.bf16.msra.mxu0 0
      %4919 = vmatprep.subr.bf16.mxu0 0
      %4920 = vmatpush1.bf16.msra.mxu0 0
      %4921 = vmatprep.subr.bf16.mxu0 0
      %4922 = vmatpush1.bf16.msra.mxu0 0
      %4923 = vmatprep.subr.bf16.mxu0 0
      %4924 = vmatpush1.bf16.msra.mxu0 0
      %4925 = vmatprep.subr.bf16.mxu0 0
      %4926 = vmatpush1.bf16.msra.mxu0 0
      %4927 = vmatprep.subr.bf16.mxu0 0
      %4928 = vmatpush1.bf16.msra.mxu0 0
      %4929 = vmatprep.subr.bf16.mxu0 0
      %4930 = vmatpush1.bf16.msra.mxu0 0
      %4931 = vmatprep.subr.bf16.mxu0 0
      %4932 = vmatpush1.bf16.msra.mxu0 0
      %4933 = vmatprep.subr.bf16.mxu0 0
      %4934 = vmatpush1.bf16.msra.mxu0 0
      %4935 = vmatprep.subr.bf16.mxu0 0
      %4936 = vmatpush1.bf16.msra.mxu0 0
      %4937 = vmatprep.subr.bf16.mxu0 0
      %4938 = vmatpush1.bf16.msra.mxu0 0
      %4939 = vmatprep.mubr.bf16.mxu0 0
      %4940 = vmatmul.mubr.bf16.gmra.mrb[0].mxu0 %v4093
      %v4941 = vpop.f32.mrb[0].mxu0
      %v4942 = vadd.f32 %v3375, %v4941
      %v4943 = vpop.f32.mrb[0].mxu0
      %v4944 = vadd.f32 %v3375, %v4943
      %v4945 = vpop.f32.mrb[0].mxu0
      %v4946 = vadd.f32 %v3380, %v4945
      %v4947 = vpop.f32.mrb[0].mxu0
      %v4948 = vadd.f32 %v3380, %v4947
      %4949 = vmatprep.mubr.bf16.mxu0 0
      %4950 = vmatmul.mubr.bf16.gmra.mrb[0].mxu0 %v4096
      %v4951 = vpop.f32.mrb[0].mxu0
      %v4952 = vadd.f32 %v3385, %v4951
      %v4953 = vpop.f32.mrb[0].mxu0
      %v4954 = vadd.f32 %v3385, %v4953
      %v4955 = vpop.f32.mrb[0].mxu0
      %v4956 = vadd.f32 %v3390, %v4955
      %v4957 = vpop.f32.mrb[0].mxu0
      %v4958 = vadd.f32 %v3390, %v4957
      %4959 = vmatprep.mubr.bf16.mxu0 0
      %4960 = vmatmul.mubr.bf16.gmra.mrb[0].mxu0 %v4099
      %v4961 = vpop.f32.mrb[0].mxu0
      %v4962 = vadd.f32 %v3395, %v4961
      %v4963 = vpop.f32.mrb[0].mxu0
      %v4964 = vadd.f32 %v3395, %v4963
      %v4965 = vpop.f32.mrb[0].mxu0
      %v4966 = vadd.f32 %v3400, %v4965
      %v4967 = vpop.f32.mrb[0].mxu0
      %v4968 = vadd.f32 %v3400, %v4967
      %4969 = vmatprep.mubr.bf16.mxu0 0
      %4970 = vmatmul.mubr.bf16.gmra.mrb[0].mxu0 %v4102
      %v4971 = vpop.f32.mrb[0].mxu0
      %v4972 = vadd.f32 %v3405, %v4971
      %v4973 = vpop.f32.mrb[0].mxu0
      %v4974 = vadd.f32 %v3405, %v4973
      %v4975 = vpop.f32.mrb[0].mxu0
      %v4976 = vadd.f32 %v3410, %v4975
      %v4977 = vpop.f32.mrb[0].mxu0
      %v4978 = vadd.f32 %v3410, %v4977
      %4979 = vmatprep.mubr.bf16.mxu0 0
      %4980 = vmatmul.mubr.bf16.gmra.mrb[0].mxu0 %v4105
      %v4981 = vpop.f32.mrb[0].mxu0
      %v4982 = vadd.f32 %v3415, %v4981
      %v4983 = vpop.f32.mrb[0].mxu0
      %v4984 = vadd.f32 %v3415, %v4983
      %v4985 = vpop.f32.mrb[0].mxu0
      %v4986 = vadd.f32 %v3420, %v4985
      %v4987 = vpop.f32.mrb[0].mxu0
      %v4988 = vadd.f32 %v3420, %v4987
      %4989 = vmatprep.mubr.bf16.mxu0 0
      %4990 = vmatmul.mubr.bf16.gmra.mrb[0].mxu0 %v4108
      %v4991 = vpop.f32.mrb[0].mxu0
      %v4992 = vadd.f32 %v3425, %v4991
      %v4993 = vpop.f32.mrb[0].mxu0
      %v4994 = vadd.f32 %v3425, %v4993
      %v4995 = vpop.f32.mrb[0].mxu0
      %v4996 = vadd.f32 %v3430, %v4995
      %v4997 = vpop.f32.mrb[0].mxu0
      %v4998 = vadd.f32 %v3430, %v4997
      %4999 = vmatprep.mubr.bf16.mxu0 0
      %5000 = vmatmul.mubr.bf16.gmra.mrb[0].mxu0 %v4111
      %v5001 = vpop.f32.mrb[0].mxu0
      %v5002 = vadd.f32 %v3435, %v5001
      %v5003 = vpop.f32.mrb[0].mxu0
      %v5004 = vadd.f32 %v3435, %v5003
      %v5005 = vpop.f32.mrb[0].mxu0
      %v5006 = vadd.f32 %v3440, %v5005
      %v5007 = vpop.f32.mrb[0].mxu0
      %v5008 = vadd.f32 %v3440, %v5007
      %5009 = vmatprep.mubr.bf16.mxu0 0
      %5010 = vmatmul.mubr.bf16.gmra.mrb[0].mxu0 %v4114
      %v5011 = vpop.f32.mrb[0].mxu0
      %v5012 = vadd.f32 %v3445, %v5011
      %v5013 = vpop.f32.mrb[0].mxu0
      %v5014 = vadd.f32 %v3445, %v5013
      %v5015 = vpop.f32.mrb[0].mxu0
      %v5016 = vadd.f32 %v3450, %v5015
      %v5017 = vpop.f32.mrb[0].mxu0
      %v5018 = vadd.f32 %v3450, %v5017
      %5019 = vdwg.mxu0
      %5020 = vmatprep.subr.bf16.mxu0 %v3853
      %5021 = vmatpush1.bf16.msra.mxu0 %v3852
      %5022 = vmatprep.subr.bf16.mxu0 %v3885
      %5023 = vmatpush1.bf16.msra.mxu0 %v3884
      %5024 = vmatprep.subr.bf16.mxu0 %v3917
      %5025 = vmatpush1.bf16.msra.mxu0 %v3916
      %5026 = vmatprep.subr.bf16.mxu0 %v3949
      %5027 = vmatpush1.bf16.msra.mxu0 %v3948
      %5028 = vmatprep.subr.bf16.mxu0 0
      %5029 = vmatpush1.bf16.msra.mxu0 0
      %5030 = vmatprep.subr.bf16.mxu0 0
      %5031 = vmatpush1.bf16.msra.mxu0 0
      %5032 = vmatprep.subr.bf16.mxu0 0
      %5033 = vmatpush1.bf16.msra.mxu0 0
      %5034 = vmatprep.subr.bf16.mxu0 0
      %5035 = vmatpush1.bf16.msra.mxu0 0
      %5036 = vmatprep.subr.bf16.mxu0 0
      %5037 = vmatpush1.bf16.msra.mxu0 0
      %5038 = vmatprep.subr.bf16.mxu0 0
      %5039 = vmatpush1.bf16.msra.mxu0 0
      %5040 = vmatprep.subr.bf16.mxu0 0
      %5041 = vmatpush1.bf16.msra.mxu0 0
      %5042 = vmatprep.subr.bf16.mxu0 0
      %5043 = vmatpush1.bf16.msra.mxu0 0
      %5044 = vmatprep.subr.bf16.mxu0 0
      %5045 = vmatpush1.bf16.msra.mxu0 0
      %5046 = vmatprep.subr.bf16.mxu0 0
      %5047 = vmatpush1.bf16.msra.mxu0 0
      %5048 = vmatprep.subr.bf16.mxu0 0
      %5049 = vmatpush1.bf16.msra.mxu0 0
      %5050 = vmatprep.subr.bf16.mxu0 0
      %5051 = vmatpush1.bf16.msra.mxu0 0
      %5052 = vmatprep.mubr.bf16.mxu0 0
      %5053 = vmatmul.mubr.bf16.gmra.mrb[0].mxu0 %v4093
      %v5054 = vpop.f32.mrb[0].mxu0
      %v5055 = vadd.f32 %v3375, %v5054
      %v5056 = vpop.f32.mrb[0].mxu0
      %v5057 = vadd.f32 %v3375, %v5056
      %v5058 = vpop.f32.mrb[0].mxu0
      %v5059 = vadd.f32 %v3380, %v5058
      %v5060 = vpop.f32.mrb[0].mxu0
      %v5061 = vadd.f32 %v3380, %v5060
      %5062 = vmatprep.mubr.bf16.mxu0 0
      %5063 = vmatmul.mubr.bf16.gmra.mrb[0].mxu0 %v4096
      %v5064 = vpop.f32.mrb[0].mxu0
      %v5065 = vadd.f32 %v3385, %v5064
      %v5066 = vpop.f32.mrb[0].mxu0
      %v5067 = vadd.f32 %v3385, %v5066
      %v5068 = vpop.f32.mrb[0].mxu0
      %v5069 = vadd.f32 %v3390, %v5068
      %v5070 = vpop.f32.mrb[0].mxu0
      %v5071 = vadd.f32 %v3390, %v5070
      %5072 = vmatprep.mubr.bf16.mxu0 0
      %5073 = vmatmul.mubr.bf16.gmra.mrb[0].mxu0 %v4099
      %v5074 = vpop.f32.mrb[0].mxu0
      %v5075 = vadd.f32 %v3395, %v5074
      %v5076 = vpop.f32.mrb[0].mxu0
      %v5077 = vadd.f32 %v3395, %v5076
      %v5078 = vpop.f32.mrb[0].mxu0
      %v5079 = vadd.f32 %v3400, %v5078
      %v5080 = vpop.f32.mrb[0].mxu0
      %v5081 = vadd.f32 %v3400, %v5080
      %5082 = vmatprep.mubr.bf16.mxu0 0
      %5083 = vmatmul.mubr.bf16.gmra.mrb[0].mxu0 %v4102
      %v5084 = vpop.f32.mrb[0].mxu0
      %v5085 = vadd.f32 %v3405, %v5084
      %v5086 = vpop.f32.mrb[0].mxu0
      %v5087 = vadd.f32 %v3405, %v5086
      %v5088 = vpop.f32.mrb[0].mxu0
      %v5089 = vadd.f32 %v3410, %v5088
      %v5090 = vpop.f32.mrb[0].mxu0
      %v5091 = vadd.f32 %v3410, %v5090
      %5092 = vmatprep.mubr.bf16.mxu0 0
      %5093 = vmatmul.mubr.bf16.gmra.mrb[0].mxu0 %v4105
      %v5094 = vpop.f32.mrb[0].mxu0
      %v5095 = vadd.f32 %v3415, %v5094
      %v5096 = vpop.f32.mrb[0].mxu0
      %v5097 = vadd.f32 %v3415, %v5096
      %v5098 = vpop.f32.mrb[0].mxu0
      %v5099 = vadd.f32 %v3420, %v5098
      %v5100 = vpop.f32.mrb[0].mxu0
      %v5101 = vadd.f32 %v3420, %v5100
      %5102 = vmatprep.mubr.bf16.mxu0 0
      %5103 = vmatmul.mubr.bf16.gmra.mrb[0].mxu0 %v4108
      %v5104 = vpop.f32.mrb[0].mxu0
      %v5105 = vadd.f32 %v3425, %v5104
      %v5106 = vpop.f32.mrb[0].mxu0
      %v5107 = vadd.f32 %v3425, %v5106
      %v5108 = vpop.f32.mrb[0].mxu0
      %v5109 = vadd.f32 %v3430, %v5108
      %v5110 = vpop.f32.mrb[0].mxu0
      %v5111 = vadd.f32 %v3430, %v5110
      %5112 = vmatprep.mubr.bf16.mxu0 0
      %5113 = vmatmul.mubr.bf16.gmra.mrb[0].mxu0 %v4111
      %v5114 = vpop.f32.mrb[0].mxu0
      %v5115 = vadd.f32 %v3435, %v5114
      %v5116 = vpop.f32.mrb[0].mxu0
      %v5117 = vadd.f32 %v3435, %v5116
      %v5118 = vpop.f32.mrb[0].mxu0
      %v5119 = vadd.f32 %v3440, %v5118
      %v5120 = vpop.f32.mrb[0].mxu0
      %v5121 = vadd.f32 %v3440, %v5120
      %5122 = vmatprep.mubr.bf16.mxu0 0
      %5123 = vmatmul.mubr.bf16.gmra.mrb[0].mxu0 %v4114
      %v5124 = vpop.f32.mrb[0].mxu0
      %v5125 = vadd.f32 %v3445, %v5124
      %v5126 = vpop.f32.mrb[0].mxu0
      %v5127 = vadd.f32 %v3445, %v5126
      %v5128 = vpop.f32.mrb[0].mxu0
      %v5129 = vadd.f32 %v3450, %v5128
      %v5130 = vpop.f32.mrb[0].mxu0
      %v5131 = vadd.f32 %v3450, %v5130
      %5132 = vdwg.mxu0
      %5133 = vmatprep.subr.bf16.mxu0 %v3855
      %5134 = vmatpush1.bf16.msra.mxu0 %v3854
      %5135 = vmatprep.subr.bf16.mxu0 %v3887
      %5136 = vmatpush1.bf16.msra.mxu0 %v3886
      %5137 = vmatprep.subr.bf16.mxu0 %v3919
      %5138 = vmatpush1.bf16.msra.mxu0 %v3918
      %5139 = vmatprep.subr.bf16.mxu0 %v3951
      %5140 = vmatpush1.bf16.msra.mxu0 %v3950
      %5141 = vmatprep.subr.bf16.mxu0 0
      %5142 = vmatpush1.bf16.msra.mxu0 0
      %5143 = vmatprep.subr.bf16.mxu0 0
      %5144 = vmatpush1.bf16.msra.mxu0 0
      %5145 = vmatprep.subr.bf16.mxu0 0
      %5146 = vmatpush1.bf16.msra.mxu0 0
      %5147 = vmatprep.subr.bf16.mxu0 0
      %5148 = vmatpush1.bf16.msra.mxu0 0
      %5149 = vmatprep.subr.bf16.mxu0 0
      %5150 = vmatpush1.bf16.msra.mxu0 0
      %5151 = vmatprep.subr.bf16.mxu0 0
      %5152 = vmatpush1.bf16.msra.mxu0 0
      %5153 = vmatprep.subr.bf16.mxu0 0
      %5154 = vmatpush1.bf16.msra.mxu0 0
      %5155 = vmatprep.subr.bf16.mxu0 0
      %5156 = vmatpush1.bf16.msra.mxu0 0
      %5157 = vmatprep.subr.bf16.mxu0 0
      %5158 = vmatpush1.bf16.msra.mxu0 0
      %5159 = vmatprep.subr.bf16.mxu0 0
      %5160 = vmatpush1.bf16.msra.mxu0 0
      %5161 = vmatprep.subr.bf16.mxu0 0
      %5162 = vmatpush1.bf16.msra.mxu0 0
      %5163 = vmatprep.subr.bf16.mxu0 0
      %5164 = vmatpush1.bf16.msra.mxu0 0
      %5165 = vmatprep.mubr.bf16.mxu0 0
      %5166 = vmatmul.mubr.bf16.gmra.mrb[0].mxu0 %v4093
      %v5167 = vpop.f32.mrb[0].mxu0
      %v5168 = vadd.f32 %v3375, %v5167
      %v5169 = vpop.f32.mrb[0].mxu0
      %v5170 = vadd.f32 %v3375, %v5169
      %v5171 = vpop.f32.mrb[0].mxu0
      %v5172 = vadd.f32 %v3380, %v5171
      %v5173 = vpop.f32.mrb[0].mxu0
      %v5174 = vadd.f32 %v3380, %v5173
      %5175 = vmatprep.mubr.bf16.mxu0 0
      %5176 = vmatmul.mubr.bf16.gmra.mrb[0].mxu0 %v4096
      %v5177 = vpop.f32.mrb[0].mxu0
      %v5178 = vadd.f32 %v3385, %v5177
      %v5179 = vpop.f32.mrb[0].mxu0
      %v5180 = vadd.f32 %v3385, %v5179
      %v5181 = vpop.f32.mrb[0].mxu0
      %v5182 = vadd.f32 %v3390, %v5181
      %v5183 = vpop.f32.mrb[0].mxu0
      %v5184 = vadd.f32 %v3390, %v5183
      %5185 = vmatprep.mubr.bf16.mxu0 0
      %5186 = vmatmul.mubr.bf16.gmra.mrb[0].mxu0 %v4099
      %v5187 = vpop.f32.mrb[0].mxu0
      %v5188 = vadd.f32 %v3395, %v5187
      %v5189 = vpop.f32.mrb[0].mxu0
      %v5190 = vadd.f32 %v3395, %v5189
      %v5191 = vpop.f32.mrb[0].mxu0
      %v5192 = vadd.f32 %v3400, %v5191
      %v5193 = vpop.f32.mrb[0].mxu0
      %v5194 = vadd.f32 %v3400, %v5193
      %5195 = vmatprep.mubr.bf16.mxu0 0
      %5196 = vmatmul.mubr.bf16.gmra.mrb[0].mxu0 %v4102
      %v5197 = vpop.f32.mrb[0].mxu0
      %v5198 = vadd.f32 %v3405, %v5197
      %v5199 = vpop.f32.mrb[0].mxu0
      %v5200 = vadd.f32 %v3405, %v5199
      %v5201 = vpop.f32.mrb[0].mxu0
      %v5202 = vadd.f32 %v3410, %v5201
      %v5203 = vpop.f32.mrb[0].mxu0
      %v5204 = vadd.f32 %v3410, %v5203
      %5205 = vmatprep.mubr.bf16.mxu0 0
      %5206 = vmatmul.mubr.bf16.gmra.mrb[0].mxu0 %v4105
      %v5207 = vpop.f32.mrb[0].mxu0
      %v5208 = vadd.f32 %v3415, %v5207
      %v5209 = vpop.f32.mrb[0].mxu0
      %v5210 = vadd.f32 %v3415, %v5209
      %v5211 = vpop.f32.mrb[0].mxu0
      %v5212 = vadd.f32 %v3420, %v5211
      %v5213 = vpop.f32.mrb[0].mxu0
      %v5214 = vadd.f32 %v3420, %v5213
      %5215 = vmatprep.mubr.bf16.mxu0 0
      %5216 = vmatmul.mubr.bf16.gmra.mrb[0].mxu0 %v4108
      %v5217 = vpop.f32.mrb[0].mxu0
      %v5218 = vadd.f32 %v3425, %v5217
      %v5219 = vpop.f32.mrb[0].mxu0
      %v5220 = vadd.f32 %v3425, %v5219
      %v5221 = vpop.f32.mrb[0].mxu0
      %v5222 = vadd.f32 %v3430, %v5221
      %v5223 = vpop.f32.mrb[0].mxu0
      %v5224 = vadd.f32 %v3430, %v5223
      %5225 = vmatprep.mubr.bf16.mxu0 0
      %5226 = vmatmul.mubr.bf16.gmra.mrb[0].mxu0 %v4111
      %v5227 = vpop.f32.mrb[0].mxu0
      %v5228 = vadd.f32 %v3435, %v5227
      %v5229 = vpop.f32.mrb[0].mxu0
      %v5230 = vadd.f32 %v3435, %v5229
      %v5231 = vpop.f32.mrb[0].mxu0
      %v5232 = vadd.f32 %v3440, %v5231
      %v5233 = vpop.f32.mrb[0].mxu0
      %v5234 = vadd.f32 %v3440, %v5233
      %5235 = vmatprep.mubr.bf16.mxu0 0
      %5236 = vmatmul.mubr.bf16.gmra.mrb[0].mxu0 %v4114
      %v5237 = vpop.f32.mrb[0].mxu0
      %v5238 = vadd.f32 %v3445, %v5237
      %v5239 = vpop.f32.mrb[0].mxu0
      %v5240 = vadd.f32 %v3445, %v5239
      %v5241 = vpop.f32.mrb[0].mxu0
      %v5242 = vadd.f32 %v3450, %v5241
      %v5243 = vpop.f32.mrb[0].mxu0
      %v5244 = vadd.f32 %v3450, %v5243
      %5245 = vdwg.mxu0
      %5246 = vmatprep.subr.bf16.mxu0 %v3857
      %5247 = vmatpush1.bf16.msra.mxu0 %v3856
      %5248 = vmatprep.subr.bf16.mxu0 %v3889
      %5249 = vmatpush1.bf16.msra.mxu0 %v3888
      %5250 = vmatprep.subr.bf16.mxu0 %v3921
      %5251 = vmatpush1.bf16.msra.mxu0 %v3920
      %5252 = vmatprep.subr.bf16.mxu0 %v3953
      %5253 = vmatpush1.bf16.msra.mxu0 %v3952
      %5254 = vmatprep.subr.bf16.mxu0 0
      %5255 = vmatpush1.bf16.msra.mxu0 0
      %5256 = vmatprep.subr.bf16.mxu0 0
      %5257 = vmatpush1.bf16.msra.mxu0 0
      %5258 = vmatprep.subr.bf16.mxu0 0
      %5259 = vmatpush1.bf16.msra.mxu0 0
      %5260 = vmatprep.subr.bf16.mxu0 0
      %5261 = vmatpush1.bf16.msra.mxu0 0
      %5262 = vmatprep.subr.bf16.mxu0 0
      %5263 = vmatpush1.bf16.msra.mxu0 0
      %5264 = vmatprep.subr.bf16.mxu0 0
      %5265 = vmatpush1.bf16.msra.mxu0 0
      %5266 = vmatprep.subr.bf16.mxu0 0
      %5267 = vmatpush1.bf16.msra.mxu0 0
      %5268 = vmatprep.subr.bf16.mxu0 0
      %5269 = vmatpush1.bf16.msra.mxu0 0
      %5270 = vmatprep.subr.bf16.mxu0 0
      %5271 = vmatpush1.bf16.msra.mxu0 0
      %5272 = vmatprep.subr.bf16.mxu0 0
      %5273 = vmatpush1.bf16.msra.mxu0 0
      %5274 = vmatprep.subr.bf16.mxu0 0
      %5275 = vmatpush1.bf16.msra.mxu0 0
      %5276 = vmatprep.subr.bf16.mxu0 0
      %5277 = vmatpush1.bf16.msra.mxu0 0
      %5278 = vmatprep.mubr.bf16.mxu0 0
      %5279 = vmatmul.mubr.bf16.gmra.mrb[0].mxu0 %v4093
      %v5280 = vpop.f32.mrb[0].mxu0
      %v5281 = vadd.f32 %v3375, %v5280
      %v5282 = vpop.f32.mrb[0].mxu0
      %v5283 = vadd.f32 %v3375, %v5282
      %v5284 = vpop.f32.mrb[0].mxu0
      %v5285 = vadd.f32 %v3380, %v5284
      %v5286 = vpop.f32.mrb[0].mxu0
      %v5287 = vadd.f32 %v3380, %v5286
      %5288 = vmatprep.mubr.bf16.mxu0 0
      %5289 = vmatmul.mubr.bf16.gmra.mrb[0].mxu0 %v4096
      %v5290 = vpop.f32.mrb[0].mxu0
      %v5291 = vadd.f32 %v3385, %v5290
      %v5292 = vpop.f32.mrb[0].mxu0
      %v5293 = vadd.f32 %v3385, %v5292
      %v5294 = vpop.f32.mrb[0].mxu0
      %v5295 = vadd.f32 %v3390, %v5294
      %v5296 = vpop.f32.mrb[0].mxu0
      %v5297 = vadd.f32 %v3390, %v5296
      %5298 = vmatprep.mubr.bf16.mxu0 0
      %5299 = vmatmul.mubr.bf16.gmra.mrb[0].mxu0 %v4099
      %v5300 = vpop.f32.mrb[0].mxu0
      %v5301 = vadd.f32 %v3395, %v5300
      %v5302 = vpop.f32.mrb[0].mxu0
      %v5303 = vadd.f32 %v3395, %v5302
      %v5304 = vpop.f32.mrb[0].mxu0
      %v5305 = vadd.f32 %v3400, %v5304
      %v5306 = vpop.f32.mrb[0].mxu0
      %v5307 = vadd.f32 %v3400, %v5306
      %5308 = vmatprep.mubr.bf16.mxu0 0
      %5309 = vmatmul.mubr.bf16.gmra.mrb[0].mxu0 %v4102
      %v5310 = vpop.f32.mrb[0].mxu0
      %v5311 = vadd.f32 %v3405, %v5310
      %v5312 = vpop.f32.mrb[0].mxu0
      %v5313 = vadd.f32 %v3405, %v5312
      %v5314 = vpop.f32.mrb[0].mxu0
      %v5315 = vadd.f32 %v3410, %v5314
      %v5316 = vpop.f32.mrb[0].mxu0
      %v5317 = vadd.f32 %v3410, %v5316
      %5318 = vmatprep.mubr.bf16.mxu0 0
      %5319 = vmatmul.mubr.bf16.gmra.mrb[0].mxu0 %v4105
      %v5320 = vpop.f32.mrb[0].mxu0
      %v5321 = vadd.f32 %v3415, %v5320
      %v5322 = vpop.f32.mrb[0].mxu0
      %v5323 = vadd.f32 %v3415, %v5322
      %v5324 = vpop.f32.mrb[0].mxu0
      %v5325 = vadd.f32 %v3420, %v5324
      %v5326 = vpop.f32.mrb[0].mxu0
      %v5327 = vadd.f32 %v3420, %v5326
      %5328 = vmatprep.mubr.bf16.mxu0 0
      %5329 = vmatmul.mubr.bf16.gmra.mrb[0].mxu0 %v4108
      %v5330 = vpop.f32.mrb[0].mxu0
      %v5331 = vadd.f32 %v3425, %v5330
      %v5332 = vpop.f32.mrb[0].mxu0
      %v5333 = vadd.f32 %v3425, %v5332
      %v5334 = vpop.f32.mrb[0].mxu0
      %v5335 = vadd.f32 %v3430, %v5334
      %v5336 = vpop.f32.mrb[0].mxu0
      %v5337 = vadd.f32 %v3430, %v5336
      %5338 = vmatprep.mubr.bf16.mxu0 0
      %5339 = vmatmul.mubr.bf16.gmra.mrb[0].mxu0 %v4111
      %v5340 = vpop.f32.mrb[0].mxu0
      %v5341 = vadd.f32 %v3435, %v5340
      %v5342 = vpop.f32.mrb[0].mxu0
      %v5343 = vadd.f32 %v3435, %v5342
      %v5344 = vpop.f32.mrb[0].mxu0
      %v5345 = vadd.f32 %v3440, %v5344
      %v5346 = vpop.f32.mrb[0].mxu0
      %v5347 = vadd.f32 %v3440, %v5346
      %5348 = vmatprep.mubr.bf16.mxu0 0
      %5349 = vmatmul.mubr.bf16.gmra.mrb[0].mxu0 %v4114
      %v5350 = vpop.f32.mrb[0].mxu0
      %v5351 = vadd.f32 %v3445, %v5350
      %v5352 = vpop.f32.mrb[0].mxu0
      %v5353 = vadd.f32 %v3445, %v5352
      %v5354 = vpop.f32.mrb[0].mxu0
      %v5355 = vadd.f32 %v3450, %v5354
      %v5356 = vpop.f32.mrb[0].mxu0
      %v5357 = vadd.f32 %v3450, %v5356
      %5358 = vdwg.mxu0
      %5359 = vmatprep.subr.bf16.mxu0 %v3859
      %5360 = vmatpush1.bf16.msra.mxu0 %v3858
      %5361 = vmatprep.subr.bf16.mxu0 %v3891
      %5362 = vmatpush1.bf16.msra.mxu0 %v3890
      %5363 = vmatprep.subr.bf16.mxu0 %v3923
      %5364 = vmatpush1.bf16.msra.mxu0 %v3922
      %5365 = vmatprep.subr.bf16.mxu0 %v3955
      %5366 = vmatpush1.bf16.msra.mxu0 %v3954
      %5367 = vmatprep.subr.bf16.mxu0 0
      %5368 = vmatpush1.bf16.msra.mxu0 0
      %5369 = vmatprep.subr.bf16.mxu0 0
      %5370 = vmatpush1.bf16.msra.mxu0 0
      %5371 = vmatprep.subr.bf16.mxu0 0
      %5372 = vmatpush1.bf16.msra.mxu0 0
      %5373 = vmatprep.subr.bf16.mxu0 0
      %5374 = vmatpush1.bf16.msra.mxu0 0
      %5375 = vmatprep.subr.bf16.mxu0 0
      %5376 = vmatpush1.bf16.msra.mxu0 0
      %5377 = vmatprep.subr.bf16.mxu0 0
      %5378 = vmatpush1.bf16.msra.mxu0 0
      %5379 = vmatprep.subr.bf16.mxu0 0
      %5380 = vmatpush1.bf16.msra.mxu0 0
      %5381 = vmatprep.subr.bf16.mxu0 0
      %5382 = vmatpush1.bf16.msra.mxu0 0
      %5383 = vmatprep.subr.bf16.mxu0 0
      %5384 = vmatpush1.bf16.msra.mxu0 0
      %5385 = vmatprep.subr.bf16.mxu0 0
      %5386 = vmatpush1.bf16.msra.mxu0 0
      %5387 = vmatprep.subr.bf16.mxu0 0
      %5388 = vmatpush1.bf16.msra.mxu0 0
      %5389 = vmatprep.subr.bf16.mxu0 0
      %5390 = vmatpush1.bf16.msra.mxu0 0
      %5391 = vmatprep.mubr.bf16.mxu0 0
      %5392 = vmatmul.mubr.bf16.gmra.mrb[0].mxu0 %v4093
      %v5393 = vpop.f32.mrb[0].mxu0
      %v5394 = vadd.f32 %v3375, %v5393
      %v5395 = vpop.f32.mrb[0].mxu0
      %v5396 = vadd.f32 %v3375, %v5395
      %v5397 = vpop.f32.mrb[0].mxu0
      %v5398 = vadd.f32 %v3380, %v5397
      %v5399 = vpop.f32.mrb[0].mxu0
      %v5400 = vadd.f32 %v3380, %v5399
      %5401 = vmatprep.mubr.bf16.mxu0 0
      %5402 = vmatmul.mubr.bf16.gmra.mrb[0].mxu0 %v4096
      %v5403 = vpop.f32.mrb[0].mxu0
      %v5404 = vadd.f32 %v3385, %v5403
      %v5405 = vpop.f32.mrb[0].mxu0
      %v5406 = vadd.f32 %v3385, %v5405
      %v5407 = vpop.f32.mrb[0].mxu0
      %v5408 = vadd.f32 %v3390, %v5407
      %v5409 = vpop.f32.mrb[0].mxu0
      %v5410 = vadd.f32 %v3390, %v5409
      %5411 = vmatprep.mubr.bf16.mxu0 0
      %5412 = vmatmul.mubr.bf16.gmra.mrb[0].mxu0 %v4099
      %v5413 = vpop.f32.mrb[0].mxu0
      %v5414 = vadd.f32 %v3395, %v5413
      %v5415 = vpop.f32.mrb[0].mxu0
      %v5416 = vadd.f32 %v3395, %v5415
      %v5417 = vpop.f32.mrb[0].mxu0
      %v5418 = vadd.f32 %v3400, %v5417
      %v5419 = vpop.f32.mrb[0].mxu0
      %v5420 = vadd.f32 %v3400, %v5419
      %5421 = vmatprep.mubr.bf16.mxu0 0
      %5422 = vmatmul.mubr.bf16.gmra.mrb[0].mxu0 %v4102
      %v5423 = vpop.f32.mrb[0].mxu0
      %v5424 = vadd.f32 %v3405, %v5423
      %v5425 = vpop.f32.mrb[0].mxu0
      %v5426 = vadd.f32 %v3405, %v5425
      %v5427 = vpop.f32.mrb[0].mxu0
      %v5428 = vadd.f32 %v3410, %v5427
      %v5429 = vpop.f32.mrb[0].mxu0
      %v5430 = vadd.f32 %v3410, %v5429
      %5431 = vmatprep.mubr.bf16.mxu0 0
      %5432 = vmatmul.mubr.bf16.gmra.mrb[0].mxu0 %v4105
      %v5433 = vpop.f32.mrb[0].mxu0
      %v5434 = vadd.f32 %v3415, %v5433
      %v5435 = vpop.f32.mrb[0].mxu0
      %v5436 = vadd.f32 %v3415, %v5435
      %v5437 = vpop.f32.mrb[0].mxu0
      %v5438 = vadd.f32 %v3420, %v5437
      %v5439 = vpop.f32.mrb[0].mxu0
      %v5440 = vadd.f32 %v3420, %v5439
      %5441 = vmatprep.mubr.bf16.mxu0 0
      %5442 = vmatmul.mubr.bf16.gmra.mrb[0].mxu0 %v4108
      %v5443 = vpop.f32.mrb[0].mxu0
      %v5444 = vadd.f32 %v3425, %v5443
      %v5445 = vpop.f32.mrb[0].mxu0
      %v5446 = vadd.f32 %v3425, %v5445
      %v5447 = vpop.f32.mrb[0].mxu0
      %v5448 = vadd.f32 %v3430, %v5447
      %v5449 = vpop.f32.mrb[0].mxu0
      %v5450 = vadd.f32 %v3430, %v5449
      %5451 = vmatprep.mubr.bf16.mxu0 0
      %5452 = vmatmul.mubr.bf16.gmra.mrb[0].mxu0 %v4111
      %v5453 = vpop.f32.mrb[0].mxu0
      %v5454 = vadd.f32 %v3435, %v5453
      %v5455 = vpop.f32.mrb[0].mxu0
      %v5456 = vadd.f32 %v3435, %v5455
      %v5457 = vpop.f32.mrb[0].mxu0
      %v5458 = vadd.f32 %v3440, %v5457
      %v5459 = vpop.f32.mrb[0].mxu0
      %v5460 = vadd.f32 %v3440, %v5459
      %5461 = vmatprep.mubr.bf16.mxu0 0
      %5462 = vmatmul.mubr.bf16.gmra.mrb[0].mxu0 %v4114
      %v5463 = vpop.f32.mrb[0].mxu0
      %v5464 = vadd.f32 %v3445, %v5463
      %v5465 = vpop.f32.mrb[0].mxu0
      %v5466 = vadd.f32 %v3445, %v5465
      %v5467 = vpop.f32.mrb[0].mxu0
      %v5468 = vadd.f32 %v3450, %v5467
      %v5469 = vpop.f32.mrb[0].mxu0
      %v5470 = vadd.f32 %v3450, %v5469
      %5471 = vdwg.mxu0
      %5472 = vmatprep.subr.bf16.mxu0 %v3861
      %5473 = vmatpush1.bf16.msra.mxu0 %v3860
      %5474 = vmatprep.subr.bf16.mxu0 %v3893
      %5475 = vmatpush1.bf16.msra.mxu0 %v3892
      %5476 = vmatprep.subr.bf16.mxu0 %v3925
      %5477 = vmatpush1.bf16.msra.mxu0 %v3924
      %5478 = vmatprep.subr.bf16.mxu0 %v3957
      %5479 = vmatpush1.bf16.msra.mxu0 %v3956
      %5480 = vmatprep.subr.bf16.mxu0 0
      %5481 = vmatpush1.bf16.msra.mxu0 0
      %5482 = vmatprep.subr.bf16.mxu0 0
      %5483 = vmatpush1.bf16.msra.mxu0 0
      %5484 = vmatprep.subr.bf16.mxu0 0
      %5485 = vmatpush1.bf16.msra.mxu0 0
      %5486 = vmatprep.subr.bf16.mxu0 0
      %5487 = vmatpush1.bf16.msra.mxu0 0
      %5488 = vmatprep.subr.bf16.mxu0 0
      %5489 = vmatpush1.bf16.msra.mxu0 0
      %5490 = vmatprep.subr.bf16.mxu0 0
      %5491 = vmatpush1.bf16.msra.mxu0 0
      %5492 = vmatprep.subr.bf16.mxu0 0
      %5493 = vmatpush1.bf16.msra.mxu0 0
      %5494 = vmatprep.subr.bf16.mxu0 0
      %5495 = vmatpush1.bf16.msra.mxu0 0
      %5496 = vmatprep.subr.bf16.mxu0 0
      %5497 = vmatpush1.bf16.msra.mxu0 0
      %5498 = vmatprep.subr.bf16.mxu0 0
      %5499 = vmatpush1.bf16.msra.mxu0 0
      %5500 = vmatprep.subr.bf16.mxu0 0
      %5501 = vmatpush1.bf16.msra.mxu0 0
      %5502 = vmatprep.subr.bf16.mxu0 0
      %5503 = vmatpush1.bf16.msra.mxu0 0
      %5504 = vmatprep.mubr.bf16.mxu0 0
      %5505 = vmatmul.mubr.bf16.gmra.mrb[0].mxu0 %v4093
      %v5506 = vpop.f32.mrb[0].mxu0
      %v5507 = vadd.f32 %v3375, %v5506
      %v5508 = vpop.f32.mrb[0].mxu0
      %v5509 = vadd.f32 %v3375, %v5508
      %v5510 = vpop.f32.mrb[0].mxu0
      %v5511 = vadd.f32 %v3380, %v5510
      %v5512 = vpop.f32.mrb[0].mxu0
      %v5513 = vadd.f32 %v3380, %v5512
      %5514 = vmatprep.mubr.bf16.mxu0 0
      %5515 = vmatmul.mubr.bf16.gmra.mrb[0].mxu0 %v4096
      %v5516 = vpop.f32.mrb[0].mxu0
      %v5517 = vadd.f32 %v3385, %v5516
      %v5518 = vpop.f32.mrb[0].mxu0
      %v5519 = vadd.f32 %v3385, %v5518
      %v5520 = vpop.f32.mrb[0].mxu0
      %v5521 = vadd.f32 %v3390, %v5520
      %v5522 = vpop.f32.mrb[0].mxu0
      %v5523 = vadd.f32 %v3390, %v5522
      %5524 = vmatprep.mubr.bf16.mxu0 0
      %5525 = vmatmul.mubr.bf16.gmra.mrb[0].mxu0 %v4099
      %v5526 = vpop.f32.mrb[0].mxu0
      %v5527 = vadd.f32 %v3395, %v5526
      %v5528 = vpop.f32.mrb[0].mxu0
      %v5529 = vadd.f32 %v3395, %v5528
      %v5530 = vpop.f32.mrb[0].mxu0
      %v5531 = vadd.f32 %v3400, %v5530
      %v5532 = vpop.f32.mrb[0].mxu0
      %v5533 = vadd.f32 %v3400, %v5532
      %5534 = vmatprep.mubr.bf16.mxu0 0
      %5535 = vmatmul.mubr.bf16.gmra.mrb[0].mxu0 %v4102
      %v5536 = vpop.f32.mrb[0].mxu0
      %v5537 = vadd.f32 %v3405, %v5536
      %v5538 = vpop.f32.mrb[0].mxu0
      %v5539 = vadd.f32 %v3405, %v5538
      %v5540 = vpop.f32.mrb[0].mxu0
      %v5541 = vadd.f32 %v3410, %v5540
      %v5542 = vpop.f32.mrb[0].mxu0
      %v5543 = vadd.f32 %v3410, %v5542
      %5544 = vmatprep.mubr.bf16.mxu0 0
      %5545 = vmatmul.mubr.bf16.gmra.mrb[0].mxu0 %v4105
      %v5546 = vpop.f32.mrb[0].mxu0
      %v5547 = vadd.f32 %v3415, %v5546
      %v5548 = vpop.f32.mrb[0].mxu0
      %v5549 = vadd.f32 %v3415, %v5548
      %v5550 = vpop.f32.mrb[0].mxu0
      %v5551 = vadd.f32 %v3420, %v5550
      %v5552 = vpop.f32.mrb[0].mxu0
      %v5553 = vadd.f32 %v3420, %v5552
      %5554 = vmatprep.mubr.bf16.mxu0 0
      %5555 = vmatmul.mubr.bf16.gmra.mrb[0].mxu0 %v4108
      %v5556 = vpop.f32.mrb[0].mxu0
      %v5557 = vadd.f32 %v3425, %v5556
      %v5558 = vpop.f32.mrb[0].mxu0
      %v5559 = vadd.f32 %v3425, %v5558
      %v5560 = vpop.f32.mrb[0].mxu0
      %v5561 = vadd.f32 %v3430, %v5560
      %v5562 = vpop.f32.mrb[0].mxu0
      %v5563 = vadd.f32 %v3430, %v5562
      %5564 = vmatprep.mubr.bf16.mxu0 0
      %5565 = vmatmul.mubr.bf16.gmra.mrb[0].mxu0 %v4111
      %v5566 = vpop.f32.mrb[0].mxu0
      %v5567 = vadd.f32 %v3435, %v5566
      %v5568 = vpop.f32.mrb[0].mxu0
      %v5569 = vadd.f32 %v3435, %v5568
      %v5570 = vpop.f32.mrb[0].mxu0
      %v5571 = vadd.f32 %v3440, %v5570
      %v5572 = vpop.f32.mrb[0].mxu0
      %v5573 = vadd.f32 %v3440, %v5572
      %5574 = vmatprep.mubr.bf16.mxu0 0
      %5575 = vmatmul.mubr.bf16.gmra.mrb[0].mxu0 %v4114
      %v5576 = vpop.f32.mrb[0].mxu0
      %v5577 = vadd.f32 %v3445, %v5576
      %v5578 = vpop.f32.mrb[0].mxu0
      %v5579 = vadd.f32 %v3445, %v5578
      %v5580 = vpop.f32.mrb[0].mxu0
      %v5581 = vadd.f32 %v3450, %v5580
      %v5582 = vpop.f32.mrb[0].mxu0
      %v5583 = vadd.f32 %v3450, %v5582
      %5584 = vdwg.mxu0
      %5585 = vmatprep.subr.bf16.mxu0 %v3863
      %5586 = vmatpush1.bf16.msra.mxu0 %v3862
      %5587 = vmatprep.subr.bf16.mxu0 %v3895
      %5588 = vmatpush1.bf16.msra.mxu0 %v3894
      %5589 = vmatprep.subr.bf16.mxu0 %v3927
      %5590 = vmatpush1.bf16.msra.mxu0 %v3926
      %5591 = vmatprep.subr.bf16.mxu0 %v3959
      %5592 = vmatpush1.bf16.msra.mxu0 %v3958
      %5593 = vmatprep.subr.bf16.mxu0 0
      %5594 = vmatpush1.bf16.msra.mxu0 0
      %5595 = vmatprep.subr.bf16.mxu0 0
      %5596 = vmatpush1.bf16.msra.mxu0 0
      %5597 = vmatprep.subr.bf16.mxu0 0
      %5598 = vmatpush1.bf16.msra.mxu0 0
      %5599 = vmatprep.subr.bf16.mxu0 0
      %5600 = vmatpush1.bf16.msra.mxu0 0
      %5601 = vmatprep.subr.bf16.mxu0 0
      %5602 = vmatpush1.bf16.msra.mxu0 0
      %5603 = vmatprep.subr.bf16.mxu0 0
      %5604 = vmatpush1.bf16.msra.mxu0 0
      %5605 = vmatprep.subr.bf16.mxu0 0
      %5606 = vmatpush1.bf16.msra.mxu0 0
      %5607 = vmatprep.subr.bf16.mxu0 0
      %5608 = vmatpush1.bf16.msra.mxu0 0
      %5609 = vmatprep.subr.bf16.mxu0 0
      %5610 = vmatpush1.bf16.msra.mxu0 0
      %5611 = vmatprep.subr.bf16.mxu0 0
      %5612 = vmatpush1.bf16.msra.mxu0 0
      %5613 = vmatprep.subr.bf16.mxu0 0
      %5614 = vmatpush1.bf16.msra.mxu0 0
      %5615 = vmatprep.subr.bf16.mxu0 0
      %5616 = vmatpush1.bf16.msra.mxu0 0
      %5617 = vmatprep.mubr.bf16.mxu0 0
      %5618 = vmatmul.mubr.bf16.gmra.mrb[0].mxu0 %v4093
      %v5619 = vpop.f32.mrb[0].mxu0
      %v5620 = vadd.f32 %v3375, %v5619
      %v5621 = vpop.f32.mrb[0].mxu0
      %v5622 = vadd.f32 %v3375, %v5621
      %v5623 = vpop.f32.mrb[0].mxu0
      %v5624 = vadd.f32 %v3380, %v5623
      %v5625 = vpop.f32.mrb[0].mxu0
      %v5626 = vadd.f32 %v3380, %v5625
      %5627 = vmatprep.mubr.bf16.mxu0 0
      %5628 = vmatmul.mubr.bf16.gmra.mrb[0].mxu0 %v4096
      %v5629 = vpop.f32.mrb[0].mxu0
      %v5630 = vadd.f32 %v3385, %v5629
      %v5631 = vpop.f32.mrb[0].mxu0
      %v5632 = vadd.f32 %v3385, %v5631
      %v5633 = vpop.f32.mrb[0].mxu0
      %v5634 = vadd.f32 %v3390, %v5633
      %v5635 = vpop.f32.mrb[0].mxu0
      %v5636 = vadd.f32 %v3390, %v5635
      %5637 = vmatprep.mubr.bf16.mxu0 0
      %5638 = vmatmul.mubr.bf16.gmra.mrb[0].mxu0 %v4099
      %v5639 = vpop.f32.mrb[0].mxu0
      %v5640 = vadd.f32 %v3395, %v5639
      %v5641 = vpop.f32.mrb[0].mxu0
      %v5642 = vadd.f32 %v3395, %v5641
      %v5643 = vpop.f32.mrb[0].mxu0
      %v5644 = vadd.f32 %v3400, %v5643
      %v5645 = vpop.f32.mrb[0].mxu0
      %v5646 = vadd.f32 %v3400, %v5645
      %5647 = vmatprep.mubr.bf16.mxu0 0
      %5648 = vmatmul.mubr.bf16.gmra.mrb[0].mxu0 %v4102
      %v5649 = vpop.f32.mrb[0].mxu0
      %v5650 = vadd.f32 %v3405, %v5649
      %v5651 = vpop.f32.mrb[0].mxu0
      %v5652 = vadd.f32 %v3405, %v5651
      %v5653 = vpop.f32.mrb[0].mxu0
      %v5654 = vadd.f32 %v3410, %v5653
      %v5655 = vpop.f32.mrb[0].mxu0
      %v5656 = vadd.f32 %v3410, %v5655
      %5657 = vmatprep.mubr.bf16.mxu0 0
      %5658 = vmatmul.mubr.bf16.gmra.mrb[0].mxu0 %v4105
      %v5659 = vpop.f32.mrb[0].mxu0
      %v5660 = vadd.f32 %v3415, %v5659
      %v5661 = vpop.f32.mrb[0].mxu0
      %v5662 = vadd.f32 %v3415, %v5661
      %v5663 = vpop.f32.mrb[0].mxu0
      %v5664 = vadd.f32 %v3420, %v5663
      %v5665 = vpop.f32.mrb[0].mxu0
      %v5666 = vadd.f32 %v3420, %v5665
      %5667 = vmatprep.mubr.bf16.mxu0 0
      %5668 = vmatmul.mubr.bf16.gmra.mrb[0].mxu0 %v4108
      %v5669 = vpop.f32.mrb[0].mxu0
      %v5670 = vadd.f32 %v3425, %v5669
      %v5671 = vpop.f32.mrb[0].mxu0
      %v5672 = vadd.f32 %v3425, %v5671
      %v5673 = vpop.f32.mrb[0].mxu0
      %v5674 = vadd.f32 %v3430, %v5673
      %v5675 = vpop.f32.mrb[0].mxu0
      %v5676 = vadd.f32 %v3430, %v5675
      %5677 = vmatprep.mubr.bf16.mxu0 0
      %5678 = vmatmul.mubr.bf16.gmra.mrb[0].mxu0 %v4111
      %v5679 = vpop.f32.mrb[0].mxu0
      %v5680 = vadd.f32 %v3435, %v5679
      %v5681 = vpop.f32.mrb[0].mxu0
      %v5682 = vadd.f32 %v3435, %v5681
      %v5683 = vpop.f32.mrb[0].mxu0
      %v5684 = vadd.f32 %v3440, %v5683
      %v5685 = vpop.f32.mrb[0].mxu0
      %v5686 = vadd.f32 %v3440, %v5685
      %5687 = vmatprep.mubr.bf16.mxu0 0
      %5688 = vmatmul.mubr.bf16.gmra.mrb[0].mxu0 %v4114
      %v5689 = vpop.f32.mrb[0].mxu0
      %v5690 = vadd.f32 %v3445, %v5689
      %v5691 = vpop.f32.mrb[0].mxu0
      %v5692 = vadd.f32 %v3445, %v5691
      %v5693 = vpop.f32.mrb[0].mxu0
      %v5694 = vadd.f32 %v3450, %v5693
      %v5695 = vpop.f32.mrb[0].mxu0
      %v5696 = vadd.f32 %v3450, %v5695
      %5697 = vdwg.mxu0
      %5698 = vmatprep.subr.bf16.mxu0 %v3865
      %5699 = vmatpush1.bf16.msra.mxu0 %v3864
      %5700 = vmatprep.subr.bf16.mxu0 %v3897
      %5701 = vmatpush1.bf16.msra.mxu0 %v3896
      %5702 = vmatprep.subr.bf16.mxu0 %v3929
      %5703 = vmatpush1.bf16.msra.mxu0 %v3928
      %5704 = vmatprep.subr.bf16.mxu0 %v3961
      %5705 = vmatpush1.bf16.msra.mxu0 %v3960
      %5706 = vmatprep.subr.bf16.mxu0 0
      %5707 = vmatpush1.bf16.msra.mxu0 0
      %5708 = vmatprep.subr.bf16.mxu0 0
      %5709 = vmatpush1.bf16.msra.mxu0 0
      %5710 = vmatprep.subr.bf16.mxu0 0
      %5711 = vmatpush1.bf16.msra.mxu0 0
      %5712 = vmatprep.subr.bf16.mxu0 0
      %5713 = vmatpush1.bf16.msra.mxu0 0
      %5714 = vmatprep.subr.bf16.mxu0 0
      %5715 = vmatpush1.bf16.msra.mxu0 0
      %5716 = vmatprep.subr.bf16.mxu0 0
      %5717 = vmatpush1.bf16.msra.mxu0 0
      %5718 = vmatprep.subr.bf16.mxu0 0
      %5719 = vmatpush1.bf16.msra.mxu0 0
      %5720 = vmatprep.subr.bf16.mxu0 0
      %5721 = vmatpush1.bf16.msra.mxu0 0
      %5722 = vmatprep.subr.bf16.mxu0 0
      %5723 = vmatpush1.bf16.msra.mxu0 0
      %5724 = vmatprep.subr.bf16.mxu0 0
      %5725 = vmatpush1.bf16.msra.mxu0 0
      %5726 = vmatprep.subr.bf16.mxu0 0
      %5727 = vmatpush1.bf16.msra.mxu0 0
      %5728 = vmatprep.subr.bf16.mxu0 0
      %5729 = vmatpush1.bf16.msra.mxu0 0
      %5730 = vmatprep.mubr.bf16.mxu0 0
      %5731 = vmatmul.mubr.bf16.gmra.mrb[0].mxu0 %v4093
      %v5732 = vpop.f32.mrb[0].mxu0
      %v5733 = vadd.f32 %v3375, %v5732
      %v5734 = vpop.f32.mrb[0].mxu0
      %v5735 = vadd.f32 %v3375, %v5734
      %v5736 = vpop.f32.mrb[0].mxu0
      %v5737 = vadd.f32 %v3380, %v5736
      %v5738 = vpop.f32.mrb[0].mxu0
      %v5739 = vadd.f32 %v3380, %v5738
      %5740 = vmatprep.mubr.bf16.mxu0 0
      %5741 = vmatmul.mubr.bf16.gmra.mrb[0].mxu0 %v4096
      %v5742 = vpop.f32.mrb[0].mxu0
      %v5743 = vadd.f32 %v3385, %v5742
      %v5744 = vpop.f32.mrb[0].mxu0
      %v5745 = vadd.f32 %v3385, %v5744
      %v5746 = vpop.f32.mrb[0].mxu0
      %v5747 = vadd.f32 %v3390, %v5746
      %v5748 = vpop.f32.mrb[0].mxu0
      %v5749 = vadd.f32 %v3390, %v5748
      %5750 = vmatprep.mubr.bf16.mxu0 0
      %5751 = vmatmul.mubr.bf16.gmra.mrb[0].mxu0 %v4099
      %v5752 = vpop.f32.mrb[0].mxu0
      %v5753 = vadd.f32 %v3395, %v5752
      %v5754 = vpop.f32.mrb[0].mxu0
      %v5755 = vadd.f32 %v3395, %v5754
      %v5756 = vpop.f32.mrb[0].mxu0
      %v5757 = vadd.f32 %v3400, %v5756
      %v5758 = vpop.f32.mrb[0].mxu0
      %v5759 = vadd.f32 %v3400, %v5758
      %5760 = vmatprep.mubr.bf16.mxu0 0
      %5761 = vmatmul.mubr.bf16.gmra.mrb[0].mxu0 %v4102
      %v5762 = vpop.f32.mrb[0].mxu0
      %v5763 = vadd.f32 %v3405, %v5762
      %v5764 = vpop.f32.mrb[0].mxu0
      %v5765 = vadd.f32 %v3405, %v5764
      %v5766 = vpop.f32.mrb[0].mxu0
      %v5767 = vadd.f32 %v3410, %v5766
      %v5768 = vpop.f32.mrb[0].mxu0
      %v5769 = vadd.f32 %v3410, %v5768
      %5770 = vmatprep.mubr.bf16.mxu0 0
      %5771 = vmatmul.mubr.bf16.gmra.mrb[0].mxu0 %v4105
      %v5772 = vpop.f32.mrb[0].mxu0
      %v5773 = vadd.f32 %v3415, %v5772
      %v5774 = vpop.f32.mrb[0].mxu0
      %v5775 = vadd.f32 %v3415, %v5774
      %v5776 = vpop.f32.mrb[0].mxu0
      %v5777 = vadd.f32 %v3420, %v5776
      %v5778 = vpop.f32.mrb[0].mxu0
      %v5779 = vadd.f32 %v3420, %v5778
      %5780 = vmatprep.mubr.bf16.mxu0 0
      %5781 = vmatmul.mubr.bf16.gmra.mrb[0].mxu0 %v4108
      %v5782 = vpop.f32.mrb[0].mxu0
      %v5783 = vadd.f32 %v3425, %v5782
      %v5784 = vpop.f32.mrb[0].mxu0
      %v5785 = vadd.f32 %v3425, %v5784
      %v5786 = vpop.f32.mrb[0].mxu0
      %v5787 = vadd.f32 %v3430, %v5786
      %v5788 = vpop.f32.mrb[0].mxu0
      %v5789 = vadd.f32 %v3430, %v5788
      %5790 = vmatprep.mubr.bf16.mxu0 0
      %5791 = vmatmul.mubr.bf16.gmra.mrb[0].mxu0 %v4111
      %v5792 = vpop.f32.mrb[0].mxu0
      %v5793 = vadd.f32 %v3435, %v5792
      %v5794 = vpop.f32.mrb[0].mxu0
      %v5795 = vadd.f32 %v3435, %v5794
      %v5796 = vpop.f32.mrb[0].mxu0
      %v5797 = vadd.f32 %v3440, %v5796
      %v5798 = vpop.f32.mrb[0].mxu0
      %v5799 = vadd.f32 %v3440, %v5798
      %5800 = vmatprep.mubr.bf16.mxu0 0
      %5801 = vmatmul.mubr.bf16.gmra.mrb[0].mxu0 %v4114
      %v5802 = vpop.f32.mrb[0].mxu0
      %v5803 = vadd.f32 %v3445, %v5802
      %v5804 = vpop.f32.mrb[0].mxu0
      %v5805 = vadd.f32 %v3445, %v5804
      %v5806 = vpop.f32.mrb[0].mxu0
      %v5807 = vadd.f32 %v3450, %v5806
      %v5808 = vpop.f32.mrb[0].mxu0
      %v5809 = vadd.f32 %v3450, %v5808
      %5810 = vdwg.mxu0
      %5811 = vmatprep.subr.bf16.mxu0 %v3867
      %5812 = vmatpush1.bf16.msra.mxu0 %v3866
      %5813 = vmatprep.subr.bf16.mxu0 %v3899
      %5814 = vmatpush1.bf16.msra.mxu0 %v3898
      %5815 = vmatprep.subr.bf16.mxu0 %v3931
      %5816 = vmatpush1.bf16.msra.mxu0 %v3930
      %5817 = vmatprep.subr.bf16.mxu0 %v3963
      %5818 = vmatpush1.bf16.msra.mxu0 %v3962
      %5819 = vmatprep.subr.bf16.mxu0 0
      %5820 = vmatpush1.bf16.msra.mxu0 0
      %5821 = vmatprep.subr.bf16.mxu0 0
      %5822 = vmatpush1.bf16.msra.mxu0 0
      %5823 = vmatprep.subr.bf16.mxu0 0
      %5824 = vmatpush1.bf16.msra.mxu0 0
      %5825 = vmatprep.subr.bf16.mxu0 0
      %5826 = vmatpush1.bf16.msra.mxu0 0
      %5827 = vmatprep.subr.bf16.mxu0 0
      %5828 = vmatpush1.bf16.msra.mxu0 0
      %5829 = vmatprep.subr.bf16.mxu0 0
      %5830 = vmatpush1.bf16.msra.mxu0 0
      %5831 = vmatprep.subr.bf16.mxu0 0
      %5832 = vmatpush1.bf16.msra.mxu0 0
      %5833 = vmatprep.subr.bf16.mxu0 0
      %5834 = vmatpush1.bf16.msra.mxu0 0
      %5835 = vmatprep.subr.bf16.mxu0 0
      %5836 = vmatpush1.bf16.msra.mxu0 0
      %5837 = vmatprep.subr.bf16.mxu0 0
      %5838 = vmatpush1.bf16.msra.mxu0 0
      %5839 = vmatprep.subr.bf16.mxu0 0
      %5840 = vmatpush1.bf16.msra.mxu0 0
      %5841 = vmatprep.subr.bf16.mxu0 0
      %5842 = vmatpush1.bf16.msra.mxu0 0
      %5843 = vmatprep.mubr.bf16.mxu0 0
      %5844 = vmatmul.mubr.bf16.gmra.mrb[0].mxu0 %v4093
      %v5845 = vpop.f32.mrb[0].mxu0
      %v5846 = vadd.f32 %v3375, %v5845
      %v5847 = vpop.f32.mrb[0].mxu0
      %v5848 = vadd.f32 %v3375, %v5847
      %v5849 = vpop.f32.mrb[0].mxu0
      %v5850 = vadd.f32 %v3380, %v5849
      %v5851 = vpop.f32.mrb[0].mxu0
      %v5852 = vadd.f32 %v3380, %v5851
      %5853 = vmatprep.mubr.bf16.mxu0 0
      %5854 = vmatmul.mubr.bf16.gmra.mrb[0].mxu0 %v4096
      %v5855 = vpop.f32.mrb[0].mxu0
      %v5856 = vadd.f32 %v3385, %v5855
      %v5857 = vpop.f32.mrb[0].mxu0
      %v5858 = vadd.f32 %v3385, %v5857
      %v5859 = vpop.f32.mrb[0].mxu0
      %v5860 = vadd.f32 %v3390, %v5859
      %v5861 = vpop.f32.mrb[0].mxu0
      %v5862 = vadd.f32 %v3390, %v5861
      %5863 = vmatprep.mubr.bf16.mxu0 0
      %5864 = vmatmul.mubr.bf16.gmra.mrb[0].mxu0 %v4099
      %v5865 = vpop.f32.mrb[0].mxu0
      %v5866 = vadd.f32 %v3395, %v5865
      %v5867 = vpop.f32.mrb[0].mxu0
      %v5868 = vadd.f32 %v3395, %v5867
      %v5869 = vpop.f32.mrb[0].mxu0
      %v5870 = vadd.f32 %v3400, %v5869
      %v5871 = vpop.f32.mrb[0].mxu0
      %v5872 = vadd.f32 %v3400, %v5871
      %5873 = vmatprep.mubr.bf16.mxu0 0
      %5874 = vmatmul.mubr.bf16.gmra.mrb[0].mxu0 %v4102
      %v5875 = vpop.f32.mrb[0].mxu0
      %v5876 = vadd.f32 %v3405, %v5875
      %v5877 = vpop.f32.mrb[0].mxu0
      %v5878 = vadd.f32 %v3405, %v5877
      %v5879 = vpop.f32.mrb[0].mxu0
      %v5880 = vadd.f32 %v3410, %v5879
      %v5881 = vpop.f32.mrb[0].mxu0
      %v5882 = vadd.f32 %v3410, %v5881
      %5883 = vmatprep.mubr.bf16.mxu0 0
      %5884 = vmatmul.mubr.bf16.gmra.mrb[0].mxu0 %v4105
      %v5885 = vpop.f32.mrb[0].mxu0
      %v5886 = vadd.f32 %v3415, %v5885
      %v5887 = vpop.f32.mrb[0].mxu0
      %v5888 = vadd.f32 %v3415, %v5887
      %v5889 = vpop.f32.mrb[0].mxu0
      %v5890 = vadd.f32 %v3420, %v5889
      %v5891 = vpop.f32.mrb[0].mxu0
      %v5892 = vadd.f32 %v3420, %v5891
      %5893 = vmatprep.mubr.bf16.mxu0 0
      %5894 = vmatmul.mubr.bf16.gmra.mrb[0].mxu0 %v4108
      %v5895 = vpop.f32.mrb[0].mxu0
      %v5896 = vadd.f32 %v3425, %v5895
      %v5897 = vpop.f32.mrb[0].mxu0
      %v5898 = vadd.f32 %v3425, %v5897
      %v5899 = vpop.f32.mrb[0].mxu0
      %v5900 = vadd.f32 %v3430, %v5899
      %v5901 = vpop.f32.mrb[0].mxu0
      %v5902 = vadd.f32 %v3430, %v5901
      %5903 = vmatprep.mubr.bf16.mxu0 0
      %5904 = vmatmul.mubr.bf16.gmra.mrb[0].mxu0 %v4111
      %v5905 = vpop.f32.mrb[0].mxu0
      %v5906 = vadd.f32 %v3435, %v5905
      %v5907 = vpop.f32.mrb[0].mxu0
      %v5908 = vadd.f32 %v3435, %v5907
      %v5909 = vpop.f32.mrb[0].mxu0
      %v5910 = vadd.f32 %v3440, %v5909
      %v5911 = vpop.f32.mrb[0].mxu0
      %v5912 = vadd.f32 %v3440, %v5911
      %5913 = vmatprep.mubr.bf16.mxu0 0
      %5914 = vmatmul.mubr.bf16.gmra.mrb[0].mxu0 %v4114
      %v5915 = vpop.f32.mrb[0].mxu0
      %v5916 = vadd.f32 %v3445, %v5915
      %v5917 = vpop.f32.mrb[0].mxu0
      %v5918 = vadd.f32 %v3445, %v5917
      %v5919 = vpop.f32.mrb[0].mxu0
      %v5920 = vadd.f32 %v3450, %v5919
      %v5921 = vpop.f32.mrb[0].mxu0
      %v5922 = vadd.f32 %v3450, %v5921
      %5923 = vdwg.mxu0
      %v5924 = vmax.f32 %v4151, 0.0
      %v5925 = vmax.f32 %v4153, 0.0
      %v5926 = vmax.f32 %v4264, 0.0
      %v5927 = vmax.f32 %v4266, 0.0
      %v5928 = vmax.f32 %v4377, 0.0
      %v5929 = vmax.f32 %v4379, 0.0
      %v5930 = vmax.f32 %v4490, 0.0
      %v5931 = vmax.f32 %v4492, 0.0
      %v5932 = vmax.f32 %v4603, 0.0
      %v5933 = vmax.f32 %v4605, 0.0
      %v5934 = vmax.f32 %v4716, 0.0
      %v5935 = vmax.f32 %v4718, 0.0
      %v5936 = vmax.f32 %v4829, 0.0
      %v5937 = vmax.f32 %v4831, 0.0
      %v5938 = vmax.f32 %v4942, 0.0
      %v5939 = vmax.f32 %v4944, 0.0
      %v5940 = vmax.f32 %v5055, 0.0
      %v5941 = vmax.f32 %v5057, 0.0
      %v5942 = vmax.f32 %v5168, 0.0
      %v5943 = vmax.f32 %v5170, 0.0
      %v5944 = vmax.f32 %v5281, 0.0
      %v5945 = vmax.f32 %v5283, 0.0
      %v5946 = vmax.f32 %v5394, 0.0
      %v5947 = vmax.f32 %v5396, 0.0
      %v5948 = vmax.f32 %v5507, 0.0
      %v5949 = vmax.f32 %v5509, 0.0
      %v5950 = vmax.f32 %v5620, 0.0
      %v5951 = vmax.f32 %v5622, 0.0
      %v5952 = vmax.f32 %v5733, 0.0
      %v5953 = vmax.f32 %v5735, 0.0
      %v5954 = vmax.f32 %v5846, 0.0
      %v5955 = vmax.f32 %v5848, 0.0
      %v5956 = vmax.f32 %v4155, 0.0
      %v5957 = vmax.f32 %v4157, 0.0
      %v5958 = vmax.f32 %v4268, 0.0
      %v5959 = vmax.f32 %v4270, 0.0
      %v5960 = vmax.f32 %v4381, 0.0
      %v5961 = vmax.f32 %v4383, 0.0
      %v5962 = vmax.f32 %v4494, 0.0
      %v5963 = vmax.f32 %v4496, 0.0
      %v5964 = vmax.f32 %v4607, 0.0
      %v5965 = vmax.f32 %v4609, 0.0
      %v5966 = vmax.f32 %v4720, 0.0
      %v5967 = vmax.f32 %v4722, 0.0
      %v5968 = vmax.f32 %v4833, 0.0
      %v5969 = vmax.f32 %v4835, 0.0
      %v5970 = vmax.f32 %v4946, 0.0
      %v5971 = vmax.f32 %v4948, 0.0
      %v5972 = vmax.f32 %v5059, 0.0
      %v5973 = vmax.f32 %v5061, 0.0
      %v5974 = vmax.f32 %v5172, 0.0
      %v5975 = vmax.f32 %v5174, 0.0
      %v5976 = vmax.f32 %v5285, 0.0
      %v5977 = vmax.f32 %v5287, 0.0
      %v5978 = vmax.f32 %v5398, 0.0
      %v5979 = vmax.f32 %v5400, 0.0
      %v5980 = vmax.f32 %v5511, 0.0
      %v5981 = vmax.f32 %v5513, 0.0
      %v5982 = vmax.f32 %v5624, 0.0
      %v5983 = vmax.f32 %v5626, 0.0
      %v5984 = vmax.f32 %v5737, 0.0
      %v5985 = vmax.f32 %v5739, 0.0
      %v5986 = vmax.f32 %v5850, 0.0
      %v5987 = vmax.f32 %v5852, 0.0
      %v5988 = vmax.f32 %v4161, 0.0
      %v5989 = vmax.f32 %v4163, 0.0
      %v5990 = vmax.f32 %v4274, 0.0
      %v5991 = vmax.f32 %v4276, 0.0
      %v5992 = vmax.f32 %v4387, 0.0
      %v5993 = vmax.f32 %v4389, 0.0
      %v5994 = vmax.f32 %v4500, 0.0
      %v5995 = vmax.f32 %v4502, 0.0
      %v5996 = vmax.f32 %v4613, 0.0
      %v5997 = vmax.f32 %v4615, 0.0
      %v5998 = vmax.f32 %v4726, 0.0
      %v5999 = vmax.f32 %v4728, 0.0
      %v6000 = vmax.f32 %v4839, 0.0
      %v6001 = vmax.f32 %v4841, 0.0
      %v6002 = vmax.f32 %v4952, 0.0
      %v6003 = vmax.f32 %v4954, 0.0
      %v6004 = vmax.f32 %v5065, 0.0
      %v6005 = vmax.f32 %v5067, 0.0
      %v6006 = vmax.f32 %v5178, 0.0
      %v6007 = vmax.f32 %v5180, 0.0
      %v6008 = vmax.f32 %v5291, 0.0
      %v6009 = vmax.f32 %v5293, 0.0
      %v6010 = vmax.f32 %v5404, 0.0
      %v6011 = vmax.f32 %v5406, 0.0
      %v6012 = vmax.f32 %v5517, 0.0
      %v6013 = vmax.f32 %v5519, 0.0
      %v6014 = vmax.f32 %v5630, 0.0
      %v6015 = vmax.f32 %v5632, 0.0
      %v6016 = vmax.f32 %v5743, 0.0
      %v6017 = vmax.f32 %v5745, 0.0
      %v6018 = vmax.f32 %v5856, 0.0
      %v6019 = vmax.f32 %v5858, 0.0
      %v6020 = vmax.f32 %v4165, 0.0
      %v6021 = vmax.f32 %v4167, 0.0
      %v6022 = vmax.f32 %v4278, 0.0
      %v6023 = vmax.f32 %v4280, 0.0
      %v6024 = vmax.f32 %v4391, 0.0
      %v6025 = vmax.f32 %v4393, 0.0
      %v6026 = vmax.f32 %v4504, 0.0
      %v6027 = vmax.f32 %v4506, 0.0
      %v6028 = vmax.f32 %v4617, 0.0
      %v6029 = vmax.f32 %v4619, 0.0
      %v6030 = vmax.f32 %v4730, 0.0
      %v6031 = vmax.f32 %v4732, 0.0
      %v6032 = vmax.f32 %v4843, 0.0
      %v6033 = vmax.f32 %v4845, 0.0
      %v6034 = vmax.f32 %v4956, 0.0
      %v6035 = vmax.f32 %v4958, 0.0
      %v6036 = vmax.f32 %v5069, 0.0
      %v6037 = vmax.f32 %v5071, 0.0
      %v6038 = vmax.f32 %v5182, 0.0
      %v6039 = vmax.f32 %v5184, 0.0
      %v6040 = vmax.f32 %v5295, 0.0
      %v6041 = vmax.f32 %v5297, 0.0
      %v6042 = vmax.f32 %v5408, 0.0
      %v6043 = vmax.f32 %v5410, 0.0
      %v6044 = vmax.f32 %v5521, 0.0
      %v6045 = vmax.f32 %v5523, 0.0
      %v6046 = vmax.f32 %v5634, 0.0
      %v6047 = vmax.f32 %v5636, 0.0
      %v6048 = vmax.f32 %v5747, 0.0
      %v6049 = vmax.f32 %v5749, 0.0
      %v6050 = vmax.f32 %v5860, 0.0
      %v6051 = vmax.f32 %v5862, 0.0
      %v6052 = vmax.f32 %v4171, 0.0
      %v6053 = vmax.f32 %v4173, 0.0
      %v6054 = vmax.f32 %v4284, 0.0
      %v6055 = vmax.f32 %v4286, 0.0
      %v6056 = vmax.f32 %v4397, 0.0
      %v6057 = vmax.f32 %v4399, 0.0
      %v6058 = vmax.f32 %v4510, 0.0
      %v6059 = vmax.f32 %v4512, 0.0
      %v6060 = vmax.f32 %v4623, 0.0
      %v6061 = vmax.f32 %v4625, 0.0
      %v6062 = vmax.f32 %v4736, 0.0
      %v6063 = vmax.f32 %v4738, 0.0
      %v6064 = vmax.f32 %v4849, 0.0
      %v6065 = vmax.f32 %v4851, 0.0
      %v6066 = vmax.f32 %v4962, 0.0
      %v6067 = vmax.f32 %v4964, 0.0
      %v6068 = vmax.f32 %v5075, 0.0
      %v6069 = vmax.f32 %v5077, 0.0
      %v6070 = vmax.f32 %v5188, 0.0
      %v6071 = vmax.f32 %v5190, 0.0
      %v6072 = vmax.f32 %v5301, 0.0
      %v6073 = vmax.f32 %v5303, 0.0
      %v6074 = vmax.f32 %v5414, 0.0
      %v6075 = vmax.f32 %v5416, 0.0
      %v6076 = vmax.f32 %v5527, 0.0
      %v6077 = vmax.f32 %v5529, 0.0
      %v6078 = vmax.f32 %v5640, 0.0
      %v6079 = vmax.f32 %v5642, 0.0
      %v6080 = vmax.f32 %v5753, 0.0
      %v6081 = vmax.f32 %v5755, 0.0
      %v6082 = vmax.f32 %v5866, 0.0
      %v6083 = vmax.f32 %v5868, 0.0
      %v6084 = vmax.f32 %v4175, 0.0
      %v6085 = vmax.f32 %v4177, 0.0
      %v6086 = vmax.f32 %v4288, 0.0
      %v6087 = vmax.f32 %v4290, 0.0
      %v6088 = vmax.f32 %v4401, 0.0
      %v6089 = vmax.f32 %v4403, 0.0
      %v6090 = vmax.f32 %v4514, 0.0
      %v6091 = vmax.f32 %v4516, 0.0
      %v6092 = vmax.f32 %v4627, 0.0
      %v6093 = vmax.f32 %v4629, 0.0
      %v6094 = vmax.f32 %v4740, 0.0
      %v6095 = vmax.f32 %v4742, 0.0
      %v6096 = vmax.f32 %v4853, 0.0
      %v6097 = vmax.f32 %v4855, 0.0
      %v6098 = vmax.f32 %v4966, 0.0
      %v6099 = vmax.f32 %v4968, 0.0
      %v6100 = vmax.f32 %v5079, 0.0
      %v6101 = vmax.f32 %v5081, 0.0
      %v6102 = vmax.f32 %v5192, 0.0
      %v6103 = vmax.f32 %v5194, 0.0
      %v6104 = vmax.f32 %v5305, 0.0
      %v6105 = vmax.f32 %v5307, 0.0
      %v6106 = vmax.f32 %v5418, 0.0
      %v6107 = vmax.f32 %v5420, 0.0
      %v6108 = vmax.f32 %v5531, 0.0
      %v6109 = vmax.f32 %v5533, 0.0
      %v6110 = vmax.f32 %v5644, 0.0
      %v6111 = vmax.f32 %v5646, 0.0
      %v6112 = vmax.f32 %v5757, 0.0
      %v6113 = vmax.f32 %v5759, 0.0
      %v6114 = vmax.f32 %v5870, 0.0
      %v6115 = vmax.f32 %v5872, 0.0
      %v6116 = vmax.f32 %v4181, 0.0
      %v6117 = vmax.f32 %v4183, 0.0
      %v6118 = vmax.f32 %v4294, 0.0
      %v6119 = vmax.f32 %v4296, 0.0
      %v6120 = vmax.f32 %v4407, 0.0
      %v6121 = vmax.f32 %v4409, 0.0
      %v6122 = vmax.f32 %v4520, 0.0
      %v6123 = vmax.f32 %v4522, 0.0
      %v6124 = vmax.f32 %v4633, 0.0
      %v6125 = vmax.f32 %v4635, 0.0
      %v6126 = vmax.f32 %v4746, 0.0
      %v6127 = vmax.f32 %v4748, 0.0
      %v6128 = vmax.f32 %v4859, 0.0
      %v6129 = vmax.f32 %v4861, 0.0
      %v6130 = vmax.f32 %v4972, 0.0
      %v6131 = vmax.f32 %v4974, 0.0
      %v6132 = vmax.f32 %v5085, 0.0
      %v6133 = vmax.f32 %v5087, 0.0
      %v6134 = vmax.f32 %v5198, 0.0
      %v6135 = vmax.f32 %v5200, 0.0
      %v6136 = vmax.f32 %v5311, 0.0
      %v6137 = vmax.f32 %v5313, 0.0
      %v6138 = vmax.f32 %v5424, 0.0
      %v6139 = vmax.f32 %v5426, 0.0
      %v6140 = vmax.f32 %v5537, 0.0
      %v6141 = vmax.f32 %v5539, 0.0
      %v6142 = vmax.f32 %v5650, 0.0
      %v6143 = vmax.f32 %v5652, 0.0
      %v6144 = vmax.f32 %v5763, 0.0
      %v6145 = vmax.f32 %v5765, 0.0
      %v6146 = vmax.f32 %v5876, 0.0
      %v6147 = vmax.f32 %v5878, 0.0
      %v6148 = vmax.f32 %v4185, 0.0
      %v6149 = vmax.f32 %v4187, 0.0
      %v6150 = vmax.f32 %v4298, 0.0
      %v6151 = vmax.f32 %v4300, 0.0
      %v6152 = vmax.f32 %v4411, 0.0
      %v6153 = vmax.f32 %v4413, 0.0
      %v6154 = vmax.f32 %v4524, 0.0
      %v6155 = vmax.f32 %v4526, 0.0
      %v6156 = vmax.f32 %v4637, 0.0
      %v6157 = vmax.f32 %v4639, 0.0
      %v6158 = vmax.f32 %v4750, 0.0
      %v6159 = vmax.f32 %v4752, 0.0
      %v6160 = vmax.f32 %v4863, 0.0
      %v6161 = vmax.f32 %v4865, 0.0
      %v6162 = vmax.f32 %v4976, 0.0
      %v6163 = vmax.f32 %v4978, 0.0
      %v6164 = vmax.f32 %v5089, 0.0
      %v6165 = vmax.f32 %v5091, 0.0
      %v6166 = vmax.f32 %v5202, 0.0
      %v6167 = vmax.f32 %v5204, 0.0
      %v6168 = vmax.f32 %v5315, 0.0
      %v6169 = vmax.f32 %v5317, 0.0
      %v6170 = vmax.f32 %v5428, 0.0
      %v6171 = vmax.f32 %v5430, 0.0
      %v6172 = vmax.f32 %v5541, 0.0
      %v6173 = vmax.f32 %v5543, 0.0
      %v6174 = vmax.f32 %v5654, 0.0
      %v6175 = vmax.f32 %v5656, 0.0
      %v6176 = vmax.f32 %v5767, 0.0
      %v6177 = vmax.f32 %v5769, 0.0
      %v6178 = vmax.f32 %v5880, 0.0
      %v6179 = vmax.f32 %v5882, 0.0
      %v6180 = vmax.f32 %v4191, 0.0
      %v6181 = vmax.f32 %v4193, 0.0
      %v6182 = vmax.f32 %v4304, 0.0
      %v6183 = vmax.f32 %v4306, 0.0
      %v6184 = vmax.f32 %v4417, 0.0
      %v6185 = vmax.f32 %v4419, 0.0
      %v6186 = vmax.f32 %v4530, 0.0
      %v6187 = vmax.f32 %v4532, 0.0
      %v6188 = vmax.f32 %v4643, 0.0
      %v6189 = vmax.f32 %v4645, 0.0
      %v6190 = vmax.f32 %v4756, 0.0
      %v6191 = vmax.f32 %v4758, 0.0
      %v6192 = vmax.f32 %v4869, 0.0
      %v6193 = vmax.f32 %v4871, 0.0
      %v6194 = vmax.f32 %v4982, 0.0
      %v6195 = vmax.f32 %v4984, 0.0
      %v6196 = vmax.f32 %v5095, 0.0
      %v6197 = vmax.f32 %v5097, 0.0
      %v6198 = vmax.f32 %v5208, 0.0
      %v6199 = vmax.f32 %v5210, 0.0
      %v6200 = vmax.f32 %v5321, 0.0
      %v6201 = vmax.f32 %v5323, 0.0
      %v6202 = vmax.f32 %v5434, 0.0
      %v6203 = vmax.f32 %v5436, 0.0
      %v6204 = vmax.f32 %v5547, 0.0
      %v6205 = vmax.f32 %v5549, 0.0
      %v6206 = vmax.f32 %v5660, 0.0
      %v6207 = vmax.f32 %v5662, 0.0
      %v6208 = vmax.f32 %v5773, 0.0
      %v6209 = vmax.f32 %v5775, 0.0
      %v6210 = vmax.f32 %v5886, 0.0
      %v6211 = vmax.f32 %v5888, 0.0
      %v6212 = vmax.f32 %v4195, 0.0
      %v6213 = vmax.f32 %v4197, 0.0
      %v6214 = vmax.f32 %v4308, 0.0
      %v6215 = vmax.f32 %v4310, 0.0
      %v6216 = vmax.f32 %v4421, 0.0
      %v6217 = vmax.f32 %v4423, 0.0
      %v6218 = vmax.f32 %v4534, 0.0
      %v6219 = vmax.f32 %v4536, 0.0
      %v6220 = vmax.f32 %v4647, 0.0
      %v6221 = vmax.f32 %v4649, 0.0
      %v6222 = vmax.f32 %v4760, 0.0
      %v6223 = vmax.f32 %v4762, 0.0
      %v6224 = vmax.f32 %v4873, 0.0
      %v6225 = vmax.f32 %v4875, 0.0
      %v6226 = vmax.f32 %v4986, 0.0
      %v6227 = vmax.f32 %v4988, 0.0
      %v6228 = vmax.f32 %v5099, 0.0
      %v6229 = vmax.f32 %v5101, 0.0
      %v6230 = vmax.f32 %v5212, 0.0
      %v6231 = vmax.f32 %v5214, 0.0
      %v6232 = vmax.f32 %v5325, 0.0
      %v6233 = vmax.f32 %v5327, 0.0
      %v6234 = vmax.f32 %v5438, 0.0
      %v6235 = vmax.f32 %v5440, 0.0
      %v6236 = vmax.f32 %v5551, 0.0
      %v6237 = vmax.f32 %v5553, 0.0
      %v6238 = vmax.f32 %v5664, 0.0
      %v6239 = vmax.f32 %v5666, 0.0
      %v6240 = vmax.f32 %v5777, 0.0
      %v6241 = vmax.f32 %v5779, 0.0
      %v6242 = vmax.f32 %v5890, 0.0
      %v6243 = vmax.f32 %v5892, 0.0
      %v6244 = vmax.f32 %v4201, 0.0
      %v6245 = vmax.f32 %v4203, 0.0
      %v6246 = vmax.f32 %v4314, 0.0
      %v6247 = vmax.f32 %v4316, 0.0
      %v6248 = vmax.f32 %v4427, 0.0
      %v6249 = vmax.f32 %v4429, 0.0
      %v6250 = vmax.f32 %v4540, 0.0
      %v6251 = vmax.f32 %v4542, 0.0
      %v6252 = vmax.f32 %v4653, 0.0
      %v6253 = vmax.f32 %v4655, 0.0
      %v6254 = vmax.f32 %v4766, 0.0
      %v6255 = vmax.f32 %v4768, 0.0
      %v6256 = vmax.f32 %v4879, 0.0
      %v6257 = vmax.f32 %v4881, 0.0
      %v6258 = vmax.f32 %v4992, 0.0
      %v6259 = vmax.f32 %v4994, 0.0
      %v6260 = vmax.f32 %v5105, 0.0
      %v6261 = vmax.f32 %v5107, 0.0
      %v6262 = vmax.f32 %v5218, 0.0
      %v6263 = vmax.f32 %v5220, 0.0
      %v6264 = vmax.f32 %v5331, 0.0
      %v6265 = vmax.f32 %v5333, 0.0
      %v6266 = vmax.f32 %v5444, 0.0
      %v6267 = vmax.f32 %v5446, 0.0
      %v6268 = vmax.f32 %v5557, 0.0
      %v6269 = vmax.f32 %v5559, 0.0
      %v6270 = vmax.f32 %v5670, 0.0
      %v6271 = vmax.f32 %v5672, 0.0
      %v6272 = vmax.f32 %v5783, 0.0
      %v6273 = vmax.f32 %v5785, 0.0
      %v6274 = vmax.f32 %v5896, 0.0
      %v6275 = vmax.f32 %v5898, 0.0
      %v6276 = vmax.f32 %v4205, 0.0
      %v6277 = vmax.f32 %v4207, 0.0
      %v6278 = vmax.f32 %v4318, 0.0
      %v6279 = vmax.f32 %v4320, 0.0
      %v6280 = vmax.f32 %v4431, 0.0
      %v6281 = vmax.f32 %v4433, 0.0
      %v6282 = vmax.f32 %v4544, 0.0
      %v6283 = vmax.f32 %v4546, 0.0
      %v6284 = vmax.f32 %v4657, 0.0
      %v6285 = vmax.f32 %v4659, 0.0
      %v6286 = vmax.f32 %v4770, 0.0
      %v6287 = vmax.f32 %v4772, 0.0
      %v6288 = vmax.f32 %v4883, 0.0
      %v6289 = vmax.f32 %v4885, 0.0
      %v6290 = vmax.f32 %v4996, 0.0
      %v6291 = vmax.f32 %v4998, 0.0
      %v6292 = vmax.f32 %v5109, 0.0
      %v6293 = vmax.f32 %v5111, 0.0
      %v6294 = vmax.f32 %v5222, 0.0
      %v6295 = vmax.f32 %v5224, 0.0
      %v6296 = vmax.f32 %v5335, 0.0
      %v6297 = vmax.f32 %v5337, 0.0
      %v6298 = vmax.f32 %v5448, 0.0
      %v6299 = vmax.f32 %v5450, 0.0
      %v6300 = vmax.f32 %v5561, 0.0
      %v6301 = vmax.f32 %v5563, 0.0
      %v6302 = vmax.f32 %v5674, 0.0
      %v6303 = vmax.f32 %v5676, 0.0
      %v6304 = vmax.f32 %v5787, 0.0
      %v6305 = vmax.f32 %v5789, 0.0
      %v6306 = vmax.f32 %v5900, 0.0
      %v6307 = vmax.f32 %v5902, 0.0
      %v6308 = vmax.f32 %v4211, 0.0
      %v6309 = vmax.f32 %v4213, 0.0
      %v6310 = vmax.f32 %v4324, 0.0
      %v6311 = vmax.f32 %v4326, 0.0
      %v6312 = vmax.f32 %v4437, 0.0
      %v6313 = vmax.f32 %v4439, 0.0
      %v6314 = vmax.f32 %v4550, 0.0
      %v6315 = vmax.f32 %v4552, 0.0
      %v6316 = vmax.f32 %v4663, 0.0
      %v6317 = vmax.f32 %v4665, 0.0
      %v6318 = vmax.f32 %v4776, 0.0
      %v6319 = vmax.f32 %v4778, 0.0
      %v6320 = vmax.f32 %v4889, 0.0
      %v6321 = vmax.f32 %v4891, 0.0
      %v6322 = vmax.f32 %v5002, 0.0
      %v6323 = vmax.f32 %v5004, 0.0
      %v6324 = vmax.f32 %v5115, 0.0
      %v6325 = vmax.f32 %v5117, 0.0
      %v6326 = vmax.f32 %v5228, 0.0
      %v6327 = vmax.f32 %v5230, 0.0
      %v6328 = vmax.f32 %v5341, 0.0
      %v6329 = vmax.f32 %v5343, 0.0
      %v6330 = vmax.f32 %v5454, 0.0
      %v6331 = vmax.f32 %v5456, 0.0
      %v6332 = vmax.f32 %v5567, 0.0
      %v6333 = vmax.f32 %v5569, 0.0
      %v6334 = vmax.f32 %v5680, 0.0
      %v6335 = vmax.f32 %v5682, 0.0
      %v6336 = vmax.f32 %v5793, 0.0
      %v6337 = vmax.f32 %v5795, 0.0
      %v6338 = vmax.f32 %v5906, 0.0
      %v6339 = vmax.f32 %v5908, 0.0
      %v6340 = vmax.f32 %v4215, 0.0
      %v6341 = vmax.f32 %v4217, 0.0
      %v6342 = vmax.f32 %v4328, 0.0
      %v6343 = vmax.f32 %v4330, 0.0
      %v6344 = vmax.f32 %v4441, 0.0
      %v6345 = vmax.f32 %v4443, 0.0
      %v6346 = vmax.f32 %v4554, 0.0
      %v6347 = vmax.f32 %v4556, 0.0
      %v6348 = vmax.f32 %v4667, 0.0
      %v6349 = vmax.f32 %v4669, 0.0
      %v6350 = vmax.f32 %v4780, 0.0
      %v6351 = vmax.f32 %v4782, 0.0
      %v6352 = vmax.f32 %v4893, 0.0
      %v6353 = vmax.f32 %v4895, 0.0
      %v6354 = vmax.f32 %v5006, 0.0
      %v6355 = vmax.f32 %v5008, 0.0
      %v6356 = vmax.f32 %v5119, 0.0
      %v6357 = vmax.f32 %v5121, 0.0
      %v6358 = vmax.f32 %v5232, 0.0
      %v6359 = vmax.f32 %v5234, 0.0
      %v6360 = vmax.f32 %v5345, 0.0
      %v6361 = vmax.f32 %v5347, 0.0
      %v6362 = vmax.f32 %v5458, 0.0
      %v6363 = vmax.f32 %v5460, 0.0
      %v6364 = vmax.f32 %v5571, 0.0
      %v6365 = vmax.f32 %v5573, 0.0
      %v6366 = vmax.f32 %v5684, 0.0
      %v6367 = vmax.f32 %v5686, 0.0
      %v6368 = vmax.f32 %v5797, 0.0
      %v6369 = vmax.f32 %v5799, 0.0
      %v6370 = vmax.f32 %v5910, 0.0
      %v6371 = vmax.f32 %v5912, 0.0
      %v6372 = vmax.f32 %v4221, 0.0
      %v6373 = vmax.f32 %v4223, 0.0
      %v6374 = vmax.f32 %v4334, 0.0
      %v6375 = vmax.f32 %v4336, 0.0
      %v6376 = vmax.f32 %v4447, 0.0
      %v6377 = vmax.f32 %v4449, 0.0
      %v6378 = vmax.f32 %v4560, 0.0
      %v6379 = vmax.f32 %v4562, 0.0
      %v6380 = vmax.f32 %v4673, 0.0
      %v6381 = vmax.f32 %v4675, 0.0
      %v6382 = vmax.f32 %v4786, 0.0
      %v6383 = vmax.f32 %v4788, 0.0
      %v6384 = vmax.f32 %v4899, 0.0
      %v6385 = vmax.f32 %v4901, 0.0
      %v6386 = vmax.f32 %v5012, 0.0
      %v6387 = vmax.f32 %v5014, 0.0
      %v6388 = vmax.f32 %v5125, 0.0
      %v6389 = vmax.f32 %v5127, 0.0
      %v6390 = vmax.f32 %v5238, 0.0
      %v6391 = vmax.f32 %v5240, 0.0
      %v6392 = vmax.f32 %v5351, 0.0
      %v6393 = vmax.f32 %v5353, 0.0
      %v6394 = vmax.f32 %v5464, 0.0
      %v6395 = vmax.f32 %v5466, 0.0
      %v6396 = vmax.f32 %v5577, 0.0
      %v6397 = vmax.f32 %v5579, 0.0
      %v6398 = vmax.f32 %v5690, 0.0
      %v6399 = vmax.f32 %v5692, 0.0
      %v6400 = vmax.f32 %v5803, 0.0
      %v6401 = vmax.f32 %v5805, 0.0
      %v6402 = vmax.f32 %v5916, 0.0
      %v6403 = vmax.f32 %v5918, 0.0
      %v6404 = vmax.f32 %v4225, 0.0
      %v6405 = vmax.f32 %v4227, 0.0
      %v6406 = vmax.f32 %v4338, 0.0
      %v6407 = vmax.f32 %v4340, 0.0
      %v6408 = vmax.f32 %v4451, 0.0
      %v6409 = vmax.f32 %v4453, 0.0
      %v6410 = vmax.f32 %v4564, 0.0
      %v6411 = vmax.f32 %v4566, 0.0
      %v6412 = vmax.f32 %v4677, 0.0
      %v6413 = vmax.f32 %v4679, 0.0
      %v6414 = vmax.f32 %v4790, 0.0
      %v6415 = vmax.f32 %v4792, 0.0
      %v6416 = vmax.f32 %v4903, 0.0
      %v6417 = vmax.f32 %v4905, 0.0
      %v6418 = vmax.f32 %v5016, 0.0
      %v6419 = vmax.f32 %v5018, 0.0
      %v6420 = vmax.f32 %v5129, 0.0
      %v6421 = vmax.f32 %v5131, 0.0
      %v6422 = vmax.f32 %v5242, 0.0
      %v6423 = vmax.f32 %v5244, 0.0
      %v6424 = vmax.f32 %v5355, 0.0
      %v6425 = vmax.f32 %v5357, 0.0
      %v6426 = vmax.f32 %v5468, 0.0
      %v6427 = vmax.f32 %v5470, 0.0
      %v6428 = vmax.f32 %v5581, 0.0
      %v6429 = vmax.f32 %v5583, 0.0
      %v6430 = vmax.f32 %v5694, 0.0
      %v6431 = vmax.f32 %v5696, 0.0
      %v6432 = vmax.f32 %v5807, 0.0
      %v6433 = vmax.f32 %v5809, 0.0
      %v6434 = vmax.f32 %v5920, 0.0
      %v6435 = vmax.f32 %v5922, 0.0
      %v6436 = vld [vmem:[%s17] sm:$0x1]
      %v6437 = vpack.c.bf16 %v5956, %v5924
      %v6438 = vpack.c.bf16 %v5957, %v5925
      %v6439 = vpack.c.bf16 %v5958, %v5926
      %v6440 = vpack.c.bf16 %v5959, %v5927
      %v6441 = vpack.c.bf16 %v5960, %v5928
      %v6442 = vpack.c.bf16 %v5961, %v5929
      %v6443 = vpack.c.bf16 %v5962, %v5930
      %v6444 = vpack.c.bf16 %v5963, %v5931
      %v6445 = vpack.c.bf16 %v5964, %v5932
      %v6446 = vpack.c.bf16 %v5965, %v5933
      %v6447 = vpack.c.bf16 %v5966, %v5934
      %v6448 = vpack.c.bf16 %v5967, %v5935
      %v6449 = vpack.c.bf16 %v5968, %v5936
      %v6450 = vpack.c.bf16 %v5969, %v5937
      %v6451 = vpack.c.bf16 %v5970, %v5938
      %v6452 = vpack.c.bf16 %v5971, %v5939
      %v6453 = vpack.c.bf16 %v5972, %v5940
      %v6454 = vpack.c.bf16 %v5973, %v5941
      %v6455 = vpack.c.bf16 %v5974, %v5942
      %v6456 = vpack.c.bf16 %v5975, %v5943
      %v6457 = vpack.c.bf16 %v5976, %v5944
      %v6458 = vpack.c.bf16 %v5977, %v5945
      %v6459 = vpack.c.bf16 %v5978, %v5946
      %v6460 = vpack.c.bf16 %v5979, %v5947
      %v6461 = vpack.c.bf16 %v5980, %v5948
      %v6462 = vpack.c.bf16 %v5981, %v5949
      %v6463 = vpack.c.bf16 %v5982, %v5950
      %v6464 = vpack.c.bf16 %v5983, %v5951
      %v6465 = vpack.c.bf16 %v5984, %v5952
      %v6466 = vpack.c.bf16 %v5985, %v5953
      %v6467 = vpack.c.bf16 %v5986, %v5954
      %v6468 = vpack.c.bf16 %v5987, %v5955
      %v6469 = vpack.c.bf16 %v6020, %v5988
      %v6470 = vpack.c.bf16 %v6021, %v5989
      %v6471 = vpack.c.bf16 %v6022, %v5990
      %v6472 = vpack.c.bf16 %v6023, %v5991
      %v6473 = vpack.c.bf16 %v6024, %v5992
      %v6474 = vpack.c.bf16 %v6025, %v5993
      %v6475 = vpack.c.bf16 %v6026, %v5994
      %v6476 = vpack.c.bf16 %v6027, %v5995
      %v6477 = vpack.c.bf16 %v6028, %v5996
      %v6478 = vpack.c.bf16 %v6029, %v5997
      %v6479 = vpack.c.bf16 %v6030, %v5998
      %v6480 = vpack.c.bf16 %v6031, %v5999
      %v6481 = vpack.c.bf16 %v6032, %v6000
      %v6482 = vpack.c.bf16 %v6033, %v6001
      %v6483 = vpack.c.bf16 %v6034, %v6002
      %v6484 = vpack.c.bf16 %v6035, %v6003
      %v6485 = vpack.c.bf16 %v6036, %v6004
      %v6486 = vpack.c.bf16 %v6037, %v6005
      %v6487 = vpack.c.bf16 %v6038, %v6006
      %v6488 = vpack.c.bf16 %v6039, %v6007
      %v6489 = vpack.c.bf16 %v6040, %v6008
      %v6490 = vpack.c.bf16 %v6041, %v6009
      %v6491 = vpack.c.bf16 %v6042, %v6010
      %v6492 = vpack.c.bf16 %v6043, %v6011
      %v6493 = vpack.c.bf16 %v6044, %v6012
      %v6494 = vpack.c.bf16 %v6045, %v6013
      %v6495 = vpack.c.bf16 %v6046, %v6014
      %v6496 = vpack.c.bf16 %v6047, %v6015
      %v6497 = vpack.c.bf16 %v6048, %v6016
      %v6498 = vpack.c.bf16 %v6049, %v6017
      %v6499 = vpack.c.bf16 %v6050, %v6018
      %v6500 = vpack.c.bf16 %v6051, %v6019
      %v6501 = vpack.c.bf16 %v6084, %v6052
      %v6502 = vpack.c.bf16 %v6085, %v6053
      %v6503 = vpack.c.bf16 %v6086, %v6054
      %v6504 = vpack.c.bf16 %v6087, %v6055
      %v6505 = vpack.c.bf16 %v6088, %v6056
      %v6506 = vpack.c.bf16 %v6089, %v6057
      %v6507 = vpack.c.bf16 %v6090, %v6058
      %v6508 = vpack.c.bf16 %v6091, %v6059
      %v6509 = vpack.c.bf16 %v6092, %v6060
      %v6510 = vpack.c.bf16 %v6093, %v6061
      %v6511 = vpack.c.bf16 %v6094, %v6062
      %v6512 = vpack.c.bf16 %v6095, %v6063
      %v6513 = vpack.c.bf16 %v6096, %v6064
      %v6514 = vpack.c.bf16 %v6097, %v6065
      %v6515 = vpack.c.bf16 %v6098, %v6066
      %v6516 = vpack.c.bf16 %v6099, %v6067
      %v6517 = vpack.c.bf16 %v6100, %v6068
      %v6518 = vpack.c.bf16 %v6101, %v6069
      %v6519 = vpack.c.bf16 %v6102, %v6070
      %v6520 = vpack.c.bf16 %v6103, %v6071
      %v6521 = vpack.c.bf16 %v6104, %v6072
      %v6522 = vpack.c.bf16 %v6105, %v6073
      %v6523 = vpack.c.bf16 %v6106, %v6074
      %v6524 = vpack.c.bf16 %v6107, %v6075
      %v6525 = vpack.c.bf16 %v6108, %v6076
      %v6526 = vpack.c.bf16 %v6109, %v6077
      %v6527 = vpack.c.bf16 %v6110, %v6078
      %v6528 = vpack.c.bf16 %v6111, %v6079
      %v6529 = vpack.c.bf16 %v6112, %v6080
      %v6530 = vpack.c.bf16 %v6113, %v6081
      %v6531 = vpack.c.bf16 %v6114, %v6082
      %v6532 = vpack.c.bf16 %v6115, %v6083
      %v6533 = vpack.c.bf16 %v6148, %v6116
      %v6534 = vpack.c.bf16 %v6149, %v6117
      %v6535 = vpack.c.bf16 %v6150, %v6118
      %v6536 = vpack.c.bf16 %v6151, %v6119
      %v6537 = vpack.c.bf16 %v6152, %v6120
      %v6538 = vpack.c.bf16 %v6153, %v6121
      %v6539 = vpack.c.bf16 %v6154, %v6122
      %v6540 = vpack.c.bf16 %v6155, %v6123
      %v6541 = vpack.c.bf16 %v6156, %v6124
      %v6542 = vpack.c.bf16 %v6157, %v6125
      %v6543 = vpack.c.bf16 %v6158, %v6126
      %v6544 = vpack.c.bf16 %v6159, %v6127
      %v6545 = vpack.c.bf16 %v6160, %v6128
      %v6546 = vpack.c.bf16 %v6161, %v6129
      %v6547 = vpack.c.bf16 %v6162, %v6130
      %v6548 = vpack.c.bf16 %v6163, %v6131
      %v6549 = vpack.c.bf16 %v6164, %v6132
      %v6550 = vpack.c.bf16 %v6165, %v6133
      %v6551 = vpack.c.bf16 %v6166, %v6134
      %v6552 = vpack.c.bf16 %v6167, %v6135
      %v6553 = vpack.c.bf16 %v6168, %v6136
      %v6554 = vpack.c.bf16 %v6169, %v6137
      %v6555 = vpack.c.bf16 %v6170, %v6138
      %v6556 = vpack.c.bf16 %v6171, %v6139
      %v6557 = vpack.c.bf16 %v6172, %v6140
      %v6558 = vpack.c.bf16 %v6173, %v6141
      %v6559 = vpack.c.bf16 %v6174, %v6142
      %v6560 = vpack.c.bf16 %v6175, %v6143
      %v6561 = vpack.c.bf16 %v6176, %v6144
      %v6562 = vpack.c.bf16 %v6177, %v6145
      %v6563 = vpack.c.bf16 %v6178, %v6146
      %v6564 = vpack.c.bf16 %v6179, %v6147
      %v6565 = vpack.c.bf16 %v6212, %v6180
      %v6566 = vpack.c.bf16 %v6213, %v6181
      %v6567 = vpack.c.bf16 %v6214, %v6182
      %v6568 = vpack.c.bf16 %v6215, %v6183
      %v6569 = vpack.c.bf16 %v6216, %v6184
      %v6570 = vpack.c.bf16 %v6217, %v6185
      %v6571 = vpack.c.bf16 %v6218, %v6186
      %v6572 = vpack.c.bf16 %v6219, %v6187
      %v6573 = vpack.c.bf16 %v6220, %v6188
      %v6574 = vpack.c.bf16 %v6221, %v6189
      %v6575 = vpack.c.bf16 %v6222, %v6190
      %v6576 = vpack.c.bf16 %v6223, %v6191
      %v6577 = vpack.c.bf16 %v6224, %v6192
      %v6578 = vpack.c.bf16 %v6225, %v6193
      %v6579 = vpack.c.bf16 %v6226, %v6194
      %v6580 = vpack.c.bf16 %v6227, %v6195
      %v6581 = vpack.c.bf16 %v6228, %v6196
      %v6582 = vpack.c.bf16 %v6229, %v6197
      %v6583 = vpack.c.bf16 %v6230, %v6198
      %v6584 = vpack.c.bf16 %v6231, %v6199
      %v6585 = vpack.c.bf16 %v6232, %v6200
      %v6586 = vpack.c.bf16 %v6233, %v6201
      %v6587 = vpack.c.bf16 %v6234, %v6202
      %v6588 = vpack.c.bf16 %v6235, %v6203
      %v6589 = vpack.c.bf16 %v6236, %v6204
      %v6590 = vpack.c.bf16 %v6237, %v6205
      %v6591 = vpack.c.bf16 %v6238, %v6206
      %v6592 = vpack.c.bf16 %v6239, %v6207
      %v6593 = vpack.c.bf16 %v6240, %v6208
      %v6594 = vpack.c.bf16 %v6241, %v6209
      %v6595 = vpack.c.bf16 %v6242, %v6210
      %v6596 = vpack.c.bf16 %v6243, %v6211
      %v6597 = vpack.c.bf16 %v6276, %v6244
      %v6598 = vpack.c.bf16 %v6277, %v6245
      %v6599 = vpack.c.bf16 %v6278, %v6246
      %v6600 = vpack.c.bf16 %v6279, %v6247
      %v6601 = vpack.c.bf16 %v6280, %v6248
      %v6602 = vpack.c.bf16 %v6281, %v6249
      %v6603 = vpack.c.bf16 %v6282, %v6250
      %v6604 = vpack.c.bf16 %v6283, %v6251
      %v6605 = vpack.c.bf16 %v6284, %v6252
      %v6606 = vpack.c.bf16 %v6285, %v6253
      %v6607 = vpack.c.bf16 %v6286, %v6254
      %v6608 = vpack.c.bf16 %v6287, %v6255
      %v6609 = vpack.c.bf16 %v6288, %v6256
      %v6610 = vpack.c.bf16 %v6289, %v6257
      %v6611 = vpack.c.bf16 %v6290, %v6258
      %v6612 = vpack.c.bf16 %v6291, %v6259
      %v6613 = vpack.c.bf16 %v6292, %v6260
      %v6614 = vpack.c.bf16 %v6293, %v6261
      %v6615 = vpack.c.bf16 %v6294, %v6262
      %v6616 = vpack.c.bf16 %v6295, %v6263
      %v6617 = vpack.c.bf16 %v6296, %v6264
      %v6618 = vpack.c.bf16 %v6297, %v6265
      %v6619 = vpack.c.bf16 %v6298, %v6266
      %v6620 = vpack.c.bf16 %v6299, %v6267
      %v6621 = vpack.c.bf16 %v6300, %v6268
      %v6622 = vpack.c.bf16 %v6301, %v6269
      %v6623 = vpack.c.bf16 %v6302, %v6270
      %v6624 = vpack.c.bf16 %v6303, %v6271
      %v6625 = vpack.c.bf16 %v6304, %v6272
      %v6626 = vpack.c.bf16 %v6305, %v6273
      %v6627 = vpack.c.bf16 %v6306, %v6274
      %v6628 = vpack.c.bf16 %v6307, %v6275
      %v6629 = vpack.c.bf16 %v6340, %v6308
      %v6630 = vpack.c.bf16 %v6341, %v6309
      %v6631 = vpack.c.bf16 %v6342, %v6310
      %v6632 = vpack.c.bf16 %v6343, %v6311
      %v6633 = vpack.c.bf16 %v6344, %v6312
      %v6634 = vpack.c.bf16 %v6345, %v6313
      %v6635 = vpack.c.bf16 %v6346, %v6314
      %v6636 = vpack.c.bf16 %v6347, %v6315
      %v6637 = vpack.c.bf16 %v6348, %v6316
      %v6638 = vpack.c.bf16 %v6349, %v6317
      %v6639 = vpack.c.bf16 %v6350, %v6318
      %v6640 = vpack.c.bf16 %v6351, %v6319
      %v6641 = vpack.c.bf16 %v6352, %v6320
      %v6642 = vpack.c.bf16 %v6353, %v6321
      %v6643 = vpack.c.bf16 %v6354, %v6322
      %v6644 = vpack.c.bf16 %v6355, %v6323
      %v6645 = vpack.c.bf16 %v6356, %v6324
      %v6646 = vpack.c.bf16 %v6357, %v6325
      %v6647 = vpack.c.bf16 %v6358, %v6326
      %v6648 = vpack.c.bf16 %v6359, %v6327
      %v6649 = vpack.c.bf16 %v6360, %v6328
      %v6650 = vpack.c.bf16 %v6361, %v6329
      %v6651 = vpack.c.bf16 %v6362, %v6330
      %v6652 = vpack.c.bf16 %v6363, %v6331
      %v6653 = vpack.c.bf16 %v6364, %v6332
      %v6654 = vpack.c.bf16 %v6365, %v6333
      %v6655 = vpack.c.bf16 %v6366, %v6334
      %v6656 = vpack.c.bf16 %v6367, %v6335
      %v6657 = vpack.c.bf16 %v6368, %v6336
      %v6658 = vpack.c.bf16 %v6369, %v6337
      %v6659 = vpack.c.bf16 %v6370, %v6338
      %v6660 = vpack.c.bf16 %v6371, %v6339
      %v6661 = vpack.c.bf16 %v6404, %v6372
      %v6662 = vpack.c.bf16 %v6405, %v6373
      %v6663 = vpack.c.bf16 %v6406, %v6374
      %v6664 = vpack.c.bf16 %v6407, %v6375
      %v6665 = vpack.c.bf16 %v6408, %v6376
      %v6666 = vpack.c.bf16 %v6409, %v6377
      %v6667 = vpack.c.bf16 %v6410, %v6378
      %v6668 = vpack.c.bf16 %v6411, %v6379
      %v6669 = vpack.c.bf16 %v6412, %v6380
      %v6670 = vpack.c.bf16 %v6413, %v6381
      %v6671 = vpack.c.bf16 %v6414, %v6382
      %v6672 = vpack.c.bf16 %v6415, %v6383
      %v6673 = vpack.c.bf16 %v6416, %v6384
      %v6674 = vpack.c.bf16 %v6417, %v6385
      %v6675 = vpack.c.bf16 %v6418, %v6386
      %v6676 = vpack.c.bf16 %v6419, %v6387
      %v6677 = vpack.c.bf16 %v6420, %v6388
      %v6678 = vpack.c.bf16 %v6421, %v6389
      %v6679 = vpack.c.bf16 %v6422, %v6390
      %v6680 = vpack.c.bf16 %v6423, %v6391
      %v6681 = vpack.c.bf16 %v6424, %v6392
      %v6682 = vpack.c.bf16 %v6425, %v6393
      %v6683 = vpack.c.bf16 %v6426, %v6394
      %v6684 = vpack.c.bf16 %v6427, %v6395
      %v6685 = vpack.c.bf16 %v6428, %v6396
      %v6686 = vpack.c.bf16 %v6429, %v6397
      %v6687 = vpack.c.bf16 %v6430, %v6398
      %v6688 = vpack.c.bf16 %v6431, %v6399
      %v6689 = vpack.c.bf16 %v6432, %v6400
      %v6690 = vpack.c.bf16 %v6433, %v6401
      %v6691 = vpack.c.bf16 %v6434, %v6402
      %v6692 = vpack.c.bf16 %v6435, %v6403
      %v6693 = vld [vmem:[%s18] sm:$0x3]
      %6695 = vset.pattern.permute.xlu0 0
      %6696 = vperm.xlu0 %6695, %v6693
      %v6697 = vpop.permute.xlu0 %6696
      %6699 = vmatprep.subr.bf16.mxu0 %v6438
      %6700 = vmatpush1.bf16.msra.mxu0 %v6437
      %6701 = vmatprep.subr.bf16.mxu0 %v6470
      %6702 = vmatpush1.bf16.msra.mxu0 %v6469
      %6703 = vmatprep.subr.bf16.mxu0 %v6502
      %6704 = vmatpush1.bf16.msra.mxu0 %v6501
      %6705 = vmatprep.subr.bf16.mxu0 %v6534
      %6706 = vmatpush1.bf16.msra.mxu0 %v6533
      %6707 = vmatprep.subr.bf16.mxu0 %v6566
      %6708 = vmatpush1.bf16.msra.mxu0 %v6565
      %6709 = vmatprep.subr.bf16.mxu0 %v6598
      %6710 = vmatpush1.bf16.msra.mxu0 %v6597
      %6711 = vmatprep.subr.bf16.mxu0 %v6630
      %6712 = vmatpush1.bf16.msra.mxu0 %v6629
      %6713 = vmatprep.subr.bf16.mxu0 %v6662
      %6714 = vmatpush1.bf16.msra.mxu0 %v6661
      %6715 = vmatprep.subr.bf16.mxu0 0
      %6716 = vmatpush1.bf16.msra.mxu0 0
      %6717 = vmatprep.subr.bf16.mxu0 0
      %6718 = vmatpush1.bf16.msra.mxu0 0
      %6719 = vmatprep.subr.bf16.mxu0 0
      %6720 = vmatpush1.bf16.msra.mxu0 0
      %6721 = vmatprep.subr.bf16.mxu0 0
      %6722 = vmatpush1.bf16.msra.mxu0 0
      %6723 = vmatprep.subr.bf16.mxu0 0
      %6724 = vmatpush1.bf16.msra.mxu0 0
      %6725 = vmatprep.subr.bf16.mxu0 0
      %6726 = vmatpush1.bf16.msra.mxu0 0
      %6727 = vmatprep.subr.bf16.mxu0 0
      %6728 = vmatpush1.bf16.msra.mxu0 0
      %6729 = vmatprep.subr.bf16.mxu0 0
      %6730 = vmatpush1.bf16.msra.mxu0 0
      %6731 = vmatprep.mubr.bf16.mxu0 0
      %6732 = vmatmul.mubr.bf16.gmra.mrb[0].mxu0 %v6436
      %v6733 = vpop.f32.mrb[0].mxu0
      %v6734 = vadd.f32 %v6697, %v6733
      %v6735 = vpop.f32.mrb[0].mxu0
      %v6736 = vadd.f32 %v6697, %v6735
      %v6737 = vpop.f32.mrb[0].mxu0
      %v6738 = vpop.f32.mrb[0].mxu0
      %6739 = vdwg.mxu0
      %6740 = vmatprep.subr.bf16.mxu0 %v6440
      %6741 = vmatpush1.bf16.msra.mxu0 %v6439
      %6742 = vmatprep.subr.bf16.mxu0 %v6472
      %6743 = vmatpush1.bf16.msra.mxu0 %v6471
      %6744 = vmatprep.subr.bf16.mxu0 %v6504
      %6745 = vmatpush1.bf16.msra.mxu0 %v6503
      %6746 = vmatprep.subr.bf16.mxu0 %v6536
      %6747 = vmatpush1.bf16.msra.mxu0 %v6535
      %6748 = vmatprep.subr.bf16.mxu0 %v6568
      %6749 = vmatpush1.bf16.msra.mxu0 %v6567
      %6750 = vmatprep.subr.bf16.mxu0 %v6600
      %6751 = vmatpush1.bf16.msra.mxu0 %v6599
      %6752 = vmatprep.subr.bf16.mxu0 %v6632
      %6753 = vmatpush1.bf16.msra.mxu0 %v6631
      %6754 = vmatprep.subr.bf16.mxu0 %v6664
      %6755 = vmatpush1.bf16.msra.mxu0 %v6663
      %6756 = vmatprep.subr.bf16.mxu0 0
      %6757 = vmatpush1.bf16.msra.mxu0 0
      %6758 = vmatprep.subr.bf16.mxu0 0
      %6759 = vmatpush1.bf16.msra.mxu0 0
      %6760 = vmatprep.subr.bf16.mxu0 0
      %6761 = vmatpush1.bf16.msra.mxu0 0
      %6762 = vmatprep.subr.bf16.mxu0 0
      %6763 = vmatpush1.bf16.msra.mxu0 0
      %6764 = vmatprep.subr.bf16.mxu0 0
      %6765 = vmatpush1.bf16.msra.mxu0 0
      %6766 = vmatprep.subr.bf16.mxu0 0
      %6767 = vmatpush1.bf16.msra.mxu0 0
      %6768 = vmatprep.subr.bf16.mxu0 0
      %6769 = vmatpush1.bf16.msra.mxu0 0
      %6770 = vmatprep.subr.bf16.mxu0 0
      %6771 = vmatpush1.bf16.msra.mxu0 0
      %6772 = vmatprep.mubr.bf16.mxu0 0
      %6773 = vmatmul.mubr.bf16.gmra.mrb[0].mxu0 %v6436
      %v6774 = vpop.f32.mrb[0].mxu0
      %v6775 = vadd.f32 %v6697, %v6774
      %v6776 = vpop.f32.mrb[0].mxu0
      %v6777 = vadd.f32 %v6697, %v6776
      %v6778 = vpop.f32.mrb[0].mxu0
      %v6779 = vpop.f32.mrb[0].mxu0
      %6780 = vdwg.mxu0
      %6781 = vmatprep.subr.bf16.mxu0 %v6442
      %6782 = vmatpush1.bf16.msra.mxu0 %v6441
      %6783 = vmatprep.subr.bf16.mxu0 %v6474
      %6784 = vmatpush1.bf16.msra.mxu0 %v6473
      %6785 = vmatprep.subr.bf16.mxu0 %v6506
      %6786 = vmatpush1.bf16.msra.mxu0 %v6505
      %6787 = vmatprep.subr.bf16.mxu0 %v6538
      %6788 = vmatpush1.bf16.msra.mxu0 %v6537
      %6789 = vmatprep.subr.bf16.mxu0 %v6570
      %6790 = vmatpush1.bf16.msra.mxu0 %v6569
      %6791 = vmatprep.subr.bf16.mxu0 %v6602
      %6792 = vmatpush1.bf16.msra.mxu0 %v6601
      %6793 = vmatprep.subr.bf16.mxu0 %v6634
      %6794 = vmatpush1.bf16.msra.mxu0 %v6633
      %6795 = vmatprep.subr.bf16.mxu0 %v6666
      %6796 = vmatpush1.bf16.msra.mxu0 %v6665
      %6797 = vmatprep.subr.bf16.mxu0 0
      %6798 = vmatpush1.bf16.msra.mxu0 0
      %6799 = vmatprep.subr.bf16.mxu0 0
      %6800 = vmatpush1.bf16.msra.mxu0 0
      %6801 = vmatprep.subr.bf16.mxu0 0
      %6802 = vmatpush1.bf16.msra.mxu0 0
      %6803 = vmatprep.subr.bf16.mxu0 0
      %6804 = vmatpush1.bf16.msra.mxu0 0
      %6805 = vmatprep.subr.bf16.mxu0 0
      %6806 = vmatpush1.bf16.msra.mxu0 0
      %6807 = vmatprep.subr.bf16.mxu0 0
      %6808 = vmatpush1.bf16.msra.mxu0 0
      %6809 = vmatprep.subr.bf16.mxu0 0
      %6810 = vmatpush1.bf16.msra.mxu0 0
      %6811 = vmatprep.subr.bf16.mxu0 0
      %6812 = vmatpush1.bf16.msra.mxu0 0
      %6813 = vmatprep.mubr.bf16.mxu0 0
      %6814 = vmatmul.mubr.bf16.gmra.mrb[0].mxu0 %v6436
      %v6815 = vpop.f32.mrb[0].mxu0
      %v6816 = vadd.f32 %v6697, %v6815
      %v6817 = vpop.f32.mrb[0].mxu0
      %v6818 = vadd.f32 %v6697, %v6817
      %v6819 = vpop.f32.mrb[0].mxu0
      %v6820 = vpop.f32.mrb[0].mxu0
      %6821 = vdwg.mxu0
      %6822 = vmatprep.subr.bf16.mxu0 %v6444
      %6823 = vmatpush1.bf16.msra.mxu0 %v6443
      %6824 = vmatprep.subr.bf16.mxu0 %v6476
      %6825 = vmatpush1.bf16.msra.mxu0 %v6475
      %6826 = vmatprep.subr.bf16.mxu0 %v6508
      %6827 = vmatpush1.bf16.msra.mxu0 %v6507
      %6828 = vmatprep.subr.bf16.mxu0 %v6540
      %6829 = vmatpush1.bf16.msra.mxu0 %v6539
      %6830 = vmatprep.subr.bf16.mxu0 %v6572
      %6831 = vmatpush1.bf16.msra.mxu0 %v6571
      %6832 = vmatprep.subr.bf16.mxu0 %v6604
      %6833 = vmatpush1.bf16.msra.mxu0 %v6603
      %6834 = vmatprep.subr.bf16.mxu0 %v6636
      %6835 = vmatpush1.bf16.msra.mxu0 %v6635
      %6836 = vmatprep.subr.bf16.mxu0 %v6668
      %6837 = vmatpush1.bf16.msra.mxu0 %v6667
      %6838 = vmatprep.subr.bf16.mxu0 0
      %6839 = vmatpush1.bf16.msra.mxu0 0
      %6840 = vmatprep.subr.bf16.mxu0 0
      %6841 = vmatpush1.bf16.msra.mxu0 0
      %6842 = vmatprep.subr.bf16.mxu0 0
      %6843 = vmatpush1.bf16.msra.mxu0 0
      %6844 = vmatprep.subr.bf16.mxu0 0
      %6845 = vmatpush1.bf16.msra.mxu0 0
      %6846 = vmatprep.subr.bf16.mxu0 0
      %6847 = vmatpush1.bf16.msra.mxu0 0
      %6848 = vmatprep.subr.bf16.mxu0 0
      %6849 = vmatpush1.bf16.msra.mxu0 0
      %6850 = vmatprep.subr.bf16.mxu0 0
      %6851 = vmatpush1.bf16.msra.mxu0 0
      %6852 = vmatprep.subr.bf16.mxu0 0
      %6853 = vmatpush1.bf16.msra.mxu0 0
      %6854 = vmatprep.mubr.bf16.mxu0 0
      %6855 = vmatmul.mubr.bf16.gmra.mrb[0].mxu0 %v6436
      %v6856 = vpop.f32.mrb[0].mxu0
      %v6857 = vadd.f32 %v6697, %v6856
      %v6858 = vpop.f32.mrb[0].mxu0
      %v6859 = vadd.f32 %v6697, %v6858
      %v6860 = vpop.f32.mrb[0].mxu0
      %v6861 = vpop.f32.mrb[0].mxu0
      %6862 = vdwg.mxu0
      %6863 = vmatprep.subr.bf16.mxu0 %v6446
      %6864 = vmatpush1.bf16.msra.mxu0 %v6445
      %6865 = vmatprep.subr.bf16.mxu0 %v6478
      %6866 = vmatpush1.bf16.msra.mxu0 %v6477
      %6867 = vmatprep.subr.bf16.mxu0 %v6510
      %6868 = vmatpush1.bf16.msra.mxu0 %v6509
      %6869 = vmatprep.subr.bf16.mxu0 %v6542
      %6870 = vmatpush1.bf16.msra.mxu0 %v6541
      %6871 = vmatprep.subr.bf16.mxu0 %v6574
      %6872 = vmatpush1.bf16.msra.mxu0 %v6573
      %6873 = vmatprep.subr.bf16.mxu0 %v6606
      %6874 = vmatpush1.bf16.msra.mxu0 %v6605
      %6875 = vmatprep.subr.bf16.mxu0 %v6638
      %6876 = vmatpush1.bf16.msra.mxu0 %v6637
      %6877 = vmatprep.subr.bf16.mxu0 %v6670
      %6878 = vmatpush1.bf16.msra.mxu0 %v6669
      %6879 = vmatprep.subr.bf16.mxu0 0
      %6880 = vmatpush1.bf16.msra.mxu0 0
      %6881 = vmatprep.subr.bf16.mxu0 0
      %6882 = vmatpush1.bf16.msra.mxu0 0
      %6883 = vmatprep.subr.bf16.mxu0 0
      %6884 = vmatpush1.bf16.msra.mxu0 0
      %6885 = vmatprep.subr.bf16.mxu0 0
      %6886 = vmatpush1.bf16.msra.mxu0 0
      %6887 = vmatprep.subr.bf16.mxu0 0
      %6888 = vmatpush1.bf16.msra.mxu0 0
      %6889 = vmatprep.subr.bf16.mxu0 0
      %6890 = vmatpush1.bf16.msra.mxu0 0
      %6891 = vmatprep.subr.bf16.mxu0 0
      %6892 = vmatpush1.bf16.msra.mxu0 0
      %6893 = vmatprep.subr.bf16.mxu0 0
      %6894 = vmatpush1.bf16.msra.mxu0 0
      %6895 = vmatprep.mubr.bf16.mxu0 0
      %6896 = vmatmul.mubr.bf16.gmra.mrb[0].mxu0 %v6436
      %v6897 = vpop.f32.mrb[0].mxu0
      %v6898 = vadd.f32 %v6697, %v6897
      %v6899 = vpop.f32.mrb[0].mxu0
      %v6900 = vadd.f32 %v6697, %v6899
      %v6901 = vpop.f32.mrb[0].mxu0
      %v6902 = vpop.f32.mrb[0].mxu0
      %6903 = vdwg.mxu0
      %6904 = vmatprep.subr.bf16.mxu0 %v6448
      %6905 = vmatpush1.bf16.msra.mxu0 %v6447
      %6906 = vmatprep.subr.bf16.mxu0 %v6480
      %6907 = vmatpush1.bf16.msra.mxu0 %v6479
      %6908 = vmatprep.subr.bf16.mxu0 %v6512
      %6909 = vmatpush1.bf16.msra.mxu0 %v6511
      %6910 = vmatprep.subr.bf16.mxu0 %v6544
      %6911 = vmatpush1.bf16.msra.mxu0 %v6543
      %6912 = vmatprep.subr.bf16.mxu0 %v6576
      %6913 = vmatpush1.bf16.msra.mxu0 %v6575
      %6914 = vmatprep.subr.bf16.mxu0 %v6608
      %6915 = vmatpush1.bf16.msra.mxu0 %v6607
      %6916 = vmatprep.subr.bf16.mxu0 %v6640
      %6917 = vmatpush1.bf16.msra.mxu0 %v6639
      %6918 = vmatprep.subr.bf16.mxu0 %v6672
      %6919 = vmatpush1.bf16.msra.mxu0 %v6671
      %6920 = vmatprep.subr.bf16.mxu0 0
      %6921 = vmatpush1.bf16.msra.mxu0 0
      %6922 = vmatprep.subr.bf16.mxu0 0
      %6923 = vmatpush1.bf16.msra.mxu0 0
      %6924 = vmatprep.subr.bf16.mxu0 0
      %6925 = vmatpush1.bf16.msra.mxu0 0
      %6926 = vmatprep.subr.bf16.mxu0 0
      %6927 = vmatpush1.bf16.msra.mxu0 0
      %6928 = vmatprep.subr.bf16.mxu0 0
      %6929 = vmatpush1.bf16.msra.mxu0 0
      %6930 = vmatprep.subr.bf16.mxu0 0
      %6931 = vmatpush1.bf16.msra.mxu0 0
      %6932 = vmatprep.subr.bf16.mxu0 0
      %6933 = vmatpush1.bf16.msra.mxu0 0
      %6934 = vmatprep.subr.bf16.mxu0 0
      %6935 = vmatpush1.bf16.msra.mxu0 0
      %6936 = vmatprep.mubr.bf16.mxu0 0
      %6937 = vmatmul.mubr.bf16.gmra.mrb[0].mxu0 %v6436
      %v6938 = vpop.f32.mrb[0].mxu0
      %v6939 = vadd.f32 %v6697, %v6938
      %v6940 = vpop.f32.mrb[0].mxu0
      %v6941 = vadd.f32 %v6697, %v6940
      %v6942 = vpop.f32.mrb[0].mxu0
      %v6943 = vpop.f32.mrb[0].mxu0
      %6944 = vdwg.mxu0
      %6945 = vmatprep.subr.bf16.mxu0 %v6450
      %6946 = vmatpush1.bf16.msra.mxu0 %v6449
      %6947 = vmatprep.subr.bf16.mxu0 %v6482
      %6948 = vmatpush1.bf16.msra.mxu0 %v6481
      %6949 = vmatprep.subr.bf16.mxu0 %v6514
      %6950 = vmatpush1.bf16.msra.mxu0 %v6513
      %6951 = vmatprep.subr.bf16.mxu0 %v6546
      %6952 = vmatpush1.bf16.msra.mxu0 %v6545
      %6953 = vmatprep.subr.bf16.mxu0 %v6578
      %6954 = vmatpush1.bf16.msra.mxu0 %v6577
      %6955 = vmatprep.subr.bf16.mxu0 %v6610
      %6956 = vmatpush1.bf16.msra.mxu0 %v6609
      %6957 = vmatprep.subr.bf16.mxu0 %v6642
      %6958 = vmatpush1.bf16.msra.mxu0 %v6641
      %6959 = vmatprep.subr.bf16.mxu0 %v6674
      %6960 = vmatpush1.bf16.msra.mxu0 %v6673
      %6961 = vmatprep.subr.bf16.mxu0 0
      %6962 = vmatpush1.bf16.msra.mxu0 0
      %6963 = vmatprep.subr.bf16.mxu0 0
      %6964 = vmatpush1.bf16.msra.mxu0 0
      %6965 = vmatprep.subr.bf16.mxu0 0
      %6966 = vmatpush1.bf16.msra.mxu0 0
      %6967 = vmatprep.subr.bf16.mxu0 0
      %6968 = vmatpush1.bf16.msra.mxu0 0
      %6969 = vmatprep.subr.bf16.mxu0 0
      %6970 = vmatpush1.bf16.msra.mxu0 0
      %6971 = vmatprep.subr.bf16.mxu0 0
      %6972 = vmatpush1.bf16.msra.mxu0 0
      %6973 = vmatprep.subr.bf16.mxu0 0
      %6974 = vmatpush1.bf16.msra.mxu0 0
      %6975 = vmatprep.subr.bf16.mxu0 0
      %6976 = vmatpush1.bf16.msra.mxu0 0
      %6977 = vmatprep.mubr.bf16.mxu0 0
      %6978 = vmatmul.mubr.bf16.gmra.mrb[0].mxu0 %v6436
      %v6979 = vpop.f32.mrb[0].mxu0
      %v6980 = vadd.f32 %v6697, %v6979
      %v6981 = vpop.f32.mrb[0].mxu0
      %v6982 = vadd.f32 %v6697, %v6981
      %v6983 = vpop.f32.mrb[0].mxu0
      %v6984 = vpop.f32.mrb[0].mxu0
      %6985 = vdwg.mxu0
      %6986 = vmatprep.subr.bf16.mxu0 %v6452
      %6987 = vmatpush1.bf16.msra.mxu0 %v6451
      %6988 = vmatprep.subr.bf16.mxu0 %v6484
      %6989 = vmatpush1.bf16.msra.mxu0 %v6483
      %6990 = vmatprep.subr.bf16.mxu0 %v6516
      %6991 = vmatpush1.bf16.msra.mxu0 %v6515
      %6992 = vmatprep.subr.bf16.mxu0 %v6548
      %6993 = vmatpush1.bf16.msra.mxu0 %v6547
      %6994 = vmatprep.subr.bf16.mxu0 %v6580
      %6995 = vmatpush1.bf16.msra.mxu0 %v6579
      %6996 = vmatprep.subr.bf16.mxu0 %v6612
      %6997 = vmatpush1.bf16.msra.mxu0 %v6611
      %6998 = vmatprep.subr.bf16.mxu0 %v6644
      %6999 = vmatpush1.bf16.msra.mxu0 %v6643
      %7000 = vmatprep.subr.bf16.mxu0 %v6676
      %7001 = vmatpush1.bf16.msra.mxu0 %v6675
      %7002 = vmatprep.subr.bf16.mxu0 0
      %7003 = vmatpush1.bf16.msra.mxu0 0
      %7004 = vmatprep.subr.bf16.mxu0 0
      %7005 = vmatpush1.bf16.msra.mxu0 0
      %7006 = vmatprep.subr.bf16.mxu0 0
      %7007 = vmatpush1.bf16.msra.mxu0 0
      %7008 = vmatprep.subr.bf16.mxu0 0
      %7009 = vmatpush1.bf16.msra.mxu0 0
      %7010 = vmatprep.subr.bf16.mxu0 0
      %7011 = vmatpush1.bf16.msra.mxu0 0
      %7012 = vmatprep.subr.bf16.mxu0 0
      %7013 = vmatpush1.bf16.msra.mxu0 0
      %7014 = vmatprep.subr.bf16.mxu0 0
      %7015 = vmatpush1.bf16.msra.mxu0 0
      %7016 = vmatprep.subr.bf16.mxu0 0
      %7017 = vmatpush1.bf16.msra.mxu0 0
      %7018 = vmatprep.mubr.bf16.mxu0 0
      %7019 = vmatmul.mubr.bf16.gmra.mrb[0].mxu0 %v6436
      %v7020 = vpop.f32.mrb[0].mxu0
      %v7021 = vadd.f32 %v6697, %v7020
      %v7022 = vpop.f32.mrb[0].mxu0
      %v7023 = vadd.f32 %v6697, %v7022
      %v7024 = vpop.f32.mrb[0].mxu0
      %v7025 = vpop.f32.mrb[0].mxu0
      %7026 = vdwg.mxu0
      %7027 = vmatprep.subr.bf16.mxu0 %v6454
      %7028 = vmatpush1.bf16.msra.mxu0 %v6453
      %7029 = vmatprep.subr.bf16.mxu0 %v6486
      %7030 = vmatpush1.bf16.msra.mxu0 %v6485
      %7031 = vmatprep.subr.bf16.mxu0 %v6518
      %7032 = vmatpush1.bf16.msra.mxu0 %v6517
      %7033 = vmatprep.subr.bf16.mxu0 %v6550
      %7034 = vmatpush1.bf16.msra.mxu0 %v6549
      %7035 = vmatprep.subr.bf16.mxu0 %v6582
      %7036 = vmatpush1.bf16.msra.mxu0 %v6581
      %7037 = vmatprep.subr.bf16.mxu0 %v6614
      %7038 = vmatpush1.bf16.msra.mxu0 %v6613
      %7039 = vmatprep.subr.bf16.mxu0 %v6646
      %7040 = vmatpush1.bf16.msra.mxu0 %v6645
      %7041 = vmatprep.subr.bf16.mxu0 %v6678
      %7042 = vmatpush1.bf16.msra.mxu0 %v6677
      %7043 = vmatprep.subr.bf16.mxu0 0
      %7044 = vmatpush1.bf16.msra.mxu0 0
      %7045 = vmatprep.subr.bf16.mxu0 0
      %7046 = vmatpush1.bf16.msra.mxu0 0
      %7047 = vmatprep.subr.bf16.mxu0 0
      %7048 = vmatpush1.bf16.msra.mxu0 0
      %7049 = vmatprep.subr.bf16.mxu0 0
      %7050 = vmatpush1.bf16.msra.mxu0 0
      %7051 = vmatprep.subr.bf16.mxu0 0
      %7052 = vmatpush1.bf16.msra.mxu0 0
      %7053 = vmatprep.subr.bf16.mxu0 0
      %7054 = vmatpush1.bf16.msra.mxu0 0
      %7055 = vmatprep.subr.bf16.mxu0 0
      %7056 = vmatpush1.bf16.msra.mxu0 0
      %7057 = vmatprep.subr.bf16.mxu0 0
      %7058 = vmatpush1.bf16.msra.mxu0 0
      %7059 = vmatprep.mubr.bf16.mxu0 0
      %7060 = vmatmul.mubr.bf16.gmra.mrb[0].mxu0 %v6436
      %v7061 = vpop.f32.mrb[0].mxu0
      %v7062 = vadd.f32 %v6697, %v7061
      %v7063 = vpop.f32.mrb[0].mxu0
      %v7064 = vadd.f32 %v6697, %v7063
      %v7065 = vpop.f32.mrb[0].mxu0
      %v7066 = vpop.f32.mrb[0].mxu0
      %7067 = vdwg.mxu0
      %7068 = vmatprep.subr.bf16.mxu0 %v6456
      %7069 = vmatpush1.bf16.msra.mxu0 %v6455
      %7070 = vmatprep.subr.bf16.mxu0 %v6488
      %7071 = vmatpush1.bf16.msra.mxu0 %v6487
      %7072 = vmatprep.subr.bf16.mxu0 %v6520
      %7073 = vmatpush1.bf16.msra.mxu0 %v6519
      %7074 = vmatprep.subr.bf16.mxu0 %v6552
      %7075 = vmatpush1.bf16.msra.mxu0 %v6551
      %7076 = vmatprep.subr.bf16.mxu0 %v6584
      %7077 = vmatpush1.bf16.msra.mxu0 %v6583
      %7078 = vmatprep.subr.bf16.mxu0 %v6616
      %7079 = vmatpush1.bf16.msra.mxu0 %v6615
      %7080 = vmatprep.subr.bf16.mxu0 %v6648
      %7081 = vmatpush1.bf16.msra.mxu0 %v6647
      %7082 = vmatprep.subr.bf16.mxu0 %v6680
      %7083 = vmatpush1.bf16.msra.mxu0 %v6679
      %7084 = vmatprep.subr.bf16.mxu0 0
      %7085 = vmatpush1.bf16.msra.mxu0 0
      %7086 = vmatprep.subr.bf16.mxu0 0
      %7087 = vmatpush1.bf16.msra.mxu0 0
      %7088 = vmatprep.subr.bf16.mxu0 0
      %7089 = vmatpush1.bf16.msra.mxu0 0
      %7090 = vmatprep.subr.bf16.mxu0 0
      %7091 = vmatpush1.bf16.msra.mxu0 0
      %7092 = vmatprep.subr.bf16.mxu0 0
      %7093 = vmatpush1.bf16.msra.mxu0 0
      %7094 = vmatprep.subr.bf16.mxu0 0
      %7095 = vmatpush1.bf16.msra.mxu0 0
      %7096 = vmatprep.subr.bf16.mxu0 0
      %7097 = vmatpush1.bf16.msra.mxu0 0
      %7098 = vmatprep.subr.bf16.mxu0 0
      %7099 = vmatpush1.bf16.msra.mxu0 0
      %7100 = vmatprep.mubr.bf16.mxu0 0
      %7101 = vmatmul.mubr.bf16.gmra.mrb[0].mxu0 %v6436
      %v7102 = vpop.f32.mrb[0].mxu0
      %v7103 = vadd.f32 %v6697, %v7102
      %v7104 = vpop.f32.mrb[0].mxu0
      %v7105 = vadd.f32 %v6697, %v7104
      %v7106 = vpop.f32.mrb[0].mxu0
      %v7107 = vpop.f32.mrb[0].mxu0
      %7108 = vdwg.mxu0
      %7109 = vmatprep.subr.bf16.mxu0 %v6458
      %7110 = vmatpush1.bf16.msra.mxu0 %v6457
      %7111 = vmatprep.subr.bf16.mxu0 %v6490
      %7112 = vmatpush1.bf16.msra.mxu0 %v6489
      %7113 = vmatprep.subr.bf16.mxu0 %v6522
      %7114 = vmatpush1.bf16.msra.mxu0 %v6521
      %7115 = vmatprep.subr.bf16.mxu0 %v6554
      %7116 = vmatpush1.bf16.msra.mxu0 %v6553
      %7117 = vmatprep.subr.bf16.mxu0 %v6586
      %7118 = vmatpush1.bf16.msra.mxu0 %v6585
      %7119 = vmatprep.subr.bf16.mxu0 %v6618
      %7120 = vmatpush1.bf16.msra.mxu0 %v6617
      %7121 = vmatprep.subr.bf16.mxu0 %v6650
      %7122 = vmatpush1.bf16.msra.mxu0 %v6649
      %7123 = vmatprep.subr.bf16.mxu0 %v6682
      %7124 = vmatpush1.bf16.msra.mxu0 %v6681
      %7125 = vmatprep.subr.bf16.mxu0 0
      %7126 = vmatpush1.bf16.msra.mxu0 0
      %7127 = vmatprep.subr.bf16.mxu0 0
      %7128 = vmatpush1.bf16.msra.mxu0 0
      %7129 = vmatprep.subr.bf16.mxu0 0
      %7130 = vmatpush1.bf16.msra.mxu0 0
      %7131 = vmatprep.subr.bf16.mxu0 0
      %7132 = vmatpush1.bf16.msra.mxu0 0
      %7133 = vmatprep.subr.bf16.mxu0 0
      %7134 = vmatpush1.bf16.msra.mxu0 0
      %7135 = vmatprep.subr.bf16.mxu0 0
      %7136 = vmatpush1.bf16.msra.mxu0 0
      %7137 = vmatprep.subr.bf16.mxu0 0
      %7138 = vmatpush1.bf16.msra.mxu0 0
      %7139 = vmatprep.subr.bf16.mxu0 0
      %7140 = vmatpush1.bf16.msra.mxu0 0
      %7141 = vmatprep.mubr.bf16.mxu0 0
      %7142 = vmatmul.mubr.bf16.gmra.mrb[0].mxu0 %v6436
      %v7143 = vpop.f32.mrb[0].mxu0
      %v7144 = vadd.f32 %v6697, %v7143
      %v7145 = vpop.f32.mrb[0].mxu0
      %v7146 = vadd.f32 %v6697, %v7145
      %v7147 = vpop.f32.mrb[0].mxu0
      %v7148 = vpop.f32.mrb[0].mxu0
      %7149 = vdwg.mxu0
      %7150 = vmatprep.subr.bf16.mxu0 %v6460
      %7151 = vmatpush1.bf16.msra.mxu0 %v6459
      %7152 = vmatprep.subr.bf16.mxu0 %v6492
      %7153 = vmatpush1.bf16.msra.mxu0 %v6491
      %7154 = vmatprep.subr.bf16.mxu0 %v6524
      %7155 = vmatpush1.bf16.msra.mxu0 %v6523
      %7156 = vmatprep.subr.bf16.mxu0 %v6556
      %7157 = vmatpush1.bf16.msra.mxu0 %v6555
      %7158 = vmatprep.subr.bf16.mxu0 %v6588
      %7159 = vmatpush1.bf16.msra.mxu0 %v6587
      %7160 = vmatprep.subr.bf16.mxu0 %v6620
      %7161 = vmatpush1.bf16.msra.mxu0 %v6619
      %7162 = vmatprep.subr.bf16.mxu0 %v6652
      %7163 = vmatpush1.bf16.msra.mxu0 %v6651
      %7164 = vmatprep.subr.bf16.mxu0 %v6684
      %7165 = vmatpush1.bf16.msra.mxu0 %v6683
      %7166 = vmatprep.subr.bf16.mxu0 0
      %7167 = vmatpush1.bf16.msra.mxu0 0
      %7168 = vmatprep.subr.bf16.mxu0 0
      %7169 = vmatpush1.bf16.msra.mxu0 0
      %7170 = vmatprep.subr.bf16.mxu0 0
      %7171 = vmatpush1.bf16.msra.mxu0 0
      %7172 = vmatprep.subr.bf16.mxu0 0
      %7173 = vmatpush1.bf16.msra.mxu0 0
      %7174 = vmatprep.subr.bf16.mxu0 0
      %7175 = vmatpush1.bf16.msra.mxu0 0
      %7176 = vmatprep.subr.bf16.mxu0 0
      %7177 = vmatpush1.bf16.msra.mxu0 0
      %7178 = vmatprep.subr.bf16.mxu0 0
      %7179 = vmatpush1.bf16.msra.mxu0 0
      %7180 = vmatprep.subr.bf16.mxu0 0
      %7181 = vmatpush1.bf16.msra.mxu0 0
      %7182 = vmatprep.mubr.bf16.mxu0 0
      %7183 = vmatmul.mubr.bf16.gmra.mrb[0].mxu0 %v6436
      %v7184 = vpop.f32.mrb[0].mxu0
      %v7185 = vadd.f32 %v6697, %v7184
      %v7186 = vpop.f32.mrb[0].mxu0
      %v7187 = vadd.f32 %v6697, %v7186
      %v7188 = vpop.f32.mrb[0].mxu0
      %v7189 = vpop.f32.mrb[0].mxu0
      %7190 = vdwg.mxu0
      %7191 = vmatprep.subr.bf16.mxu0 %v6462
      %7192 = vmatpush1.bf16.msra.mxu0 %v6461
      %7193 = vmatprep.subr.bf16.mxu0 %v6494
      %7194 = vmatpush1.bf16.msra.mxu0 %v6493
      %7195 = vmatprep.subr.bf16.mxu0 %v6526
      %7196 = vmatpush1.bf16.msra.mxu0 %v6525
      %7197 = vmatprep.subr.bf16.mxu0 %v6558
      %7198 = vmatpush1.bf16.msra.mxu0 %v6557
      %7199 = vmatprep.subr.bf16.mxu0 %v6590
      %7200 = vmatpush1.bf16.msra.mxu0 %v6589
      %7201 = vmatprep.subr.bf16.mxu0 %v6622
      %7202 = vmatpush1.bf16.msra.mxu0 %v6621
      %7203 = vmatprep.subr.bf16.mxu0 %v6654
      %7204 = vmatpush1.bf16.msra.mxu0 %v6653
      %7205 = vmatprep.subr.bf16.mxu0 %v6686
      %7206 = vmatpush1.bf16.msra.mxu0 %v6685
      %7207 = vmatprep.subr.bf16.mxu0 0
      %7208 = vmatpush1.bf16.msra.mxu0 0
      %7209 = vmatprep.subr.bf16.mxu0 0
      %7210 = vmatpush1.bf16.msra.mxu0 0
      %7211 = vmatprep.subr.bf16.mxu0 0
      %7212 = vmatpush1.bf16.msra.mxu0 0
      %7213 = vmatprep.subr.bf16.mxu0 0
      %7214 = vmatpush1.bf16.msra.mxu0 0
      %7215 = vmatprep.subr.bf16.mxu0 0
      %7216 = vmatpush1.bf16.msra.mxu0 0
      %7217 = vmatprep.subr.bf16.mxu0 0
      %7218 = vmatpush1.bf16.msra.mxu0 0
      %7219 = vmatprep.subr.bf16.mxu0 0
      %7220 = vmatpush1.bf16.msra.mxu0 0
      %7221 = vmatprep.subr.bf16.mxu0 0
      %7222 = vmatpush1.bf16.msra.mxu0 0
      %7223 = vmatprep.mubr.bf16.mxu0 0
      %7224 = vmatmul.mubr.bf16.gmra.mrb[0].mxu0 %v6436
      %v7225 = vpop.f32.mrb[0].mxu0
      %v7226 = vadd.f32 %v6697, %v7225
      %v7227 = vpop.f32.mrb[0].mxu0
      %v7228 = vadd.f32 %v6697, %v7227
      %v7229 = vpop.f32.mrb[0].mxu0
      %v7230 = vpop.f32.mrb[0].mxu0
      %7231 = vdwg.mxu0
      %7232 = vmatprep.subr.bf16.mxu0 %v6464
      %7233 = vmatpush1.bf16.msra.mxu0 %v6463
      %7234 = vmatprep.subr.bf16.mxu0 %v6496
      %7235 = vmatpush1.bf16.msra.mxu0 %v6495
      %7236 = vmatprep.subr.bf16.mxu0 %v6528
      %7237 = vmatpush1.bf16.msra.mxu0 %v6527
      %7238 = vmatprep.subr.bf16.mxu0 %v6560
      %7239 = vmatpush1.bf16.msra.mxu0 %v6559
      %7240 = vmatprep.subr.bf16.mxu0 %v6592
      %7241 = vmatpush1.bf16.msra.mxu0 %v6591
      %7242 = vmatprep.subr.bf16.mxu0 %v6624
      %7243 = vmatpush1.bf16.msra.mxu0 %v6623
      %7244 = vmatprep.subr.bf16.mxu0 %v6656
      %7245 = vmatpush1.bf16.msra.mxu0 %v6655
      %7246 = vmatprep.subr.bf16.mxu0 %v6688
      %7247 = vmatpush1.bf16.msra.mxu0 %v6687
      %7248 = vmatprep.subr.bf16.mxu0 0
      %7249 = vmatpush1.bf16.msra.mxu0 0
      %7250 = vmatprep.subr.bf16.mxu0 0
      %7251 = vmatpush1.bf16.msra.mxu0 0
      %7252 = vmatprep.subr.bf16.mxu0 0
      %7253 = vmatpush1.bf16.msra.mxu0 0
      %7254 = vmatprep.subr.bf16.mxu0 0
      %7255 = vmatpush1.bf16.msra.mxu0 0
      %7256 = vmatprep.subr.bf16.mxu0 0
      %7257 = vmatpush1.bf16.msra.mxu0 0
      %7258 = vmatprep.subr.bf16.mxu0 0
      %7259 = vmatpush1.bf16.msra.mxu0 0
      %7260 = vmatprep.subr.bf16.mxu0 0
      %7261 = vmatpush1.bf16.msra.mxu0 0
      %7262 = vmatprep.subr.bf16.mxu0 0
      %7263 = vmatpush1.bf16.msra.mxu0 0
      %7264 = vmatprep.mubr.bf16.mxu0 0
      %7265 = vmatmul.mubr.bf16.gmra.mrb[0].mxu0 %v6436
      %v7266 = vpop.f32.mrb[0].mxu0
      %v7267 = vadd.f32 %v6697, %v7266
      %v7268 = vpop.f32.mrb[0].mxu0
      %v7269 = vadd.f32 %v6697, %v7268
      %v7270 = vpop.f32.mrb[0].mxu0
      %v7271 = vpop.f32.mrb[0].mxu0
      %7272 = vdwg.mxu0
      %7273 = vmatprep.subr.bf16.mxu0 %v6466
      %7274 = vmatpush1.bf16.msra.mxu0 %v6465
      %7275 = vmatprep.subr.bf16.mxu0 %v6498
      %7276 = vmatpush1.bf16.msra.mxu0 %v6497
      %7277 = vmatprep.subr.bf16.mxu0 %v6530
      %7278 = vmatpush1.bf16.msra.mxu0 %v6529
      %7279 = vmatprep.subr.bf16.mxu0 %v6562
      %7280 = vmatpush1.bf16.msra.mxu0 %v6561
      %7281 = vmatprep.subr.bf16.mxu0 %v6594
      %7282 = vmatpush1.bf16.msra.mxu0 %v6593
      %7283 = vmatprep.subr.bf16.mxu0 %v6626
      %7284 = vmatpush1.bf16.msra.mxu0 %v6625
      %7285 = vmatprep.subr.bf16.mxu0 %v6658
      %7286 = vmatpush1.bf16.msra.mxu0 %v6657
      %7287 = vmatprep.subr.bf16.mxu0 %v6690
      %7288 = vmatpush1.bf16.msra.mxu0 %v6689
      %7289 = vmatprep.subr.bf16.mxu0 0
      %7290 = vmatpush1.bf16.msra.mxu0 0
      %7291 = vmatprep.subr.bf16.mxu0 0
      %7292 = vmatpush1.bf16.msra.mxu0 0
      %7293 = vmatprep.subr.bf16.mxu0 0
      %7294 = vmatpush1.bf16.msra.mxu0 0
      %7295 = vmatprep.subr.bf16.mxu0 0
      %7296 = vmatpush1.bf16.msra.mxu0 0
      %7297 = vmatprep.subr.bf16.mxu0 0
      %7298 = vmatpush1.bf16.msra.mxu0 0
      %7299 = vmatprep.subr.bf16.mxu0 0
      %7300 = vmatpush1.bf16.msra.mxu0 0
      %7301 = vmatprep.subr.bf16.mxu0 0
      %7302 = vmatpush1.bf16.msra.mxu0 0
      %7303 = vmatprep.subr.bf16.mxu0 0
      %7304 = vmatpush1.bf16.msra.mxu0 0
      %7305 = vmatprep.mubr.bf16.mxu0 0
      %7306 = vmatmul.mubr.bf16.gmra.mrb[0].mxu0 %v6436
      %v7307 = vpop.f32.mrb[0].mxu0
      %v7308 = vadd.f32 %v6697, %v7307
      %v7309 = vpop.f32.mrb[0].mxu0
      %v7310 = vadd.f32 %v6697, %v7309
      %v7311 = vpop.f32.mrb[0].mxu0
      %v7312 = vpop.f32.mrb[0].mxu0
      %7313 = vdwg.mxu0
      %7314 = vmatprep.subr.bf16.mxu0 %v6468
      %7315 = vmatpush1.bf16.msra.mxu0 %v6467
      %7316 = vmatprep.subr.bf16.mxu0 %v6500
      %7317 = vmatpush1.bf16.msra.mxu0 %v6499
      %7318 = vmatprep.subr.bf16.mxu0 %v6532
      %7319 = vmatpush1.bf16.msra.mxu0 %v6531
      %7320 = vmatprep.subr.bf16.mxu0 %v6564
      %7321 = vmatpush1.bf16.msra.mxu0 %v6563
      %7322 = vmatprep.subr.bf16.mxu0 %v6596
      %7323 = vmatpush1.bf16.msra.mxu0 %v6595
      %7324 = vmatprep.subr.bf16.mxu0 %v6628
      %7325 = vmatpush1.bf16.msra.mxu0 %v6627
      %7326 = vmatprep.subr.bf16.mxu0 %v6660
      %7327 = vmatpush1.bf16.msra.mxu0 %v6659
      %7328 = vmatprep.subr.bf16.mxu0 %v6692
      %7329 = vmatpush1.bf16.msra.mxu0 %v6691
      %7330 = vmatprep.subr.bf16.mxu0 0
      %7331 = vmatpush1.bf16.msra.mxu0 0
      %7332 = vmatprep.subr.bf16.mxu0 0
      %7333 = vmatpush1.bf16.msra.mxu0 0
      %7334 = vmatprep.subr.bf16.mxu0 0
      %7335 = vmatpush1.bf16.msra.mxu0 0
      %7336 = vmatprep.subr.bf16.mxu0 0
      %7337 = vmatpush1.bf16.msra.mxu0 0
      %7338 = vmatprep.subr.bf16.mxu0 0
      %7339 = vmatpush1.bf16.msra.mxu0 0
      %7340 = vmatprep.subr.bf16.mxu0 0
      %7341 = vmatpush1.bf16.msra.mxu0 0
      %7342 = vmatprep.subr.bf16.mxu0 0
      %7343 = vmatpush1.bf16.msra.mxu0 0
      %7344 = vmatprep.subr.bf16.mxu0 0
      %7345 = vmatpush1.bf16.msra.mxu0 0
      %7346 = vmatprep.mubr.bf16.mxu0 0
      %7347 = vmatmul.mubr.bf16.gmra.mrb[0].mxu0 %v6436
      %v7348 = vpop.f32.mrb[0].mxu0
      %v7349 = vadd.f32 %v6697, %v7348
      %v7350 = vpop.f32.mrb[0].mxu0
      %v7351 = vadd.f32 %v6697, %v7350
      %v7352 = vpop.f32.mrb[0].mxu0
      %v7353 = vpop.f32.mrb[0].mxu0
      %7354 = vdwg.mxu0
      %v7387 = vcombine.low %v6734, %v6736
      %v7388 = vcombine.low %v6775, %v6777
      %v7390 = vunpack.c.l.s4 1983009808
      %v7391 = vunpack.c.0.s8 %v7390
      %v7392 = vlaneseq
      %v7393 = vshrl.u32 %v7392, 7
      %v7394 = vsub.s32 %v7391, %v7393
      %v7395 = vrot.slane %v7387, %v7394
      %v7397 = vunpack.c.l.s4 1983009808
      %v7398 = vunpack.c.0.s8 %v7397
      %v7399 = vlaneseq
      %v7400 = vshrl.u32 %v7399, 7
      %v7401 = vsub.s32 %v7398, %v7400
      %v7402 = vrot.slane %v7388, %v7401
      %v7403 = vcombine.low %v7395, %v7402
      %v7404 = vcombine.low %v6816, %v6818
      %v7405 = vcombine.low %v6857, %v6859
      %v7407 = vunpack.c.l.s4 1983009808
      %v7408 = vunpack.c.0.s8 %v7407
      %v7409 = vlaneseq
      %v7410 = vshrl.u32 %v7409, 7
      %v7411 = vsub.s32 %v7408, %v7410
      %v7412 = vrot.slane %v7404, %v7411
      %v7414 = vunpack.c.l.s4 1983009808
      %v7415 = vunpack.c.0.s8 %v7414
      %v7416 = vlaneseq
      %v7417 = vshrl.u32 %v7416, 7
      %v7418 = vsub.s32 %v7415, %v7417
      %v7419 = vrot.slane %v7405, %v7418
      %v7420 = vcombine.low %v7412, %v7419
      %v7421 = vcombine.low %v6898, %v6900
      %v7422 = vcombine.low %v6939, %v6941
      %v7424 = vunpack.c.l.s4 1983009808
      %v7425 = vunpack.c.0.s8 %v7424
      %v7426 = vlaneseq
      %v7427 = vshrl.u32 %v7426, 7
      %v7428 = vsub.s32 %v7425, %v7427
      %v7429 = vrot.slane %v7421, %v7428
      %v7431 = vunpack.c.l.s4 1983009808
      %v7432 = vunpack.c.0.s8 %v7431
      %v7433 = vlaneseq
      %v7434 = vshrl.u32 %v7433, 7
      %v7435 = vsub.s32 %v7432, %v7434
      %v7436 = vrot.slane %v7422, %v7435
      %v7437 = vcombine.low %v7429, %v7436
      %v7438 = vcombine.low %v6980, %v6982
      %v7439 = vcombine.low %v7021, %v7023
      %v7441 = vunpack.c.l.s4 1983009808
      %v7442 = vunpack.c.0.s8 %v7441
      %v7443 = vlaneseq
      %v7444 = vshrl.u32 %v7443, 7
      %v7445 = vsub.s32 %v7442, %v7444
      %v7446 = vrot.slane %v7438, %v7445
      %v7448 = vunpack.c.l.s4 1983009808
      %v7449 = vunpack.c.0.s8 %v7448
      %v7450 = vlaneseq
      %v7451 = vshrl.u32 %v7450, 7
      %v7452 = vsub.s32 %v7449, %v7451
      %v7453 = vrot.slane %v7439, %v7452
      %v7454 = vcombine.low %v7446, %v7453
      %v7455 = vcombine.low %v7062, %v7064
      %v7456 = vcombine.low %v7103, %v7105
      %v7458 = vunpack.c.l.s4 1983009808
      %v7459 = vunpack.c.0.s8 %v7458
      %v7460 = vlaneseq
      %v7461 = vshrl.u32 %v7460, 7
      %v7462 = vsub.s32 %v7459, %v7461
      %v7463 = vrot.slane %v7455, %v7462
      %v7465 = vunpack.c.l.s4 1983009808
      %v7466 = vunpack.c.0.s8 %v7465
      %v7467 = vlaneseq
      %v7468 = vshrl.u32 %v7467, 7
      %v7469 = vsub.s32 %v7466, %v7468
      %v7470 = vrot.slane %v7456, %v7469
      %v7471 = vcombine.low %v7463, %v7470
      %v7472 = vcombine.low %v7144, %v7146
      %v7473 = vcombine.low %v7185, %v7187
      %v7475 = vunpack.c.l.s4 1983009808
      %v7476 = vunpack.c.0.s8 %v7475
      %v7477 = vlaneseq
      %v7478 = vshrl.u32 %v7477, 7
      %v7479 = vsub.s32 %v7476, %v7478
      %v7480 = vrot.slane %v7472, %v7479
      %v7482 = vunpack.c.l.s4 1983009808
      %v7483 = vunpack.c.0.s8 %v7482
      %v7484 = vlaneseq
      %v7485 = vshrl.u32 %v7484, 7
      %v7486 = vsub.s32 %v7483, %v7485
      %v7487 = vrot.slane %v7473, %v7486
      %v7488 = vcombine.low %v7480, %v7487
      %v7489 = vcombine.low %v7226, %v7228
      %v7490 = vcombine.low %v7267, %v7269
      %v7492 = vunpack.c.l.s4 1983009808
      %v7493 = vunpack.c.0.s8 %v7492
      %v7494 = vlaneseq
      %v7495 = vshrl.u32 %v7494, 7
      %v7496 = vsub.s32 %v7493, %v7495
      %v7497 = vrot.slane %v7489, %v7496
      %v7499 = vunpack.c.l.s4 1983009808
      %v7500 = vunpack.c.0.s8 %v7499
      %v7501 = vlaneseq
      %v7502 = vshrl.u32 %v7501, 7
      %v7503 = vsub.s32 %v7500, %v7502
      %v7504 = vrot.slane %v7490, %v7503
      %v7505 = vcombine.low %v7497, %v7504
      %v7506 = vcombine.low %v7308, %v7310
      %v7507 = vcombine.low %v7349, %v7351
      %v7509 = vunpack.c.l.s4 1983009808
      %v7510 = vunpack.c.0.s8 %v7509
      %v7511 = vlaneseq
      %v7512 = vshrl.u32 %v7511, 7
      %v7513 = vsub.s32 %v7510, %v7512
      %v7514 = vrot.slane %v7506, %v7513
      %v7516 = vunpack.c.l.s4 1983009808
      %v7517 = vunpack.c.0.s8 %v7516
      %v7518 = vlaneseq
      %v7519 = vshrl.u32 %v7518, 7
      %v7520 = vsub.s32 %v7517, %v7519
      %v7521 = vrot.slane %v7507, %v7520
      %v7522 = vcombine.low %v7514, %v7521
      %7531 = vst [vmem:[%s673] sm:$0xff] %v7403
      %7532 = vst [vmem:[%s673 + $0x8] sm:$0xff] %v7420
      %7533 = vst [vmem:[%s673 + $0x10] sm:$0xff] %v7437
      %7534 = vst [vmem:[%s673 + $0x18] sm:$0xff] %v7454
      %7535 = vst [vmem:[%s673 + $0x20] sm:$0xff] %v7471
      %7536 = vst [vmem:[%s673 + $0x28] sm:$0xff] %v7488
      %7537 = vst [vmem:[%s673 + $0x30] sm:$0xff] %v7505
      %7538 = vst [vmem:[%s673 + $0x38] sm:$0xff] %v7522
      %s7539 = smul.u32 32, %s36
      %p7540 = scmp.lt.s32.totalorder %s35, 1
      %s7541 = scalar_select %p7540, %s35, 1
      %p7542 = scmp.lt.s32.totalorder %s7539, 31
      %s7543 = scalar_select %p7542, %s7539, 31
      %s7544 = smul.addr %s7541, 32
      %s7545 = sadd.s32 %s7543, %s7544
      %s7546 = smul.addr %s7545, 2
      %s7547 = scalar_lea.vmem %s20, %s7546
      // Predicated region
      $region101: #{forward.3} parent=99 // pred_check
        %p7548 = pneg %p493
      $region102: #{forward.3} parent=99 // pred_check_branch
        %7550 = sbr.rel (%p7548) target = $region104
      $region103: #{forward.3} parent=99 // pred_region
        %s7551 = smul.u32 32, %s36
      $region104: #{forward.3} parent=99 // pred_fallthru
        _
    $region100: #{forward.3} parent=5 // pred_fallthru
      _
    %p7552 = scmp.le.s32.totalorder 2, %s26
    // Predicated region
    $region105: #{forward.3} parent=5 // pred_check
      %p7553 = pneg %p7552
    $region106: #{forward.3} parent=5 // pred_check_branch
      %7555 = sbr.rel (%p7553) target = $region108
    $region107: #{forward.3} parent=5 // pred_region
      %s7556 = ssub.s32 %s26, 2
      // Predicated region
      $region109: #{forward.3} parent=107 // pred_check
        %p7557 = pneg %p499
      $region110: #{forward.3} parent=107 // pred_check_branch
        %7559 = sbr.rel (%p7557) target = $region112
      $region111: #{forward.3} parent=107 // pred_region
        %s7560 = smul.u32 32, %s38
        %p7561 = scmp.lt.s32.totalorder %s37, 1
        %s7562 = scalar_select %p7561, %s37, 1
        %p7563 = scmp.lt.s32.totalorder %s7560, 31
        %s7564 = scalar_select %p7563, %s7560, 31
        %s7565 = smul.addr %s7562, 32
        %s7566 = sadd.s32 %s7564, %s7565
        %s7567 = smul.addr %s7566, 2
        %s7568 = scalar_lea.vmem %s20, %s7567
      $region112: #{forward.3} parent=107 // pred_fallthru
        _
    $region108: #{forward.3} parent=5 // pred_fallthru
      _
  $region6: #{forward.3} parent=0 // loop_footer
    %s30 = sadd.s32 1, %s26
  $region7: #{forward.3} parent=0 // loop_footer_branch
    %25 = sbr.rel target = $region3
  $region8: #{forward.3} parent=0 // loop_exit
    _

</llo_original>
